<compile_context>
chip_gen: v6e
topology: v6e:2x2x1
jax: 0.10.0
libtpu: 0.0.40
codegen_flags: <defaults>
</compile_context>

<pallas_src>
import jax
import jax.numpy as jnp
from jax.experimental import pallas as pl
from jax.experimental.pallas import tpu as pltpu

BN_EPS = 1e-5


# ---------------------------------------------------------------------------
# Kernels
# ---------------------------------------------------------------------------
def conv_bn_relu_pool_kernel(xs_ref, w_ref, b_ref, g_ref, beta_ref, o_ref):
    """Fused Conv2d(5x5, pad 2) + BatchNorm2d(train) + ReLU + MaxPool2d(2).

    xs_ref   : (2, 2, R, K) bf16  im2col rows grouped by the 2x2 pool-window
                                  offset (ph, pw); R = N*H2*W2, K = 25*Cin,
                                  rows ordered (n, h2, w2), features (kh,kw,ci).
    w_ref    : (K, Cout)   bf16   conv weights, rows ordered (kh, kw, ci).
    b_ref    : (1, Cout)   f32    conv bias
    g_ref    : (1, Cout)   f32    BN gamma
    beta_ref : (1, Cout)   f32    BN beta
    o_ref    : (R, Cout)   f32    pooled output, rows ordered (n, h2, w2).
    """
    w = w_ref[...]
    b = b_ref[...]
    # One full-contraction MXU matmul per pool-window offset (f32 accumulate).
    y00 = jnp.dot(xs_ref[0, 0], w, preferred_element_type=jnp.float32) + b
    y01 = jnp.dot(xs_ref[0, 1], w, preferred_element_type=jnp.float32) + b
    y10 = jnp.dot(xs_ref[1, 0], w, preferred_element_type=jnp.float32) + b
    y11 = jnp.dot(xs_ref[1, 1], w, preferred_element_type=jnp.float32) + b

    # BatchNorm (training mode): biased batch statistics over the FULL conv
    # output, i.e. all N*H*W rows = 4 window offsets x R rows.
    inv_n = 1.0 / (4.0 * y00.shape[0])
    mean = (y00.sum(axis=0, keepdims=True) + y01.sum(axis=0, keepdims=True)
            + y10.sum(axis=0, keepdims=True)
            + y11.sum(axis=0, keepdims=True)) * inv_n
    d00 = y00 - mean
    d01 = y01 - mean
    d10 = y10 - mean
    d11 = y11 - mean
    var = ((d00 * d00).sum(axis=0, keepdims=True)
           + (d01 * d01).sum(axis=0, keepdims=True)
           + (d10 * d10).sum(axis=0, keepdims=True)
           + (d11 * d11).sum(axis=0, keepdims=True)) * inv_n
    scale = g_ref[...] * jax.lax.rsqrt(var + BN_EPS)
    shift = beta_ref[...] - mean * scale

    # Affine BN + ReLU + 2x2 max-pool, all on the VMEM-resident block.
    z00 = jnp.maximum(y00 * scale + shift, 0.0)
    z01 = jnp.maximum(y01 * scale + shift, 0.0)
    z10 = jnp.maximum(y10 * scale + shift, 0.0)
    z11 = jnp.maximum(y11 * scale + shift, 0.0)
    o_ref[...] = jnp.maximum(jnp.maximum(z00, z01), jnp.maximum(z10, z11))


def fc_kernel(x_ref, w_ref, b_ref, o_ref):
    """x_ref: (N, K) bf16, w_ref: (K, 10) bf16, b_ref: (1, 10) f32."""
    o_ref[...] = (
        jnp.dot(x_ref[...], w_ref[...], preferred_element_type=jnp.float32)
        + b_ref[...]
    )


# ---------------------------------------------------------------------------
# Wrappers (layout glue)
# ---------------------------------------------------------------------------
def _vmem_spec():
    # Whole-array block resident in VMEM (no grid: single-step kernels).
    return pl.BlockSpec(memory_space=pltpu.MemorySpace.VMEM)


def _pool_grouped_patches(x_nhwc, k=5):
    """im2col + 2x2-pool-window grouping -> (2, 2, N*H2*W2, k*k*Cin).

    Leading (2, 2) dims are the (ph, pw) offsets inside each 2x2 pooling
    window; rows are ordered (n, h2, w2); features are ordered (kh, kw, ci)
    to match the (k*k*Cin, Cout) weight layout.
    """
    n, h, w, c = x_nhwc.shape
    pad = k // 2
    xp = jnp.pad(x_nhwc, ((0, 0), (pad, pad), (pad, pad), (0, 0)))
    cols = [xp[:, kh:kh + h, kw:kw + w, :] for kh in range(k) for kw in range(k)]
    patches = jnp.concatenate(cols, axis=-1)            # (N, H, W, k*k*C)
    h2, w2 = h // 2, w // 2
    kk = k * k * c
    patches = patches.reshape(n, h2, 2, w2, 2, kk)
    patches = patches.transpose(2, 4, 0, 1, 3, 5)       # (2, 2, N, H2, W2, kk)
    return patches.reshape(2, 2, n * h2 * w2, kk)


def conv_bn_relu_pool(x_nhwc, w_kc, b, g, beta):
    """x_nhwc (N,H,W,Cin) f32 -> pooled (N,H/2,W/2,Cout) f32."""
    n, h, w, _ = x_nhwc.shape
    h2, w2 = h // 2, w // 2
    cout = w_kc.shape[1]
    # TODO(synk): for large H*W / batch, build the shifted windows in-kernel
    # (pl.ds on a padded VMEM-resident input) and tile R with a 'parallel'
    # grid axis (needs a cross-tile BN-stat combine) for v7x / VMEM limits.
    xs = _pool_grouped_patches(x_nhwc.astype(jnp.bfloat16), k=5)
    out = pl.pallas_call(
        conv_bn_relu_pool_kernel,
        out_shape=jax.ShapeDtypeStruct((n * h2 * w2, cout), jnp.float32),
        in_specs=[_vmem_spec()] * 5,
        out_specs=_vmem_spec(),
    )(xs, w_kc, b, g, beta)
    return out.reshape(n, h2, w2, cout)


def fc(flat, w_kc, b):
    n = flat.shape[0]
    cout = w_kc.shape[1]
    return pl.pallas_call(
        fc_kernel,
        out_shape=jax.ShapeDtypeStruct((n, cout), jnp.float32),
        in_specs=[_vmem_spec()] * 3,
        out_specs=_vmem_spec(),
    )(flat, w_kc, b)


def net_forward(x_nchw, kp):
    """Forward pass of `Net` (train-mode BatchNorm batch statistics)."""
    n = x_nchw.shape[0]
    x = jnp.transpose(x_nchw, (0, 2, 3, 1)).astype(jnp.float32)   # NCHW -> NHWC
    p1 = conv_bn_relu_pool(x, kp["w1"], kp["b1"], kp["g1"], kp["bt1"])   # (N,14,14,16)
    p2 = conv_bn_relu_pool(p1, kp["w2"], kp["b2"], kp["g2"], kp["bt2"])  # (N,7,7,32)
    # p2 is NHWC and kp["wf"] columns were pre-permuted to HWC flatten order,
    # so this reshape is free (no runtime NCHW transpose before the FC).
    flat = p2.reshape(n, -1).astype(jnp.bfloat16)                        # (N, 1568)
    return fc(flat, kp["wf"], kp["bf"])                                  # (N, 10)


# ---------------------------------------------------------------------------
# Parameter init (torch layout) + one-time kernel-layout conversion
# ---------------------------------------------------------------------------
def _conv_weight(w_oihw):
    """torch (Cout,Cin,KH,KW) -> (KH*KW*Cin, Cout), rows ordered (kh, kw, ci)."""
    cout, cin, kh, kw = w_oihw.shape
    return jnp.transpose(w_oihw, (2, 3, 1, 0)).reshape(kh * kw * cin, cout)


def _fc_weight_hwc(wf, c, h, w):
    """torch (10, C*H*W) in CHW-flatten order -> (H*W*C, 10) in HWC order."""
    cout = wf.shape[0]
    return (wf.reshape(cout, c, h, w).transpose(0, 2, 3, 1)
            .reshape(cout, h * w * c).T)


def prepare_params(p):
    """One-time torch-layout -> kernel-layout conversion (incl. bf16 casts)."""
    row = lambda v: v.reshape(1, -1).astype(jnp.float32)
    return {
        "w1": _conv_weight(p["w1"]).astype(jnp.bfloat16),
        "b1": row(p["b1"]), "g1": row(p["g1"]), "bt1": row(p["bt1"]),
        "w2": _conv_weight(p["w2"]).astype(jnp.bfloat16),
        "b2": row(p["b2"]), "g2": row(p["g2"]), "bt2": row(p["bt2"]),
        "wf": _fc_weight_hwc(p["wf"], c=32, h=7, w=7).astype(jnp.bfloat16),
        "bf": row(p["bf"]),
    }


def init_params(key):
    ks = jax.random.split(key, 6)
    return {
        "w1": 0.1 * jax.random.normal(ks[0], (16, 1, 5, 5), jnp.float32),
        "b1": 0.1 * jax.random.normal(ks[1], (16,), jnp.float32),
        "g1": jnp.ones((16,), jnp.float32),
        "bt1": jnp.zeros((16,), jnp.float32),
        "w2": 0.05 * jax.random.normal(ks[2], (32, 16, 5, 5), jnp.float32),
        "b2": 0.1 * jax.random.normal(ks[3], (32,), jnp.float32),
        "g2": jnp.ones((32,), jnp.float32),
        "bt2": jnp.zeros((32,), jnp.float32),
        "wf": 0.02 * jax.random.normal(ks[4], (10, 7 * 7 * 32), jnp.float32),
        "bf": 0.1 * jax.random.normal(ks[5], (10,), jnp.float32),
    }


if __name__ == "__main__":
    key = jax.random.PRNGKey(0)
    pkey, xkey = jax.random.split(key)
    params = init_params(pkey)
    kparams = prepare_params(params)          # one-time layout conversion
    # MNIST-shaped input implied by fc(7*7*32 -> 10): (batch=2, 1, 28, 28).
    x = jax.random.normal(xkey, (2, 1, 28, 28), jnp.float32)

    fwd = jax.jit(net_forward)
    out = jax.block_until_ready(fwd(x, kparams))

    assert out.shape == (2, 10), out.shape
    assert bool(jnp.all(jnp.isfinite(out)))
    print("KERNEL_OK")
</pallas_src>

<mosaic_0001>
module attributes {stable_mosaic.version = 11 : i64} {
  func.func @conv_bn_relu_pool_kernel(%arg0: memref<2x2x392x25xbf16, #tpu.memory_space<vmem>>, %arg1: memref<25x16xbf16, #tpu.memory_space<vmem>>, %arg2: memref<1x16xf32, #tpu.memory_space<vmem>>, %arg3: memref<1x16xf32, #tpu.memory_space<vmem>>, %arg4: memref<1x16xf32, #tpu.memory_space<vmem>>, %arg5: memref<392x16xf32, #tpu.memory_space<vmem>>) attributes {dimension_semantics = [], scalar_prefetch = 0 : i64, scratch_operands = 0 : i64, tpu.core_type = #tpu.core_type<tc>} {
    %c0 = arith.constant 0 : index
    %c0_0 = arith.constant 0 : index
    %0 = vector.load %arg1[%c0, %c0_0] : memref<25x16xbf16, #tpu.memory_space<vmem>>, vector<25x16xbf16>
    %c0_1 = arith.constant 0 : index
    %c0_2 = arith.constant 0 : index
    %1 = vector.load %arg2[%c0_1, %c0_2] : memref<1x16xf32, #tpu.memory_space<vmem>>, vector<1x16xf32>
    %c0_3 = arith.constant 0 : index
    %c0_4 = arith.constant 0 : index
    %c0_5 = arith.constant 0 : index
    %c0_6 = arith.constant 0 : index
    %2 = vector.load %arg0[%c0_3, %c0_4, %c0_5, %c0_6] : memref<2x2x392x25xbf16, #tpu.memory_space<vmem>>, vector<1x1x392x25xbf16>
    %3 = vector.shape_cast %2 : vector<1x1x392x25xbf16> to vector<392x25xbf16>
    %cst = arith.constant dense<0.000000e+00> : vector<392x16xf32>
    %4 = tpu.matmul %3, %0, %cst {dimension_numbers = #tpu.dot_dimension_numbers<[1], [0], [0], [1], [0, 0, 1, 1], [], []>} : vector<392x25xbf16>, vector<25x16xbf16>, vector<392x16xf32> -> vector<392x16xf32>
    %5 = vector.broadcast %1 : vector<1x16xf32> to vector<392x16xf32>
    %6 = arith.addf %4, %5 : vector<392x16xf32>
    %c0_7 = arith.constant 0 : index
    %c1 = arith.constant 1 : index
    %c0_8 = arith.constant 0 : index
    %c0_9 = arith.constant 0 : index
    %7 = vector.load %arg0[%c0_7, %c1, %c0_8, %c0_9] : memref<2x2x392x25xbf16, #tpu.memory_space<vmem>>, vector<1x1x392x25xbf16>
    %8 = vector.shape_cast %7 : vector<1x1x392x25xbf16> to vector<392x25xbf16>
    %cst_10 = arith.constant dense<0.000000e+00> : vector<392x16xf32>
    %9 = tpu.matmul %8, %0, %cst_10 {dimension_numbers = #tpu.dot_dimension_numbers<[1], [0], [0], [1], [0, 0, 1, 1], [], []>} : vector<392x25xbf16>, vector<25x16xbf16>, vector<392x16xf32> -> vector<392x16xf32>
    %10 = vector.broadcast %1 : vector<1x16xf32> to vector<392x16xf32>
    %11 = arith.addf %9, %10 : vector<392x16xf32>
    %c1_11 = arith.constant 1 : index
    %c0_12 = arith.constant 0 : index
    %c0_13 = arith.constant 0 : index
    %c0_14 = arith.constant 0 : index
    %12 = vector.load %arg0[%c1_11, %c0_12, %c0_13, %c0_14] : memref<2x2x392x25xbf16, #tpu.memory_space<vmem>>, vector<1x1x392x25xbf16>
    %13 = vector.shape_cast %12 : vector<1x1x392x25xbf16> to vector<392x25xbf16>
    %cst_15 = arith.constant dense<0.000000e+00> : vector<392x16xf32>
    %14 = tpu.matmul %13, %0, %cst_15 {dimension_numbers = #tpu.dot_dimension_numbers<[1], [0], [0], [1], [0, 0, 1, 1], [], []>} : vector<392x25xbf16>, vector<25x16xbf16>, vector<392x16xf32> -> vector<392x16xf32>
    %15 = vector.broadcast %1 : vector<1x16xf32> to vector<392x16xf32>
    %16 = arith.addf %14, %15 : vector<392x16xf32>
    %c1_16 = arith.constant 1 : index
    %c1_17 = arith.constant 1 : index
    %c0_18 = arith.constant 0 : index
    %c0_19 = arith.constant 0 : index
    %17 = vector.load %arg0[%c1_16, %c1_17, %c0_18, %c0_19] : memref<2x2x392x25xbf16, #tpu.memory_space<vmem>>, vector<1x1x392x25xbf16>
    %18 = vector.shape_cast %17 : vector<1x1x392x25xbf16> to vector<392x25xbf16>
    %cst_20 = arith.constant dense<0.000000e+00> : vector<392x16xf32>
    %19 = tpu.matmul %18, %0, %cst_20 {dimension_numbers = #tpu.dot_dimension_numbers<[1], [0], [0], [1], [0, 0, 1, 1], [], []>} : vector<392x25xbf16>, vector<25x16xbf16>, vector<392x16xf32> -> vector<392x16xf32>
    %20 = vector.broadcast %1 : vector<1x16xf32> to vector<392x16xf32>
    %21 = arith.addf %19, %20 : vector<392x16xf32>
    %cst_21 = arith.constant dense<0.000000e+00> : vector<16xf32>
    %22 = vector.multi_reduction <add>, %6, %cst_21 [0] : vector<392x16xf32> to vector<16xf32>
    %23 = vector.shape_cast %22 : vector<16xf32> to vector<1x16xf32>
    %cst_22 = arith.constant dense<0.000000e+00> : vector<16xf32>
    %24 = vector.multi_reduction <add>, %11, %cst_22 [0] : vector<392x16xf32> to vector<16xf32>
    %25 = vector.shape_cast %24 : vector<16xf32> to vector<1x16xf32>
    %26 = arith.addf %23, %25 : vector<1x16xf32>
    %cst_23 = arith.constant dense<0.000000e+00> : vector<16xf32>
    %27 = vector.multi_reduction <add>, %16, %cst_23 [0] : vector<392x16xf32> to vector<16xf32>
    %28 = vector.shape_cast %27 : vector<16xf32> to vector<1x16xf32>
    %29 = arith.addf %26, %28 : vector<1x16xf32>
    %cst_24 = arith.constant dense<0.000000e+00> : vector<16xf32>
    %30 = vector.multi_reduction <add>, %21, %cst_24 [0] : vector<392x16xf32> to vector<16xf32>
    %31 = vector.shape_cast %30 : vector<16xf32> to vector<1x16xf32>
    %32 = arith.addf %29, %31 : vector<1x16xf32>
    %cst_25 = arith.constant 6.37755089E-4 : f32
    %33 = vector.broadcast %cst_25 : f32 to vector<1x16xf32>
    %34 = arith.mulf %32, %33 : vector<1x16xf32>
    %35 = vector.broadcast %34 : vector<1x16xf32> to vector<392x16xf32>
    %36 = arith.subf %6, %35 : vector<392x16xf32>
    %37 = vector.broadcast %34 : vector<1x16xf32> to vector<392x16xf32>
    %38 = arith.subf %11, %37 : vector<392x16xf32>
    %39 = vector.broadcast %34 : vector<1x16xf32> to vector<392x16xf32>
    %40 = arith.subf %16, %39 : vector<392x16xf32>
    %41 = vector.broadcast %34 : vector<1x16xf32> to vector<392x16xf32>
    %42 = arith.subf %21, %41 : vector<392x16xf32>
    %43 = arith.mulf %36, %36 : vector<392x16xf32>
    %cst_26 = arith.constant dense<0.000000e+00> : vector<16xf32>
    %44 = vector.multi_reduction <add>, %43, %cst_26 [0] : vector<392x16xf32> to vector<16xf32>
    %45 = vector.shape_cast %44 : vector<16xf32> to vector<1x16xf32>
    %46 = arith.mulf %38, %38 : vector<392x16xf32>
    %cst_27 = arith.constant dense<0.000000e+00> : vector<16xf32>
    %47 = vector.multi_reduction <add>, %46, %cst_27 [0] : vector<392x16xf32> to vector<16xf32>
    %48 = vector.shape_cast %47 : vector<16xf32> to vector<1x16xf32>
    %49 = arith.addf %45, %48 : vector<1x16xf32>
    %50 = arith.mulf %40, %40 : vector<392x16xf32>
    %cst_28 = arith.constant dense<0.000000e+00> : vector<16xf32>
    %51 = vector.multi_reduction <add>, %50, %cst_28 [0] : vector<392x16xf32> to vector<16xf32>
    %52 = vector.shape_cast %51 : vector<16xf32> to vector<1x16xf32>
    %53 = arith.addf %49, %52 : vector<1x16xf32>
    %54 = arith.mulf %42, %42 : vector<392x16xf32>
    %cst_29 = arith.constant dense<0.000000e+00> : vector<16xf32>
    %55 = vector.multi_reduction <add>, %54, %cst_29 [0] : vector<392x16xf32> to vector<16xf32>
    %56 = vector.shape_cast %55 : vector<16xf32> to vector<1x16xf32>
    %57 = arith.addf %53, %56 : vector<1x16xf32>
    %cst_30 = arith.constant 6.37755089E-4 : f32
    %58 = vector.broadcast %cst_30 : f32 to vector<1x16xf32>
    %59 = arith.mulf %57, %58 : vector<1x16xf32>
    %c0_31 = arith.constant 0 : index
    %c0_32 = arith.constant 0 : index
    %60 = vector.load %arg3[%c0_31, %c0_32] : memref<1x16xf32, #tpu.memory_space<vmem>>, vector<1x16xf32>
    %cst_33 = arith.constant 9.99999974E-6 : f32
    %61 = vector.broadcast %cst_33 : f32 to vector<1x16xf32>
    %62 = arith.addf %59, %61 : vector<1x16xf32>
    %63 = math.rsqrt %62 : vector<1x16xf32>
    %64 = arith.mulf %60, %63 : vector<1x16xf32>
    %c0_34 = arith.constant 0 : index
    %c0_35 = arith.constant 0 : index
    %65 = vector.load %arg4[%c0_34, %c0_35] : memref<1x16xf32, #tpu.memory_space<vmem>>, vector<1x16xf32>
    %66 = arith.mulf %34, %64 : vector<1x16xf32>
    %67 = arith.subf %65, %66 : vector<1x16xf32>
    %68 = vector.broadcast %64 : vector<1x16xf32> to vector<392x16xf32>
    %69 = arith.mulf %6, %68 : vector<392x16xf32>
    %70 = vector.broadcast %67 : vector<1x16xf32> to vector<392x16xf32>
    %71 = arith.addf %69, %70 : vector<392x16xf32>
    %cst_36 = arith.constant 0.000000e+00 : f32
    %72 = vector.broadcast %cst_36 : f32 to vector<392x16xf32>
    %73 = arith.maximumf %71, %72 : vector<392x16xf32>
    %74 = vector.broadcast %64 : vector<1x16xf32> to vector<392x16xf32>
    %75 = arith.mulf %11, %74 : vector<392x16xf32>
    %76 = vector.broadcast %67 : vector<1x16xf32> to vector<392x16xf32>
    %77 = arith.addf %75, %76 : vector<392x16xf32>
    %cst_37 = arith.constant 0.000000e+00 : f32
    %78 = vector.broadcast %cst_37 : f32 to vector<392x16xf32>
    %79 = arith.maximumf %77, %78 : vector<392x16xf32>
    %80 = vector.broadcast %64 : vector<1x16xf32> to vector<392x16xf32>
    %81 = arith.mulf %16, %80 : vector<392x16xf32>
    %82 = vector.broadcast %67 : vector<1x16xf32> to vector<392x16xf32>
    %83 = arith.addf %81, %82 : vector<392x16xf32>
    %cst_38 = arith.constant 0.000000e+00 : f32
    %84 = vector.broadcast %cst_38 : f32 to vector<392x16xf32>
    %85 = arith.maximumf %83, %84 : vector<392x16xf32>
    %86 = vector.broadcast %64 : vector<1x16xf32> to vector<392x16xf32>
    %87 = arith.mulf %21, %86 : vector<392x16xf32>
    %88 = vector.broadcast %67 : vector<1x16xf32> to vector<392x16xf32>
    %89 = arith.addf %87, %88 : vector<392x16xf32>
    %cst_39 = arith.constant 0.000000e+00 : f32
    %90 = vector.broadcast %cst_39 : f32 to vector<392x16xf32>
    %91 = arith.maximumf %89, %90 : vector<392x16xf32>
    %92 = arith.maximumf %73, %79 : vector<392x16xf32>
    %93 = arith.maximumf %85, %91 : vector<392x16xf32>
    %94 = arith.maximumf %92, %93 : vector<392x16xf32>
    %c0_40 = arith.constant 0 : index
    %c0_41 = arith.constant 0 : index
    %95 = vector.load %arg5[%c0_40, %c0_41] : memref<392x16xf32, #tpu.memory_space<vmem>>, vector<392x16xf32>
    tpu.vector_store %arg5[%c0_40, %c0_41], %94 {strides = array<i32>} : memref<392x16xf32, #tpu.memory_space<vmem>>, vector<392x16xf32>,
    return
  }
}

module attributes {stable_mosaic.version = 11 : i64} {
  func.func @conv_bn_relu_pool_kernel(%arg0: memref<2x2x98x400xbf16, #tpu.memory_space<vmem>>, %arg1: memref<400x32xbf16, #tpu.memory_space<vmem>>, %arg2: memref<1x32xf32, #tpu.memory_space<vmem>>, %arg3: memref<1x32xf32, #tpu.memory_space<vmem>>, %arg4: memref<1x32xf32, #tpu.memory_space<vmem>>, %arg5: memref<98x32xf32, #tpu.memory_space<vmem>>) attributes {dimension_semantics = [], scalar_prefetch = 0 : i64, scratch_operands = 0 : i64, tpu.core_type = #tpu.core_type<tc>} {
    %c0 = arith.constant 0 : index
    %c0_0 = arith.constant 0 : index
    %0 = vector.load %arg1[%c0, %c0_0] : memref<400x32xbf16, #tpu.memory_space<vmem>>, vector<400x32xbf16>
    %c0_1 = arith.constant 0 : index
    %c0_2 = arith.constant 0 : index
    %1 = vector.load %arg2[%c0_1, %c0_2] : memref<1x32xf32, #tpu.memory_space<vmem>>, vector<1x32xf32>
    %c0_3 = arith.constant 0 : index
    %c0_4 = arith.constant 0 : index
    %c0_5 = arith.constant 0 : index
    %c0_6 = arith.constant 0 : index
    %2 = vector.load %arg0[%c0_3, %c0_4, %c0_5, %c0_6] : memref<2x2x98x400xbf16, #tpu.memory_space<vmem>>, vector<1x1x98x400xbf16>
    %3 = vector.shape_cast %2 : vector<1x1x98x400xbf16> to vector<98x400xbf16>
    %cst = arith.constant dense<0.000000e+00> : vector<98x32xf32>
    %4 = tpu.matmul %3, %0, %cst {dimension_numbers = #tpu.dot_dimension_numbers<[1], [0], [0], [1], [0, 0, 1, 1], [], []>} : vector<98x400xbf16>, vector<400x32xbf16>, vector<98x32xf32> -> vector<98x32xf32>
    %5 = vector.broadcast %1 : vector<1x32xf32> to vector<98x32xf32>
    %6 = arith.addf %4, %5 : vector<98x32xf32>
    %c0_7 = arith.constant 0 : index
    %c1 = arith.constant 1 : index
    %c0_8 = arith.constant 0 : index
    %c0_9 = arith.constant 0 : index
    %7 = vector.load %arg0[%c0_7, %c1, %c0_8, %c0_9] : memref<2x2x98x400xbf16, #tpu.memory_space<vmem>>, vector<1x1x98x400xbf16>
    %8 = vector.shape_cast %7 : vector<1x1x98x400xbf16> to vector<98x400xbf16>
    %cst_10 = arith.constant dense<0.000000e+00> : vector<98x32xf32>
    %9 = tpu.matmul %8, %0, %cst_10 {dimension_numbers = #tpu.dot_dimension_numbers<[1], [0], [0], [1], [0, 0, 1, 1], [], []>} : vector<98x400xbf16>, vector<400x32xbf16>, vector<98x32xf32> -> vector<98x32xf32>
    %10 = vector.broadcast %1 : vector<1x32xf32> to vector<98x32xf32>
    %11 = arith.addf %9, %10 : vector<98x32xf32>
    %c1_11 = arith.constant 1 : index
    %c0_12 = arith.constant 0 : index
    %c0_13 = arith.constant 0 : index
    %c0_14 = arith.constant 0 : index
    %12 = vector.load %arg0[%c1_11, %c0_12, %c0_13, %c0_14] : memref<2x2x98x400xbf16, #tpu.memory_space<vmem>>, vector<1x1x98x400xbf16>
    %13 = vector.shape_cast %12 : vector<1x1x98x400xbf16> to vector<98x400xbf16>
    %cst_15 = arith.constant dense<0.000000e+00> : vector<98x32xf32>
    %14 = tpu.matmul %13, %0, %cst_15 {dimension_numbers = #tpu.dot_dimension_numbers<[1], [0], [0], [1], [0, 0, 1, 1], [], []>} : vector<98x400xbf16>, vector<400x32xbf16>, vector<98x32xf32> -> vector<98x32xf32>
    %15 = vector.broadcast %1 : vector<1x32xf32> to vector<98x32xf32>
    %16 = arith.addf %14, %15 : vector<98x32xf32>
    %c1_16 = arith.constant 1 : index
    %c1_17 = arith.constant 1 : index
    %c0_18 = arith.constant 0 : index
    %c0_19 = arith.constant 0 : index
    %17 = vector.load %arg0[%c1_16, %c1_17, %c0_18, %c0_19] : memref<2x2x98x400xbf16, #tpu.memory_space<vmem>>, vector<1x1x98x400xbf16>
    %18 = vector.shape_cast %17 : vector<1x1x98x400xbf16> to vector<98x400xbf16>
    %cst_20 = arith.constant dense<0.000000e+00> : vector<98x32xf32>
    %19 = tpu.matmul %18, %0, %cst_20 {dimension_numbers = #tpu.dot_dimension_numbers<[1], [0], [0], [1], [0, 0, 1, 1], [], []>} : vector<98x400xbf16>, vector<400x32xbf16>, vector<98x32xf32> -> vector<98x32xf32>
    %20 = vector.broadcast %1 : vector<1x32xf32> to vector<98x32xf32>
    %21 = arith.addf %19, %20 : vector<98x32xf32>
    %cst_21 = arith.constant dense<0.000000e+00> : vector<32xf32>
    %22 = vector.multi_reduction <add>, %6, %cst_21 [0] : vector<98x32xf32> to vector<32xf32>
    %23 = vector.shape_cast %22 : vector<32xf32> to vector<1x32xf32>
    %cst_22 = arith.constant dense<0.000000e+00> : vector<32xf32>
    %24 = vector.multi_reduction <add>, %11, %cst_22 [0] : vector<98x32xf32> to vector<32xf32>
    %25 = vector.shape_cast %24 : vector<32xf32> to vector<1x32xf32>
    %26 = arith.addf %23, %25 : vector<1x32xf32>
    %cst_23 = arith.constant dense<0.000000e+00> : vector<32xf32>
    %27 = vector.multi_reduction <add>, %16, %cst_23 [0] : vector<98x32xf32> to vector<32xf32>
    %28 = vector.shape_cast %27 : vector<32xf32> to vector<1x32xf32>
    %29 = arith.addf %26, %28 : vector<1x32xf32>
    %cst_24 = arith.constant dense<0.000000e+00> : vector<32xf32>
    %30 = vector.multi_reduction <add>, %21, %cst_24 [0] : vector<98x32xf32> to vector<32xf32>
    %31 = vector.shape_cast %30 : vector<32xf32> to vector<1x32xf32>
    %32 = arith.addf %29, %31 : vector<1x32xf32>
    %cst_25 = arith.constant 0.00255102036 : f32
    %33 = vector.broadcast %cst_25 : f32 to vector<1x32xf32>
    %34 = arith.mulf %32, %33 : vector<1x32xf32>
    %35 = vector.broadcast %34 : vector<1x32xf32> to vector<98x32xf32>
    %36 = arith.subf %6, %35 : vector<98x32xf32>
    %37 = vector.broadcast %34 : vector<1x32xf32> to vector<98x32xf32>
    %38 = arith.subf %11, %37 : vector<98x32xf32>
    %39 = vector.broadcast %34 : vector<1x32xf32> to vector<98x32xf32>
    %40 = arith.subf %16, %39 : vector<98x32xf32>
    %41 = vector.broadcast %34 : vector<1x32xf32> to vector<98x32xf32>
    %42 = arith.subf %21, %41 : vector<98x32xf32>
    %43 = arith.mulf %36, %36 : vector<98x32xf32>
    %cst_26 = arith.constant dense<0.000000e+00> : vector<32xf32>
    %44 = vector.multi_reduction <add>, %43, %cst_26 [0] : vector<98x32xf32> to vector<32xf32>
    %45 = vector.shape_cast %44 : vector<32xf32> to vector<1x32xf32>
    %46 = arith.mulf %38, %38 : vector<98x32xf32>
    %cst_27 = arith.constant dense<0.000000e+00> : vector<32xf32>
    %47 = vector.multi_reduction <add>, %46, %cst_27 [0] : vector<98x32xf32> to vector<32xf32>
    %48 = vector.shape_cast %47 : vector<32xf32> to vector<1x32xf32>
    %49 = arith.addf %45, %48 : vector<1x32xf32>
    %50 = arith.mulf %40, %40 : vector<98x32xf32>
    %cst_28 = arith.constant dense<0.000000e+00> : vector<32xf32>
    %51 = vector.multi_reduction <add>, %50, %cst_28 [0] : vector<98x32xf32> to vector<32xf32>
    %52 = vector.shape_cast %51 : vector<32xf32> to vector<1x32xf32>
    %53 = arith.addf %49, %52 : vector<1x32xf32>
    %54 = arith.mulf %42, %42 : vector<98x32xf32>
    %cst_29 = arith.constant dense<0.000000e+00> : vector<32xf32>
    %55 = vector.multi_reduction <add>, %54, %cst_29 [0] : vector<98x32xf32> to vector<32xf32>
    %56 = vector.shape_cast %55 : vector<32xf32> to vector<1x32xf32>
    %57 = arith.addf %53, %56 : vector<1x32xf32>
    %cst_30 = arith.constant 0.00255102036 : f32
    %58 = vector.broadcast %cst_30 : f32 to vector<1x32xf32>
    %59 = arith.mulf %57, %58 : vector<1x32xf32>
    %c0_31 = arith.constant 0 : index
    %c0_32 = arith.constant 0 : index
    %60 = vector.load %arg3[%c0_31, %c0_32] : memref<1x32xf32, #tpu.memory_space<vmem>>, vector<1x32xf32>
    %cst_33 = arith.constant 9.99999974E-6 : f32
    %61 = vector.broadcast %cst_33 : f32 to vector<1x32xf32>
    %62 = arith.addf %59, %61 : vector<1x32xf32>
    %63 = math.rsqrt %62 : vector<1x32xf32>
    %64 = arith.mulf %60, %63 : vector<1x32xf32>
    %c0_34 = arith.constant 0 : index
    %c0_35 = arith.constant 0 : index
    %65 = vector.load %arg4[%c0_34, %c0_35] : memref<1x32xf32, #tpu.memory_space<vmem>>, vector<1x32xf32>
    %66 = arith.mulf %34, %64 : vector<1x32xf32>
    %67 = arith.subf %65, %66 : vector<1x32xf32>
    %68 = vector.broadcast %64 : vector<1x32xf32> to vector<98x32xf32>
    %69 = arith.mulf %6, %68 : vector<98x32xf32>
    %70 = vector.broadcast %67 : vector<1x32xf32> to vector<98x32xf32>
    %71 = arith.addf %69, %70 : vector<98x32xf32>
    %cst_36 = arith.constant 0.000000e+00 : f32
    %72 = vector.broadcast %cst_36 : f32 to vector<98x32xf32>
    %73 = arith.maximumf %71, %72 : vector<98x32xf32>
    %74 = vector.broadcast %64 : vector<1x32xf32> to vector<98x32xf32>
    %75 = arith.mulf %11, %74 : vector<98x32xf32>
    %76 = vector.broadcast %67 : vector<1x32xf32> to vector<98x32xf32>
    %77 = arith.addf %75, %76 : vector<98x32xf32>
    %cst_37 = arith.constant 0.000000e+00 : f32
    %78 = vector.broadcast %cst_37 : f32 to vector<98x32xf32>
    %79 = arith.maximumf %77, %78 : vector<98x32xf32>
    %80 = vector.broadcast %64 : vector<1x32xf32> to vector<98x32xf32>
    %81 = arith.mulf %16, %80 : vector<98x32xf32>
    %82 = vector.broadcast %67 : vector<1x32xf32> to vector<98x32xf32>
    %83 = arith.addf %81, %82 : vector<98x32xf32>
    %cst_38 = arith.constant 0.000000e+00 : f32
    %84 = vector.broadcast %cst_38 : f32 to vector<98x32xf32>
    %85 = arith.maximumf %83, %84 : vector<98x32xf32>
    %86 = vector.broadcast %64 : vector<1x32xf32> to vector<98x32xf32>
    %87 = arith.mulf %21, %86 : vector<98x32xf32>
    %88 = vector.broadcast %67 : vector<1x32xf32> to vector<98x32xf32>
    %89 = arith.addf %87, %88 : vector<98x32xf32>
    %cst_39 = arith.constant 0.000000e+00 : f32
    %90 = vector.broadcast %cst_39 : f32 to vector<98x32xf32>
    %91 = arith.maximumf %89, %90 : vector<98x32xf32>
    %92 = arith.maximumf %73, %79 : vector<98x32xf32>
    %93 = arith.maximumf %85, %91 : vector<98x32xf32>
    %94 = arith.maximumf %92, %93 : vector<98x32xf32>
    %c0_40 = arith.constant 0 : index
    %c0_41 = arith.constant 0 : index
    %95 = vector.load %arg5[%c0_40, %c0_41] : memref<98x32xf32, #tpu.memory_space<vmem>>, vector<98x32xf32>
    tpu.vector_store %arg5[%c0_40, %c0_41], %94 {strides = array<i32>} : memref<98x32xf32, #tpu.memory_space<vmem>>, vector<98x32xf32>,
    return
  }
}

module attributes {stable_mosaic.version = 11 : i64} {
  func.func @fc_kernel(%arg0: memref<2x1568xbf16, #tpu.memory_space<vmem>>, %arg1: memref<1568x10xbf16, #tpu.memory_space<vmem>>, %arg2: memref<1x10xf32, #tpu.memory_space<vmem>>, %arg3: memref<2x10xf32, #tpu.memory_space<vmem>>) attributes {dimension_semantics = [], scalar_prefetch = 0 : i64, scratch_operands = 0 : i64, tpu.core_type = #tpu.core_type<tc>} {
    %c0 = arith.constant 0 : index
    %c0_0 = arith.constant 0 : index
    %0 = vector.load %arg0[%c0, %c0_0] : memref<2x1568xbf16, #tpu.memory_space<vmem>>, vector<2x1568xbf16>
    %c0_1 = arith.constant 0 : index
    %c0_2 = arith.constant 0 : index
    %1 = vector.load %arg1[%c0_1, %c0_2] : memref<1568x10xbf16, #tpu.memory_space<vmem>>, vector<1568x10xbf16>
    %cst = arith.constant dense<0.000000e+00> : vector<2x10xf32>
    %2 = tpu.matmul %0, %1, %cst {dimension_numbers = #tpu.dot_dimension_numbers<[1], [0], [0], [1], [0, 0, 1, 1], [], []>} : vector<2x1568xbf16>, vector<1568x10xbf16>, vector<2x10xf32> -> vector<2x10xf32>
    %c0_3 = arith.constant 0 : index
    %c0_4 = arith.constant 0 : index
    %3 = vector.load %arg2[%c0_3, %c0_4] : memref<1x10xf32, #tpu.memory_space<vmem>>, vector<1x10xf32>
    %4 = vector.broadcast %3 : vector<1x10xf32> to vector<2x10xf32>
    %5 = arith.addf %2, %4 : vector<2x10xf32>
    %c0_5 = arith.constant 0 : index
    %c0_6 = arith.constant 0 : index
    %6 = vector.load %arg3[%c0_5, %c0_6] : memref<2x10xf32, #tpu.memory_space<vmem>>, vector<2x10xf32>
    tpu.vector_store %arg3[%c0_5, %c0_6], %5 {strides = array<i32>} : memref<2x10xf32, #tpu.memory_space<vmem>>, vector<2x10xf32>,
    return
  }
}

</mosaic_0001>

<llo_original>
// kernel: net_forward.3
$region0: #{net_forward.3}
  #allocation0 [shape = 'u32[]', space=smem, size = 0x4, offset = 0x4, fixed_abs, tag = 'smem constant byte address 0x4 - core index']
  #allocation1 [shape = 'u32[144,128]{1,0:T(1,128)}', space=vmem, size = 0x12000, scoped, tag = 'internal scratch']
  %s0 = inlined_call_operand.vmem [shape: bf16[2,2,392,25], index: 0, kind: input, shape index: {}]
  %s1 = inlined_call_operand.vmem [shape: bf16[25,16], index: 1, kind: input, shape index: {}]
  %s2 = inlined_call_operand.vmem [shape: f32[1,16], index: 2, kind: input, shape index: {}]
  %s3 = inlined_call_operand.vmem [shape: f32[1,16], index: 3, kind: input, shape index: {}]
  %s4 = inlined_call_operand.vmem [shape: f32[1,16], index: 4, kind: input, shape index: {}]
  %s5 = inlined_call_operand.vmem [shape: f32[392,16], index: 5, kind: output, shape index: {}]
  %s6 = sld [smem:[#allocation0]]
  $region30: #{net_forward.3} parent=0
    _
  %s8 = ssub.s32 1, %s6
  %s9 = scalar_select 0, %s8, %s6
  // Predicated region
  $region2: #{net_forward.3} parent=0 // pred_check
    _
  $region3: #{net_forward.3} parent=0 // pred_check_branch
    %11 = sbr.rel (0) target = $region5
  $region4: #{net_forward.3} parent=0 // pred_region
    _
  $region5: #{net_forward.3} parent=0 // pred_fallthru
    _
  // Predicated region
  $region6: #{net_forward.3} parent=0 // pred_check
    _
  $region7: #{net_forward.3} parent=0 // pred_check_branch
    %13 = sbr.rel (0) target = $region9
  $region8: #{net_forward.3} parent=0 // pred_region
    _
  $region9: #{net_forward.3} parent=0 // pred_fallthru
    _
  // Predicated region
  $region10: #{net_forward.3} parent=0 // pred_check
    _
  $region11: #{net_forward.3} parent=0 // pred_check_branch
    %15 = sbr.rel (0) target = $region13
  $region12: #{net_forward.3} parent=0 // pred_region
    _
  $region13: #{net_forward.3} parent=0 // pred_fallthru
    _
  // Predicated region
  $region14: #{net_forward.3} parent=0 // pred_check
    _
  $region15: #{net_forward.3} parent=0 // pred_check_branch
    %17 = sbr.rel (0) target = $region17
  $region16: #{net_forward.3} parent=0 // pred_region
    _
  $region17: #{net_forward.3} parent=0 // pred_fallthru
    _
  // Predicated region
  $region18: #{net_forward.3} parent=0 // pred_check
    _
  $region19: #{net_forward.3} parent=0 // pred_check_branch
    %19 = sbr.rel (0) target = $region21
  $region20: #{net_forward.3} parent=0 // pred_region
    _
  $region21: #{net_forward.3} parent=0 // pred_fallthru
    _
  %v21 = vld [vmem:[%s1] sm:$0xf]
  %v22 = vld [vmem:[%s1 + $0x4] sm:$0xf]
  %v23 = vld [vmem:[%s1 + $0x8] sm:$0xf]
  %v24 = vld [vmem:[%s1 + $0xc] sm:$0x1]
  %v25 = vld [vmem:[%s2] sm:$0x1]
  %v26 = vld [vmem:[%s0] sm:$0xf]
  %v27 = vld [vmem:[%s0 + $0x4] sm:$0xf]
  %v28 = vld [vmem:[%s0 + $0x8] sm:$0xf]
  %v29 = vld [vmem:[%s0 + $0xc] sm:$0xf]
  %v30 = vld [vmem:[%s0 + $0x10] sm:$0xf]
  %v31 = vld [vmem:[%s0 + $0x14] sm:$0xf]
  %v32 = vld [vmem:[%s0 + $0x18] sm:$0xf]
  %v33 = vld [vmem:[%s0 + $0x1c] sm:$0xf]
  %v34 = vld [vmem:[%s0 + $0x20] sm:$0xf]
  %v35 = vld [vmem:[%s0 + $0x24] sm:$0xf]
  %v36 = vld [vmem:[%s0 + $0x28] sm:$0xf]
  %v37 = vld [vmem:[%s0 + $0x2c] sm:$0xf]
  %v38 = vld [vmem:[%s0 + $0x30] sm:$0xf]
  %v39 = vld [vmem:[%s0 + $0x34] sm:$0xf]
  %v40 = vld [vmem:[%s0 + $0x38] sm:$0xf]
  %v41 = vld [vmem:[%s0 + $0x3c] sm:$0xf]
  %v42 = vld [vmem:[%s0 + $0x40] sm:$0xf]
  %v43 = vld [vmem:[%s0 + $0x44] sm:$0xf]
  %v44 = vld [vmem:[%s0 + $0x48] sm:$0xf]
  %v45 = vld [vmem:[%s0 + $0x4c] sm:$0xf]
  %v46 = vld [vmem:[%s0 + $0x50] sm:$0xf]
  %v47 = vld [vmem:[%s0 + $0x54] sm:$0xf]
  %v48 = vld [vmem:[%s0 + $0x58] sm:$0xf]
  %v49 = vld [vmem:[%s0 + $0x5c] sm:$0xf]
  %v50 = vld [vmem:[%s0 + $0x60] sm:$0xf]
  %v51 = vld [vmem:[%s0 + $0x64] sm:$0xf]
  %v52 = vld [vmem:[%s0 + $0x68] sm:$0xf]
  %v53 = vld [vmem:[%s0 + $0x6c] sm:$0xf]
  %v54 = vld [vmem:[%s0 + $0x70] sm:$0xf]
  %v55 = vld [vmem:[%s0 + $0x74] sm:$0xf]
  %v56 = vld [vmem:[%s0 + $0x78] sm:$0xf]
  %v57 = vld [vmem:[%s0 + $0x7c] sm:$0xf]
  %v58 = vld [vmem:[%s0 + $0x80] sm:$0xf]
  %v59 = vld [vmem:[%s0 + $0x84] sm:$0xf]
  %v60 = vld [vmem:[%s0 + $0x88] sm:$0xf]
  %v61 = vld [vmem:[%s0 + $0x8c] sm:$0xf]
  %v62 = vld [vmem:[%s0 + $0x90] sm:$0xf]
  %v63 = vld [vmem:[%s0 + $0x94] sm:$0xf]
  %v64 = vld [vmem:[%s0 + $0x98] sm:$0xf]
  %v65 = vld [vmem:[%s0 + $0x9c] sm:$0xf]
  %v66 = vld [vmem:[%s0 + $0xa0] sm:$0xf]
  %v67 = vld [vmem:[%s0 + $0xa4] sm:$0xf]
  %v68 = vld [vmem:[%s0 + $0xa8] sm:$0xf]
  %v69 = vld [vmem:[%s0 + $0xac] sm:$0xf]
  %v70 = vld [vmem:[%s0 + $0xb0] sm:$0xf]
  %v71 = vld [vmem:[%s0 + $0xb4] sm:$0xf]
  %v72 = vld [vmem:[%s0 + $0xb8] sm:$0xf]
  %v73 = vld [vmem:[%s0 + $0xbc] sm:$0xf]
  %v74 = vld [vmem:[%s0 + $0xc0] sm:$0xf]
  %v76 = vlaneseq
  %v77 = vshrl.u32 %v76, 7
  %v78 = vsub.s32 0, %v77
  %v79 = vrot.slane %v25, %v78
  %v130 = vunpack.c.l.b16 %v26
  %v131 = vunpack.c.l.b16 %v27
  %v132 = vunpack.c.l.b16 %v28
  %v133 = vunpack.c.l.b16 %v29
  %v134 = vunpack.c.l.b16 %v30
  %v135 = vunpack.c.l.b16 %v31
  %v136 = vunpack.c.l.b16 %v32
  %v137 = vunpack.c.l.b16 %v33
  %v138 = vunpack.c.l.b16 %v34
  %v139 = vunpack.c.l.b16 %v35
  %v140 = vunpack.c.l.b16 %v36
  %v141 = vunpack.c.l.b16 %v37
  %v142 = vunpack.c.l.b16 %v38
  %v143 = vunpack.c.l.b16 %v39
  %v144 = vunpack.c.l.b16 %v40
  %v145 = vunpack.c.l.b16 %v41
  %v146 = vunpack.c.l.b16 %v42
  %v147 = vunpack.c.l.b16 %v43
  %v148 = vunpack.c.l.b16 %v44
  %v149 = vunpack.c.l.b16 %v45
  %v150 = vunpack.c.l.b16 %v46
  %v151 = vunpack.c.l.b16 %v47
  %v152 = vunpack.c.l.b16 %v48
  %v153 = vunpack.c.l.b16 %v49
  %v154 = vunpack.c.l.b16 %v50
  %v155 = vunpack.c.l.b16 %v51
  %v156 = vunpack.c.l.b16 %v52
  %v157 = vunpack.c.l.b16 %v53
  %v158 = vunpack.c.l.b16 %v54
  %v159 = vunpack.c.l.b16 %v55
  %v160 = vunpack.c.l.b16 %v56
  %v161 = vunpack.c.l.b16 %v57
  %v162 = vunpack.c.l.b16 %v58
  %v163 = vunpack.c.l.b16 %v59
  %v164 = vunpack.c.l.b16 %v60
  %v165 = vunpack.c.l.b16 %v61
  %v166 = vunpack.c.l.b16 %v62
  %v167 = vunpack.c.l.b16 %v63
  %v168 = vunpack.c.l.b16 %v64
  %v169 = vunpack.c.l.b16 %v65
  %v170 = vunpack.c.l.b16 %v66
  %v171 = vunpack.c.l.b16 %v67
  %v172 = vunpack.c.l.b16 %v68
  %v173 = vunpack.c.l.b16 %v69
  %v174 = vunpack.c.l.b16 %v70
  %v175 = vunpack.c.l.b16 %v71
  %v176 = vunpack.c.l.b16 %v72
  %v177 = vunpack.c.l.b16 %v73
  %v178 = vunpack.c.l.b16 %v74
  %v179 = vpack.c.b16 %v131, %v130
  %v180 = vpack.c.b16 %v133, %v132
  %v181 = vpack.c.b16 %v135, %v134
  %v182 = vpack.c.b16 %v137, %v136
  %v183 = vpack.c.b16 %v139, %v138
  %v184 = vpack.c.b16 %v141, %v140
  %v185 = vpack.c.b16 %v143, %v142
  %v186 = vpack.c.b16 %v145, %v144
  %v187 = vpack.c.b16 %v147, %v146
  %v188 = vpack.c.b16 %v149, %v148
  %v189 = vpack.c.b16 %v151, %v150
  %v190 = vpack.c.b16 %v153, %v152
  %v191 = vpack.c.b16 %v155, %v154
  %v192 = vpack.c.b16 %v157, %v156
  %v193 = vpack.c.b16 %v159, %v158
  %v194 = vpack.c.b16 %v161, %v160
  %v195 = vpack.c.b16 %v163, %v162
  %v196 = vpack.c.b16 %v165, %v164
  %v197 = vpack.c.b16 %v167, %v166
  %v198 = vpack.c.b16 %v169, %v168
  %v199 = vpack.c.b16 %v171, %v170
  %v200 = vpack.c.b16 %v173, %v172
  %v201 = vpack.c.b16 %v175, %v174
  %v202 = vpack.c.b16 %v177, %v176
  %v203 = vpack.c.b16 %v178, %v178
  %v208 = vunpack.c.l.b16 %v21
  %v209 = vunpack.c.l.b16 %v22
  %v210 = vunpack.c.l.b16 %v23
  %v211 = vunpack.c.l.b16 %v24
  %v212 = vpack.c.b16 %v209, %v208
  %v213 = vpack.c.b16 %v211, %v210
  %vm215 = vcmask 203776
  %v217 = vsel %vm215, %v179, 0
  %v220 = vsel %vm215, %v180, 0
  %v223 = vsel %vm215, %v181, 0
  %v226 = vsel %vm215, %v182, 0
  %v229 = vsel %vm215, %v183, 0
  %v232 = vsel %vm215, %v184, 0
  %v235 = vsel %vm215, %v185, 0
  %v238 = vsel %vm215, %v186, 0
  %v241 = vsel %vm215, %v187, 0
  %v244 = vsel %vm215, %v188, 0
  %v247 = vsel %vm215, %v189, 0
  %v250 = vsel %vm215, %v190, 0
  %v253 = vsel %vm215, %v191, 0
  %v256 = vsel %vm215, %v192, 0
  %v259 = vsel %vm215, %v193, 0
  %v262 = vsel %vm215, %v194, 0
  %v265 = vsel %vm215, %v195, 0
  %v268 = vsel %vm215, %v196, 0
  %v271 = vsel %vm215, %v197, 0
  %v274 = vsel %vm215, %v198, 0
  %v277 = vsel %vm215, %v199, 0
  %v280 = vsel %vm215, %v200, 0
  %v283 = vsel %vm215, %v201, 0
  %v286 = vsel %vm215, %v202, 0
  %v289 = vsel %vm215, %v203, 0
  %vm291 = vcmask 1043456
  %vm292 = vcmask 1044480
  %v293 = vsel %vm291, 4294967295, 65535
  %v294 = vsel %vm292, %v293, 0
  %v296 = vand.u32 %v213, %v294
  %298 = vmatprep.subr.bf16.mxu0 0
  %299 = vmatpush1.bf16.msra.mxu0 0
  %300 = vmatprep.subr.bf16.mxu0 0
  %301 = vmatpush1.bf16.msra.mxu0 0
  %302 = vmatprep.subr.bf16.mxu0 0
  %303 = vmatpush1.bf16.msra.mxu0 0
  %304 = vmatprep.subr.bf16.mxu0 0
  %305 = vmatpush1.bf16.msra.mxu0 0
  %306 = vmatprep.subr.bf16.mxu0 0
  %307 = vmatpush1.bf16.msra.mxu0 0
  %308 = vmatprep.subr.bf16.mxu0 0
  %309 = vmatpush1.bf16.msra.mxu0 0
  %310 = vmatprep.subr.bf16.mxu0 0
  %311 = vmatpush1.bf16.msra.mxu0 %v296
  %312 = vmatprep.subr.bf16.mxu0 0
  %313 = vmatpush1.bf16.msra.mxu0 %v212
  %314 = vmatprep.subr.bf16.mxu0 0
  %315 = vmatpush2.bf16.msra.mxu0 0
  %316 = vmatprep.subr.bf16.mxu0 0
  %317 = vmatpush2.bf16.msra.mxu0 0
  %318 = vmatprep.subr.bf16.mxu0 0
  %319 = vmatpush2.bf16.msra.mxu0 0
  %320 = vmatprep.subr.bf16.mxu0 0
  %321 = vmatpush2.bf16.msra.mxu0 0
  %322 = vmatprep.subr.bf16.mxu0 0
  %323 = vmatpush2.bf16.msra.mxu0 0
  %324 = vmatprep.subr.bf16.mxu0 0
  %325 = vmatpush2.bf16.msra.mxu0 0
  %326 = vmatprep.subr.bf16.mxu0 0
  %327 = vmatpush2.bf16.msra.mxu0 0
  %328 = vmatprep.subr.bf16.mxu0 0
  %329 = vmatpush2.bf16.msra.mxu0 0
  %330 = vmatprep.mubr.bf16.mxu0 0
  %331 = vmatmul.mubr.bf16.gmra.mxu0 %v217
  %v332 = vpop.f32.mrf.mxu0
  %v333 = vadd.f32 %v79, %v332
  %v334 = vpop.f32.mrf.mxu0
  %v335 = vpop.f32.mrf.mxu0
  %v336 = vadd.f32 %v79, %v335
  %v337 = vpop.f32.mrf.mxu0
  %338 = vmatprep.mubr.bf16.mxu0 0
  %339 = vmatmul.mubr.bf16.gmra.mxu0 %v220
  %v340 = vpop.f32.mrf.mxu0
  %v341 = vadd.f32 %v79, %v340
  %v342 = vpop.f32.mrf.mxu0
  %v343 = vpop.f32.mrf.mxu0
  %v344 = vadd.f32 %v79, %v343
  %v345 = vpop.f32.mrf.mxu0
  %346 = vmatprep.mubr.bf16.mxu0 0
  %347 = vmatmul.mubr.bf16.gmra.mxu0 %v223
  %v348 = vpop.f32.mrf.mxu0
  %v349 = vadd.f32 %v79, %v348
  %v350 = vpop.f32.mrf.mxu0
  %v351 = vpop.f32.mrf.mxu0
  %v352 = vadd.f32 %v79, %v351
  %v353 = vpop.f32.mrf.mxu0
  %354 = vmatprep.mubr.bf16.mxu0 0
  %355 = vmatmul.mubr.bf16.gmra.mxu0 %v226
  %v356 = vpop.f32.mrf.mxu0
  %v357 = vadd.f32 %v79, %v356
  %v358 = vpop.f32.mrf.mxu0
  %v359 = vpop.f32.mrf.mxu0
  %v360 = vadd.f32 %v79, %v359
  %v361 = vpop.f32.mrf.mxu0
  %362 = vmatprep.mubr.bf16.mxu0 0
  %363 = vmatmul.mubr.bf16.gmra.mxu0 %v229
  %v364 = vpop.f32.mrf.mxu0
  %v365 = vadd.f32 %v79, %v364
  %v366 = vpop.f32.mrf.mxu0
  %v367 = vpop.f32.mrf.mxu0
  %v368 = vadd.f32 %v79, %v367
  %v369 = vpop.f32.mrf.mxu0
  %370 = vmatprep.mubr.bf16.mxu0 0
  %371 = vmatmul.mubr.bf16.gmra.mxu0 %v232
  %v372 = vpop.f32.mrf.mxu0
  %v373 = vadd.f32 %v79, %v372
  %v374 = vpop.f32.mrf.mxu0
  %v375 = vpop.f32.mrf.mxu0
  %v376 = vadd.f32 %v79, %v375
  %v377 = vpop.f32.mrf.mxu0
  %378 = vmatprep.mubr.bf16.mxu0 0
  %379 = vmatmul.mubr.bf16.gmra.mxu0 %v235
  %v380 = vpop.f32.mrf.mxu0
  %v381 = vadd.f32 %v79, %v380
  %v382 = vpop.f32.mrf.mxu0
  %v383 = vpop.f32.mrf.mxu0
  %v384 = vadd.f32 %v79, %v383
  %v385 = vpop.f32.mrf.mxu0
  %386 = vmatprep.mubr.bf16.mxu0 0
  %387 = vmatmul.mubr.bf16.gmra.mxu0 %v238
  %v388 = vpop.f32.mrf.mxu0
  %v389 = vadd.f32 %v79, %v388
  %v390 = vpop.f32.mrf.mxu0
  %v391 = vpop.f32.mrf.mxu0
  %v392 = vadd.f32 %v79, %v391
  %v393 = vpop.f32.mrf.mxu0
  %394 = vmatprep.mubr.bf16.mxu0 0
  %395 = vmatmul.mubr.bf16.gmra.mxu0 %v241
  %v396 = vpop.f32.mrf.mxu0
  %v397 = vadd.f32 %v79, %v396
  %v398 = vpop.f32.mrf.mxu0
  %v399 = vpop.f32.mrf.mxu0
  %v400 = vadd.f32 %v79, %v399
  %v401 = vpop.f32.mrf.mxu0
  %402 = vmatprep.mubr.bf16.mxu0 0
  %403 = vmatmul.mubr.bf16.gmra.mxu0 %v244
  %v404 = vpop.f32.mrf.mxu0
  %v405 = vadd.f32 %v79, %v404
  %v406 = vpop.f32.mrf.mxu0
  %v407 = vpop.f32.mrf.mxu0
  %v408 = vadd.f32 %v79, %v407
  %v409 = vpop.f32.mrf.mxu0
  %410 = vmatprep.mubr.bf16.mxu0 0
  %411 = vmatmul.mubr.bf16.gmra.mxu0 %v247
  %v412 = vpop.f32.mrf.mxu0
  %v413 = vadd.f32 %v79, %v412
  %v414 = vpop.f32.mrf.mxu0
  %v415 = vpop.f32.mrf.mxu0
  %v416 = vadd.f32 %v79, %v415
  %v417 = vpop.f32.mrf.mxu0
  %418 = vmatprep.mubr.bf16.mxu0 0
  %419 = vmatmul.mubr.bf16.gmra.mxu0 %v250
  %v420 = vpop.f32.mrf.mxu0
  %v421 = vadd.f32 %v79, %v420
  %v422 = vpop.f32.mrf.mxu0
  %v423 = vpop.f32.mrf.mxu0
  %v424 = vadd.f32 %v79, %v423
  %v425 = vpop.f32.mrf.mxu0
  %426 = vmatprep.mubr.bf16.mxu0 0
  %427 = vmatmul.mubr.bf16.gmra.mxu0 %v253
  %v428 = vpop.f32.mrf.mxu0
  %v429 = vadd.f32 %v79, %v428
  %v430 = vpop.f32.mrf.mxu0
  %v431 = vpop.f32.mrf.mxu0
  %v432 = vadd.f32 %v79, %v431
  %v433 = vpop.f32.mrf.mxu0
  %434 = vmatprep.mubr.bf16.mxu0 0
  %435 = vmatmul.mubr.bf16.gmra.mxu0 %v256
  %v436 = vpop.f32.mrf.mxu0
  %v437 = vadd.f32 %v79, %v436
  %v438 = vpop.f32.mrf.mxu0
  %v439 = vpop.f32.mrf.mxu0
  %v440 = vadd.f32 %v79, %v439
  %v441 = vpop.f32.mrf.mxu0
  %442 = vmatprep.mubr.bf16.mxu0 0
  %443 = vmatmul.mubr.bf16.gmra.mxu0 %v259
  %v444 = vpop.f32.mrf.mxu0
  %v445 = vadd.f32 %v79, %v444
  %v446 = vpop.f32.mrf.mxu0
  %v447 = vpop.f32.mrf.mxu0
  %v448 = vadd.f32 %v79, %v447
  %v449 = vpop.f32.mrf.mxu0
  %450 = vmatprep.mubr.bf16.mxu0 0
  %451 = vmatmul.mubr.bf16.gmra.mxu0 %v262
  %v452 = vpop.f32.mrf.mxu0
  %v453 = vadd.f32 %v79, %v452
  %v454 = vpop.f32.mrf.mxu0
  %v455 = vpop.f32.mrf.mxu0
  %v456 = vadd.f32 %v79, %v455
  %v457 = vpop.f32.mrf.mxu0
  %458 = vmatprep.mubr.bf16.mxu0 0
  %459 = vmatmul.mubr.bf16.gmra.mxu0 %v265
  %v460 = vpop.f32.mrf.mxu0
  %v461 = vadd.f32 %v79, %v460
  %v462 = vpop.f32.mrf.mxu0
  %v463 = vpop.f32.mrf.mxu0
  %v464 = vadd.f32 %v79, %v463
  %v465 = vpop.f32.mrf.mxu0
  %466 = vmatprep.mubr.bf16.mxu0 0
  %467 = vmatmul.mubr.bf16.gmra.mxu0 %v268
  %v468 = vpop.f32.mrf.mxu0
  %v469 = vadd.f32 %v79, %v468
  %v470 = vpop.f32.mrf.mxu0
  %v471 = vpop.f32.mrf.mxu0
  %v472 = vadd.f32 %v79, %v471
  %v473 = vpop.f32.mrf.mxu0
  %474 = vmatprep.mubr.bf16.mxu0 0
  %475 = vmatmul.mubr.bf16.gmra.mxu0 %v271
  %v476 = vpop.f32.mrf.mxu0
  %v477 = vadd.f32 %v79, %v476
  %v478 = vpop.f32.mrf.mxu0
  %v479 = vpop.f32.mrf.mxu0
  %v480 = vadd.f32 %v79, %v479
  %v481 = vpop.f32.mrf.mxu0
  %482 = vmatprep.mubr.bf16.mxu0 0
  %483 = vmatmul.mubr.bf16.gmra.mxu0 %v274
  %v484 = vpop.f32.mrf.mxu0
  %v485 = vadd.f32 %v79, %v484
  %v486 = vpop.f32.mrf.mxu0
  %v487 = vpop.f32.mrf.mxu0
  %v488 = vadd.f32 %v79, %v487
  %v489 = vpop.f32.mrf.mxu0
  %490 = vmatprep.mubr.bf16.mxu0 0
  %491 = vmatmul.mubr.bf16.gmra.mxu0 %v277
  %v492 = vpop.f32.mrf.mxu0
  %v493 = vadd.f32 %v79, %v492
  %v494 = vpop.f32.mrf.mxu0
  %v495 = vpop.f32.mrf.mxu0
  %v496 = vadd.f32 %v79, %v495
  %v497 = vpop.f32.mrf.mxu0
  %498 = vmatprep.mubr.bf16.mxu0 0
  %499 = vmatmul.mubr.bf16.gmra.mxu0 %v280
  %v500 = vpop.f32.mrf.mxu0
  %v501 = vadd.f32 %v79, %v500
  %v502 = vpop.f32.mrf.mxu0
  %v503 = vpop.f32.mrf.mxu0
  %v504 = vadd.f32 %v79, %v503
  %v505 = vpop.f32.mrf.mxu0
  %506 = vmatprep.mubr.bf16.mxu0 0
  %507 = vmatmul.mubr.bf16.gmra.mxu0 %v283
  %v508 = vpop.f32.mrf.mxu0
  %v509 = vadd.f32 %v79, %v508
  %v510 = vpop.f32.mrf.mxu0
  %v511 = vpop.f32.mrf.mxu0
  %v512 = vadd.f32 %v79, %v511
  %v513 = vpop.f32.mrf.mxu0
  %514 = vmatprep.mubr.bf16.mxu0 0
  %515 = vmatmul.mubr.bf16.gmra.mxu0 %v286
  %v516 = vpop.f32.mrf.mxu0
  %v517 = vadd.f32 %v79, %v516
  %v518 = vpop.f32.mrf.mxu0
  %v519 = vpop.f32.mrf.mxu0
  %v520 = vadd.f32 %v79, %v519
  %v521 = vpop.f32.mrf.mxu0
  %522 = vmatprep.mubr.bf16.mxu0 0
  %523 = vmatmul.mubr.bf16.gmra.mxu0 %v289
  %v524 = vpop.f32.mrf.mxu0
  %v525 = vadd.f32 %v79, %v524
  %v526 = vpop.f32.mrf.mxu0
  %v527 = vpop.f32.mrf.mxu0
  %v528 = vpop.f32.mrf.mxu0
  %529 = vdwg.mxu0
  %s530 = scalar_lea.vmem %s0, 196
  %v531 = vld [vmem:[%s530] sm:$0xf]
  %v532 = vld [vmem:[%s530 + $0x4] sm:$0xf]
  %v533 = vld [vmem:[%s530 + $0x8] sm:$0xf]
  %v534 = vld [vmem:[%s530 + $0xc] sm:$0xf]
  %v535 = vld [vmem:[%s530 + $0x10] sm:$0xf]
  %v536 = vld [vmem:[%s530 + $0x14] sm:$0xf]
  %v537 = vld [vmem:[%s530 + $0x18] sm:$0xf]
  %v538 = vld [vmem:[%s530 + $0x1c] sm:$0xf]
  %v539 = vld [vmem:[%s530 + $0x20] sm:$0xf]
  %v540 = vld [vmem:[%s530 + $0x24] sm:$0xf]
  %v541 = vld [vmem:[%s530 + $0x28] sm:$0xf]
  %v542 = vld [vmem:[%s530 + $0x2c] sm:$0xf]
  %v543 = vld [vmem:[%s530 + $0x30] sm:$0xf]
  %v544 = vld [vmem:[%s530 + $0x34] sm:$0xf]
  %v545 = vld [vmem:[%s530 + $0x38] sm:$0xf]
  %v546 = vld [vmem:[%s530 + $0x3c] sm:$0xf]
  %v547 = vld [vmem:[%s530 + $0x40] sm:$0xf]
  %v548 = vld [vmem:[%s530 + $0x44] sm:$0xf]
  %v549 = vld [vmem:[%s530 + $0x48] sm:$0xf]
  %v550 = vld [vmem:[%s530 + $0x4c] sm:$0xf]
  %v551 = vld [vmem:[%s530 + $0x50] sm:$0xf]
  %v552 = vld [vmem:[%s530 + $0x54] sm:$0xf]
  %v553 = vld [vmem:[%s530 + $0x58] sm:$0xf]
  %v554 = vld [vmem:[%s530 + $0x5c] sm:$0xf]
  %v555 = vld [vmem:[%s530 + $0x60] sm:$0xf]
  %v556 = vld [vmem:[%s530 + $0x64] sm:$0xf]
  %v557 = vld [vmem:[%s530 + $0x68] sm:$0xf]
  %v558 = vld [vmem:[%s530 + $0x6c] sm:$0xf]
  %v559 = vld [vmem:[%s530 + $0x70] sm:$0xf]
  %v560 = vld [vmem:[%s530 + $0x74] sm:$0xf]
  %v561 = vld [vmem:[%s530 + $0x78] sm:$0xf]
  %v562 = vld [vmem:[%s530 + $0x7c] sm:$0xf]
  %v563 = vld [vmem:[%s530 + $0x80] sm:$0xf]
  %v564 = vld [vmem:[%s530 + $0x84] sm:$0xf]
  %v565 = vld [vmem:[%s530 + $0x88] sm:$0xf]
  %v566 = vld [vmem:[%s530 + $0x8c] sm:$0xf]
  %v567 = vld [vmem:[%s530 + $0x90] sm:$0xf]
  %v568 = vld [vmem:[%s530 + $0x94] sm:$0xf]
  %v569 = vld [vmem:[%s530 + $0x98] sm:$0xf]
  %v570 = vld [vmem:[%s530 + $0x9c] sm:$0xf]
  %v571 = vld [vmem:[%s530 + $0xa0] sm:$0xf]
  %v572 = vld [vmem:[%s530 + $0xa4] sm:$0xf]
  %v573 = vld [vmem:[%s530 + $0xa8] sm:$0xf]
  %v574 = vld [vmem:[%s530 + $0xac] sm:$0xf]
  %v575 = vld [vmem:[%s530 + $0xb0] sm:$0xf]
  %v576 = vld [vmem:[%s530 + $0xb4] sm:$0xf]
  %v577 = vld [vmem:[%s530 + $0xb8] sm:$0xf]
  %v578 = vld [vmem:[%s530 + $0xbc] sm:$0xf]
  %v579 = vld [vmem:[%s530 + $0xc0] sm:$0xf]
  %v629 = vunpack.c.l.b16 %v531
  %v630 = vunpack.c.l.b16 %v532
  %v631 = vunpack.c.l.b16 %v533
  %v632 = vunpack.c.l.b16 %v534
  %v633 = vunpack.c.l.b16 %v535
  %v634 = vunpack.c.l.b16 %v536
  %v635 = vunpack.c.l.b16 %v537
  %v636 = vunpack.c.l.b16 %v538
  %v637 = vunpack.c.l.b16 %v539
  %v638 = vunpack.c.l.b16 %v540
  %v639 = vunpack.c.l.b16 %v541
  %v640 = vunpack.c.l.b16 %v542
  %v641 = vunpack.c.l.b16 %v543
  %v642 = vunpack.c.l.b16 %v544
  %v643 = vunpack.c.l.b16 %v545
  %v644 = vunpack.c.l.b16 %v546
  %v645 = vunpack.c.l.b16 %v547
  %v646 = vunpack.c.l.b16 %v548
  %v647 = vunpack.c.l.b16 %v549
  %v648 = vunpack.c.l.b16 %v550
  %v649 = vunpack.c.l.b16 %v551
  %v650 = vunpack.c.l.b16 %v552
  %v651 = vunpack.c.l.b16 %v553
  %v652 = vunpack.c.l.b16 %v554
  %v653 = vunpack.c.l.b16 %v555
  %v654 = vunpack.c.l.b16 %v556
  %v655 = vunpack.c.l.b16 %v557
  %v656 = vunpack.c.l.b16 %v558
  %v657 = vunpack.c.l.b16 %v559
  %v658 = vunpack.c.l.b16 %v560
  %v659 = vunpack.c.l.b16 %v561
  %v660 = vunpack.c.l.b16 %v562
  %v661 = vunpack.c.l.b16 %v563
  %v662 = vunpack.c.l.b16 %v564
  %v663 = vunpack.c.l.b16 %v565
  %v664 = vunpack.c.l.b16 %v566
  %v665 = vunpack.c.l.b16 %v567
  %v666 = vunpack.c.l.b16 %v568
  %v667 = vunpack.c.l.b16 %v569
  %v668 = vunpack.c.l.b16 %v570
  %v669 = vunpack.c.l.b16 %v571
  %v670 = vunpack.c.l.b16 %v572
  %v671 = vunpack.c.l.b16 %v573
  %v672 = vunpack.c.l.b16 %v574
  %v673 = vunpack.c.l.b16 %v575
  %v674 = vunpack.c.l.b16 %v576
  %v675 = vunpack.c.l.b16 %v577
  %v676 = vunpack.c.l.b16 %v578
  %v677 = vunpack.c.l.b16 %v579
  %v678 = vpack.c.b16 %v630, %v629
  %v679 = vpack.c.b16 %v632, %v631
  %v680 = vpack.c.b16 %v634, %v633
  %v681 = vpack.c.b16 %v636, %v635
  %v682 = vpack.c.b16 %v638, %v637
  %v683 = vpack.c.b16 %v640, %v639
  %v684 = vpack.c.b16 %v642, %v641
  %v685 = vpack.c.b16 %v644, %v643
  %v686 = vpack.c.b16 %v646, %v645
  %v687 = vpack.c.b16 %v648, %v647
  %v688 = vpack.c.b16 %v650, %v649
  %v689 = vpack.c.b16 %v652, %v651
  %v690 = vpack.c.b16 %v654, %v653
  %v691 = vpack.c.b16 %v656, %v655
  %v692 = vpack.c.b16 %v658, %v657
  %v693 = vpack.c.b16 %v660, %v659
  %v694 = vpack.c.b16 %v662, %v661
  %v695 = vpack.c.b16 %v664, %v663
  %v696 = vpack.c.b16 %v666, %v665
  %v697 = vpack.c.b16 %v668, %v667
  %v698 = vpack.c.b16 %v670, %v669
  %v699 = vpack.c.b16 %v672, %v671
  %v700 = vpack.c.b16 %v674, %v673
  %v701 = vpack.c.b16 %v676, %v675
  %v702 = vpack.c.b16 %v677, %v677
  %v704 = vsel %vm215, %v678, 0
  %v707 = vsel %vm215, %v679, 0
  %v710 = vsel %vm215, %v680, 0
  %v713 = vsel %vm215, %v681, 0
  %v716 = vsel %vm215, %v682, 0
  %v719 = vsel %vm215, %v683, 0
  %v722 = vsel %vm215, %v684, 0
  %v725 = vsel %vm215, %v685, 0
  %v728 = vsel %vm215, %v686, 0
  %v731 = vsel %vm215, %v687, 0
  %v734 = vsel %vm215, %v688, 0
  %v737 = vsel %vm215, %v689, 0
  %v740 = vsel %vm215, %v690, 0
  %v743 = vsel %vm215, %v691, 0
  %v746 = vsel %vm215, %v692, 0
  %v749 = vsel %vm215, %v693, 0
  %v752 = vsel %vm215, %v694, 0
  %v755 = vsel %vm215, %v695, 0
  %v758 = vsel %vm215, %v696, 0
  %v761 = vsel %vm215, %v697, 0
  %v764 = vsel %vm215, %v698, 0
  %v767 = vsel %vm215, %v699, 0
  %v770 = vsel %vm215, %v700, 0
  %v773 = vsel %vm215, %v701, 0
  %v776 = vsel %vm215, %v702, 0
  %778 = vmatprep.subr.bf16.mxu0 0
  %779 = vmatpush1.bf16.msra.mxu0 0
  %780 = vmatprep.subr.bf16.mxu0 0
  %781 = vmatpush1.bf16.msra.mxu0 0
  %782 = vmatprep.subr.bf16.mxu0 0
  %783 = vmatpush1.bf16.msra.mxu0 0
  %784 = vmatprep.subr.bf16.mxu0 0
  %785 = vmatpush1.bf16.msra.mxu0 0
  %786 = vmatprep.subr.bf16.mxu0 0
  %787 = vmatpush1.bf16.msra.mxu0 0
  %788 = vmatprep.subr.bf16.mxu0 0
  %789 = vmatpush1.bf16.msra.mxu0 0
  %790 = vmatprep.subr.bf16.mxu0 0
  %791 = vmatpush1.bf16.msra.mxu0 %v296
  %792 = vmatprep.subr.bf16.mxu0 0
  %793 = vmatpush1.bf16.msra.mxu0 %v212
  %794 = vmatprep.subr.bf16.mxu0 0
  %795 = vmatpush2.bf16.msra.mxu0 0
  %796 = vmatprep.subr.bf16.mxu0 0
  %797 = vmatpush2.bf16.msra.mxu0 0
  %798 = vmatprep.subr.bf16.mxu0 0
  %799 = vmatpush2.bf16.msra.mxu0 0
  %800 = vmatprep.subr.bf16.mxu0 0
  %801 = vmatpush2.bf16.msra.mxu0 0
  %802 = vmatprep.subr.bf16.mxu0 0
  %803 = vmatpush2.bf16.msra.mxu0 0
  %804 = vmatprep.subr.bf16.mxu0 0
  %805 = vmatpush2.bf16.msra.mxu0 0
  %806 = vmatprep.subr.bf16.mxu0 0
  %807 = vmatpush2.bf16.msra.mxu0 0
  %808 = vmatprep.subr.bf16.mxu0 0
  %809 = vmatpush2.bf16.msra.mxu0 0
  %810 = vmatprep.mubr.bf16.mxu0 0
  %811 = vmatmul.mubr.bf16.gmra.mxu0 %v704
  %v812 = vpop.f32.mrf.mxu0
  %v813 = vadd.f32 %v79, %v812
  %v814 = vpop.f32.mrf.mxu0
  %v815 = vpop.f32.mrf.mxu0
  %v816 = vadd.f32 %v79, %v815
  %v817 = vpop.f32.mrf.mxu0
  %818 = vmatprep.mubr.bf16.mxu0 0
  %819 = vmatmul.mubr.bf16.gmra.mxu0 %v707
  %v820 = vpop.f32.mrf.mxu0
  %v821 = vadd.f32 %v79, %v820
  %v822 = vpop.f32.mrf.mxu0
  %v823 = vpop.f32.mrf.mxu0
  %v824 = vadd.f32 %v79, %v823
  %v825 = vpop.f32.mrf.mxu0
  %826 = vmatprep.mubr.bf16.mxu0 0
  %827 = vmatmul.mubr.bf16.gmra.mxu0 %v710
  %v828 = vpop.f32.mrf.mxu0
  %v829 = vadd.f32 %v79, %v828
  %v830 = vpop.f32.mrf.mxu0
  %v831 = vpop.f32.mrf.mxu0
  %v832 = vadd.f32 %v79, %v831
  %v833 = vpop.f32.mrf.mxu0
  %834 = vmatprep.mubr.bf16.mxu0 0
  %835 = vmatmul.mubr.bf16.gmra.mxu0 %v713
  %v836 = vpop.f32.mrf.mxu0
  %v837 = vadd.f32 %v79, %v836
  %v838 = vpop.f32.mrf.mxu0
  %v839 = vpop.f32.mrf.mxu0
  %v840 = vadd.f32 %v79, %v839
  %v841 = vpop.f32.mrf.mxu0
  %842 = vmatprep.mubr.bf16.mxu0 0
  %843 = vmatmul.mubr.bf16.gmra.mxu0 %v716
  %v844 = vpop.f32.mrf.mxu0
  %v845 = vadd.f32 %v79, %v844
  %v846 = vpop.f32.mrf.mxu0
  %v847 = vpop.f32.mrf.mxu0
  %v848 = vadd.f32 %v79, %v847
  %v849 = vpop.f32.mrf.mxu0
  %850 = vmatprep.mubr.bf16.mxu0 0
  %851 = vmatmul.mubr.bf16.gmra.mxu0 %v719
  %v852 = vpop.f32.mrf.mxu0
  %v853 = vadd.f32 %v79, %v852
  %v854 = vpop.f32.mrf.mxu0
  %v855 = vpop.f32.mrf.mxu0
  %v856 = vadd.f32 %v79, %v855
  %v857 = vpop.f32.mrf.mxu0
  %858 = vmatprep.mubr.bf16.mxu0 0
  %859 = vmatmul.mubr.bf16.gmra.mxu0 %v722
  %v860 = vpop.f32.mrf.mxu0
  %v861 = vadd.f32 %v79, %v860
  %v862 = vpop.f32.mrf.mxu0
  %v863 = vpop.f32.mrf.mxu0
  %v864 = vadd.f32 %v79, %v863
  %v865 = vpop.f32.mrf.mxu0
  %866 = vmatprep.mubr.bf16.mxu0 0
  %867 = vmatmul.mubr.bf16.gmra.mxu0 %v725
  %v868 = vpop.f32.mrf.mxu0
  %v869 = vadd.f32 %v79, %v868
  %v870 = vpop.f32.mrf.mxu0
  %v871 = vpop.f32.mrf.mxu0
  %v872 = vadd.f32 %v79, %v871
  %v873 = vpop.f32.mrf.mxu0
  %874 = vmatprep.mubr.bf16.mxu0 0
  %875 = vmatmul.mubr.bf16.gmra.mxu0 %v728
  %v876 = vpop.f32.mrf.mxu0
  %v877 = vadd.f32 %v79, %v876
  %v878 = vpop.f32.mrf.mxu0
  %v879 = vpop.f32.mrf.mxu0
  %v880 = vadd.f32 %v79, %v879
  %v881 = vpop.f32.mrf.mxu0
  %882 = vmatprep.mubr.bf16.mxu0 0
  %883 = vmatmul.mubr.bf16.gmra.mxu0 %v731
  %v884 = vpop.f32.mrf.mxu0
  %v885 = vadd.f32 %v79, %v884
  %v886 = vpop.f32.mrf.mxu0
  %v887 = vpop.f32.mrf.mxu0
  %v888 = vadd.f32 %v79, %v887
  %v889 = vpop.f32.mrf.mxu0
  %890 = vmatprep.mubr.bf16.mxu0 0
  %891 = vmatmul.mubr.bf16.gmra.mxu0 %v734
  %v892 = vpop.f32.mrf.mxu0
  %v893 = vadd.f32 %v79, %v892
  %v894 = vpop.f32.mrf.mxu0
  %v895 = vpop.f32.mrf.mxu0
  %v896 = vadd.f32 %v79, %v895
  %v897 = vpop.f32.mrf.mxu0
  %898 = vmatprep.mubr.bf16.mxu0 0
  %899 = vmatmul.mubr.bf16.gmra.mxu0 %v737
  %v900 = vpop.f32.mrf.mxu0
  %v901 = vadd.f32 %v79, %v900
  %v902 = vpop.f32.mrf.mxu0
  %v903 = vpop.f32.mrf.mxu0
  %v904 = vadd.f32 %v79, %v903
  %v905 = vpop.f32.mrf.mxu0
  %906 = vmatprep.mubr.bf16.mxu0 0
  %907 = vmatmul.mubr.bf16.gmra.mxu0 %v740
  %v908 = vpop.f32.mrf.mxu0
  %v909 = vadd.f32 %v79, %v908
  %v910 = vpop.f32.mrf.mxu0
  %v911 = vpop.f32.mrf.mxu0
  %v912 = vadd.f32 %v79, %v911
  %v913 = vpop.f32.mrf.mxu0
  %914 = vmatprep.mubr.bf16.mxu0 0
  %915 = vmatmul.mubr.bf16.gmra.mxu0 %v743
  %v916 = vpop.f32.mrf.mxu0
  %v917 = vadd.f32 %v79, %v916
  %v918 = vpop.f32.mrf.mxu0
  %v919 = vpop.f32.mrf.mxu0
  %v920 = vadd.f32 %v79, %v919
  %v921 = vpop.f32.mrf.mxu0
  %922 = vmatprep.mubr.bf16.mxu0 0
  %923 = vmatmul.mubr.bf16.gmra.mxu0 %v746
  %v924 = vpop.f32.mrf.mxu0
  %v925 = vadd.f32 %v79, %v924
  %v926 = vpop.f32.mrf.mxu0
  %v927 = vpop.f32.mrf.mxu0
  %v928 = vadd.f32 %v79, %v927
  %v929 = vpop.f32.mrf.mxu0
  %930 = vmatprep.mubr.bf16.mxu0 0
  %931 = vmatmul.mubr.bf16.gmra.mxu0 %v749
  %v932 = vpop.f32.mrf.mxu0
  %v933 = vadd.f32 %v79, %v932
  %v934 = vpop.f32.mrf.mxu0
  %v935 = vpop.f32.mrf.mxu0
  %v936 = vadd.f32 %v79, %v935
  %v937 = vpop.f32.mrf.mxu0
  %938 = vmatprep.mubr.bf16.mxu0 0
  %939 = vmatmul.mubr.bf16.gmra.mxu0 %v752
  %v940 = vpop.f32.mrf.mxu0
  %v941 = vadd.f32 %v79, %v940
  %v942 = vpop.f32.mrf.mxu0
  %v943 = vpop.f32.mrf.mxu0
  %v944 = vadd.f32 %v79, %v943
  %v945 = vpop.f32.mrf.mxu0
  %946 = vmatprep.mubr.bf16.mxu0 0
  %947 = vmatmul.mubr.bf16.gmra.mxu0 %v755
  %v948 = vpop.f32.mrf.mxu0
  %v949 = vadd.f32 %v79, %v948
  %v950 = vpop.f32.mrf.mxu0
  %v951 = vpop.f32.mrf.mxu0
  %v952 = vadd.f32 %v79, %v951
  %v953 = vpop.f32.mrf.mxu0
  %954 = vmatprep.mubr.bf16.mxu0 0
  %955 = vmatmul.mubr.bf16.gmra.mxu0 %v758
  %v956 = vpop.f32.mrf.mxu0
  %v957 = vadd.f32 %v79, %v956
  %v958 = vpop.f32.mrf.mxu0
  %v959 = vpop.f32.mrf.mxu0
  %v960 = vadd.f32 %v79, %v959
  %v961 = vpop.f32.mrf.mxu0
  %962 = vmatprep.mubr.bf16.mxu0 0
  %963 = vmatmul.mubr.bf16.gmra.mxu0 %v761
  %v964 = vpop.f32.mrf.mxu0
  %v965 = vadd.f32 %v79, %v964
  %v966 = vpop.f32.mrf.mxu0
  %v967 = vpop.f32.mrf.mxu0
  %v968 = vadd.f32 %v79, %v967
  %v969 = vpop.f32.mrf.mxu0
  %970 = vmatprep.mubr.bf16.mxu0 0
  %971 = vmatmul.mubr.bf16.gmra.mxu0 %v764
  %v972 = vpop.f32.mrf.mxu0
  %v973 = vadd.f32 %v79, %v972
  %v974 = vpop.f32.mrf.mxu0
  %v975 = vpop.f32.mrf.mxu0
  %v976 = vadd.f32 %v79, %v975
  %v977 = vpop.f32.mrf.mxu0
  %978 = vmatprep.mubr.bf16.mxu0 0
  %979 = vmatmul.mubr.bf16.gmra.mxu0 %v767
  %v980 = vpop.f32.mrf.mxu0
  %v981 = vadd.f32 %v79, %v980
  %v982 = vpop.f32.mrf.mxu0
  %v983 = vpop.f32.mrf.mxu0
  %v984 = vadd.f32 %v79, %v983
  %v985 = vpop.f32.mrf.mxu0
  %986 = vmatprep.mubr.bf16.mxu0 0
  %987 = vmatmul.mubr.bf16.gmra.mxu0 %v770
  %v988 = vpop.f32.mrf.mxu0
  %v989 = vadd.f32 %v79, %v988
  %v990 = vpop.f32.mrf.mxu0
  %v991 = vpop.f32.mrf.mxu0
  %v992 = vadd.f32 %v79, %v991
  %v993 = vpop.f32.mrf.mxu0
  %994 = vmatprep.mubr.bf16.mxu0 0
  %995 = vmatmul.mubr.bf16.gmra.mxu0 %v773
  %v996 = vpop.f32.mrf.mxu0
  %v997 = vadd.f32 %v79, %v996
  %v998 = vpop.f32.mrf.mxu0
  %v999 = vpop.f32.mrf.mxu0
  %v1000 = vadd.f32 %v79, %v999
  %v1001 = vpop.f32.mrf.mxu0
  %1002 = vmatprep.mubr.bf16.mxu0 0
  %1003 = vmatmul.mubr.bf16.gmra.mxu0 %v776
  %v1004 = vpop.f32.mrf.mxu0
  %v1005 = vadd.f32 %v79, %v1004
  %v1006 = vpop.f32.mrf.mxu0
  %v1007 = vpop.f32.mrf.mxu0
  %v1008 = vpop.f32.mrf.mxu0
  %1009 = vdwg.mxu0
  %s1010 = scalar_lea.vmem %s0, 392
  %v1011 = vld [vmem:[%s1010] sm:$0xf]
  %v1012 = vld [vmem:[%s1010 + $0x4] sm:$0xf]
  %v1013 = vld [vmem:[%s1010 + $0x8] sm:$0xf]
  %v1014 = vld [vmem:[%s1010 + $0xc] sm:$0xf]
  %v1015 = vld [vmem:[%s1010 + $0x10] sm:$0xf]
  %v1016 = vld [vmem:[%s1010 + $0x14] sm:$0xf]
  %v1017 = vld [vmem:[%s1010 + $0x18] sm:$0xf]
  %v1018 = vld [vmem:[%s1010 + $0x1c] sm:$0xf]
  %v1019 = vld [vmem:[%s1010 + $0x20] sm:$0xf]
  %v1020 = vld [vmem:[%s1010 + $0x24] sm:$0xf]
  %v1021 = vld [vmem:[%s1010 + $0x28] sm:$0xf]
  %v1022 = vld [vmem:[%s1010 + $0x2c] sm:$0xf]
  %v1023 = vld [vmem:[%s1010 + $0x30] sm:$0xf]
  %v1024 = vld [vmem:[%s1010 + $0x34] sm:$0xf]
  %v1025 = vld [vmem:[%s1010 + $0x38] sm:$0xf]
  %v1026 = vld [vmem:[%s1010 + $0x3c] sm:$0xf]
  %v1027 = vld [vmem:[%s1010 + $0x40] sm:$0xf]
  %v1028 = vld [vmem:[%s1010 + $0x44] sm:$0xf]
  %v1029 = vld [vmem:[%s1010 + $0x48] sm:$0xf]
  %v1030 = vld [vmem:[%s1010 + $0x4c] sm:$0xf]
  %v1031 = vld [vmem:[%s1010 + $0x50] sm:$0xf]
  %v1032 = vld [vmem:[%s1010 + $0x54] sm:$0xf]
  %v1033 = vld [vmem:[%s1010 + $0x58] sm:$0xf]
  %v1034 = vld [vmem:[%s1010 + $0x5c] sm:$0xf]
  %v1035 = vld [vmem:[%s1010 + $0x60] sm:$0xf]
  %v1036 = vld [vmem:[%s1010 + $0x64] sm:$0xf]
  %v1037 = vld [vmem:[%s1010 + $0x68] sm:$0xf]
  %v1038 = vld [vmem:[%s1010 + $0x6c] sm:$0xf]
  %v1039 = vld [vmem:[%s1010 + $0x70] sm:$0xf]
  %v1040 = vld [vmem:[%s1010 + $0x74] sm:$0xf]
  %v1041 = vld [vmem:[%s1010 + $0x78] sm:$0xf]
  %v1042 = vld [vmem:[%s1010 + $0x7c] sm:$0xf]
  %v1043 = vld [vmem:[%s1010 + $0x80] sm:$0xf]
  %v1044 = vld [vmem:[%s1010 + $0x84] sm:$0xf]
  %v1045 = vld [vmem:[%s1010 + $0x88] sm:$0xf]
  %v1046 = vld [vmem:[%s1010 + $0x8c] sm:$0xf]
  %v1047 = vld [vmem:[%s1010 + $0x90] sm:$0xf]
  %v1048 = vld [vmem:[%s1010 + $0x94] sm:$0xf]
  %v1049 = vld [vmem:[%s1010 + $0x98] sm:$0xf]
  %v1050 = vld [vmem:[%s1010 + $0x9c] sm:$0xf]
  %v1051 = vld [vmem:[%s1010 + $0xa0] sm:$0xf]
  %v1052 = vld [vmem:[%s1010 + $0xa4] sm:$0xf]
  %v1053 = vld [vmem:[%s1010 + $0xa8] sm:$0xf]
  %v1054 = vld [vmem:[%s1010 + $0xac] sm:$0xf]
  %v1055 = vld [vmem:[%s1010 + $0xb0] sm:$0xf]
  %v1056 = vld [vmem:[%s1010 + $0xb4] sm:$0xf]
  %v1057 = vld [vmem:[%s1010 + $0xb8] sm:$0xf]
  %v1058 = vld [vmem:[%s1010 + $0xbc] sm:$0xf]
  %v1059 = vld [vmem:[%s1010 + $0xc0] sm:$0xf]
  %v1109 = vunpack.c.l.b16 %v1011
  %v1110 = vunpack.c.l.b16 %v1012
  %v1111 = vunpack.c.l.b16 %v1013
  %v1112 = vunpack.c.l.b16 %v1014
  %v1113 = vunpack.c.l.b16 %v1015
  %v1114 = vunpack.c.l.b16 %v1016
  %v1115 = vunpack.c.l.b16 %v1017
  %v1116 = vunpack.c.l.b16 %v1018
  %v1117 = vunpack.c.l.b16 %v1019
  %v1118 = vunpack.c.l.b16 %v1020
  %v1119 = vunpack.c.l.b16 %v1021
  %v1120 = vunpack.c.l.b16 %v1022
  %v1121 = vunpack.c.l.b16 %v1023
  %v1122 = vunpack.c.l.b16 %v1024
  %v1123 = vunpack.c.l.b16 %v1025
  %v1124 = vunpack.c.l.b16 %v1026
  %v1125 = vunpack.c.l.b16 %v1027
  %v1126 = vunpack.c.l.b16 %v1028
  %v1127 = vunpack.c.l.b16 %v1029
  %v1128 = vunpack.c.l.b16 %v1030
  %v1129 = vunpack.c.l.b16 %v1031
  %v1130 = vunpack.c.l.b16 %v1032
  %v1131 = vunpack.c.l.b16 %v1033
  %v1132 = vunpack.c.l.b16 %v1034
  %v1133 = vunpack.c.l.b16 %v1035
  %v1134 = vunpack.c.l.b16 %v1036
  %v1135 = vunpack.c.l.b16 %v1037
  %v1136 = vunpack.c.l.b16 %v1038
  %v1137 = vunpack.c.l.b16 %v1039
  %v1138 = vunpack.c.l.b16 %v1040
  %v1139 = vunpack.c.l.b16 %v1041
  %v1140 = vunpack.c.l.b16 %v1042
  %v1141 = vunpack.c.l.b16 %v1043
  %v1142 = vunpack.c.l.b16 %v1044
  %v1143 = vunpack.c.l.b16 %v1045
  %v1144 = vunpack.c.l.b16 %v1046
  %v1145 = vunpack.c.l.b16 %v1047
  %v1146 = vunpack.c.l.b16 %v1048
  %v1147 = vunpack.c.l.b16 %v1049
  %v1148 = vunpack.c.l.b16 %v1050
  %v1149 = vunpack.c.l.b16 %v1051
  %v1150 = vunpack.c.l.b16 %v1052
  %v1151 = vunpack.c.l.b16 %v1053
  %v1152 = vunpack.c.l.b16 %v1054
  %v1153 = vunpack.c.l.b16 %v1055
  %v1154 = vunpack.c.l.b16 %v1056
  %v1155 = vunpack.c.l.b16 %v1057
  %v1156 = vunpack.c.l.b16 %v1058
  %v1157 = vunpack.c.l.b16 %v1059
  %v1158 = vpack.c.b16 %v1110, %v1109
  %v1159 = vpack.c.b16 %v1112, %v1111
  %v1160 = vpack.c.b16 %v1114, %v1113
  %v1161 = vpack.c.b16 %v1116, %v1115
  %v1162 = vpack.c.b16 %v1118, %v1117
  %v1163 = vpack.c.b16 %v1120, %v1119
  %v1164 = vpack.c.b16 %v1122, %v1121
  %v1165 = vpack.c.b16 %v1124, %v1123
  %v1166 = vpack.c.b16 %v1126, %v1125
  %v1167 = vpack.c.b16 %v1128, %v1127
  %v1168 = vpack.c.b16 %v1130, %v1129
  %v1169 = vpack.c.b16 %v1132, %v1131
  %v1170 = vpack.c.b16 %v1134, %v1133
  %v1171 = vpack.c.b16 %v1136, %v1135
  %v1172 = vpack.c.b16 %v1138, %v1137
  %v1173 = vpack.c.b16 %v1140, %v1139
  %v1174 = vpack.c.b16 %v1142, %v1141
  %v1175 = vpack.c.b16 %v1144, %v1143
  %v1176 = vpack.c.b16 %v1146, %v1145
  %v1177 = vpack.c.b16 %v1148, %v1147
  %v1178 = vpack.c.b16 %v1150, %v1149
  %v1179 = vpack.c.b16 %v1152, %v1151
  %v1180 = vpack.c.b16 %v1154, %v1153
  %v1181 = vpack.c.b16 %v1156, %v1155
  %v1182 = vpack.c.b16 %v1157, %v1157
  %v1184 = vsel %vm215, %v1158, 0
  %v1187 = vsel %vm215, %v1159, 0
  %v1190 = vsel %vm215, %v1160, 0
  %v1193 = vsel %vm215, %v1161, 0
  %v1196 = vsel %vm215, %v1162, 0
  %v1199 = vsel %vm215, %v1163, 0
  %v1202 = vsel %vm215, %v1164, 0
  %v1205 = vsel %vm215, %v1165, 0
  %v1208 = vsel %vm215, %v1166, 0
  %v1211 = vsel %vm215, %v1167, 0
  %v1214 = vsel %vm215, %v1168, 0
  %v1217 = vsel %vm215, %v1169, 0
  %v1220 = vsel %vm215, %v1170, 0
  %v1223 = vsel %vm215, %v1171, 0
  %v1226 = vsel %vm215, %v1172, 0
  %v1229 = vsel %vm215, %v1173, 0
  %v1232 = vsel %vm215, %v1174, 0
  %v1235 = vsel %vm215, %v1175, 0
  %v1238 = vsel %vm215, %v1176, 0
  %v1241 = vsel %vm215, %v1177, 0
  %v1244 = vsel %vm215, %v1178, 0
  %v1247 = vsel %vm215, %v1179, 0
  %v1250 = vsel %vm215, %v1180, 0
  %v1253 = vsel %vm215, %v1181, 0
  %v1256 = vsel %vm215, %v1182, 0
  %1258 = vmatprep.subr.bf16.mxu0 0
  %1259 = vmatpush1.bf16.msra.mxu0 0
  %1260 = vmatprep.subr.bf16.mxu0 0
  %1261 = vmatpush1.bf16.msra.mxu0 0
  %1262 = vmatprep.subr.bf16.mxu0 0
  %1263 = vmatpush1.bf16.msra.mxu0 0
  %1264 = vmatprep.subr.bf16.mxu0 0
  %1265 = vmatpush1.bf16.msra.mxu0 0
  %1266 = vmatprep.subr.bf16.mxu0 0
  %1267 = vmatpush1.bf16.msra.mxu0 0
  %1268 = vmatprep.subr.bf16.mxu0 0
  %1269 = vmatpush1.bf16.msra.mxu0 0
  %1270 = vmatprep.subr.bf16.mxu0 0
  %1271 = vmatpush1.bf16.msra.mxu0 %v296
  %1272 = vmatprep.subr.bf16.mxu0 0
  %1273 = vmatpush1.bf16.msra.mxu0 %v212
  %1274 = vmatprep.subr.bf16.mxu0 0
  %1275 = vmatpush2.bf16.msra.mxu0 0
  %1276 = vmatprep.subr.bf16.mxu0 0
  %1277 = vmatpush2.bf16.msra.mxu0 0
  %1278 = vmatprep.subr.bf16.mxu0 0
  %1279 = vmatpush2.bf16.msra.mxu0 0
  %1280 = vmatprep.subr.bf16.mxu0 0
  %1281 = vmatpush2.bf16.msra.mxu0 0
  %1282 = vmatprep.subr.bf16.mxu0 0
  %1283 = vmatpush2.bf16.msra.mxu0 0
  %1284 = vmatprep.subr.bf16.mxu0 0
  %1285 = vmatpush2.bf16.msra.mxu0 0
  %1286 = vmatprep.subr.bf16.mxu0 0
  %1287 = vmatpush2.bf16.msra.mxu0 0
  %1288 = vmatprep.subr.bf16.mxu0 0
  %1289 = vmatpush2.bf16.msra.mxu0 0
  %1290 = vmatprep.mubr.bf16.mxu0 0
  %1291 = vmatmul.mubr.bf16.gmra.mxu0 %v1184
  %v1292 = vpop.f32.mrf.mxu0
  %v1293 = vadd.f32 %v79, %v1292
  %v1294 = vpop.f32.mrf.mxu0
  %v1295 = vpop.f32.mrf.mxu0
  %v1296 = vadd.f32 %v79, %v1295
  %v1297 = vpop.f32.mrf.mxu0
  %1298 = vmatprep.mubr.bf16.mxu0 0
  %1299 = vmatmul.mubr.bf16.gmra.mxu0 %v1187
  %v1300 = vpop.f32.mrf.mxu0
  %v1301 = vadd.f32 %v79, %v1300
  %v1302 = vpop.f32.mrf.mxu0
  %v1303 = vpop.f32.mrf.mxu0
  %v1304 = vadd.f32 %v79, %v1303
  %v1305 = vpop.f32.mrf.mxu0
  %1306 = vmatprep.mubr.bf16.mxu0 0
  %1307 = vmatmul.mubr.bf16.gmra.mxu0 %v1190
  %v1308 = vpop.f32.mrf.mxu0
  %v1309 = vadd.f32 %v79, %v1308
  %v1310 = vpop.f32.mrf.mxu0
  %v1311 = vpop.f32.mrf.mxu0
  %v1312 = vadd.f32 %v79, %v1311
  %v1313 = vpop.f32.mrf.mxu0
  %1314 = vmatprep.mubr.bf16.mxu0 0
  %1315 = vmatmul.mubr.bf16.gmra.mxu0 %v1193
  %v1316 = vpop.f32.mrf.mxu0
  %v1317 = vadd.f32 %v79, %v1316
  %v1318 = vpop.f32.mrf.mxu0
  %v1319 = vpop.f32.mrf.mxu0
  %v1320 = vadd.f32 %v79, %v1319
  %v1321 = vpop.f32.mrf.mxu0
  %1322 = vmatprep.mubr.bf16.mxu0 0
  %1323 = vmatmul.mubr.bf16.gmra.mxu0 %v1196
  %v1324 = vpop.f32.mrf.mxu0
  %v1325 = vadd.f32 %v79, %v1324
  %v1326 = vpop.f32.mrf.mxu0
  %v1327 = vpop.f32.mrf.mxu0
  %v1328 = vadd.f32 %v79, %v1327
  %v1329 = vpop.f32.mrf.mxu0
  %1330 = vmatprep.mubr.bf16.mxu0 0
  %1331 = vmatmul.mubr.bf16.gmra.mxu0 %v1199
  %v1332 = vpop.f32.mrf.mxu0
  %v1333 = vadd.f32 %v79, %v1332
  %v1334 = vpop.f32.mrf.mxu0
  %v1335 = vpop.f32.mrf.mxu0
  %v1336 = vadd.f32 %v79, %v1335
  %v1337 = vpop.f32.mrf.mxu0
  %1338 = vmatprep.mubr.bf16.mxu0 0
  %1339 = vmatmul.mubr.bf16.gmra.mxu0 %v1202
  %v1340 = vpop.f32.mrf.mxu0
  %v1341 = vadd.f32 %v79, %v1340
  %v1342 = vpop.f32.mrf.mxu0
  %v1343 = vpop.f32.mrf.mxu0
  %v1344 = vadd.f32 %v79, %v1343
  %v1345 = vpop.f32.mrf.mxu0
  %1346 = vmatprep.mubr.bf16.mxu0 0
  %1347 = vmatmul.mubr.bf16.gmra.mxu0 %v1205
  %v1348 = vpop.f32.mrf.mxu0
  %v1349 = vadd.f32 %v79, %v1348
  %v1350 = vpop.f32.mrf.mxu0
  %v1351 = vpop.f32.mrf.mxu0
  %v1352 = vadd.f32 %v79, %v1351
  %v1353 = vpop.f32.mrf.mxu0
  %1354 = vmatprep.mubr.bf16.mxu0 0
  %1355 = vmatmul.mubr.bf16.gmra.mxu0 %v1208
  %v1356 = vpop.f32.mrf.mxu0
  %v1357 = vadd.f32 %v79, %v1356
  %v1358 = vpop.f32.mrf.mxu0
  %v1359 = vpop.f32.mrf.mxu0
  %v1360 = vadd.f32 %v79, %v1359
  %v1361 = vpop.f32.mrf.mxu0
  %1362 = vmatprep.mubr.bf16.mxu0 0
  %1363 = vmatmul.mubr.bf16.gmra.mxu0 %v1211
  %v1364 = vpop.f32.mrf.mxu0
  %v1365 = vadd.f32 %v79, %v1364
  %v1366 = vpop.f32.mrf.mxu0
  %v1367 = vpop.f32.mrf.mxu0
  %v1368 = vadd.f32 %v79, %v1367
  %v1369 = vpop.f32.mrf.mxu0
  %1370 = vmatprep.mubr.bf16.mxu0 0
  %1371 = vmatmul.mubr.bf16.gmra.mxu0 %v1214
  %v1372 = vpop.f32.mrf.mxu0
  %v1373 = vadd.f32 %v79, %v1372
  %v1374 = vpop.f32.mrf.mxu0
  %v1375 = vpop.f32.mrf.mxu0
  %v1376 = vadd.f32 %v79, %v1375
  %v1377 = vpop.f32.mrf.mxu0
  %1378 = vmatprep.mubr.bf16.mxu0 0
  %1379 = vmatmul.mubr.bf16.gmra.mxu0 %v1217
  %v1380 = vpop.f32.mrf.mxu0
  %v1381 = vadd.f32 %v79, %v1380
  %v1382 = vpop.f32.mrf.mxu0
  %v1383 = vpop.f32.mrf.mxu0
  %v1384 = vadd.f32 %v79, %v1383
  %v1385 = vpop.f32.mrf.mxu0
  %1386 = vmatprep.mubr.bf16.mxu0 0
  %1387 = vmatmul.mubr.bf16.gmra.mxu0 %v1220
  %v1388 = vpop.f32.mrf.mxu0
  %v1389 = vadd.f32 %v79, %v1388
  %v1390 = vpop.f32.mrf.mxu0
  %v1391 = vpop.f32.mrf.mxu0
  %v1392 = vadd.f32 %v79, %v1391
  %v1393 = vpop.f32.mrf.mxu0
  %1394 = vmatprep.mubr.bf16.mxu0 0
  %1395 = vmatmul.mubr.bf16.gmra.mxu0 %v1223
  %v1396 = vpop.f32.mrf.mxu0
  %v1397 = vadd.f32 %v79, %v1396
  %v1398 = vpop.f32.mrf.mxu0
  %v1399 = vpop.f32.mrf.mxu0
  %v1400 = vadd.f32 %v79, %v1399
  %v1401 = vpop.f32.mrf.mxu0
  %1402 = vmatprep.mubr.bf16.mxu0 0
  %1403 = vmatmul.mubr.bf16.gmra.mxu0 %v1226
  %v1404 = vpop.f32.mrf.mxu0
  %v1405 = vadd.f32 %v79, %v1404
  %v1406 = vpop.f32.mrf.mxu0
  %v1407 = vpop.f32.mrf.mxu0
  %v1408 = vadd.f32 %v79, %v1407
  %v1409 = vpop.f32.mrf.mxu0
  %1410 = vmatprep.mubr.bf16.mxu0 0
  %1411 = vmatmul.mubr.bf16.gmra.mxu0 %v1229
  %v1412 = vpop.f32.mrf.mxu0
  %v1413 = vadd.f32 %v79, %v1412
  %v1414 = vpop.f32.mrf.mxu0
  %v1415 = vpop.f32.mrf.mxu0
  %v1416 = vadd.f32 %v79, %v1415
  %v1417 = vpop.f32.mrf.mxu0
  %1418 = vmatprep.mubr.bf16.mxu0 0
  %1419 = vmatmul.mubr.bf16.gmra.mxu0 %v1232
  %v1420 = vpop.f32.mrf.mxu0
  %v1421 = vadd.f32 %v79, %v1420
  %v1422 = vpop.f32.mrf.mxu0
  %v1423 = vpop.f32.mrf.mxu0
  %v1424 = vadd.f32 %v79, %v1423
  %v1425 = vpop.f32.mrf.mxu0
  %1426 = vmatprep.mubr.bf16.mxu0 0
  %1427 = vmatmul.mubr.bf16.gmra.mxu0 %v1235
  %v1428 = vpop.f32.mrf.mxu0
  %v1429 = vadd.f32 %v79, %v1428
  %v1430 = vpop.f32.mrf.mxu0
  %v1431 = vpop.f32.mrf.mxu0
  %v1432 = vadd.f32 %v79, %v1431
  %v1433 = vpop.f32.mrf.mxu0
  %1434 = vmatprep.mubr.bf16.mxu0 0
  %1435 = vmatmul.mubr.bf16.gmra.mxu0 %v1238
  %v1436 = vpop.f32.mrf.mxu0
  %v1437 = vadd.f32 %v79, %v1436
  %v1438 = vpop.f32.mrf.mxu0
  %v1439 = vpop.f32.mrf.mxu0
  %v1440 = vadd.f32 %v79, %v1439
  %v1441 = vpop.f32.mrf.mxu0
  %1442 = vmatprep.mubr.bf16.mxu0 0
  %1443 = vmatmul.mubr.bf16.gmra.mxu0 %v1241
  %v1444 = vpop.f32.mrf.mxu0
  %v1445 = vadd.f32 %v79, %v1444
  %v1446 = vpop.f32.mrf.mxu0
  %v1447 = vpop.f32.mrf.mxu0
  %v1448 = vadd.f32 %v79, %v1447
  %v1449 = vpop.f32.mrf.mxu0
  %1450 = vmatprep.mubr.bf16.mxu0 0
  %1451 = vmatmul.mubr.bf16.gmra.mxu0 %v1244
  %v1452 = vpop.f32.mrf.mxu0
  %v1453 = vadd.f32 %v79, %v1452
  %v1454 = vpop.f32.mrf.mxu0
  %v1455 = vpop.f32.mrf.mxu0
  %v1456 = vadd.f32 %v79, %v1455
  %v1457 = vpop.f32.mrf.mxu0
  %1458 = vmatprep.mubr.bf16.mxu0 0
  %1459 = vmatmul.mubr.bf16.gmra.mxu0 %v1247
  %v1460 = vpop.f32.mrf.mxu0
  %v1461 = vadd.f32 %v79, %v1460
  %v1462 = vpop.f32.mrf.mxu0
  %v1463 = vpop.f32.mrf.mxu0
  %v1464 = vadd.f32 %v79, %v1463
  %v1465 = vpop.f32.mrf.mxu0
  %1466 = vmatprep.mubr.bf16.mxu0 0
  %1467 = vmatmul.mubr.bf16.gmra.mxu0 %v1250
  %v1468 = vpop.f32.mrf.mxu0
  %v1469 = vadd.f32 %v79, %v1468
  %v1470 = vpop.f32.mrf.mxu0
  %v1471 = vpop.f32.mrf.mxu0
  %v1472 = vadd.f32 %v79, %v1471
  %v1473 = vpop.f32.mrf.mxu0
  %1474 = vmatprep.mubr.bf16.mxu0 0
  %1475 = vmatmul.mubr.bf16.gmra.mxu0 %v1253
  %v1476 = vpop.f32.mrf.mxu0
  %v1477 = vadd.f32 %v79, %v1476
  %v1478 = vpop.f32.mrf.mxu0
  %v1479 = vpop.f32.mrf.mxu0
  %v1480 = vadd.f32 %v79, %v1479
  %v1481 = vpop.f32.mrf.mxu0
  %1482 = vmatprep.mubr.bf16.mxu0 0
  %1483 = vmatmul.mubr.bf16.gmra.mxu0 %v1256
  %v1484 = vpop.f32.mrf.mxu0
  %v1485 = vadd.f32 %v79, %v1484
  %v1486 = vpop.f32.mrf.mxu0
  %v1487 = vpop.f32.mrf.mxu0
  %v1488 = vpop.f32.mrf.mxu0
  %1489 = vdwg.mxu0
  %s1490 = scalar_lea.vmem %s0, 588
  %v1491 = vld [vmem:[%s1490] sm:$0xf]
  %v1492 = vld [vmem:[%s1490 + $0x4] sm:$0xf]
  %v1493 = vld [vmem:[%s1490 + $0x8] sm:$0xf]
  %v1494 = vld [vmem:[%s1490 + $0xc] sm:$0xf]
  %v1495 = vld [vmem:[%s1490 + $0x10] sm:$0xf]
  %v1496 = vld [vmem:[%s1490 + $0x14] sm:$0xf]
  %v1497 = vld [vmem:[%s1490 + $0x18] sm:$0xf]
  %v1498 = vld [vmem:[%s1490 + $0x1c] sm:$0xf]
  %v1499 = vld [vmem:[%s1490 + $0x20] sm:$0xf]
  %v1500 = vld [vmem:[%s1490 + $0x24] sm:$0xf]
  %v1501 = vld [vmem:[%s1490 + $0x28] sm:$0xf]
  %v1502 = vld [vmem:[%s1490 + $0x2c] sm:$0xf]
  %v1503 = vld [vmem:[%s1490 + $0x30] sm:$0xf]
  %v1504 = vld [vmem:[%s1490 + $0x34] sm:$0xf]
  %v1505 = vld [vmem:[%s1490 + $0x38] sm:$0xf]
  %v1506 = vld [vmem:[%s1490 + $0x3c] sm:$0xf]
  %v1507 = vld [vmem:[%s1490 + $0x40] sm:$0xf]
  %v1508 = vld [vmem:[%s1490 + $0x44] sm:$0xf]
  %v1509 = vld [vmem:[%s1490 + $0x48] sm:$0xf]
  %v1510 = vld [vmem:[%s1490 + $0x4c] sm:$0xf]
  %v1511 = vld [vmem:[%s1490 + $0x50] sm:$0xf]
  %v1512 = vld [vmem:[%s1490 + $0x54] sm:$0xf]
  %v1513 = vld [vmem:[%s1490 + $0x58] sm:$0xf]
  %v1514 = vld [vmem:[%s1490 + $0x5c] sm:$0xf]
  %v1515 = vld [vmem:[%s1490 + $0x60] sm:$0xf]
  %v1516 = vld [vmem:[%s1490 + $0x64] sm:$0xf]
  %v1517 = vld [vmem:[%s1490 + $0x68] sm:$0xf]
  %v1518 = vld [vmem:[%s1490 + $0x6c] sm:$0xf]
  %v1519 = vld [vmem:[%s1490 + $0x70] sm:$0xf]
  %v1520 = vld [vmem:[%s1490 + $0x74] sm:$0xf]
  %v1521 = vld [vmem:[%s1490 + $0x78] sm:$0xf]
  %v1522 = vld [vmem:[%s1490 + $0x7c] sm:$0xf]
  %v1523 = vld [vmem:[%s1490 + $0x80] sm:$0xf]
  %v1524 = vld [vmem:[%s1490 + $0x84] sm:$0xf]
  %v1525 = vld [vmem:[%s1490 + $0x88] sm:$0xf]
  %v1526 = vld [vmem:[%s1490 + $0x8c] sm:$0xf]
  %v1527 = vld [vmem:[%s1490 + $0x90] sm:$0xf]
  %v1528 = vld [vmem:[%s1490 + $0x94] sm:$0xf]
  %v1529 = vld [vmem:[%s1490 + $0x98] sm:$0xf]
  %v1530 = vld [vmem:[%s1490 + $0x9c] sm:$0xf]
  %v1531 = vld [vmem:[%s1490 + $0xa0] sm:$0xf]
  %v1532 = vld [vmem:[%s1490 + $0xa4] sm:$0xf]
  %v1533 = vld [vmem:[%s1490 + $0xa8] sm:$0xf]
  %v1534 = vld [vmem:[%s1490 + $0xac] sm:$0xf]
  %v1535 = vld [vmem:[%s1490 + $0xb0] sm:$0xf]
  %v1536 = vld [vmem:[%s1490 + $0xb4] sm:$0xf]
  %v1537 = vld [vmem:[%s1490 + $0xb8] sm:$0xf]
  %v1538 = vld [vmem:[%s1490 + $0xbc] sm:$0xf]
  %v1539 = vld [vmem:[%s1490 + $0xc0] sm:$0xf]
  %v1589 = vunpack.c.l.b16 %v1491
  %v1590 = vunpack.c.l.b16 %v1492
  %v1591 = vunpack.c.l.b16 %v1493
  %v1592 = vunpack.c.l.b16 %v1494
  %v1593 = vunpack.c.l.b16 %v1495
  %v1594 = vunpack.c.l.b16 %v1496
  %v1595 = vunpack.c.l.b16 %v1497
  %v1596 = vunpack.c.l.b16 %v1498
  %v1597 = vunpack.c.l.b16 %v1499
  %v1598 = vunpack.c.l.b16 %v1500
  %v1599 = vunpack.c.l.b16 %v1501
  %v1600 = vunpack.c.l.b16 %v1502
  %v1601 = vunpack.c.l.b16 %v1503
  %v1602 = vunpack.c.l.b16 %v1504
  %v1603 = vunpack.c.l.b16 %v1505
  %v1604 = vunpack.c.l.b16 %v1506
  %v1605 = vunpack.c.l.b16 %v1507
  %v1606 = vunpack.c.l.b16 %v1508
  %v1607 = vunpack.c.l.b16 %v1509
  %v1608 = vunpack.c.l.b16 %v1510
  %v1609 = vunpack.c.l.b16 %v1511
  %v1610 = vunpack.c.l.b16 %v1512
  %v1611 = vunpack.c.l.b16 %v1513
  %v1612 = vunpack.c.l.b16 %v1514
  %v1613 = vunpack.c.l.b16 %v1515
  %v1614 = vunpack.c.l.b16 %v1516
  %v1615 = vunpack.c.l.b16 %v1517
  %v1616 = vunpack.c.l.b16 %v1518
  %v1617 = vunpack.c.l.b16 %v1519
  %v1618 = vunpack.c.l.b16 %v1520
  %v1619 = vunpack.c.l.b16 %v1521
  %v1620 = vunpack.c.l.b16 %v1522
  %v1621 = vunpack.c.l.b16 %v1523
  %v1622 = vunpack.c.l.b16 %v1524
  %v1623 = vunpack.c.l.b16 %v1525
  %v1624 = vunpack.c.l.b16 %v1526
  %v1625 = vunpack.c.l.b16 %v1527
  %v1626 = vunpack.c.l.b16 %v1528
  %v1627 = vunpack.c.l.b16 %v1529
  %v1628 = vunpack.c.l.b16 %v1530
  %v1629 = vunpack.c.l.b16 %v1531
  %v1630 = vunpack.c.l.b16 %v1532
  %v1631 = vunpack.c.l.b16 %v1533
  %v1632 = vunpack.c.l.b16 %v1534
  %v1633 = vunpack.c.l.b16 %v1535
  %v1634 = vunpack.c.l.b16 %v1536
  %v1635 = vunpack.c.l.b16 %v1537
  %v1636 = vunpack.c.l.b16 %v1538
  %v1637 = vunpack.c.l.b16 %v1539
  %v1638 = vpack.c.b16 %v1590, %v1589
  %v1639 = vpack.c.b16 %v1592, %v1591
  %v1640 = vpack.c.b16 %v1594, %v1593
  %v1641 = vpack.c.b16 %v1596, %v1595
  %v1642 = vpack.c.b16 %v1598, %v1597
  %v1643 = vpack.c.b16 %v1600, %v1599
  %v1644 = vpack.c.b16 %v1602, %v1601
  %v1645 = vpack.c.b16 %v1604, %v1603
  %v1646 = vpack.c.b16 %v1606, %v1605
  %v1647 = vpack.c.b16 %v1608, %v1607
  %v1648 = vpack.c.b16 %v1610, %v1609
  %v1649 = vpack.c.b16 %v1612, %v1611
  %v1650 = vpack.c.b16 %v1614, %v1613
  %v1651 = vpack.c.b16 %v1616, %v1615
  %v1652 = vpack.c.b16 %v1618, %v1617
  %v1653 = vpack.c.b16 %v1620, %v1619
  %v1654 = vpack.c.b16 %v1622, %v1621
  %v1655 = vpack.c.b16 %v1624, %v1623
  %v1656 = vpack.c.b16 %v1626, %v1625
  %v1657 = vpack.c.b16 %v1628, %v1627
  %v1658 = vpack.c.b16 %v1630, %v1629
  %v1659 = vpack.c.b16 %v1632, %v1631
  %v1660 = vpack.c.b16 %v1634, %v1633
  %v1661 = vpack.c.b16 %v1636, %v1635
  %v1662 = vpack.c.b16 %v1637, %v1637
  %v1664 = vsel %vm215, %v1638, 0
  %v1667 = vsel %vm215, %v1639, 0
  %v1670 = vsel %vm215, %v1640, 0
  %v1673 = vsel %vm215, %v1641, 0
  %v1676 = vsel %vm215, %v1642, 0
  %v1679 = vsel %vm215, %v1643, 0
  %v1682 = vsel %vm215, %v1644, 0
  %v1685 = vsel %vm215, %v1645, 0
  %v1688 = vsel %vm215, %v1646, 0
  %v1691 = vsel %vm215, %v1647, 0
  %v1694 = vsel %vm215, %v1648, 0
  %v1697 = vsel %vm215, %v1649, 0
  %v1700 = vsel %vm215, %v1650, 0
  %v1703 = vsel %vm215, %v1651, 0
  %v1706 = vsel %vm215, %v1652, 0
  %v1709 = vsel %vm215, %v1653, 0
  %v1712 = vsel %vm215, %v1654, 0
  %v1715 = vsel %vm215, %v1655, 0
  %v1718 = vsel %vm215, %v1656, 0
  %v1721 = vsel %vm215, %v1657, 0
  %v1724 = vsel %vm215, %v1658, 0
  %v1727 = vsel %vm215, %v1659, 0
  %v1730 = vsel %vm215, %v1660, 0
  %v1733 = vsel %vm215, %v1661, 0
  %v1736 = vsel %vm215, %v1662, 0
  %1738 = vmatprep.subr.bf16.mxu0 0
  %1739 = vmatpush1.bf16.msra.mxu0 0
  %1740 = vmatprep.subr.bf16.mxu0 0
  %1741 = vmatpush1.bf16.msra.mxu0 0
  %1742 = vmatprep.subr.bf16.mxu0 0
  %1743 = vmatpush1.bf16.msra.mxu0 0
  %1744 = vmatprep.subr.bf16.mxu0 0
  %1745 = vmatpush1.bf16.msra.mxu0 0
  %1746 = vmatprep.subr.bf16.mxu0 0
  %1747 = vmatpush1.bf16.msra.mxu0 0
  %1748 = vmatprep.subr.bf16.mxu0 0
  %1749 = vmatpush1.bf16.msra.mxu0 0
  %1750 = vmatprep.subr.bf16.mxu0 0
  %1751 = vmatpush1.bf16.msra.mxu0 %v296
  %1752 = vmatprep.subr.bf16.mxu0 0
  %1753 = vmatpush1.bf16.msra.mxu0 %v212
  %1754 = vmatprep.subr.bf16.mxu0 0
  %1755 = vmatpush2.bf16.msra.mxu0 0
  %1756 = vmatprep.subr.bf16.mxu0 0
  %1757 = vmatpush2.bf16.msra.mxu0 0
  %1758 = vmatprep.subr.bf16.mxu0 0
  %1759 = vmatpush2.bf16.msra.mxu0 0
  %1760 = vmatprep.subr.bf16.mxu0 0
  %1761 = vmatpush2.bf16.msra.mxu0 0
  %1762 = vmatprep.subr.bf16.mxu0 0
  %1763 = vmatpush2.bf16.msra.mxu0 0
  %1764 = vmatprep.subr.bf16.mxu0 0
  %1765 = vmatpush2.bf16.msra.mxu0 0
  %1766 = vmatprep.subr.bf16.mxu0 0
  %1767 = vmatpush2.bf16.msra.mxu0 0
  %1768 = vmatprep.subr.bf16.mxu0 0
  %1769 = vmatpush2.bf16.msra.mxu0 0
  %1770 = vmatprep.mubr.bf16.mxu0 0
  %1771 = vmatmul.mubr.bf16.gmra.mxu0 %v1664
  %v1772 = vpop.f32.mrf.mxu0
  %v1773 = vadd.f32 %v79, %v1772
  %v1774 = vpop.f32.mrf.mxu0
  %v1775 = vpop.f32.mrf.mxu0
  %v1776 = vadd.f32 %v79, %v1775
  %v1777 = vpop.f32.mrf.mxu0
  %1778 = vmatprep.mubr.bf16.mxu0 0
  %1779 = vmatmul.mubr.bf16.gmra.mxu0 %v1667
  %v1780 = vpop.f32.mrf.mxu0
  %v1781 = vadd.f32 %v79, %v1780
  %v1782 = vpop.f32.mrf.mxu0
  %v1783 = vpop.f32.mrf.mxu0
  %v1784 = vadd.f32 %v79, %v1783
  %v1785 = vpop.f32.mrf.mxu0
  %1786 = vmatprep.mubr.bf16.mxu0 0
  %1787 = vmatmul.mubr.bf16.gmra.mxu0 %v1670
  %v1788 = vpop.f32.mrf.mxu0
  %v1789 = vadd.f32 %v79, %v1788
  %v1790 = vpop.f32.mrf.mxu0
  %v1791 = vpop.f32.mrf.mxu0
  %v1792 = vadd.f32 %v79, %v1791
  %v1793 = vpop.f32.mrf.mxu0
  %1794 = vmatprep.mubr.bf16.mxu0 0
  %1795 = vmatmul.mubr.bf16.gmra.mxu0 %v1673
  %v1796 = vpop.f32.mrf.mxu0
  %v1797 = vadd.f32 %v79, %v1796
  %v1798 = vpop.f32.mrf.mxu0
  %v1799 = vpop.f32.mrf.mxu0
  %v1800 = vadd.f32 %v79, %v1799
  %v1801 = vpop.f32.mrf.mxu0
  %1802 = vmatprep.mubr.bf16.mxu0 0
  %1803 = vmatmul.mubr.bf16.gmra.mxu0 %v1676
  %v1804 = vpop.f32.mrf.mxu0
  %v1805 = vadd.f32 %v79, %v1804
  %v1806 = vpop.f32.mrf.mxu0
  %v1807 = vpop.f32.mrf.mxu0
  %v1808 = vadd.f32 %v79, %v1807
  %v1809 = vpop.f32.mrf.mxu0
  %1810 = vmatprep.mubr.bf16.mxu0 0
  %1811 = vmatmul.mubr.bf16.gmra.mxu0 %v1679
  %v1812 = vpop.f32.mrf.mxu0
  %v1813 = vadd.f32 %v79, %v1812
  %v1814 = vpop.f32.mrf.mxu0
  %v1815 = vpop.f32.mrf.mxu0
  %v1816 = vadd.f32 %v79, %v1815
  %v1817 = vpop.f32.mrf.mxu0
  %1818 = vmatprep.mubr.bf16.mxu0 0
  %1819 = vmatmul.mubr.bf16.gmra.mxu0 %v1682
  %v1820 = vpop.f32.mrf.mxu0
  %v1821 = vadd.f32 %v79, %v1820
  %v1822 = vpop.f32.mrf.mxu0
  %v1823 = vpop.f32.mrf.mxu0
  %v1824 = vadd.f32 %v79, %v1823
  %v1825 = vpop.f32.mrf.mxu0
  %1826 = vmatprep.mubr.bf16.mxu0 0
  %1827 = vmatmul.mubr.bf16.gmra.mxu0 %v1685
  %v1828 = vpop.f32.mrf.mxu0
  %v1829 = vadd.f32 %v79, %v1828
  %v1830 = vpop.f32.mrf.mxu0
  %v1831 = vpop.f32.mrf.mxu0
  %v1832 = vadd.f32 %v79, %v1831
  %v1833 = vpop.f32.mrf.mxu0
  %1834 = vmatprep.mubr.bf16.mxu0 0
  %1835 = vmatmul.mubr.bf16.gmra.mxu0 %v1688
  %v1836 = vpop.f32.mrf.mxu0
  %v1837 = vadd.f32 %v79, %v1836
  %v1838 = vpop.f32.mrf.mxu0
  %v1839 = vpop.f32.mrf.mxu0
  %v1840 = vadd.f32 %v79, %v1839
  %v1841 = vpop.f32.mrf.mxu0
  %1842 = vmatprep.mubr.bf16.mxu0 0
  %1843 = vmatmul.mubr.bf16.gmra.mxu0 %v1691
  %v1844 = vpop.f32.mrf.mxu0
  %v1845 = vadd.f32 %v79, %v1844
  %v1846 = vpop.f32.mrf.mxu0
  %v1847 = vpop.f32.mrf.mxu0
  %v1848 = vadd.f32 %v79, %v1847
  %v1849 = vpop.f32.mrf.mxu0
  %1850 = vmatprep.mubr.bf16.mxu0 0
  %1851 = vmatmul.mubr.bf16.gmra.mxu0 %v1694
  %v1852 = vpop.f32.mrf.mxu0
  %v1853 = vadd.f32 %v79, %v1852
  %v1854 = vpop.f32.mrf.mxu0
  %v1855 = vpop.f32.mrf.mxu0
  %v1856 = vadd.f32 %v79, %v1855
  %v1857 = vpop.f32.mrf.mxu0
  %1858 = vmatprep.mubr.bf16.mxu0 0
  %1859 = vmatmul.mubr.bf16.gmra.mxu0 %v1697
  %v1860 = vpop.f32.mrf.mxu0
  %v1861 = vadd.f32 %v79, %v1860
  %v1862 = vpop.f32.mrf.mxu0
  %v1863 = vpop.f32.mrf.mxu0
  %v1864 = vadd.f32 %v79, %v1863
  %v1865 = vpop.f32.mrf.mxu0
  %1866 = vmatprep.mubr.bf16.mxu0 0
  %1867 = vmatmul.mubr.bf16.gmra.mxu0 %v1700
  %v1868 = vpop.f32.mrf.mxu0
  %v1869 = vadd.f32 %v79, %v1868
  %v1870 = vpop.f32.mrf.mxu0
  %v1871 = vpop.f32.mrf.mxu0
  %v1872 = vadd.f32 %v79, %v1871
  %v1873 = vpop.f32.mrf.mxu0
  %1874 = vmatprep.mubr.bf16.mxu0 0
  %1875 = vmatmul.mubr.bf16.gmra.mxu0 %v1703
  %v1876 = vpop.f32.mrf.mxu0
  %v1877 = vadd.f32 %v79, %v1876
  %v1878 = vpop.f32.mrf.mxu0
  %v1879 = vpop.f32.mrf.mxu0
  %v1880 = vadd.f32 %v79, %v1879
  %v1881 = vpop.f32.mrf.mxu0
  %1882 = vmatprep.mubr.bf16.mxu0 0
  %1883 = vmatmul.mubr.bf16.gmra.mxu0 %v1706
  %v1884 = vpop.f32.mrf.mxu0
  %v1885 = vadd.f32 %v79, %v1884
  %v1886 = vpop.f32.mrf.mxu0
  %v1887 = vpop.f32.mrf.mxu0
  %v1888 = vadd.f32 %v79, %v1887
  %v1889 = vpop.f32.mrf.mxu0
  %1890 = vmatprep.mubr.bf16.mxu0 0
  %1891 = vmatmul.mubr.bf16.gmra.mxu0 %v1709
  %v1892 = vpop.f32.mrf.mxu0
  %v1893 = vadd.f32 %v79, %v1892
  %v1894 = vpop.f32.mrf.mxu0
  %v1895 = vpop.f32.mrf.mxu0
  %v1896 = vadd.f32 %v79, %v1895
  %v1897 = vpop.f32.mrf.mxu0
  %1898 = vmatprep.mubr.bf16.mxu0 0
  %1899 = vmatmul.mubr.bf16.gmra.mxu0 %v1712
  %v1900 = vpop.f32.mrf.mxu0
  %v1901 = vadd.f32 %v79, %v1900
  %v1902 = vpop.f32.mrf.mxu0
  %v1903 = vpop.f32.mrf.mxu0
  %v1904 = vadd.f32 %v79, %v1903
  %v1905 = vpop.f32.mrf.mxu0
  %1906 = vmatprep.mubr.bf16.mxu0 0
  %1907 = vmatmul.mubr.bf16.gmra.mxu0 %v1715
  %v1908 = vpop.f32.mrf.mxu0
  %v1909 = vadd.f32 %v79, %v1908
  %v1910 = vpop.f32.mrf.mxu0
  %v1911 = vpop.f32.mrf.mxu0
  %v1912 = vadd.f32 %v79, %v1911
  %v1913 = vpop.f32.mrf.mxu0
  %1914 = vmatprep.mubr.bf16.mxu0 0
  %1915 = vmatmul.mubr.bf16.gmra.mxu0 %v1718
  %v1916 = vpop.f32.mrf.mxu0
  %v1917 = vadd.f32 %v79, %v1916
  %v1918 = vpop.f32.mrf.mxu0
  %v1919 = vpop.f32.mrf.mxu0
  %v1920 = vadd.f32 %v79, %v1919
  %v1921 = vpop.f32.mrf.mxu0
  %1922 = vmatprep.mubr.bf16.mxu0 0
  %1923 = vmatmul.mubr.bf16.gmra.mxu0 %v1721
  %v1924 = vpop.f32.mrf.mxu0
  %v1925 = vadd.f32 %v79, %v1924
  %v1926 = vpop.f32.mrf.mxu0
  %v1927 = vpop.f32.mrf.mxu0
  %v1928 = vadd.f32 %v79, %v1927
  %v1929 = vpop.f32.mrf.mxu0
  %1930 = vmatprep.mubr.bf16.mxu0 0
  %1931 = vmatmul.mubr.bf16.gmra.mxu0 %v1724
  %v1932 = vpop.f32.mrf.mxu0
  %v1933 = vadd.f32 %v79, %v1932
  %v1934 = vpop.f32.mrf.mxu0
  %v1935 = vpop.f32.mrf.mxu0
  %v1936 = vadd.f32 %v79, %v1935
  %v1937 = vpop.f32.mrf.mxu0
  %1938 = vmatprep.mubr.bf16.mxu0 0
  %1939 = vmatmul.mubr.bf16.gmra.mxu0 %v1727
  %v1940 = vpop.f32.mrf.mxu0
  %v1941 = vadd.f32 %v79, %v1940
  %v1942 = vpop.f32.mrf.mxu0
  %v1943 = vpop.f32.mrf.mxu0
  %v1944 = vadd.f32 %v79, %v1943
  %v1945 = vpop.f32.mrf.mxu0
  %1946 = vmatprep.mubr.bf16.mxu0 0
  %1947 = vmatmul.mubr.bf16.gmra.mxu0 %v1730
  %v1948 = vpop.f32.mrf.mxu0
  %v1949 = vadd.f32 %v79, %v1948
  %v1950 = vpop.f32.mrf.mxu0
  %v1951 = vpop.f32.mrf.mxu0
  %v1952 = vadd.f32 %v79, %v1951
  %v1953 = vpop.f32.mrf.mxu0
  %1954 = vmatprep.mubr.bf16.mxu0 0
  %1955 = vmatmul.mubr.bf16.gmra.mxu0 %v1733
  %v1956 = vpop.f32.mrf.mxu0
  %v1957 = vadd.f32 %v79, %v1956
  %v1958 = vpop.f32.mrf.mxu0
  %v1959 = vpop.f32.mrf.mxu0
  %v1960 = vadd.f32 %v79, %v1959
  %v1961 = vpop.f32.mrf.mxu0
  %1962 = vmatprep.mubr.bf16.mxu0 0
  %1963 = vmatmul.mubr.bf16.gmra.mxu0 %v1736
  %v1964 = vpop.f32.mrf.mxu0
  %v1965 = vadd.f32 %v79, %v1964
  %v1966 = vpop.f32.mrf.mxu0
  %v1967 = vpop.f32.mrf.mxu0
  %v1968 = vpop.f32.mrf.mxu0
  %1969 = vdwg.mxu0
  %vm1970 = vcmask 130048
  %v1971 = vsel %vm1970, %v333, 0.0
  %v1972 = vsel %vm1970, %v336, 0.0
  %v1973 = vadd.f32 %v1971, %v1972
  %v1974 = vsel %vm1970, %v341, 0.0
  %v1975 = vadd.f32 %v1973, %v1974
  %v1976 = vsel %vm1970, %v344, 0.0
  %v1977 = vadd.f32 %v1975, %v1976
  %v1978 = vsel %vm1970, %v349, 0.0
  %v1979 = vadd.f32 %v1977, %v1978
  %v1980 = vsel %vm1970, %v352, 0.0
  %v1981 = vadd.f32 %v1979, %v1980
  %v1982 = vsel %vm1970, %v357, 0.0
  %v1983 = vadd.f32 %v1981, %v1982
  %v1984 = vsel %vm1970, %v360, 0.0
  %v1985 = vadd.f32 %v1983, %v1984
  %v1986 = vsel %vm1970, %v365, 0.0
  %v1987 = vadd.f32 %v1985, %v1986
  %v1988 = vsel %vm1970, %v368, 0.0
  %v1989 = vadd.f32 %v1987, %v1988
  %v1990 = vsel %vm1970, %v373, 0.0
  %v1991 = vadd.f32 %v1989, %v1990
  %v1992 = vsel %vm1970, %v376, 0.0
  %v1993 = vadd.f32 %v1991, %v1992
  %v1994 = vsel %vm1970, %v381, 0.0
  %v1995 = vadd.f32 %v1993, %v1994
  %v1996 = vsel %vm1970, %v384, 0.0
  %v1997 = vadd.f32 %v1995, %v1996
  %v1998 = vsel %vm1970, %v389, 0.0
  %v1999 = vadd.f32 %v1997, %v1998
  %v2000 = vsel %vm1970, %v392, 0.0
  %v2001 = vadd.f32 %v1999, %v2000
  %v2002 = vsel %vm1970, %v397, 0.0
  %v2003 = vadd.f32 %v2001, %v2002
  %v2004 = vsel %vm1970, %v400, 0.0
  %v2005 = vadd.f32 %v2003, %v2004
  %v2006 = vsel %vm1970, %v405, 0.0
  %v2007 = vadd.f32 %v2005, %v2006
  %v2008 = vsel %vm1970, %v408, 0.0
  %v2009 = vadd.f32 %v2007, %v2008
  %v2010 = vsel %vm1970, %v413, 0.0
  %v2011 = vadd.f32 %v2009, %v2010
  %v2012 = vsel %vm1970, %v416, 0.0
  %v2013 = vadd.f32 %v2011, %v2012
  %v2014 = vsel %vm1970, %v421, 0.0
  %v2015 = vadd.f32 %v2013, %v2014
  %v2016 = vsel %vm1970, %v424, 0.0
  %v2017 = vadd.f32 %v2015, %v2016
  %v2018 = vsel %vm1970, %v429, 0.0
  %v2019 = vadd.f32 %v2017, %v2018
  %v2020 = vsel %vm1970, %v432, 0.0
  %v2021 = vadd.f32 %v2019, %v2020
  %v2022 = vsel %vm1970, %v437, 0.0
  %v2023 = vadd.f32 %v2021, %v2022
  %v2024 = vsel %vm1970, %v440, 0.0
  %v2025 = vadd.f32 %v2023, %v2024
  %v2026 = vsel %vm1970, %v445, 0.0
  %v2027 = vadd.f32 %v2025, %v2026
  %v2028 = vsel %vm1970, %v448, 0.0
  %v2029 = vadd.f32 %v2027, %v2028
  %v2030 = vsel %vm1970, %v453, 0.0
  %v2031 = vadd.f32 %v2029, %v2030
  %v2032 = vsel %vm1970, %v456, 0.0
  %v2033 = vadd.f32 %v2031, %v2032
  %v2034 = vsel %vm1970, %v461, 0.0
  %v2035 = vadd.f32 %v2033, %v2034
  %v2036 = vsel %vm1970, %v464, 0.0
  %v2037 = vadd.f32 %v2035, %v2036
  %v2038 = vsel %vm1970, %v469, 0.0
  %v2039 = vadd.f32 %v2037, %v2038
  %v2040 = vsel %vm1970, %v472, 0.0
  %v2041 = vadd.f32 %v2039, %v2040
  %v2042 = vsel %vm1970, %v477, 0.0
  %v2043 = vadd.f32 %v2041, %v2042
  %v2044 = vsel %vm1970, %v480, 0.0
  %v2045 = vadd.f32 %v2043, %v2044
  %v2046 = vsel %vm1970, %v485, 0.0
  %v2047 = vadd.f32 %v2045, %v2046
  %v2048 = vsel %vm1970, %v488, 0.0
  %v2049 = vadd.f32 %v2047, %v2048
  %v2050 = vsel %vm1970, %v493, 0.0
  %v2051 = vadd.f32 %v2049, %v2050
  %v2052 = vsel %vm1970, %v496, 0.0
  %v2053 = vadd.f32 %v2051, %v2052
  %v2054 = vsel %vm1970, %v501, 0.0
  %v2055 = vadd.f32 %v2053, %v2054
  %v2056 = vsel %vm1970, %v504, 0.0
  %v2057 = vadd.f32 %v2055, %v2056
  %v2058 = vsel %vm1970, %v509, 0.0
  %v2059 = vadd.f32 %v2057, %v2058
  %v2060 = vsel %vm1970, %v512, 0.0
  %v2061 = vadd.f32 %v2059, %v2060
  %v2062 = vsel %vm1970, %v517, 0.0
  %v2063 = vadd.f32 %v2061, %v2062
  %v2064 = vsel %vm1970, %v520, 0.0
  %v2065 = vadd.f32 %v2063, %v2064
  %v2066 = vsel %vm1970, %v525, 0.0
  %v2067 = vadd.f32 %v2065, %v2066
  %v2068 = vrot.slane %v2067, 4
  %v2069 = vadd.f32 %v2067, %v2068
  %v2070 = vrot.slane %v2069, 2
  %v2071 = vadd.f32 %v2069, %v2070
  %v2072 = vrot.slane %v2071, 1
  %v2073 = vadd.f32 %v2071, %v2072
  %v2074 = vsel %vm1970, %v813, 0.0
  %v2075 = vsel %vm1970, %v816, 0.0
  %v2076 = vadd.f32 %v2074, %v2075
  %v2077 = vsel %vm1970, %v821, 0.0
  %v2078 = vadd.f32 %v2076, %v2077
  %v2079 = vsel %vm1970, %v824, 0.0
  %v2080 = vadd.f32 %v2078, %v2079
  %v2081 = vsel %vm1970, %v829, 0.0
  %v2082 = vadd.f32 %v2080, %v2081
  %v2083 = vsel %vm1970, %v832, 0.0
  %v2084 = vadd.f32 %v2082, %v2083
  %v2085 = vsel %vm1970, %v837, 0.0
  %v2086 = vadd.f32 %v2084, %v2085
  %v2087 = vsel %vm1970, %v840, 0.0
  %v2088 = vadd.f32 %v2086, %v2087
  %v2089 = vsel %vm1970, %v845, 0.0
  %v2090 = vadd.f32 %v2088, %v2089
  %v2091 = vsel %vm1970, %v848, 0.0
  %v2092 = vadd.f32 %v2090, %v2091
  %v2093 = vsel %vm1970, %v853, 0.0
  %v2094 = vadd.f32 %v2092, %v2093
  %v2095 = vsel %vm1970, %v856, 0.0
  %v2096 = vadd.f32 %v2094, %v2095
  %v2097 = vsel %vm1970, %v861, 0.0
  %v2098 = vadd.f32 %v2096, %v2097
  %v2099 = vsel %vm1970, %v864, 0.0
  %v2100 = vadd.f32 %v2098, %v2099
  %v2101 = vsel %vm1970, %v869, 0.0
  %v2102 = vadd.f32 %v2100, %v2101
  %v2103 = vsel %vm1970, %v872, 0.0
  %v2104 = vadd.f32 %v2102, %v2103
  %v2105 = vsel %vm1970, %v877, 0.0
  %v2106 = vadd.f32 %v2104, %v2105
  %v2107 = vsel %vm1970, %v880, 0.0
  %v2108 = vadd.f32 %v2106, %v2107
  %v2109 = vsel %vm1970, %v885, 0.0
  %v2110 = vadd.f32 %v2108, %v2109
  %v2111 = vsel %vm1970, %v888, 0.0
  %v2112 = vadd.f32 %v2110, %v2111
  %v2113 = vsel %vm1970, %v893, 0.0
  %v2114 = vadd.f32 %v2112, %v2113
  %v2115 = vsel %vm1970, %v896, 0.0
  %v2116 = vadd.f32 %v2114, %v2115
  %v2117 = vsel %vm1970, %v901, 0.0
  %v2118 = vadd.f32 %v2116, %v2117
  %v2119 = vsel %vm1970, %v904, 0.0
  %v2120 = vadd.f32 %v2118, %v2119
  %v2121 = vsel %vm1970, %v909, 0.0
  %v2122 = vadd.f32 %v2120, %v2121
  %v2123 = vsel %vm1970, %v912, 0.0
  %v2124 = vadd.f32 %v2122, %v2123
  %v2125 = vsel %vm1970, %v917, 0.0
  %v2126 = vadd.f32 %v2124, %v2125
  %v2127 = vsel %vm1970, %v920, 0.0
  %v2128 = vadd.f32 %v2126, %v2127
  %v2129 = vsel %vm1970, %v925, 0.0
  %v2130 = vadd.f32 %v2128, %v2129
  %v2131 = vsel %vm1970, %v928, 0.0
  %v2132 = vadd.f32 %v2130, %v2131
  %v2133 = vsel %vm1970, %v933, 0.0
  %v2134 = vadd.f32 %v2132, %v2133
  %v2135 = vsel %vm1970, %v936, 0.0
  %v2136 = vadd.f32 %v2134, %v2135
  %v2137 = vsel %vm1970, %v941, 0.0
  %v2138 = vadd.f32 %v2136, %v2137
  %v2139 = vsel %vm1970, %v944, 0.0
  %v2140 = vadd.f32 %v2138, %v2139
  %v2141 = vsel %vm1970, %v949, 0.0
  %v2142 = vadd.f32 %v2140, %v2141
  %v2143 = vsel %vm1970, %v952, 0.0
  %v2144 = vadd.f32 %v2142, %v2143
  %v2145 = vsel %vm1970, %v957, 0.0
  %v2146 = vadd.f32 %v2144, %v2145
  %v2147 = vsel %vm1970, %v960, 0.0
  %v2148 = vadd.f32 %v2146, %v2147
  %v2149 = vsel %vm1970, %v965, 0.0
  %v2150 = vadd.f32 %v2148, %v2149
  %v2151 = vsel %vm1970, %v968, 0.0
  %v2152 = vadd.f32 %v2150, %v2151
  %v2153 = vsel %vm1970, %v973, 0.0
  %v2154 = vadd.f32 %v2152, %v2153
  %v2155 = vsel %vm1970, %v976, 0.0
  %v2156 = vadd.f32 %v2154, %v2155
  %v2157 = vsel %vm1970, %v981, 0.0
  %v2158 = vadd.f32 %v2156, %v2157
  %v2159 = vsel %vm1970, %v984, 0.0
  %v2160 = vadd.f32 %v2158, %v2159
  %v2161 = vsel %vm1970, %v989, 0.0
  %v2162 = vadd.f32 %v2160, %v2161
  %v2163 = vsel %vm1970, %v992, 0.0
  %v2164 = vadd.f32 %v2162, %v2163
  %v2165 = vsel %vm1970, %v997, 0.0
  %v2166 = vadd.f32 %v2164, %v2165
  %v2167 = vsel %vm1970, %v1000, 0.0
  %v2168 = vadd.f32 %v2166, %v2167
  %v2169 = vsel %vm1970, %v1005, 0.0
  %v2170 = vadd.f32 %v2168, %v2169
  %v2171 = vrot.slane %v2170, 4
  %v2172 = vadd.f32 %v2170, %v2171
  %v2173 = vrot.slane %v2172, 2
  %v2174 = vadd.f32 %v2172, %v2173
  %v2175 = vrot.slane %v2174, 1
  %v2176 = vadd.f32 %v2174, %v2175
  %v2177 = vadd.f32 %v2073, %v2176
  %v2178 = vsel %vm1970, %v1293, 0.0
  %v2179 = vsel %vm1970, %v1296, 0.0
  %v2180 = vadd.f32 %v2178, %v2179
  %v2181 = vsel %vm1970, %v1301, 0.0
  %v2182 = vadd.f32 %v2180, %v2181
  %v2183 = vsel %vm1970, %v1304, 0.0
  %v2184 = vadd.f32 %v2182, %v2183
  %v2185 = vsel %vm1970, %v1309, 0.0
  %v2186 = vadd.f32 %v2184, %v2185
  %v2187 = vsel %vm1970, %v1312, 0.0
  %v2188 = vadd.f32 %v2186, %v2187
  %v2189 = vsel %vm1970, %v1317, 0.0
  %v2190 = vadd.f32 %v2188, %v2189
  %v2191 = vsel %vm1970, %v1320, 0.0
  %v2192 = vadd.f32 %v2190, %v2191
  %v2193 = vsel %vm1970, %v1325, 0.0
  %v2194 = vadd.f32 %v2192, %v2193
  %v2195 = vsel %vm1970, %v1328, 0.0
  %v2196 = vadd.f32 %v2194, %v2195
  %v2197 = vsel %vm1970, %v1333, 0.0
  %v2198 = vadd.f32 %v2196, %v2197
  %v2199 = vsel %vm1970, %v1336, 0.0
  %v2200 = vadd.f32 %v2198, %v2199
  %v2201 = vsel %vm1970, %v1341, 0.0
  %v2202 = vadd.f32 %v2200, %v2201
  %v2203 = vsel %vm1970, %v1344, 0.0
  %v2204 = vadd.f32 %v2202, %v2203
  %v2205 = vsel %vm1970, %v1349, 0.0
  %v2206 = vadd.f32 %v2204, %v2205
  %v2207 = vsel %vm1970, %v1352, 0.0
  %v2208 = vadd.f32 %v2206, %v2207
  %v2209 = vsel %vm1970, %v1357, 0.0
  %v2210 = vadd.f32 %v2208, %v2209
  %v2211 = vsel %vm1970, %v1360, 0.0
  %v2212 = vadd.f32 %v2210, %v2211
  %v2213 = vsel %vm1970, %v1365, 0.0
  %v2214 = vadd.f32 %v2212, %v2213
  %v2215 = vsel %vm1970, %v1368, 0.0
  %v2216 = vadd.f32 %v2214, %v2215
  %v2217 = vsel %vm1970, %v1373, 0.0
  %v2218 = vadd.f32 %v2216, %v2217
  %v2219 = vsel %vm1970, %v1376, 0.0
  %v2220 = vadd.f32 %v2218, %v2219
  %v2221 = vsel %vm1970, %v1381, 0.0
  %v2222 = vadd.f32 %v2220, %v2221
  %v2223 = vsel %vm1970, %v1384, 0.0
  %v2224 = vadd.f32 %v2222, %v2223
  %v2225 = vsel %vm1970, %v1389, 0.0
  %v2226 = vadd.f32 %v2224, %v2225
  %v2227 = vsel %vm1970, %v1392, 0.0
  %v2228 = vadd.f32 %v2226, %v2227
  %v2229 = vsel %vm1970, %v1397, 0.0
  %v2230 = vadd.f32 %v2228, %v2229
  %v2231 = vsel %vm1970, %v1400, 0.0
  %v2232 = vadd.f32 %v2230, %v2231
  %v2233 = vsel %vm1970, %v1405, 0.0
  %v2234 = vadd.f32 %v2232, %v2233
  %v2235 = vsel %vm1970, %v1408, 0.0
  %v2236 = vadd.f32 %v2234, %v2235
  %v2237 = vsel %vm1970, %v1413, 0.0
  %v2238 = vadd.f32 %v2236, %v2237
  %v2239 = vsel %vm1970, %v1416, 0.0
  %v2240 = vadd.f32 %v2238, %v2239
  %v2241 = vsel %vm1970, %v1421, 0.0
  %v2242 = vadd.f32 %v2240, %v2241
  %v2243 = vsel %vm1970, %v1424, 0.0
  %v2244 = vadd.f32 %v2242, %v2243
  %v2245 = vsel %vm1970, %v1429, 0.0
  %v2246 = vadd.f32 %v2244, %v2245
  %v2247 = vsel %vm1970, %v1432, 0.0
  %v2248 = vadd.f32 %v2246, %v2247
  %v2249 = vsel %vm1970, %v1437, 0.0
  %v2250 = vadd.f32 %v2248, %v2249
  %v2251 = vsel %vm1970, %v1440, 0.0
  %v2252 = vadd.f32 %v2250, %v2251
  %v2253 = vsel %vm1970, %v1445, 0.0
  %v2254 = vadd.f32 %v2252, %v2253
  %v2255 = vsel %vm1970, %v1448, 0.0
  %v2256 = vadd.f32 %v2254, %v2255
  %v2257 = vsel %vm1970, %v1453, 0.0
  %v2258 = vadd.f32 %v2256, %v2257
  %v2259 = vsel %vm1970, %v1456, 0.0
  %v2260 = vadd.f32 %v2258, %v2259
  %v2261 = vsel %vm1970, %v1461, 0.0
  %v2262 = vadd.f32 %v2260, %v2261
  %v2263 = vsel %vm1970, %v1464, 0.0
  %v2264 = vadd.f32 %v2262, %v2263
  %v2265 = vsel %vm1970, %v1469, 0.0
  %v2266 = vadd.f32 %v2264, %v2265
  %v2267 = vsel %vm1970, %v1472, 0.0
  %v2268 = vadd.f32 %v2266, %v2267
  %v2269 = vsel %vm1970, %v1477, 0.0
  %v2270 = vadd.f32 %v2268, %v2269
  %v2271 = vsel %vm1970, %v1480, 0.0
  %v2272 = vadd.f32 %v2270, %v2271
  %v2273 = vsel %vm1970, %v1485, 0.0
  %v2274 = vadd.f32 %v2272, %v2273
  %v2275 = vrot.slane %v2274, 4
  %v2276 = vadd.f32 %v2274, %v2275
  %v2277 = vrot.slane %v2276, 2
  %v2278 = vadd.f32 %v2276, %v2277
  %v2279 = vrot.slane %v2278, 1
  %v2280 = vadd.f32 %v2278, %v2279
  %v2281 = vadd.f32 %v2177, %v2280
  %v2282 = vsel %vm1970, %v1773, 0.0
  %v2283 = vsel %vm1970, %v1776, 0.0
  %v2284 = vadd.f32 %v2282, %v2283
  %v2285 = vsel %vm1970, %v1781, 0.0
  %v2286 = vadd.f32 %v2284, %v2285
  %v2287 = vsel %vm1970, %v1784, 0.0
  %v2288 = vadd.f32 %v2286, %v2287
  %v2289 = vsel %vm1970, %v1789, 0.0
  %v2290 = vadd.f32 %v2288, %v2289
  %v2291 = vsel %vm1970, %v1792, 0.0
  %v2292 = vadd.f32 %v2290, %v2291
  %v2293 = vsel %vm1970, %v1797, 0.0
  %v2294 = vadd.f32 %v2292, %v2293
  %v2295 = vsel %vm1970, %v1800, 0.0
  %v2296 = vadd.f32 %v2294, %v2295
  %v2297 = vsel %vm1970, %v1805, 0.0
  %v2298 = vadd.f32 %v2296, %v2297
  %v2299 = vsel %vm1970, %v1808, 0.0
  %v2300 = vadd.f32 %v2298, %v2299
  %v2301 = vsel %vm1970, %v1813, 0.0
  %v2302 = vadd.f32 %v2300, %v2301
  %v2303 = vsel %vm1970, %v1816, 0.0
  %v2304 = vadd.f32 %v2302, %v2303
  %v2305 = vsel %vm1970, %v1821, 0.0
  %v2306 = vadd.f32 %v2304, %v2305
  %v2307 = vsel %vm1970, %v1824, 0.0
  %v2308 = vadd.f32 %v2306, %v2307
  %v2309 = vsel %vm1970, %v1829, 0.0
  %v2310 = vadd.f32 %v2308, %v2309
  %v2311 = vsel %vm1970, %v1832, 0.0
  %v2312 = vadd.f32 %v2310, %v2311
  %v2313 = vsel %vm1970, %v1837, 0.0
  %v2314 = vadd.f32 %v2312, %v2313
  %v2315 = vsel %vm1970, %v1840, 0.0
  %v2316 = vadd.f32 %v2314, %v2315
  %v2317 = vsel %vm1970, %v1845, 0.0
  %v2318 = vadd.f32 %v2316, %v2317
  %v2319 = vsel %vm1970, %v1848, 0.0
  %v2320 = vadd.f32 %v2318, %v2319
  %v2321 = vsel %vm1970, %v1853, 0.0
  %v2322 = vadd.f32 %v2320, %v2321
  %v2323 = vsel %vm1970, %v1856, 0.0
  %v2324 = vadd.f32 %v2322, %v2323
  %v2325 = vsel %vm1970, %v1861, 0.0
  %v2326 = vadd.f32 %v2324, %v2325
  %v2327 = vsel %vm1970, %v1864, 0.0
  %v2328 = vadd.f32 %v2326, %v2327
  %v2329 = vsel %vm1970, %v1869, 0.0
  %v2330 = vadd.f32 %v2328, %v2329
  %v2331 = vsel %vm1970, %v1872, 0.0
  %v2332 = vadd.f32 %v2330, %v2331
  %v2333 = vsel %vm1970, %v1877, 0.0
  %v2334 = vadd.f32 %v2332, %v2333
  %v2335 = vsel %vm1970, %v1880, 0.0
  %v2336 = vadd.f32 %v2334, %v2335
  %v2337 = vsel %vm1970, %v1885, 0.0
  %v2338 = vadd.f32 %v2336, %v2337
  %v2339 = vsel %vm1970, %v1888, 0.0
  %v2340 = vadd.f32 %v2338, %v2339
  %v2341 = vsel %vm1970, %v1893, 0.0
  %v2342 = vadd.f32 %v2340, %v2341
  %v2343 = vsel %vm1970, %v1896, 0.0
  %v2344 = vadd.f32 %v2342, %v2343
  %v2345 = vsel %vm1970, %v1901, 0.0
  %v2346 = vadd.f32 %v2344, %v2345
  %v2347 = vsel %vm1970, %v1904, 0.0
  %v2348 = vadd.f32 %v2346, %v2347
  %v2349 = vsel %vm1970, %v1909, 0.0
  %v2350 = vadd.f32 %v2348, %v2349
  %v2351 = vsel %vm1970, %v1912, 0.0
  %v2352 = vadd.f32 %v2350, %v2351
  %v2353 = vsel %vm1970, %v1917, 0.0
  %v2354 = vadd.f32 %v2352, %v2353
  %v2355 = vsel %vm1970, %v1920, 0.0
  %v2356 = vadd.f32 %v2354, %v2355
  %v2357 = vsel %vm1970, %v1925, 0.0
  %v2358 = vadd.f32 %v2356, %v2357
  %v2359 = vsel %vm1970, %v1928, 0.0
  %v2360 = vadd.f32 %v2358, %v2359
  %v2361 = vsel %vm1970, %v1933, 0.0
  %v2362 = vadd.f32 %v2360, %v2361
  %v2363 = vsel %vm1970, %v1936, 0.0
  %v2364 = vadd.f32 %v2362, %v2363
  %v2365 = vsel %vm1970, %v1941, 0.0
  %v2366 = vadd.f32 %v2364, %v2365
  %v2367 = vsel %vm1970, %v1944, 0.0
  %v2368 = vadd.f32 %v2366, %v2367
  %v2369 = vsel %vm1970, %v1949, 0.0
  %v2370 = vadd.f32 %v2368, %v2369
  %v2371 = vsel %vm1970, %v1952, 0.0
  %v2372 = vadd.f32 %v2370, %v2371
  %v2373 = vsel %vm1970, %v1957, 0.0
  %v2374 = vadd.f32 %v2372, %v2373
  %v2375 = vsel %vm1970, %v1960, 0.0
  %v2376 = vadd.f32 %v2374, %v2375
  %v2377 = vsel %vm1970, %v1965, 0.0
  %v2378 = vadd.f32 %v2376, %v2377
  %v2379 = vrot.slane %v2378, 4
  %v2380 = vadd.f32 %v2378, %v2379
  %v2381 = vrot.slane %v2380, 2
  %v2382 = vadd.f32 %v2380, %v2381
  %v2383 = vrot.slane %v2382, 1
  %v2384 = vadd.f32 %v2382, %v2383
  %v2385 = vadd.f32 %v2281, %v2384
  %v2386 = vmul.f32 %v2385, 0.0006377551
  %v2387 = vsub.f32 %v333, %v2386
  %v2388 = vsub.f32 %v336, %v2386
  %v2389 = vsub.f32 %v341, %v2386
  %v2390 = vsub.f32 %v344, %v2386
  %v2391 = vsub.f32 %v349, %v2386
  %v2392 = vsub.f32 %v352, %v2386
  %v2393 = vsub.f32 %v357, %v2386
  %v2394 = vsub.f32 %v360, %v2386
  %v2395 = vsub.f32 %v365, %v2386
  %v2396 = vsub.f32 %v368, %v2386
  %v2397 = vsub.f32 %v373, %v2386
  %v2398 = vsub.f32 %v376, %v2386
  %v2399 = vsub.f32 %v381, %v2386
  %v2400 = vsub.f32 %v384, %v2386
  %v2401 = vsub.f32 %v389, %v2386
  %v2402 = vsub.f32 %v392, %v2386
  %v2403 = vsub.f32 %v397, %v2386
  %v2404 = vsub.f32 %v400, %v2386
  %v2405 = vsub.f32 %v405, %v2386
  %v2406 = vsub.f32 %v408, %v2386
  %v2407 = vsub.f32 %v413, %v2386
  %v2408 = vsub.f32 %v416, %v2386
  %v2409 = vsub.f32 %v421, %v2386
  %v2410 = vsub.f32 %v424, %v2386
  %v2411 = vsub.f32 %v429, %v2386
  %v2412 = vsub.f32 %v432, %v2386
  %v2413 = vsub.f32 %v437, %v2386
  %v2414 = vsub.f32 %v440, %v2386
  %v2415 = vsub.f32 %v445, %v2386
  %v2416 = vsub.f32 %v448, %v2386
  %v2417 = vsub.f32 %v453, %v2386
  %v2418 = vsub.f32 %v456, %v2386
  %v2419 = vsub.f32 %v461, %v2386
  %v2420 = vsub.f32 %v464, %v2386
  %v2421 = vsub.f32 %v469, %v2386
  %v2422 = vsub.f32 %v472, %v2386
  %v2423 = vsub.f32 %v477, %v2386
  %v2424 = vsub.f32 %v480, %v2386
  %v2425 = vsub.f32 %v485, %v2386
  %v2426 = vsub.f32 %v488, %v2386
  %v2427 = vsub.f32 %v493, %v2386
  %v2428 = vsub.f32 %v496, %v2386
  %v2429 = vsub.f32 %v501, %v2386
  %v2430 = vsub.f32 %v504, %v2386
  %v2431 = vsub.f32 %v509, %v2386
  %v2432 = vsub.f32 %v512, %v2386
  %v2433 = vsub.f32 %v517, %v2386
  %v2434 = vsub.f32 %v520, %v2386
  %v2435 = vsub.f32 %v525, %v2386
  %v2436 = vsub.f32 %v813, %v2386
  %v2437 = vsub.f32 %v816, %v2386
  %v2438 = vsub.f32 %v821, %v2386
  %v2439 = vsub.f32 %v824, %v2386
  %v2440 = vsub.f32 %v829, %v2386
  %v2441 = vsub.f32 %v832, %v2386
  %v2442 = vsub.f32 %v837, %v2386
  %v2443 = vsub.f32 %v840, %v2386
  %v2444 = vsub.f32 %v845, %v2386
  %v2445 = vsub.f32 %v848, %v2386
  %v2446 = vsub.f32 %v853, %v2386
  %v2447 = vsub.f32 %v856, %v2386
  %v2448 = vsub.f32 %v861, %v2386
  %v2449 = vsub.f32 %v864, %v2386
  %v2450 = vsub.f32 %v869, %v2386
  %v2451 = vsub.f32 %v872, %v2386
  %v2452 = vsub.f32 %v877, %v2386
  %v2453 = vsub.f32 %v880, %v2386
  %v2454 = vsub.f32 %v885, %v2386
  %v2455 = vsub.f32 %v888, %v2386
  %v2456 = vsub.f32 %v893, %v2386
  %v2457 = vsub.f32 %v896, %v2386
  %v2458 = vsub.f32 %v901, %v2386
  %v2459 = vsub.f32 %v904, %v2386
  %v2460 = vsub.f32 %v909, %v2386
  %v2461 = vsub.f32 %v912, %v2386
  %v2462 = vsub.f32 %v917, %v2386
  %v2463 = vsub.f32 %v920, %v2386
  %v2464 = vsub.f32 %v925, %v2386
  %v2465 = vsub.f32 %v928, %v2386
  %v2466 = vsub.f32 %v933, %v2386
  %v2467 = vsub.f32 %v936, %v2386
  %v2468 = vsub.f32 %v941, %v2386
  %v2469 = vsub.f32 %v944, %v2386
  %v2470 = vsub.f32 %v949, %v2386
  %v2471 = vsub.f32 %v952, %v2386
  %v2472 = vsub.f32 %v957, %v2386
  %v2473 = vsub.f32 %v960, %v2386
  %v2474 = vsub.f32 %v965, %v2386
  %v2475 = vsub.f32 %v968, %v2386
  %v2476 = vsub.f32 %v973, %v2386
  %v2477 = vsub.f32 %v976, %v2386
  %v2478 = vsub.f32 %v981, %v2386
  %v2479 = vsub.f32 %v984, %v2386
  %v2480 = vsub.f32 %v989, %v2386
  %v2481 = vsub.f32 %v992, %v2386
  %v2482 = vsub.f32 %v997, %v2386
  %v2483 = vsub.f32 %v1000, %v2386
  %v2484 = vsub.f32 %v1005, %v2386
  %v2485 = vsub.f32 %v1293, %v2386
  %v2486 = vsub.f32 %v1296, %v2386
  %v2487 = vsub.f32 %v1301, %v2386
  %v2488 = vsub.f32 %v1304, %v2386
  %v2489 = vsub.f32 %v1309, %v2386
  %v2490 = vsub.f32 %v1312, %v2386
  %v2491 = vsub.f32 %v1317, %v2386
  %v2492 = vsub.f32 %v1320, %v2386
  %v2493 = vsub.f32 %v1325, %v2386
  %v2494 = vsub.f32 %v1328, %v2386
  %v2495 = vsub.f32 %v1333, %v2386
  %v2496 = vsub.f32 %v1336, %v2386
  %v2497 = vsub.f32 %v1341, %v2386
  %v2498 = vsub.f32 %v1344, %v2386
  %v2499 = vsub.f32 %v1349, %v2386
  %v2500 = vsub.f32 %v1352, %v2386
  %v2501 = vsub.f32 %v1357, %v2386
  %v2502 = vsub.f32 %v1360, %v2386
  %v2503 = vsub.f32 %v1365, %v2386
  %v2504 = vsub.f32 %v1368, %v2386
  %v2505 = vsub.f32 %v1373, %v2386
  %v2506 = vsub.f32 %v1376, %v2386
  %v2507 = vsub.f32 %v1381, %v2386
  %v2508 = vsub.f32 %v1384, %v2386
  %v2509 = vsub.f32 %v1389, %v2386
  %v2510 = vsub.f32 %v1392, %v2386
  %v2511 = vsub.f32 %v1397, %v2386
  %v2512 = vsub.f32 %v1400, %v2386
  %v2513 = vsub.f32 %v1405, %v2386
  %v2514 = vsub.f32 %v1408, %v2386
  %v2515 = vsub.f32 %v1413, %v2386
  %v2516 = vsub.f32 %v1416, %v2386
  %v2517 = vsub.f32 %v1421, %v2386
  %v2518 = vsub.f32 %v1424, %v2386
  %v2519 = vsub.f32 %v1429, %v2386
  %v2520 = vsub.f32 %v1432, %v2386
  %v2521 = vsub.f32 %v1437, %v2386
  %v2522 = vsub.f32 %v1440, %v2386
  %v2523 = vsub.f32 %v1445, %v2386
  %v2524 = vsub.f32 %v1448, %v2386
  %v2525 = vsub.f32 %v1453, %v2386
  %v2526 = vsub.f32 %v1456, %v2386
  %v2527 = vsub.f32 %v1461, %v2386
  %v2528 = vsub.f32 %v1464, %v2386
  %v2529 = vsub.f32 %v1469, %v2386
  %v2530 = vsub.f32 %v1472, %v2386
  %v2531 = vsub.f32 %v1477, %v2386
  %v2532 = vsub.f32 %v1480, %v2386
  %v2533 = vsub.f32 %v1485, %v2386
  %v2534 = vsub.f32 %v1773, %v2386
  %v2535 = vsub.f32 %v1776, %v2386
  %v2536 = vsub.f32 %v1781, %v2386
  %v2537 = vsub.f32 %v1784, %v2386
  %v2538 = vsub.f32 %v1789, %v2386
  %v2539 = vsub.f32 %v1792, %v2386
  %v2540 = vsub.f32 %v1797, %v2386
  %v2541 = vsub.f32 %v1800, %v2386
  %v2542 = vsub.f32 %v1805, %v2386
  %v2543 = vsub.f32 %v1808, %v2386
  %v2544 = vsub.f32 %v1813, %v2386
  %v2545 = vsub.f32 %v1816, %v2386
  %v2546 = vsub.f32 %v1821, %v2386
  %v2547 = vsub.f32 %v1824, %v2386
  %v2548 = vsub.f32 %v1829, %v2386
  %v2549 = vsub.f32 %v1832, %v2386
  %v2550 = vsub.f32 %v1837, %v2386
  %v2551 = vsub.f32 %v1840, %v2386
  %v2552 = vsub.f32 %v1845, %v2386
  %v2553 = vsub.f32 %v1848, %v2386
  %v2554 = vsub.f32 %v1853, %v2386
  %v2555 = vsub.f32 %v1856, %v2386
  %v2556 = vsub.f32 %v1861, %v2386
  %v2557 = vsub.f32 %v1864, %v2386
  %v2558 = vsub.f32 %v1869, %v2386
  %v2559 = vsub.f32 %v1872, %v2386
  %v2560 = vsub.f32 %v1877, %v2386
  %v2561 = vsub.f32 %v1880, %v2386
  %v2562 = vsub.f32 %v1885, %v2386
  %v2563 = vsub.f32 %v1888, %v2386
  %v2564 = vsub.f32 %v1893, %v2386
  %v2565 = vsub.f32 %v1896, %v2386
  %v2566 = vsub.f32 %v1901, %v2386
  %v2567 = vsub.f32 %v1904, %v2386
  %v2568 = vsub.f32 %v1909, %v2386
  %v2569 = vsub.f32 %v1912, %v2386
  %v2570 = vsub.f32 %v1917, %v2386
  %v2571 = vsub.f32 %v1920, %v2386
  %v2572 = vsub.f32 %v1925, %v2386
  %v2573 = vsub.f32 %v1928, %v2386
  %v2574 = vsub.f32 %v1933, %v2386
  %v2575 = vsub.f32 %v1936, %v2386
  %v2576 = vsub.f32 %v1941, %v2386
  %v2577 = vsub.f32 %v1944, %v2386
  %v2578 = vsub.f32 %v1949, %v2386
  %v2579 = vsub.f32 %v1952, %v2386
  %v2580 = vsub.f32 %v1957, %v2386
  %v2581 = vsub.f32 %v1960, %v2386
  %v2582 = vsub.f32 %v1965, %v2386
  %v2583 = vmul.f32 %v2387, %v2387
  %v2584 = vmul.f32 %v2388, %v2388
  %v2585 = vmul.f32 %v2389, %v2389
  %v2586 = vmul.f32 %v2390, %v2390
  %v2587 = vmul.f32 %v2391, %v2391
  %v2588 = vmul.f32 %v2392, %v2392
  %v2589 = vmul.f32 %v2393, %v2393
  %v2590 = vmul.f32 %v2394, %v2394
  %v2591 = vmul.f32 %v2395, %v2395
  %v2592 = vmul.f32 %v2396, %v2396
  %v2593 = vmul.f32 %v2397, %v2397
  %v2594 = vmul.f32 %v2398, %v2398
  %v2595 = vmul.f32 %v2399, %v2399
  %v2596 = vmul.f32 %v2400, %v2400
  %v2597 = vmul.f32 %v2401, %v2401
  %v2598 = vmul.f32 %v2402, %v2402
  %v2599 = vmul.f32 %v2403, %v2403
  %v2600 = vmul.f32 %v2404, %v2404
  %v2601 = vmul.f32 %v2405, %v2405
  %v2602 = vmul.f32 %v2406, %v2406
  %v2603 = vmul.f32 %v2407, %v2407
  %v2604 = vmul.f32 %v2408, %v2408
  %v2605 = vmul.f32 %v2409, %v2409
  %v2606 = vmul.f32 %v2410, %v2410
  %v2607 = vmul.f32 %v2411, %v2411
  %v2608 = vmul.f32 %v2412, %v2412
  %v2609 = vmul.f32 %v2413, %v2413
  %v2610 = vmul.f32 %v2414, %v2414
  %v2611 = vmul.f32 %v2415, %v2415
  %v2612 = vmul.f32 %v2416, %v2416
  %v2613 = vmul.f32 %v2417, %v2417
  %v2614 = vmul.f32 %v2418, %v2418
  %v2615 = vmul.f32 %v2419, %v2419
  %v2616 = vmul.f32 %v2420, %v2420
  %v2617 = vmul.f32 %v2421, %v2421
  %v2618 = vmul.f32 %v2422, %v2422
  %v2619 = vmul.f32 %v2423, %v2423
  %v2620 = vmul.f32 %v2424, %v2424
  %v2621 = vmul.f32 %v2425, %v2425
  %v2622 = vmul.f32 %v2426, %v2426
  %v2623 = vmul.f32 %v2427, %v2427
  %v2624 = vmul.f32 %v2428, %v2428
  %v2625 = vmul.f32 %v2429, %v2429
  %v2626 = vmul.f32 %v2430, %v2430
  %v2627 = vmul.f32 %v2431, %v2431
  %v2628 = vmul.f32 %v2432, %v2432
  %v2629 = vmul.f32 %v2433, %v2433
  %v2630 = vmul.f32 %v2434, %v2434
  %v2631 = vmul.f32 %v2435, %v2435
  %v2632 = vsel %vm1970, %v2583, 0.0
  %v2633 = vsel %vm1970, %v2584, 0.0
  %v2634 = vadd.f32 %v2632, %v2633
  %v2635 = vsel %vm1970, %v2585, 0.0
  %v2636 = vadd.f32 %v2634, %v2635
  %v2637 = vsel %vm1970, %v2586, 0.0
  %v2638 = vadd.f32 %v2636, %v2637
  %v2639 = vsel %vm1970, %v2587, 0.0
  %v2640 = vadd.f32 %v2638, %v2639
  %v2641 = vsel %vm1970, %v2588, 0.0
  %v2642 = vadd.f32 %v2640, %v2641
  %v2643 = vsel %vm1970, %v2589, 0.0
  %v2644 = vadd.f32 %v2642, %v2643
  %v2645 = vsel %vm1970, %v2590, 0.0
  %v2646 = vadd.f32 %v2644, %v2645
  %v2647 = vsel %vm1970, %v2591, 0.0
  %v2648 = vadd.f32 %v2646, %v2647
  %v2649 = vsel %vm1970, %v2592, 0.0
  %v2650 = vadd.f32 %v2648, %v2649
  %v2651 = vsel %vm1970, %v2593, 0.0
  %v2652 = vadd.f32 %v2650, %v2651
  %v2653 = vsel %vm1970, %v2594, 0.0
  %v2654 = vadd.f32 %v2652, %v2653
  %v2655 = vsel %vm1970, %v2595, 0.0
  %v2656 = vadd.f32 %v2654, %v2655
  %v2657 = vsel %vm1970, %v2596, 0.0
  %v2658 = vadd.f32 %v2656, %v2657
  %v2659 = vsel %vm1970, %v2597, 0.0
  %v2660 = vadd.f32 %v2658, %v2659
  %v2661 = vsel %vm1970, %v2598, 0.0
  %v2662 = vadd.f32 %v2660, %v2661
  %v2663 = vsel %vm1970, %v2599, 0.0
  %v2664 = vadd.f32 %v2662, %v2663
  %v2665 = vsel %vm1970, %v2600, 0.0
  %v2666 = vadd.f32 %v2664, %v2665
  %v2667 = vsel %vm1970, %v2601, 0.0
  %v2668 = vadd.f32 %v2666, %v2667
  %v2669 = vsel %vm1970, %v2602, 0.0
  %v2670 = vadd.f32 %v2668, %v2669
  %v2671 = vsel %vm1970, %v2603, 0.0
  %v2672 = vadd.f32 %v2670, %v2671
  %v2673 = vsel %vm1970, %v2604, 0.0
  %v2674 = vadd.f32 %v2672, %v2673
  %v2675 = vsel %vm1970, %v2605, 0.0
  %v2676 = vadd.f32 %v2674, %v2675
  %v2677 = vsel %vm1970, %v2606, 0.0
  %v2678 = vadd.f32 %v2676, %v2677
  %v2679 = vsel %vm1970, %v2607, 0.0
  %v2680 = vadd.f32 %v2678, %v2679
  %v2681 = vsel %vm1970, %v2608, 0.0
  %v2682 = vadd.f32 %v2680, %v2681
  %v2683 = vsel %vm1970, %v2609, 0.0
  %v2684 = vadd.f32 %v2682, %v2683
  %v2685 = vsel %vm1970, %v2610, 0.0
  %v2686 = vadd.f32 %v2684, %v2685
  %v2687 = vsel %vm1970, %v2611, 0.0
  %v2688 = vadd.f32 %v2686, %v2687
  %v2689 = vsel %vm1970, %v2612, 0.0
  %v2690 = vadd.f32 %v2688, %v2689
  %v2691 = vsel %vm1970, %v2613, 0.0
  %v2692 = vadd.f32 %v2690, %v2691
  %v2693 = vsel %vm1970, %v2614, 0.0
  %v2694 = vadd.f32 %v2692, %v2693
  %v2695 = vsel %vm1970, %v2615, 0.0
  %v2696 = vadd.f32 %v2694, %v2695
  %v2697 = vsel %vm1970, %v2616, 0.0
  %v2698 = vadd.f32 %v2696, %v2697
  %v2699 = vsel %vm1970, %v2617, 0.0
  %v2700 = vadd.f32 %v2698, %v2699
  %v2701 = vsel %vm1970, %v2618, 0.0
  %v2702 = vadd.f32 %v2700, %v2701
  %v2703 = vsel %vm1970, %v2619, 0.0
  %v2704 = vadd.f32 %v2702, %v2703
  %v2705 = vsel %vm1970, %v2620, 0.0
  %v2706 = vadd.f32 %v2704, %v2705
  %v2707 = vsel %vm1970, %v2621, 0.0
  %v2708 = vadd.f32 %v2706, %v2707
  %v2709 = vsel %vm1970, %v2622, 0.0
  %v2710 = vadd.f32 %v2708, %v2709
  %v2711 = vsel %vm1970, %v2623, 0.0
  %v2712 = vadd.f32 %v2710, %v2711
  %v2713 = vsel %vm1970, %v2624, 0.0
  %v2714 = vadd.f32 %v2712, %v2713
  %v2715 = vsel %vm1970, %v2625, 0.0
  %v2716 = vadd.f32 %v2714, %v2715
  %v2717 = vsel %vm1970, %v2626, 0.0
  %v2718 = vadd.f32 %v2716, %v2717
  %v2719 = vsel %vm1970, %v2627, 0.0
  %v2720 = vadd.f32 %v2718, %v2719
  %v2721 = vsel %vm1970, %v2628, 0.0
  %v2722 = vadd.f32 %v2720, %v2721
  %v2723 = vsel %vm1970, %v2629, 0.0
  %v2724 = vadd.f32 %v2722, %v2723
  %v2725 = vsel %vm1970, %v2630, 0.0
  %v2726 = vadd.f32 %v2724, %v2725
  %v2727 = vsel %vm1970, %v2631, 0.0
  %v2728 = vadd.f32 %v2726, %v2727
  %v2729 = vrot.slane %v2728, 4
  %v2730 = vadd.f32 %v2728, %v2729
  %v2731 = vrot.slane %v2730, 2
  %v2732 = vadd.f32 %v2730, %v2731
  %v2733 = vrot.slane %v2732, 1
  %v2734 = vadd.f32 %v2732, %v2733
  %v2735 = vmul.f32 %v2436, %v2436
  %v2736 = vmul.f32 %v2437, %v2437
  %v2737 = vmul.f32 %v2438, %v2438
  %v2738 = vmul.f32 %v2439, %v2439
  %v2739 = vmul.f32 %v2440, %v2440
  %v2740 = vmul.f32 %v2441, %v2441
  %v2741 = vmul.f32 %v2442, %v2442
  %v2742 = vmul.f32 %v2443, %v2443
  %v2743 = vmul.f32 %v2444, %v2444
  %v2744 = vmul.f32 %v2445, %v2445
  %v2745 = vmul.f32 %v2446, %v2446
  %v2746 = vmul.f32 %v2447, %v2447
  %v2747 = vmul.f32 %v2448, %v2448
  %v2748 = vmul.f32 %v2449, %v2449
  %v2749 = vmul.f32 %v2450, %v2450
  %v2750 = vmul.f32 %v2451, %v2451
  %v2751 = vmul.f32 %v2452, %v2452
  %v2752 = vmul.f32 %v2453, %v2453
  %v2753 = vmul.f32 %v2454, %v2454
  %v2754 = vmul.f32 %v2455, %v2455
  %v2755 = vmul.f32 %v2456, %v2456
  %v2756 = vmul.f32 %v2457, %v2457
  %v2757 = vmul.f32 %v2458, %v2458
  %v2758 = vmul.f32 %v2459, %v2459
  %v2759 = vmul.f32 %v2460, %v2460
  %v2760 = vmul.f32 %v2461, %v2461
  %v2761 = vmul.f32 %v2462, %v2462
  %v2762 = vmul.f32 %v2463, %v2463
  %v2763 = vmul.f32 %v2464, %v2464
  %v2764 = vmul.f32 %v2465, %v2465
  %v2765 = vmul.f32 %v2466, %v2466
  %v2766 = vmul.f32 %v2467, %v2467
  %v2767 = vmul.f32 %v2468, %v2468
  %v2768 = vmul.f32 %v2469, %v2469
  %v2769 = vmul.f32 %v2470, %v2470
  %v2770 = vmul.f32 %v2471, %v2471
  %v2771 = vmul.f32 %v2472, %v2472
  %v2772 = vmul.f32 %v2473, %v2473
  %v2773 = vmul.f32 %v2474, %v2474
  %v2774 = vmul.f32 %v2475, %v2475
  %v2775 = vmul.f32 %v2476, %v2476
  %v2776 = vmul.f32 %v2477, %v2477
  %v2777 = vmul.f32 %v2478, %v2478
  %v2778 = vmul.f32 %v2479, %v2479
  %v2779 = vmul.f32 %v2480, %v2480
  %v2780 = vmul.f32 %v2481, %v2481
  %v2781 = vmul.f32 %v2482, %v2482
  %v2782 = vmul.f32 %v2483, %v2483
  %v2783 = vmul.f32 %v2484, %v2484
  %v2784 = vsel %vm1970, %v2735, 0.0
  %v2785 = vsel %vm1970, %v2736, 0.0
  %v2786 = vadd.f32 %v2784, %v2785
  %v2787 = vsel %vm1970, %v2737, 0.0
  %v2788 = vadd.f32 %v2786, %v2787
  %v2789 = vsel %vm1970, %v2738, 0.0
  %v2790 = vadd.f32 %v2788, %v2789
  %v2791 = vsel %vm1970, %v2739, 0.0
  %v2792 = vadd.f32 %v2790, %v2791
  %v2793 = vsel %vm1970, %v2740, 0.0
  %v2794 = vadd.f32 %v2792, %v2793
  %v2795 = vsel %vm1970, %v2741, 0.0
  %v2796 = vadd.f32 %v2794, %v2795
  %v2797 = vsel %vm1970, %v2742, 0.0
  %v2798 = vadd.f32 %v2796, %v2797
  %v2799 = vsel %vm1970, %v2743, 0.0
  %v2800 = vadd.f32 %v2798, %v2799
  %v2801 = vsel %vm1970, %v2744, 0.0
  %v2802 = vadd.f32 %v2800, %v2801
  %v2803 = vsel %vm1970, %v2745, 0.0
  %v2804 = vadd.f32 %v2802, %v2803
  %v2805 = vsel %vm1970, %v2746, 0.0
  %v2806 = vadd.f32 %v2804, %v2805
  %v2807 = vsel %vm1970, %v2747, 0.0
  %v2808 = vadd.f32 %v2806, %v2807
  %v2809 = vsel %vm1970, %v2748, 0.0
  %v2810 = vadd.f32 %v2808, %v2809
  %v2811 = vsel %vm1970, %v2749, 0.0
  %v2812 = vadd.f32 %v2810, %v2811
  %v2813 = vsel %vm1970, %v2750, 0.0
  %v2814 = vadd.f32 %v2812, %v2813
  %v2815 = vsel %vm1970, %v2751, 0.0
  %v2816 = vadd.f32 %v2814, %v2815
  %v2817 = vsel %vm1970, %v2752, 0.0
  %v2818 = vadd.f32 %v2816, %v2817
  %v2819 = vsel %vm1970, %v2753, 0.0
  %v2820 = vadd.f32 %v2818, %v2819
  %v2821 = vsel %vm1970, %v2754, 0.0
  %v2822 = vadd.f32 %v2820, %v2821
  %v2823 = vsel %vm1970, %v2755, 0.0
  %v2824 = vadd.f32 %v2822, %v2823
  %v2825 = vsel %vm1970, %v2756, 0.0
  %v2826 = vadd.f32 %v2824, %v2825
  %v2827 = vsel %vm1970, %v2757, 0.0
  %v2828 = vadd.f32 %v2826, %v2827
  %v2829 = vsel %vm1970, %v2758, 0.0
  %v2830 = vadd.f32 %v2828, %v2829
  %v2831 = vsel %vm1970, %v2759, 0.0
  %v2832 = vadd.f32 %v2830, %v2831
  %v2833 = vsel %vm1970, %v2760, 0.0
  %v2834 = vadd.f32 %v2832, %v2833
  %v2835 = vsel %vm1970, %v2761, 0.0
  %v2836 = vadd.f32 %v2834, %v2835
  %v2837 = vsel %vm1970, %v2762, 0.0
  %v2838 = vadd.f32 %v2836, %v2837
  %v2839 = vsel %vm1970, %v2763, 0.0
  %v2840 = vadd.f32 %v2838, %v2839
  %v2841 = vsel %vm1970, %v2764, 0.0
  %v2842 = vadd.f32 %v2840, %v2841
  %v2843 = vsel %vm1970, %v2765, 0.0
  %v2844 = vadd.f32 %v2842, %v2843
  %v2845 = vsel %vm1970, %v2766, 0.0
  %v2846 = vadd.f32 %v2844, %v2845
  %v2847 = vsel %vm1970, %v2767, 0.0
  %v2848 = vadd.f32 %v2846, %v2847
  %v2849 = vsel %vm1970, %v2768, 0.0
  %v2850 = vadd.f32 %v2848, %v2849
  %v2851 = vsel %vm1970, %v2769, 0.0
  %v2852 = vadd.f32 %v2850, %v2851
  %v2853 = vsel %vm1970, %v2770, 0.0
  %v2854 = vadd.f32 %v2852, %v2853
  %v2855 = vsel %vm1970, %v2771, 0.0
  %v2856 = vadd.f32 %v2854, %v2855
  %v2857 = vsel %vm1970, %v2772, 0.0
  %v2858 = vadd.f32 %v2856, %v2857
  %v2859 = vsel %vm1970, %v2773, 0.0
  %v2860 = vadd.f32 %v2858, %v2859
  %v2861 = vsel %vm1970, %v2774, 0.0
  %v2862 = vadd.f32 %v2860, %v2861
  %v2863 = vsel %vm1970, %v2775, 0.0
  %v2864 = vadd.f32 %v2862, %v2863
  %v2865 = vsel %vm1970, %v2776, 0.0
  %v2866 = vadd.f32 %v2864, %v2865
  %v2867 = vsel %vm1970, %v2777, 0.0
  %v2868 = vadd.f32 %v2866, %v2867
  %v2869 = vsel %vm1970, %v2778, 0.0
  %v2870 = vadd.f32 %v2868, %v2869
  %v2871 = vsel %vm1970, %v2779, 0.0
  %v2872 = vadd.f32 %v2870, %v2871
  %v2873 = vsel %vm1970, %v2780, 0.0
  %v2874 = vadd.f32 %v2872, %v2873
  %v2875 = vsel %vm1970, %v2781, 0.0
  %v2876 = vadd.f32 %v2874, %v2875
  %v2877 = vsel %vm1970, %v2782, 0.0
  %v2878 = vadd.f32 %v2876, %v2877
  %v2879 = vsel %vm1970, %v2783, 0.0
  %v2880 = vadd.f32 %v2878, %v2879
  %v2881 = vrot.slane %v2880, 4
  %v2882 = vadd.f32 %v2880, %v2881
  %v2883 = vrot.slane %v2882, 2
  %v2884 = vadd.f32 %v2882, %v2883
  %v2885 = vrot.slane %v2884, 1
  %v2886 = vadd.f32 %v2884, %v2885
  %v2887 = vadd.f32 %v2734, %v2886
  %v2888 = vmul.f32 %v2485, %v2485
  %v2889 = vmul.f32 %v2486, %v2486
  %v2890 = vmul.f32 %v2487, %v2487
  %v2891 = vmul.f32 %v2488, %v2488
  %v2892 = vmul.f32 %v2489, %v2489
  %v2893 = vmul.f32 %v2490, %v2490
  %v2894 = vmul.f32 %v2491, %v2491
  %v2895 = vmul.f32 %v2492, %v2492
  %v2896 = vmul.f32 %v2493, %v2493
  %v2897 = vmul.f32 %v2494, %v2494
  %v2898 = vmul.f32 %v2495, %v2495
  %v2899 = vmul.f32 %v2496, %v2496
  %v2900 = vmul.f32 %v2497, %v2497
  %v2901 = vmul.f32 %v2498, %v2498
  %v2902 = vmul.f32 %v2499, %v2499
  %v2903 = vmul.f32 %v2500, %v2500
  %v2904 = vmul.f32 %v2501, %v2501
  %v2905 = vmul.f32 %v2502, %v2502
  %v2906 = vmul.f32 %v2503, %v2503
  %v2907 = vmul.f32 %v2504, %v2504
  %v2908 = vmul.f32 %v2505, %v2505
  %v2909 = vmul.f32 %v2506, %v2506
  %v2910 = vmul.f32 %v2507, %v2507
  %v2911 = vmul.f32 %v2508, %v2508
  %v2912 = vmul.f32 %v2509, %v2509
  %v2913 = vmul.f32 %v2510, %v2510
  %v2914 = vmul.f32 %v2511, %v2511
  %v2915 = vmul.f32 %v2512, %v2512
  %v2916 = vmul.f32 %v2513, %v2513
  %v2917 = vmul.f32 %v2514, %v2514
  %v2918 = vmul.f32 %v2515, %v2515
  %v2919 = vmul.f32 %v2516, %v2516
  %v2920 = vmul.f32 %v2517, %v2517
  %v2921 = vmul.f32 %v2518, %v2518
  %v2922 = vmul.f32 %v2519, %v2519
  %v2923 = vmul.f32 %v2520, %v2520
  %v2924 = vmul.f32 %v2521, %v2521
  %v2925 = vmul.f32 %v2522, %v2522
  %v2926 = vmul.f32 %v2523, %v2523
  %v2927 = vmul.f32 %v2524, %v2524
  %v2928 = vmul.f32 %v2525, %v2525
  %v2929 = vmul.f32 %v2526, %v2526
  %v2930 = vmul.f32 %v2527, %v2527
  %v2931 = vmul.f32 %v2528, %v2528
  %v2932 = vmul.f32 %v2529, %v2529
  %v2933 = vmul.f32 %v2530, %v2530
  %v2934 = vmul.f32 %v2531, %v2531
  %v2935 = vmul.f32 %v2532, %v2532
  %v2936 = vmul.f32 %v2533, %v2533
  %v2937 = vsel %vm1970, %v2888, 0.0
  %v2938 = vsel %vm1970, %v2889, 0.0
  %v2939 = vadd.f32 %v2937, %v2938
  %v2940 = vsel %vm1970, %v2890, 0.0
  %v2941 = vadd.f32 %v2939, %v2940
  %v2942 = vsel %vm1970, %v2891, 0.0
  %v2943 = vadd.f32 %v2941, %v2942
  %v2944 = vsel %vm1970, %v2892, 0.0
  %v2945 = vadd.f32 %v2943, %v2944
  %v2946 = vsel %vm1970, %v2893, 0.0
  %v2947 = vadd.f32 %v2945, %v2946
  %v2948 = vsel %vm1970, %v2894, 0.0
  %v2949 = vadd.f32 %v2947, %v2948
  %v2950 = vsel %vm1970, %v2895, 0.0
  %v2951 = vadd.f32 %v2949, %v2950
  %v2952 = vsel %vm1970, %v2896, 0.0
  %v2953 = vadd.f32 %v2951, %v2952
  %v2954 = vsel %vm1970, %v2897, 0.0
  %v2955 = vadd.f32 %v2953, %v2954
  %v2956 = vsel %vm1970, %v2898, 0.0
  %v2957 = vadd.f32 %v2955, %v2956
  %v2958 = vsel %vm1970, %v2899, 0.0
  %v2959 = vadd.f32 %v2957, %v2958
  %v2960 = vsel %vm1970, %v2900, 0.0
  %v2961 = vadd.f32 %v2959, %v2960
  %v2962 = vsel %vm1970, %v2901, 0.0
  %v2963 = vadd.f32 %v2961, %v2962
  %v2964 = vsel %vm1970, %v2902, 0.0
  %v2965 = vadd.f32 %v2963, %v2964
  %v2966 = vsel %vm1970, %v2903, 0.0
  %v2967 = vadd.f32 %v2965, %v2966
  %v2968 = vsel %vm1970, %v2904, 0.0
  %v2969 = vadd.f32 %v2967, %v2968
  %v2970 = vsel %vm1970, %v2905, 0.0
  %v2971 = vadd.f32 %v2969, %v2970
  %v2972 = vsel %vm1970, %v2906, 0.0
  %v2973 = vadd.f32 %v2971, %v2972
  %v2974 = vsel %vm1970, %v2907, 0.0
  %v2975 = vadd.f32 %v2973, %v2974
  %v2976 = vsel %vm1970, %v2908, 0.0
  %v2977 = vadd.f32 %v2975, %v2976
  %v2978 = vsel %vm1970, %v2909, 0.0
  %v2979 = vadd.f32 %v2977, %v2978
  %v2980 = vsel %vm1970, %v2910, 0.0
  %v2981 = vadd.f32 %v2979, %v2980
  %v2982 = vsel %vm1970, %v2911, 0.0
  %v2983 = vadd.f32 %v2981, %v2982
  %v2984 = vsel %vm1970, %v2912, 0.0
  %v2985 = vadd.f32 %v2983, %v2984
  %v2986 = vsel %vm1970, %v2913, 0.0
  %v2987 = vadd.f32 %v2985, %v2986
  %v2988 = vsel %vm1970, %v2914, 0.0
  %v2989 = vadd.f32 %v2987, %v2988
  %v2990 = vsel %vm1970, %v2915, 0.0
  %v2991 = vadd.f32 %v2989, %v2990
  %v2992 = vsel %vm1970, %v2916, 0.0
  %v2993 = vadd.f32 %v2991, %v2992
  %v2994 = vsel %vm1970, %v2917, 0.0
  %v2995 = vadd.f32 %v2993, %v2994
  %v2996 = vsel %vm1970, %v2918, 0.0
  %v2997 = vadd.f32 %v2995, %v2996
  %v2998 = vsel %vm1970, %v2919, 0.0
  %v2999 = vadd.f32 %v2997, %v2998
  %v3000 = vsel %vm1970, %v2920, 0.0
  %v3001 = vadd.f32 %v2999, %v3000
  %v3002 = vsel %vm1970, %v2921, 0.0
  %v3003 = vadd.f32 %v3001, %v3002
  %v3004 = vsel %vm1970, %v2922, 0.0
  %v3005 = vadd.f32 %v3003, %v3004
  %v3006 = vsel %vm1970, %v2923, 0.0
  %v3007 = vadd.f32 %v3005, %v3006
  %v3008 = vsel %vm1970, %v2924, 0.0
  %v3009 = vadd.f32 %v3007, %v3008
  %v3010 = vsel %vm1970, %v2925, 0.0
  %v3011 = vadd.f32 %v3009, %v3010
  %v3012 = vsel %vm1970, %v2926, 0.0
  %v3013 = vadd.f32 %v3011, %v3012
  %v3014 = vsel %vm1970, %v2927, 0.0
  %v3015 = vadd.f32 %v3013, %v3014
  %v3016 = vsel %vm1970, %v2928, 0.0
  %v3017 = vadd.f32 %v3015, %v3016
  %v3018 = vsel %vm1970, %v2929, 0.0
  %v3019 = vadd.f32 %v3017, %v3018
  %v3020 = vsel %vm1970, %v2930, 0.0
  %v3021 = vadd.f32 %v3019, %v3020
  %v3022 = vsel %vm1970, %v2931, 0.0
  %v3023 = vadd.f32 %v3021, %v3022
  %v3024 = vsel %vm1970, %v2932, 0.0
  %v3025 = vadd.f32 %v3023, %v3024
  %v3026 = vsel %vm1970, %v2933, 0.0
  %v3027 = vadd.f32 %v3025, %v3026
  %v3028 = vsel %vm1970, %v2934, 0.0
  %v3029 = vadd.f32 %v3027, %v3028
  %v3030 = vsel %vm1970, %v2935, 0.0
  %v3031 = vadd.f32 %v3029, %v3030
  %v3032 = vsel %vm1970, %v2936, 0.0
  %v3033 = vadd.f32 %v3031, %v3032
  %v3034 = vrot.slane %v3033, 4
  %v3035 = vadd.f32 %v3033, %v3034
  %v3036 = vrot.slane %v3035, 2
  %v3037 = vadd.f32 %v3035, %v3036
  %v3038 = vrot.slane %v3037, 1
  %v3039 = vadd.f32 %v3037, %v3038
  %v3040 = vadd.f32 %v2887, %v3039
  %v3041 = vmul.f32 %v2534, %v2534
  %v3042 = vmul.f32 %v2535, %v2535
  %v3043 = vmul.f32 %v2536, %v2536
  %v3044 = vmul.f32 %v2537, %v2537
  %v3045 = vmul.f32 %v2538, %v2538
  %v3046 = vmul.f32 %v2539, %v2539
  %v3047 = vmul.f32 %v2540, %v2540
  %v3048 = vmul.f32 %v2541, %v2541
  %v3049 = vmul.f32 %v2542, %v2542
  %v3050 = vmul.f32 %v2543, %v2543
  %v3051 = vmul.f32 %v2544, %v2544
  %v3052 = vmul.f32 %v2545, %v2545
  %v3053 = vmul.f32 %v2546, %v2546
  %v3054 = vmul.f32 %v2547, %v2547
  %v3055 = vmul.f32 %v2548, %v2548
  %v3056 = vmul.f32 %v2549, %v2549
  %v3057 = vmul.f32 %v2550, %v2550
  %v3058 = vmul.f32 %v2551, %v2551
  %v3059 = vmul.f32 %v2552, %v2552
  %v3060 = vmul.f32 %v2553, %v2553
  %v3061 = vmul.f32 %v2554, %v2554
  %v3062 = vmul.f32 %v2555, %v2555
  %v3063 = vmul.f32 %v2556, %v2556
  %v3064 = vmul.f32 %v2557, %v2557
  %v3065 = vmul.f32 %v2558, %v2558
  %v3066 = vmul.f32 %v2559, %v2559
  %v3067 = vmul.f32 %v2560, %v2560
  %v3068 = vmul.f32 %v2561, %v2561
  %v3069 = vmul.f32 %v2562, %v2562
  %v3070 = vmul.f32 %v2563, %v2563
  %v3071 = vmul.f32 %v2564, %v2564
  %v3072 = vmul.f32 %v2565, %v2565
  %v3073 = vmul.f32 %v2566, %v2566
  %v3074 = vmul.f32 %v2567, %v2567
  %v3075 = vmul.f32 %v2568, %v2568
  %v3076 = vmul.f32 %v2569, %v2569
  %v3077 = vmul.f32 %v2570, %v2570
  %v3078 = vmul.f32 %v2571, %v2571
  %v3079 = vmul.f32 %v2572, %v2572
  %v3080 = vmul.f32 %v2573, %v2573
  %v3081 = vmul.f32 %v2574, %v2574
  %v3082 = vmul.f32 %v2575, %v2575
  %v3083 = vmul.f32 %v2576, %v2576
  %v3084 = vmul.f32 %v2577, %v2577
  %v3085 = vmul.f32 %v2578, %v2578
  %v3086 = vmul.f32 %v2579, %v2579
  %v3087 = vmul.f32 %v2580, %v2580
  %v3088 = vmul.f32 %v2581, %v2581
  %v3089 = vmul.f32 %v2582, %v2582
  %v3090 = vsel %vm1970, %v3041, 0.0
  %v3091 = vsel %vm1970, %v3042, 0.0
  %v3092 = vadd.f32 %v3090, %v3091
  %v3093 = vsel %vm1970, %v3043, 0.0
  %v3094 = vadd.f32 %v3092, %v3093
  %v3095 = vsel %vm1970, %v3044, 0.0
  %v3096 = vadd.f32 %v3094, %v3095
  %v3097 = vsel %vm1970, %v3045, 0.0
  %v3098 = vadd.f32 %v3096, %v3097
  %v3099 = vsel %vm1970, %v3046, 0.0
  %v3100 = vadd.f32 %v3098, %v3099
  %v3101 = vsel %vm1970, %v3047, 0.0
  %v3102 = vadd.f32 %v3100, %v3101
  %v3103 = vsel %vm1970, %v3048, 0.0
  %v3104 = vadd.f32 %v3102, %v3103
  %v3105 = vsel %vm1970, %v3049, 0.0
  %v3106 = vadd.f32 %v3104, %v3105
  %v3107 = vsel %vm1970, %v3050, 0.0
  %v3108 = vadd.f32 %v3106, %v3107
  %v3109 = vsel %vm1970, %v3051, 0.0
  %v3110 = vadd.f32 %v3108, %v3109
  %v3111 = vsel %vm1970, %v3052, 0.0
  %v3112 = vadd.f32 %v3110, %v3111
  %v3113 = vsel %vm1970, %v3053, 0.0
  %v3114 = vadd.f32 %v3112, %v3113
  %v3115 = vsel %vm1970, %v3054, 0.0
  %v3116 = vadd.f32 %v3114, %v3115
  %v3117 = vsel %vm1970, %v3055, 0.0
  %v3118 = vadd.f32 %v3116, %v3117
  %v3119 = vsel %vm1970, %v3056, 0.0
  %v3120 = vadd.f32 %v3118, %v3119
  %v3121 = vsel %vm1970, %v3057, 0.0
  %v3122 = vadd.f32 %v3120, %v3121
  %v3123 = vsel %vm1970, %v3058, 0.0
  %v3124 = vadd.f32 %v3122, %v3123
  %v3125 = vsel %vm1970, %v3059, 0.0
  %v3126 = vadd.f32 %v3124, %v3125
  %v3127 = vsel %vm1970, %v3060, 0.0
  %v3128 = vadd.f32 %v3126, %v3127
  %v3129 = vsel %vm1970, %v3061, 0.0
  %v3130 = vadd.f32 %v3128, %v3129
  %v3131 = vsel %vm1970, %v3062, 0.0
  %v3132 = vadd.f32 %v3130, %v3131
  %v3133 = vsel %vm1970, %v3063, 0.0
  %v3134 = vadd.f32 %v3132, %v3133
  %v3135 = vsel %vm1970, %v3064, 0.0
  %v3136 = vadd.f32 %v3134, %v3135
  %v3137 = vsel %vm1970, %v3065, 0.0
  %v3138 = vadd.f32 %v3136, %v3137
  %v3139 = vsel %vm1970, %v3066, 0.0
  %v3140 = vadd.f32 %v3138, %v3139
  %v3141 = vsel %vm1970, %v3067, 0.0
  %v3142 = vadd.f32 %v3140, %v3141
  %v3143 = vsel %vm1970, %v3068, 0.0
  %v3144 = vadd.f32 %v3142, %v3143
  %v3145 = vsel %vm1970, %v3069, 0.0
  %v3146 = vadd.f32 %v3144, %v3145
  %v3147 = vsel %vm1970, %v3070, 0.0
  %v3148 = vadd.f32 %v3146, %v3147
  %v3149 = vsel %vm1970, %v3071, 0.0
  %v3150 = vadd.f32 %v3148, %v3149
  %v3151 = vsel %vm1970, %v3072, 0.0
  %v3152 = vadd.f32 %v3150, %v3151
  %v3153 = vsel %vm1970, %v3073, 0.0
  %v3154 = vadd.f32 %v3152, %v3153
  %v3155 = vsel %vm1970, %v3074, 0.0
  %v3156 = vadd.f32 %v3154, %v3155
  %v3157 = vsel %vm1970, %v3075, 0.0
  %v3158 = vadd.f32 %v3156, %v3157
  %v3159 = vsel %vm1970, %v3076, 0.0
  %v3160 = vadd.f32 %v3158, %v3159
  %v3161 = vsel %vm1970, %v3077, 0.0
  %v3162 = vadd.f32 %v3160, %v3161
  %v3163 = vsel %vm1970, %v3078, 0.0
  %v3164 = vadd.f32 %v3162, %v3163
  %v3165 = vsel %vm1970, %v3079, 0.0
  %v3166 = vadd.f32 %v3164, %v3165
  %v3167 = vsel %vm1970, %v3080, 0.0
  %v3168 = vadd.f32 %v3166, %v3167
  %v3169 = vsel %vm1970, %v3081, 0.0
  %v3170 = vadd.f32 %v3168, %v3169
  %v3171 = vsel %vm1970, %v3082, 0.0
  %v3172 = vadd.f32 %v3170, %v3171
  %v3173 = vsel %vm1970, %v3083, 0.0
  %v3174 = vadd.f32 %v3172, %v3173
  %v3175 = vsel %vm1970, %v3084, 0.0
  %v3176 = vadd.f32 %v3174, %v3175
  %v3177 = vsel %vm1970, %v3085, 0.0
  %v3178 = vadd.f32 %v3176, %v3177
  %v3179 = vsel %vm1970, %v3086, 0.0
  %v3180 = vadd.f32 %v3178, %v3179
  %v3181 = vsel %vm1970, %v3087, 0.0
  %v3182 = vadd.f32 %v3180, %v3181
  %v3183 = vsel %vm1970, %v3088, 0.0
  %v3184 = vadd.f32 %v3182, %v3183
  %v3185 = vsel %vm1970, %v3089, 0.0
  %v3186 = vadd.f32 %v3184, %v3185
  %v3187 = vrot.slane %v3186, 4
  %v3188 = vadd.f32 %v3186, %v3187
  %v3189 = vrot.slane %v3188, 2
  %v3190 = vadd.f32 %v3188, %v3189
  %v3191 = vrot.slane %v3190, 1
  %v3192 = vadd.f32 %v3190, %v3191
  %v3193 = vadd.f32 %v3040, %v3192
  %v3194 = vmul.f32 %v3193, 0.0006377551
  %v3195 = vld [vmem:[%s3] sm:$0x1]
  %v3196 = vadd.f32 %v3194, 1e-05
  %v3197 = vrsqrt.pop %v3196
  %v3198 = vmul.f32 %v3195, %v3197
  %v3199 = vld [vmem:[%s4] sm:$0x1]
  %v3200 = vmul.f32 %v2386, %v3198
  %v3201 = vsub.f32 %v3199, %v3200
  %v3203 = vlaneseq
  %v3204 = vshrl.u32 %v3203, 7
  %v3205 = vsub.s32 0, %v3204
  %v3206 = vrot.slane %v3198, %v3205
  %v3208 = vmul.f32 %v333, %v3206
  %v3209 = vmul.f32 %v336, %v3206
  %v3210 = vmul.f32 %v341, %v3206
  %v3211 = vmul.f32 %v344, %v3206
  %v3212 = vmul.f32 %v349, %v3206
  %v3213 = vmul.f32 %v352, %v3206
  %v3214 = vmul.f32 %v357, %v3206
  %v3215 = vmul.f32 %v360, %v3206
  %v3216 = vmul.f32 %v365, %v3206
  %v3217 = vmul.f32 %v368, %v3206
  %v3218 = vmul.f32 %v373, %v3206
  %v3219 = vmul.f32 %v376, %v3206
  %v3220 = vmul.f32 %v381, %v3206
  %v3221 = vmul.f32 %v384, %v3206
  %v3222 = vmul.f32 %v389, %v3206
  %v3223 = vmul.f32 %v392, %v3206
  %v3224 = vmul.f32 %v397, %v3206
  %v3225 = vmul.f32 %v400, %v3206
  %v3226 = vmul.f32 %v405, %v3206
  %v3227 = vmul.f32 %v408, %v3206
  %v3228 = vmul.f32 %v413, %v3206
  %v3229 = vmul.f32 %v416, %v3206
  %v3230 = vmul.f32 %v421, %v3206
  %v3231 = vmul.f32 %v424, %v3206
  %v3232 = vmul.f32 %v429, %v3206
  %v3233 = vmul.f32 %v432, %v3206
  %v3234 = vmul.f32 %v437, %v3206
  %v3235 = vmul.f32 %v440, %v3206
  %v3236 = vmul.f32 %v445, %v3206
  %v3237 = vmul.f32 %v448, %v3206
  %v3238 = vmul.f32 %v453, %v3206
  %v3239 = vmul.f32 %v456, %v3206
  %v3240 = vmul.f32 %v461, %v3206
  %v3241 = vmul.f32 %v464, %v3206
  %v3242 = vmul.f32 %v469, %v3206
  %v3243 = vmul.f32 %v472, %v3206
  %v3244 = vmul.f32 %v477, %v3206
  %v3245 = vmul.f32 %v480, %v3206
  %v3246 = vmul.f32 %v485, %v3206
  %v3247 = vmul.f32 %v488, %v3206
  %v3248 = vmul.f32 %v493, %v3206
  %v3249 = vmul.f32 %v496, %v3206
  %v3250 = vmul.f32 %v501, %v3206
  %v3251 = vmul.f32 %v504, %v3206
  %v3252 = vmul.f32 %v509, %v3206
  %v3253 = vmul.f32 %v512, %v3206
  %v3254 = vmul.f32 %v517, %v3206
  %v3255 = vmul.f32 %v520, %v3206
  %v3256 = vmul.f32 %v525, %v3206
  %v3258 = vlaneseq
  %v3259 = vshrl.u32 %v3258, 7
  %v3260 = vsub.s32 0, %v3259
  %v3261 = vrot.slane %v3201, %v3260
  %v3263 = vadd.f32 %v3208, %v3261
  %v3264 = vadd.f32 %v3209, %v3261
  %v3265 = vadd.f32 %v3210, %v3261
  %v3266 = vadd.f32 %v3211, %v3261
  %v3267 = vadd.f32 %v3212, %v3261
  %v3268 = vadd.f32 %v3213, %v3261
  %v3269 = vadd.f32 %v3214, %v3261
  %v3270 = vadd.f32 %v3215, %v3261
  %v3271 = vadd.f32 %v3216, %v3261
  %v3272 = vadd.f32 %v3217, %v3261
  %v3273 = vadd.f32 %v3218, %v3261
  %v3274 = vadd.f32 %v3219, %v3261
  %v3275 = vadd.f32 %v3220, %v3261
  %v3276 = vadd.f32 %v3221, %v3261
  %v3277 = vadd.f32 %v3222, %v3261
  %v3278 = vadd.f32 %v3223, %v3261
  %v3279 = vadd.f32 %v3224, %v3261
  %v3280 = vadd.f32 %v3225, %v3261
  %v3281 = vadd.f32 %v3226, %v3261
  %v3282 = vadd.f32 %v3227, %v3261
  %v3283 = vadd.f32 %v3228, %v3261
  %v3284 = vadd.f32 %v3229, %v3261
  %v3285 = vadd.f32 %v3230, %v3261
  %v3286 = vadd.f32 %v3231, %v3261
  %v3287 = vadd.f32 %v3232, %v3261
  %v3288 = vadd.f32 %v3233, %v3261
  %v3289 = vadd.f32 %v3234, %v3261
  %v3290 = vadd.f32 %v3235, %v3261
  %v3291 = vadd.f32 %v3236, %v3261
  %v3292 = vadd.f32 %v3237, %v3261
  %v3293 = vadd.f32 %v3238, %v3261
  %v3294 = vadd.f32 %v3239, %v3261
  %v3295 = vadd.f32 %v3240, %v3261
  %v3296 = vadd.f32 %v3241, %v3261
  %v3297 = vadd.f32 %v3242, %v3261
  %v3298 = vadd.f32 %v3243, %v3261
  %v3299 = vadd.f32 %v3244, %v3261
  %v3300 = vadd.f32 %v3245, %v3261
  %v3301 = vadd.f32 %v3246, %v3261
  %v3302 = vadd.f32 %v3247, %v3261
  %v3303 = vadd.f32 %v3248, %v3261
  %v3304 = vadd.f32 %v3249, %v3261
  %v3305 = vadd.f32 %v3250, %v3261
  %v3306 = vadd.f32 %v3251, %v3261
  %v3307 = vadd.f32 %v3252, %v3261
  %v3308 = vadd.f32 %v3253, %v3261
  %v3309 = vadd.f32 %v3254, %v3261
  %v3310 = vadd.f32 %v3255, %v3261
  %v3311 = vadd.f32 %v3256, %v3261
  %v3312 = vmax.f32 %v3263, 0.0
  %v3313 = vmax.f32 %v3264, 0.0
  %v3314 = vmax.f32 %v3265, 0.0
  %v3315 = vmax.f32 %v3266, 0.0
  %v3316 = vmax.f32 %v3267, 0.0
  %v3317 = vmax.f32 %v3268, 0.0
  %v3318 = vmax.f32 %v3269, 0.0
  %v3319 = vmax.f32 %v3270, 0.0
  %v3320 = vmax.f32 %v3271, 0.0
  %v3321 = vmax.f32 %v3272, 0.0
  %v3322 = vmax.f32 %v3273, 0.0
  %v3323 = vmax.f32 %v3274, 0.0
  %v3324 = vmax.f32 %v3275, 0.0
  %v3325 = vmax.f32 %v3276, 0.0
  %v3326 = vmax.f32 %v3277, 0.0
  %v3327 = vmax.f32 %v3278, 0.0
  %v3328 = vmax.f32 %v3279, 0.0
  %v3329 = vmax.f32 %v3280, 0.0
  %v3330 = vmax.f32 %v3281, 0.0
  %v3331 = vmax.f32 %v3282, 0.0
  %v3332 = vmax.f32 %v3283, 0.0
  %v3333 = vmax.f32 %v3284, 0.0
  %v3334 = vmax.f32 %v3285, 0.0
  %v3335 = vmax.f32 %v3286, 0.0
  %v3336 = vmax.f32 %v3287, 0.0
  %v3337 = vmax.f32 %v3288, 0.0
  %v3338 = vmax.f32 %v3289, 0.0
  %v3339 = vmax.f32 %v3290, 0.0
  %v3340 = vmax.f32 %v3291, 0.0
  %v3341 = vmax.f32 %v3292, 0.0
  %v3342 = vmax.f32 %v3293, 0.0
  %v3343 = vmax.f32 %v3294, 0.0
  %v3344 = vmax.f32 %v3295, 0.0
  %v3345 = vmax.f32 %v3296, 0.0
  %v3346 = vmax.f32 %v3297, 0.0
  %v3347 = vmax.f32 %v3298, 0.0
  %v3348 = vmax.f32 %v3299, 0.0
  %v3349 = vmax.f32 %v3300, 0.0
  %v3350 = vmax.f32 %v3301, 0.0
  %v3351 = vmax.f32 %v3302, 0.0
  %v3352 = vmax.f32 %v3303, 0.0
  %v3353 = vmax.f32 %v3304, 0.0
  %v3354 = vmax.f32 %v3305, 0.0
  %v3355 = vmax.f32 %v3306, 0.0
  %v3356 = vmax.f32 %v3307, 0.0
  %v3357 = vmax.f32 %v3308, 0.0
  %v3358 = vmax.f32 %v3309, 0.0
  %v3359 = vmax.f32 %v3310, 0.0
  %v3360 = vmax.f32 %v3311, 0.0
  %v3361 = vmul.f32 %v813, %v3206
  %v3362 = vmul.f32 %v816, %v3206
  %v3363 = vmul.f32 %v821, %v3206
  %v3364 = vmul.f32 %v824, %v3206
  %v3365 = vmul.f32 %v829, %v3206
  %v3366 = vmul.f32 %v832, %v3206
  %v3367 = vmul.f32 %v837, %v3206
  %v3368 = vmul.f32 %v840, %v3206
  %v3369 = vmul.f32 %v845, %v3206
  %v3370 = vmul.f32 %v848, %v3206
  %v3371 = vmul.f32 %v853, %v3206
  %v3372 = vmul.f32 %v856, %v3206
  %v3373 = vmul.f32 %v861, %v3206
  %v3374 = vmul.f32 %v864, %v3206
  %v3375 = vmul.f32 %v869, %v3206
  %v3376 = vmul.f32 %v872, %v3206
  %v3377 = vmul.f32 %v877, %v3206
  %v3378 = vmul.f32 %v880, %v3206
  %v3379 = vmul.f32 %v885, %v3206
  %v3380 = vmul.f32 %v888, %v3206
  %v3381 = vmul.f32 %v893, %v3206
  %v3382 = vmul.f32 %v896, %v3206
  %v3383 = vmul.f32 %v901, %v3206
  %v3384 = vmul.f32 %v904, %v3206
  %v3385 = vmul.f32 %v909, %v3206
  %v3386 = vmul.f32 %v912, %v3206
  %v3387 = vmul.f32 %v917, %v3206
  %v3388 = vmul.f32 %v920, %v3206
  %v3389 = vmul.f32 %v925, %v3206
  %v3390 = vmul.f32 %v928, %v3206
  %v3391 = vmul.f32 %v933, %v3206
  %v3392 = vmul.f32 %v936, %v3206
  %v3393 = vmul.f32 %v941, %v3206
  %v3394 = vmul.f32 %v944, %v3206
  %v3395 = vmul.f32 %v949, %v3206
  %v3396 = vmul.f32 %v952, %v3206
  %v3397 = vmul.f32 %v957, %v3206
  %v3398 = vmul.f32 %v960, %v3206
  %v3399 = vmul.f32 %v965, %v3206
  %v3400 = vmul.f32 %v968, %v3206
  %v3401 = vmul.f32 %v973, %v3206
  %v3402 = vmul.f32 %v976, %v3206
  %v3403 = vmul.f32 %v981, %v3206
  %v3404 = vmul.f32 %v984, %v3206
  %v3405 = vmul.f32 %v989, %v3206
  %v3406 = vmul.f32 %v992, %v3206
  %v3407 = vmul.f32 %v997, %v3206
  %v3408 = vmul.f32 %v1000, %v3206
  %v3409 = vmul.f32 %v1005, %v3206
  %v3410 = vadd.f32 %v3361, %v3261
  %v3411 = vadd.f32 %v3362, %v3261
  %v3412 = vadd.f32 %v3363, %v3261
  %v3413 = vadd.f32 %v3364, %v3261
  %v3414 = vadd.f32 %v3365, %v3261
  %v3415 = vadd.f32 %v3366, %v3261
  %v3416 = vadd.f32 %v3367, %v3261
  %v3417 = vadd.f32 %v3368, %v3261
  %v3418 = vadd.f32 %v3369, %v3261
  %v3419 = vadd.f32 %v3370, %v3261
  %v3420 = vadd.f32 %v3371, %v3261
  %v3421 = vadd.f32 %v3372, %v3261
  %v3422 = vadd.f32 %v3373, %v3261
  %v3423 = vadd.f32 %v3374, %v3261
  %v3424 = vadd.f32 %v3375, %v3261
  %v3425 = vadd.f32 %v3376, %v3261
  %v3426 = vadd.f32 %v3377, %v3261
  %v3427 = vadd.f32 %v3378, %v3261
  %v3428 = vadd.f32 %v3379, %v3261
  %v3429 = vadd.f32 %v3380, %v3261
  %v3430 = vadd.f32 %v3381, %v3261
  %v3431 = vadd.f32 %v3382, %v3261
  %v3432 = vadd.f32 %v3383, %v3261
  %v3433 = vadd.f32 %v3384, %v3261
  %v3434 = vadd.f32 %v3385, %v3261
  %v3435 = vadd.f32 %v3386, %v3261
  %v3436 = vadd.f32 %v3387, %v3261
  %v3437 = vadd.f32 %v3388, %v3261
  %v3438 = vadd.f32 %v3389, %v3261
  %v3439 = vadd.f32 %v3390, %v3261
  %v3440 = vadd.f32 %v3391, %v3261
  %v3441 = vadd.f32 %v3392, %v3261
  %v3442 = vadd.f32 %v3393, %v3261
  %v3443 = vadd.f32 %v3394, %v3261
  %v3444 = vadd.f32 %v3395, %v3261
  %v3445 = vadd.f32 %v3396, %v3261
  %v3446 = vadd.f32 %v3397, %v3261
  %v3447 = vadd.f32 %v3398, %v3261
  %v3448 = vadd.f32 %v3399, %v3261
  %v3449 = vadd.f32 %v3400, %v3261
  %v3450 = vadd.f32 %v3401, %v3261
  %v3451 = vadd.f32 %v3402, %v3261
  %v3452 = vadd.f32 %v3403, %v3261
  %v3453 = vadd.f32 %v3404, %v3261
  %v3454 = vadd.f32 %v3405, %v3261
  %v3455 = vadd.f32 %v3406, %v3261
  %v3456 = vadd.f32 %v3407, %v3261
  %v3457 = vadd.f32 %v3408, %v3261
  %v3458 = vadd.f32 %v3409, %v3261
  %v3459 = vmax.f32 %v3410, 0.0
  %v3460 = vmax.f32 %v3411, 0.0
  %v3461 = vmax.f32 %v3412, 0.0
  %v3462 = vmax.f32 %v3413, 0.0
  %v3463 = vmax.f32 %v3414, 0.0
  %v3464 = vmax.f32 %v3415, 0.0
  %v3465 = vmax.f32 %v3416, 0.0
  %v3466 = vmax.f32 %v3417, 0.0
  %v3467 = vmax.f32 %v3418, 0.0
  %v3468 = vmax.f32 %v3419, 0.0
  %v3469 = vmax.f32 %v3420, 0.0
  %v3470 = vmax.f32 %v3421, 0.0
  %v3471 = vmax.f32 %v3422, 0.0
  %v3472 = vmax.f32 %v3423, 0.0
  %v3473 = vmax.f32 %v3424, 0.0
  %v3474 = vmax.f32 %v3425, 0.0
  %v3475 = vmax.f32 %v3426, 0.0
  %v3476 = vmax.f32 %v3427, 0.0
  %v3477 = vmax.f32 %v3428, 0.0
  %v3478 = vmax.f32 %v3429, 0.0
  %v3479 = vmax.f32 %v3430, 0.0
  %v3480 = vmax.f32 %v3431, 0.0
  %v3481 = vmax.f32 %v3432, 0.0
  %v3482 = vmax.f32 %v3433, 0.0
  %v3483 = vmax.f32 %v3434, 0.0
  %v3484 = vmax.f32 %v3435, 0.0
  %v3485 = vmax.f32 %v3436, 0.0
  %v3486 = vmax.f32 %v3437, 0.0
  %v3487 = vmax.f32 %v3438, 0.0
  %v3488 = vmax.f32 %v3439, 0.0
  %v3489 = vmax.f32 %v3440, 0.0
  %v3490 = vmax.f32 %v3441, 0.0
  %v3491 = vmax.f32 %v3442, 0.0
  %v3492 = vmax.f32 %v3443, 0.0
  %v3493 = vmax.f32 %v3444, 0.0
  %v3494 = vmax.f32 %v3445, 0.0
  %v3495 = vmax.f32 %v3446, 0.0
  %v3496 = vmax.f32 %v3447, 0.0
  %v3497 = vmax.f32 %v3448, 0.0
  %v3498 = vmax.f32 %v3449, 0.0
  %v3499 = vmax.f32 %v3450, 0.0
  %v3500 = vmax.f32 %v3451, 0.0
  %v3501 = vmax.f32 %v3452, 0.0
  %v3502 = vmax.f32 %v3453, 0.0
  %v3503 = vmax.f32 %v3454, 0.0
  %v3504 = vmax.f32 %v3455, 0.0
  %v3505 = vmax.f32 %v3456, 0.0
  %v3506 = vmax.f32 %v3457, 0.0
  %v3507 = vmax.f32 %v3458, 0.0
  %v3508 = vmul.f32 %v1293, %v3206
  %v3509 = vmul.f32 %v1296, %v3206
  %v3510 = vmul.f32 %v1301, %v3206
  %v3511 = vmul.f32 %v1304, %v3206
  %v3512 = vmul.f32 %v1309, %v3206
  %v3513 = vmul.f32 %v1312, %v3206
  %v3514 = vmul.f32 %v1317, %v3206
  %v3515 = vmul.f32 %v1320, %v3206
  %v3516 = vmul.f32 %v1325, %v3206
  %v3517 = vmul.f32 %v1328, %v3206
  %v3518 = vmul.f32 %v1333, %v3206
  %v3519 = vmul.f32 %v1336, %v3206
  %v3520 = vmul.f32 %v1341, %v3206
  %v3521 = vmul.f32 %v1344, %v3206
  %v3522 = vmul.f32 %v1349, %v3206
  %v3523 = vmul.f32 %v1352, %v3206
  %v3524 = vmul.f32 %v1357, %v3206
  %v3525 = vmul.f32 %v1360, %v3206
  %v3526 = vmul.f32 %v1365, %v3206
  %v3527 = vmul.f32 %v1368, %v3206
  %v3528 = vmul.f32 %v1373, %v3206
  %v3529 = vmul.f32 %v1376, %v3206
  %v3530 = vmul.f32 %v1381, %v3206
  %v3531 = vmul.f32 %v1384, %v3206
  %v3532 = vmul.f32 %v1389, %v3206
  %v3533 = vmul.f32 %v1392, %v3206
  %v3534 = vmul.f32 %v1397, %v3206
  %v3535 = vmul.f32 %v1400, %v3206
  %v3536 = vmul.f32 %v1405, %v3206
  %v3537 = vmul.f32 %v1408, %v3206
  %v3538 = vmul.f32 %v1413, %v3206
  %v3539 = vmul.f32 %v1416, %v3206
  %v3540 = vmul.f32 %v1421, %v3206
  %v3541 = vmul.f32 %v1424, %v3206
  %v3542 = vmul.f32 %v1429, %v3206
  %v3543 = vmul.f32 %v1432, %v3206
  %v3544 = vmul.f32 %v1437, %v3206
  %v3545 = vmul.f32 %v1440, %v3206
  %v3546 = vmul.f32 %v1445, %v3206
  %v3547 = vmul.f32 %v1448, %v3206
  %v3548 = vmul.f32 %v1453, %v3206
  %v3549 = vmul.f32 %v1456, %v3206
  %v3550 = vmul.f32 %v1461, %v3206
  %v3551 = vmul.f32 %v1464, %v3206
  %v3552 = vmul.f32 %v1469, %v3206
  %v3553 = vmul.f32 %v1472, %v3206
  %v3554 = vmul.f32 %v1477, %v3206
  %v3555 = vmul.f32 %v1480, %v3206
  %v3556 = vmul.f32 %v1485, %v3206
  %v3557 = vadd.f32 %v3508, %v3261
  %v3558 = vadd.f32 %v3509, %v3261
  %v3559 = vadd.f32 %v3510, %v3261
  %v3560 = vadd.f32 %v3511, %v3261
  %v3561 = vadd.f32 %v3512, %v3261
  %v3562 = vadd.f32 %v3513, %v3261
  %v3563 = vadd.f32 %v3514, %v3261
  %v3564 = vadd.f32 %v3515, %v3261
  %v3565 = vadd.f32 %v3516, %v3261
  %v3566 = vadd.f32 %v3517, %v3261
  %v3567 = vadd.f32 %v3518, %v3261
  %v3568 = vadd.f32 %v3519, %v3261
  %v3569 = vadd.f32 %v3520, %v3261
  %v3570 = vadd.f32 %v3521, %v3261
  %v3571 = vadd.f32 %v3522, %v3261
  %v3572 = vadd.f32 %v3523, %v3261
  %v3573 = vadd.f32 %v3524, %v3261
  %v3574 = vadd.f32 %v3525, %v3261
  %v3575 = vadd.f32 %v3526, %v3261
  %v3576 = vadd.f32 %v3527, %v3261
  %v3577 = vadd.f32 %v3528, %v3261
  %v3578 = vadd.f32 %v3529, %v3261
  %v3579 = vadd.f32 %v3530, %v3261
  %v3580 = vadd.f32 %v3531, %v3261
  %v3581 = vadd.f32 %v3532, %v3261
  %v3582 = vadd.f32 %v3533, %v3261
  %v3583 = vadd.f32 %v3534, %v3261
  %v3584 = vadd.f32 %v3535, %v3261
  %v3585 = vadd.f32 %v3536, %v3261
  %v3586 = vadd.f32 %v3537, %v3261
  %v3587 = vadd.f32 %v3538, %v3261
  %v3588 = vadd.f32 %v3539, %v3261
  %v3589 = vadd.f32 %v3540, %v3261
  %v3590 = vadd.f32 %v3541, %v3261
  %v3591 = vadd.f32 %v3542, %v3261
  %v3592 = vadd.f32 %v3543, %v3261
  %v3593 = vadd.f32 %v3544, %v3261
  %v3594 = vadd.f32 %v3545, %v3261
  %v3595 = vadd.f32 %v3546, %v3261
  %v3596 = vadd.f32 %v3547, %v3261
  %v3597 = vadd.f32 %v3548, %v3261
  %v3598 = vadd.f32 %v3549, %v3261
  %v3599 = vadd.f32 %v3550, %v3261
  %v3600 = vadd.f32 %v3551, %v3261
  %v3601 = vadd.f32 %v3552, %v3261
  %v3602 = vadd.f32 %v3553, %v3261
  %v3603 = vadd.f32 %v3554, %v3261
  %v3604 = vadd.f32 %v3555, %v3261
  %v3605 = vadd.f32 %v3556, %v3261
  %v3606 = vmax.f32 %v3557, 0.0
  %v3607 = vmax.f32 %v3558, 0.0
  %v3608 = vmax.f32 %v3559, 0.0
  %v3609 = vmax.f32 %v3560, 0.0
  %v3610 = vmax.f32 %v3561, 0.0
  %v3611 = vmax.f32 %v3562, 0.0
  %v3612 = vmax.f32 %v3563, 0.0
  %v3613 = vmax.f32 %v3564, 0.0
  %v3614 = vmax.f32 %v3565, 0.0
  %v3615 = vmax.f32 %v3566, 0.0
  %v3616 = vmax.f32 %v3567, 0.0
  %v3617 = vmax.f32 %v3568, 0.0
  %v3618 = vmax.f32 %v3569, 0.0
  %v3619 = vmax.f32 %v3570, 0.0
  %v3620 = vmax.f32 %v3571, 0.0
  %v3621 = vmax.f32 %v3572, 0.0
  %v3622 = vmax.f32 %v3573, 0.0
  %v3623 = vmax.f32 %v3574, 0.0
  %v3624 = vmax.f32 %v3575, 0.0
  %v3625 = vmax.f32 %v3576, 0.0
  %v3626 = vmax.f32 %v3577, 0.0
  %v3627 = vmax.f32 %v3578, 0.0
  %v3628 = vmax.f32 %v3579, 0.0
  %v3629 = vmax.f32 %v3580, 0.0
  %v3630 = vmax.f32 %v3581, 0.0
  %v3631 = vmax.f32 %v3582, 0.0
  %v3632 = vmax.f32 %v3583, 0.0
  %v3633 = vmax.f32 %v3584, 0.0
  %v3634 = vmax.f32 %v3585, 0.0
  %v3635 = vmax.f32 %v3586, 0.0
  %v3636 = vmax.f32 %v3587, 0.0
  %v3637 = vmax.f32 %v3588, 0.0
  %v3638 = vmax.f32 %v3589, 0.0
  %v3639 = vmax.f32 %v3590, 0.0
  %v3640 = vmax.f32 %v3591, 0.0
  %v3641 = vmax.f32 %v3592, 0.0
  %v3642 = vmax.f32 %v3593, 0.0
  %v3643 = vmax.f32 %v3594, 0.0
  %v3644 = vmax.f32 %v3595, 0.0
  %v3645 = vmax.f32 %v3596, 0.0
  %v3646 = vmax.f32 %v3597, 0.0
  %v3647 = vmax.f32 %v3598, 0.0
  %v3648 = vmax.f32 %v3599, 0.0
  %v3649 = vmax.f32 %v3600, 0.0
  %v3650 = vmax.f32 %v3601, 0.0
  %v3651 = vmax.f32 %v3602, 0.0
  %v3652 = vmax.f32 %v3603, 0.0
  %v3653 = vmax.f32 %v3604, 0.0
  %v3654 = vmax.f32 %v3605, 0.0
  %v3655 = vmul.f32 %v1773, %v3206
  %v3656 = vmul.f32 %v1776, %v3206
  %v3657 = vmul.f32 %v1781, %v3206
  %v3658 = vmul.f32 %v1784, %v3206
  %v3659 = vmul.f32 %v1789, %v3206
  %v3660 = vmul.f32 %v1792, %v3206
  %v3661 = vmul.f32 %v1797, %v3206
  %v3662 = vmul.f32 %v1800, %v3206
  %v3663 = vmul.f32 %v1805, %v3206
  %v3664 = vmul.f32 %v1808, %v3206
  %v3665 = vmul.f32 %v1813, %v3206
  %v3666 = vmul.f32 %v1816, %v3206
  %v3667 = vmul.f32 %v1821, %v3206
  %v3668 = vmul.f32 %v1824, %v3206
  %v3669 = vmul.f32 %v1829, %v3206
  %v3670 = vmul.f32 %v1832, %v3206
  %v3671 = vmul.f32 %v1837, %v3206
  %v3672 = vmul.f32 %v1840, %v3206
  %v3673 = vmul.f32 %v1845, %v3206
  %v3674 = vmul.f32 %v1848, %v3206
  %v3675 = vmul.f32 %v1853, %v3206
  %v3676 = vmul.f32 %v1856, %v3206
  %v3677 = vmul.f32 %v1861, %v3206
  %v3678 = vmul.f32 %v1864, %v3206
  %v3679 = vmul.f32 %v1869, %v3206
  %v3680 = vmul.f32 %v1872, %v3206
  %v3681 = vmul.f32 %v1877, %v3206
  %v3682 = vmul.f32 %v1880, %v3206
  %v3683 = vmul.f32 %v1885, %v3206
  %v3684 = vmul.f32 %v1888, %v3206
  %v3685 = vmul.f32 %v1893, %v3206
  %v3686 = vmul.f32 %v1896, %v3206
  %v3687 = vmul.f32 %v1901, %v3206
  %v3688 = vmul.f32 %v1904, %v3206
  %v3689 = vmul.f32 %v1909, %v3206
  %v3690 = vmul.f32 %v1912, %v3206
  %v3691 = vmul.f32 %v1917, %v3206
  %v3692 = vmul.f32 %v1920, %v3206
  %v3693 = vmul.f32 %v1925, %v3206
  %v3694 = vmul.f32 %v1928, %v3206
  %v3695 = vmul.f32 %v1933, %v3206
  %v3696 = vmul.f32 %v1936, %v3206
  %v3697 = vmul.f32 %v1941, %v3206
  %v3698 = vmul.f32 %v1944, %v3206
  %v3699 = vmul.f32 %v1949, %v3206
  %v3700 = vmul.f32 %v1952, %v3206
  %v3701 = vmul.f32 %v1957, %v3206
  %v3702 = vmul.f32 %v1960, %v3206
  %v3703 = vmul.f32 %v1965, %v3206
  %v3704 = vadd.f32 %v3655, %v3261
  %v3705 = vadd.f32 %v3656, %v3261
  %v3706 = vadd.f32 %v3657, %v3261
  %v3707 = vadd.f32 %v3658, %v3261
  %v3708 = vadd.f32 %v3659, %v3261
  %v3709 = vadd.f32 %v3660, %v3261
  %v3710 = vadd.f32 %v3661, %v3261
  %v3711 = vadd.f32 %v3662, %v3261
  %v3712 = vadd.f32 %v3663, %v3261
  %v3713 = vadd.f32 %v3664, %v3261
  %v3714 = vadd.f32 %v3665, %v3261
  %v3715 = vadd.f32 %v3666, %v3261
  %v3716 = vadd.f32 %v3667, %v3261
  %v3717 = vadd.f32 %v3668, %v3261
  %v3718 = vadd.f32 %v3669, %v3261
  %v3719 = vadd.f32 %v3670, %v3261
  %v3720 = vadd.f32 %v3671, %v3261
  %v3721 = vadd.f32 %v3672, %v3261
  %v3722 = vadd.f32 %v3673, %v3261
  %v3723 = vadd.f32 %v3674, %v3261
  %v3724 = vadd.f32 %v3675, %v3261
  %v3725 = vadd.f32 %v3676, %v3261
  %v3726 = vadd.f32 %v3677, %v3261
  %v3727 = vadd.f32 %v3678, %v3261
  %v3728 = vadd.f32 %v3679, %v3261
  %v3729 = vadd.f32 %v3680, %v3261
  %v3730 = vadd.f32 %v3681, %v3261
  %v3731 = vadd.f32 %v3682, %v3261
  %v3732 = vadd.f32 %v3683, %v3261
  %v3733 = vadd.f32 %v3684, %v3261
  %v3734 = vadd.f32 %v3685, %v3261
  %v3735 = vadd.f32 %v3686, %v3261
  %v3736 = vadd.f32 %v3687, %v3261
  %v3737 = vadd.f32 %v3688, %v3261
  %v3738 = vadd.f32 %v3689, %v3261
  %v3739 = vadd.f32 %v3690, %v3261
  %v3740 = vadd.f32 %v3691, %v3261
  %v3741 = vadd.f32 %v3692, %v3261
  %v3742 = vadd.f32 %v3693, %v3261
  %v3743 = vadd.f32 %v3694, %v3261
  %v3744 = vadd.f32 %v3695, %v3261
  %v3745 = vadd.f32 %v3696, %v3261
  %v3746 = vadd.f32 %v3697, %v3261
  %v3747 = vadd.f32 %v3698, %v3261
  %v3748 = vadd.f32 %v3699, %v3261
  %v3749 = vadd.f32 %v3700, %v3261
  %v3750 = vadd.f32 %v3701, %v3261
  %v3751 = vadd.f32 %v3702, %v3261
  %v3752 = vadd.f32 %v3703, %v3261
  %v3753 = vmax.f32 %v3704, 0.0
  %v3754 = vmax.f32 %v3705, 0.0
  %v3755 = vmax.f32 %v3706, 0.0
  %v3756 = vmax.f32 %v3707, 0.0
  %v3757 = vmax.f32 %v3708, 0.0
  %v3758 = vmax.f32 %v3709, 0.0
  %v3759 = vmax.f32 %v3710, 0.0
  %v3760 = vmax.f32 %v3711, 0.0
  %v3761 = vmax.f32 %v3712, 0.0
  %v3762 = vmax.f32 %v3713, 0.0
  %v3763 = vmax.f32 %v3714, 0.0
  %v3764 = vmax.f32 %v3715, 0.0
  %v3765 = vmax.f32 %v3716, 0.0
  %v3766 = vmax.f32 %v3717, 0.0
  %v3767 = vmax.f32 %v3718, 0.0
  %v3768 = vmax.f32 %v3719, 0.0
  %v3769 = vmax.f32 %v3720, 0.0
  %v3770 = vmax.f32 %v3721, 0.0
  %v3771 = vmax.f32 %v3722, 0.0
  %v3772 = vmax.f32 %v3723, 0.0
  %v3773 = vmax.f32 %v3724, 0.0
  %v3774 = vmax.f32 %v3725, 0.0
  %v3775 = vmax.f32 %v3726, 0.0
  %v3776 = vmax.f32 %v3727, 0.0
  %v3777 = vmax.f32 %v3728, 0.0
  %v3778 = vmax.f32 %v3729, 0.0
  %v3779 = vmax.f32 %v3730, 0.0
  %v3780 = vmax.f32 %v3731, 0.0
  %v3781 = vmax.f32 %v3732, 0.0
  %v3782 = vmax.f32 %v3733, 0.0
  %v3783 = vmax.f32 %v3734, 0.0
  %v3784 = vmax.f32 %v3735, 0.0
  %v3785 = vmax.f32 %v3736, 0.0
  %v3786 = vmax.f32 %v3737, 0.0
  %v3787 = vmax.f32 %v3738, 0.0
  %v3788 = vmax.f32 %v3739, 0.0
  %v3789 = vmax.f32 %v3740, 0.0
  %v3790 = vmax.f32 %v3741, 0.0
  %v3791 = vmax.f32 %v3742, 0.0
  %v3792 = vmax.f32 %v3743, 0.0
  %v3793 = vmax.f32 %v3744, 0.0
  %v3794 = vmax.f32 %v3745, 0.0
  %v3795 = vmax.f32 %v3746, 0.0
  %v3796 = vmax.f32 %v3747, 0.0
  %v3797 = vmax.f32 %v3748, 0.0
  %v3798 = vmax.f32 %v3749, 0.0
  %v3799 = vmax.f32 %v3750, 0.0
  %v3800 = vmax.f32 %v3751, 0.0
  %v3801 = vmax.f32 %v3752, 0.0
  %v3802 = vmax.f32 %v3312, %v3459
  %v3803 = vmax.f32 %v3313, %v3460
  %v3804 = vmax.f32 %v3314, %v3461
  %v3805 = vmax.f32 %v3315, %v3462
  %v3806 = vmax.f32 %v3316, %v3463
  %v3807 = vmax.f32 %v3317, %v3464
  %v3808 = vmax.f32 %v3318, %v3465
  %v3809 = vmax.f32 %v3319, %v3466
  %v3810 = vmax.f32 %v3320, %v3467
  %v3811 = vmax.f32 %v3321, %v3468
  %v3812 = vmax.f32 %v3322, %v3469
  %v3813 = vmax.f32 %v3323, %v3470
  %v3814 = vmax.f32 %v3324, %v3471
  %v3815 = vmax.f32 %v3325, %v3472
  %v3816 = vmax.f32 %v3326, %v3473
  %v3817 = vmax.f32 %v3327, %v3474
  %v3818 = vmax.f32 %v3328, %v3475
  %v3819 = vmax.f32 %v3329, %v3476
  %v3820 = vmax.f32 %v3330, %v3477
  %v3821 = vmax.f32 %v3331, %v3478
  %v3822 = vmax.f32 %v3332, %v3479
  %v3823 = vmax.f32 %v3333, %v3480
  %v3824 = vmax.f32 %v3334, %v3481
  %v3825 = vmax.f32 %v3335, %v3482
  %v3826 = vmax.f32 %v3336, %v3483
  %v3827 = vmax.f32 %v3337, %v3484
  %v3828 = vmax.f32 %v3338, %v3485
  %v3829 = vmax.f32 %v3339, %v3486
  %v3830 = vmax.f32 %v3340, %v3487
  %v3831 = vmax.f32 %v3341, %v3488
  %v3832 = vmax.f32 %v3342, %v3489
  %v3833 = vmax.f32 %v3343, %v3490
  %v3834 = vmax.f32 %v3344, %v3491
  %v3835 = vmax.f32 %v3345, %v3492
  %v3836 = vmax.f32 %v3346, %v3493
  %v3837 = vmax.f32 %v3347, %v3494
  %v3838 = vmax.f32 %v3348, %v3495
  %v3839 = vmax.f32 %v3349, %v3496
  %v3840 = vmax.f32 %v3350, %v3497
  %v3841 = vmax.f32 %v3351, %v3498
  %v3842 = vmax.f32 %v3352, %v3499
  %v3843 = vmax.f32 %v3353, %v3500
  %v3844 = vmax.f32 %v3354, %v3501
  %v3845 = vmax.f32 %v3355, %v3502
  %v3846 = vmax.f32 %v3356, %v3503
  %v3847 = vmax.f32 %v3357, %v3504
  %v3848 = vmax.f32 %v3358, %v3505
  %v3849 = vmax.f32 %v3359, %v3506
  %v3850 = vmax.f32 %v3360, %v3507
  %v3851 = vmax.f32 %v3606, %v3753
  %v3852 = vmax.f32 %v3607, %v3754
  %v3853 = vmax.f32 %v3608, %v3755
  %v3854 = vmax.f32 %v3609, %v3756
  %v3855 = vmax.f32 %v3610, %v3757
  %v3856 = vmax.f32 %v3611, %v3758
  %v3857 = vmax.f32 %v3612, %v3759
  %v3858 = vmax.f32 %v3613, %v3760
  %v3859 = vmax.f32 %v3614, %v3761
  %v3860 = vmax.f32 %v3615, %v3762
  %v3861 = vmax.f32 %v3616, %v3763
  %v3862 = vmax.f32 %v3617, %v3764
  %v3863 = vmax.f32 %v3618, %v3765
  %v3864 = vmax.f32 %v3619, %v3766
  %v3865 = vmax.f32 %v3620, %v3767
  %v3866 = vmax.f32 %v3621, %v3768
  %v3867 = vmax.f32 %v3622, %v3769
  %v3868 = vmax.f32 %v3623, %v3770
  %v3869 = vmax.f32 %v3624, %v3771
  %v3870 = vmax.f32 %v3625, %v3772
  %v3871 = vmax.f32 %v3626, %v3773
  %v3872 = vmax.f32 %v3627, %v3774
  %v3873 = vmax.f32 %v3628, %v3775
  %v3874 = vmax.f32 %v3629, %v3776
  %v3875 = vmax.f32 %v3630, %v3777
  %v3876 = vmax.f32 %v3631, %v3778
  %v3877 = vmax.f32 %v3632, %v3779
  %v3878 = vmax.f32 %v3633, %v3780
  %v3879 = vmax.f32 %v3634, %v3781
  %v3880 = vmax.f32 %v3635, %v3782
  %v3881 = vmax.f32 %v3636, %v3783
  %v3882 = vmax.f32 %v3637, %v3784
  %v3883 = vmax.f32 %v3638, %v3785
  %v3884 = vmax.f32 %v3639, %v3786
  %v3885 = vmax.f32 %v3640, %v3787
  %v3886 = vmax.f32 %v3641, %v3788
  %v3887 = vmax.f32 %v3642, %v3789
  %v3888 = vmax.f32 %v3643, %v3790
  %v3889 = vmax.f32 %v3644, %v3791
  %v3890 = vmax.f32 %v3645, %v3792
  %v3891 = vmax.f32 %v3646, %v3793
  %v3892 = vmax.f32 %v3647, %v3794
  %v3893 = vmax.f32 %v3648, %v3795
  %v3894 = vmax.f32 %v3649, %v3796
  %v3895 = vmax.f32 %v3650, %v3797
  %v3896 = vmax.f32 %v3651, %v3798
  %v3897 = vmax.f32 %v3652, %v3799
  %v3898 = vmax.f32 %v3653, %v3800
  %v3899 = vmax.f32 %v3654, %v3801
  %v3900 = vmax.f32 %v3802, %v3851
  %v3901 = vmax.f32 %v3803, %v3852
  %v3902 = vmax.f32 %v3804, %v3853
  %v3903 = vmax.f32 %v3805, %v3854
  %v3904 = vmax.f32 %v3806, %v3855
  %v3905 = vmax.f32 %v3807, %v3856
  %v3906 = vmax.f32 %v3808, %v3857
  %v3907 = vmax.f32 %v3809, %v3858
  %v3908 = vmax.f32 %v3810, %v3859
  %v3909 = vmax.f32 %v3811, %v3860
  %v3910 = vmax.f32 %v3812, %v3861
  %v3911 = vmax.f32 %v3813, %v3862
  %v3912 = vmax.f32 %v3814, %v3863
  %v3913 = vmax.f32 %v3815, %v3864
  %v3914 = vmax.f32 %v3816, %v3865
  %v3915 = vmax.f32 %v3817, %v3866
  %v3916 = vmax.f32 %v3818, %v3867
  %v3917 = vmax.f32 %v3819, %v3868
  %v3918 = vmax.f32 %v3820, %v3869
  %v3919 = vmax.f32 %v3821, %v3870
  %v3920 = vmax.f32 %v3822, %v3871
  %v3921 = vmax.f32 %v3823, %v3872
  %v3922 = vmax.f32 %v3824, %v3873
  %v3923 = vmax.f32 %v3825, %v3874
  %v3924 = vmax.f32 %v3826, %v3875
  %v3925 = vmax.f32 %v3827, %v3876
  %v3926 = vmax.f32 %v3828, %v3877
  %v3927 = vmax.f32 %v3829, %v3878
  %v3928 = vmax.f32 %v3830, %v3879
  %v3929 = vmax.f32 %v3831, %v3880
  %v3930 = vmax.f32 %v3832, %v3881
  %v3931 = vmax.f32 %v3833, %v3882
  %v3932 = vmax.f32 %v3834, %v3883
  %v3933 = vmax.f32 %v3835, %v3884
  %v3934 = vmax.f32 %v3836, %v3885
  %v3935 = vmax.f32 %v3837, %v3886
  %v3936 = vmax.f32 %v3838, %v3887
  %v3937 = vmax.f32 %v3839, %v3888
  %v3938 = vmax.f32 %v3840, %v3889
  %v3939 = vmax.f32 %v3841, %v3890
  %v3940 = vmax.f32 %v3842, %v3891
  %v3941 = vmax.f32 %v3843, %v3892
  %v3942 = vmax.f32 %v3844, %v3893
  %v3943 = vmax.f32 %v3845, %v3894
  %v3944 = vmax.f32 %v3846, %v3895
  %v3945 = vmax.f32 %v3847, %v3896
  %v3946 = vmax.f32 %v3848, %v3897
  %v3947 = vmax.f32 %v3849, %v3898
  %v3948 = vmax.f32 %v3850, %v3899
  %3949 = vst.msk [vmem:[%s5] sm:$0xff] %vm1970, %v3900
  %3950 = vst.msk [vmem:[%s5 + $0x8] sm:$0xff] %vm1970, %v3901
  %3951 = vst.msk [vmem:[%s5 + $0x10] sm:$0xff] %vm1970, %v3902
  %3952 = vst.msk [vmem:[%s5 + $0x18] sm:$0xff] %vm1970, %v3903
  %3953 = vst.msk [vmem:[%s5 + $0x20] sm:$0xff] %vm1970, %v3904
  %3954 = vst.msk [vmem:[%s5 + $0x28] sm:$0xff] %vm1970, %v3905
  %3955 = vst.msk [vmem:[%s5 + $0x30] sm:$0xff] %vm1970, %v3906
  %3956 = vst.msk [vmem:[%s5 + $0x38] sm:$0xff] %vm1970, %v3907
  %3957 = vst.msk [vmem:[%s5 + $0x40] sm:$0xff] %vm1970, %v3908
  %3958 = vst.msk [vmem:[%s5 + $0x48] sm:$0xff] %vm1970, %v3909
  %3959 = vst.msk [vmem:[%s5 + $0x50] sm:$0xff] %vm1970, %v3910
  %3960 = vst.msk [vmem:[%s5 + $0x58] sm:$0xff] %vm1970, %v3911
  %3961 = vst.msk [vmem:[%s5 + $0x60] sm:$0xff] %vm1970, %v3912
  %3962 = vst.msk [vmem:[%s5 + $0x68] sm:$0xff] %vm1970, %v3913
  %3963 = vst.msk [vmem:[%s5 + $0x70] sm:$0xff] %vm1970, %v3914
  %3964 = vst.msk [vmem:[%s5 + $0x78] sm:$0xff] %vm1970, %v3915
  %3965 = vst.msk [vmem:[%s5 + $0x80] sm:$0xff] %vm1970, %v3916
  %3966 = vst.msk [vmem:[%s5 + $0x88] sm:$0xff] %vm1970, %v3917
  %3967 = vst.msk [vmem:[%s5 + $0x90] sm:$0xff] %vm1970, %v3918
  %3968 = vst.msk [vmem:[%s5 + $0x98] sm:$0xff] %vm1970, %v3919
  %3969 = vst.msk [vmem:[%s5 + $0xa0] sm:$0xff] %vm1970, %v3920
  %3970 = vst.msk [vmem:[%s5 + $0xa8] sm:$0xff] %vm1970, %v3921
  %3971 = vst.msk [vmem:[%s5 + $0xb0] sm:$0xff] %vm1970, %v3922
  %3972 = vst.msk [vmem:[%s5 + $0xb8] sm:$0xff] %vm1970, %v3923
  %3973 = vst.msk [vmem:[%s5 + $0xc0] sm:$0xff] %vm1970, %v3924
  %3974 = vst.msk [vmem:[%s5 + $0xc8] sm:$0xff] %vm1970, %v3925
  %3975 = vst.msk [vmem:[%s5 + $0xd0] sm:$0xff] %vm1970, %v3926
  %3976 = vst.msk [vmem:[%s5 + $0xd8] sm:$0xff] %vm1970, %v3927
  %3977 = vst.msk [vmem:[%s5 + $0xe0] sm:$0xff] %vm1970, %v3928
  %3978 = vst.msk [vmem:[%s5 + $0xe8] sm:$0xff] %vm1970, %v3929
  %3979 = vst.msk [vmem:[%s5 + $0xf0] sm:$0xff] %vm1970, %v3930
  %3980 = vst.msk [vmem:[%s5 + $0xf8] sm:$0xff] %vm1970, %v3931
  %3981 = vst.msk [vmem:[%s5 + $0x100] sm:$0xff] %vm1970, %v3932
  %3982 = vst.msk [vmem:[%s5 + $0x108] sm:$0xff] %vm1970, %v3933
  %3983 = vst.msk [vmem:[%s5 + $0x110] sm:$0xff] %vm1970, %v3934
  %3984 = vst.msk [vmem:[%s5 + $0x118] sm:$0xff] %vm1970, %v3935
  %3985 = vst.msk [vmem:[%s5 + $0x120] sm:$0xff] %vm1970, %v3936
  %3986 = vst.msk [vmem:[%s5 + $0x128] sm:$0xff] %vm1970, %v3937
  %3987 = vst.msk [vmem:[%s5 + $0x130] sm:$0xff] %vm1970, %v3938
  %3988 = vst.msk [vmem:[%s5 + $0x138] sm:$0xff] %vm1970, %v3939
  %3989 = vst.msk [vmem:[%s5 + $0x140] sm:$0xff] %vm1970, %v3940
  %3990 = vst.msk [vmem:[%s5 + $0x148] sm:$0xff] %vm1970, %v3941
  %3991 = vst.msk [vmem:[%s5 + $0x150] sm:$0xff] %vm1970, %v3942
  %3992 = vst.msk [vmem:[%s5 + $0x158] sm:$0xff] %vm1970, %v3943
  %3993 = vst.msk [vmem:[%s5 + $0x160] sm:$0xff] %vm1970, %v3944
  %3994 = vst.msk [vmem:[%s5 + $0x168] sm:$0xff] %vm1970, %v3945
  %3995 = vst.msk [vmem:[%s5 + $0x170] sm:$0xff] %vm1970, %v3946
  %3996 = vst.msk [vmem:[%s5 + $0x178] sm:$0xff] %vm1970, %v3947
  %3997 = vst.msk [vmem:[%s5 + $0x180] sm:$0xff] %vm1970, %v3948
  // Predicated region
  $region22: #{net_forward.3} parent=0 // pred_check
    _
  $region23: #{net_forward.3} parent=0 // pred_check_branch
    %3999 = sbr.rel (0) target = $region25
  $region24: #{net_forward.3} parent=0 // pred_region
    _
  $region25: #{net_forward.3} parent=0 // pred_fallthru
    _
  // Predicated region
  $region26: #{net_forward.3} parent=0 // pred_check
    _
  $region27: #{net_forward.3} parent=0 // pred_check_branch
    %4001 = sbr.rel (0) target = $region29
  $region28: #{net_forward.3} parent=0 // pred_region
    _
  $region29: #{net_forward.3} parent=0 // pred_fallthru
    _

// kernel: net_forward.4
$region0: #{net_forward.4}
  #allocation0 [shape = 'u32[]', space=smem, size = 0x4, offset = 0x4, fixed_abs, tag = 'smem constant byte address 0x4 - core index']
  #allocation1 [shape = 'u32[144,128]{1,0:T(1,128)}', space=vmem, size = 0x12000, scoped, tag = 'internal scratch']
  %s0 = inlined_call_operand.vmem [shape: bf16[2,2,98,400], index: 0, kind: input, shape index: {}]
  %s1 = inlined_call_operand.vmem [shape: bf16[400,32], index: 1, kind: input, shape index: {}]
  %s2 = inlined_call_operand.vmem [shape: f32[1,32], index: 2, kind: input, shape index: {}]
  %s3 = inlined_call_operand.vmem [shape: f32[1,32], index: 3, kind: input, shape index: {}]
  %s4 = inlined_call_operand.vmem [shape: f32[1,32], index: 4, kind: input, shape index: {}]
  %s5 = inlined_call_operand.vmem [shape: f32[98,32], index: 5, kind: output, shape index: {}]
  %s6 = sld [smem:[#allocation0]]
  $region30: #{net_forward.4} parent=0
    _
  %s8 = ssub.s32 1, %s6
  %s9 = scalar_select 0, %s8, %s6
  // Predicated region
  $region2: #{net_forward.4} parent=0 // pred_check
    _
  $region3: #{net_forward.4} parent=0 // pred_check_branch
    %11 = sbr.rel (0) target = $region5
  $region4: #{net_forward.4} parent=0 // pred_region
    _
  $region5: #{net_forward.4} parent=0 // pred_fallthru
    _
  // Predicated region
  $region6: #{net_forward.4} parent=0 // pred_check
    _
  $region7: #{net_forward.4} parent=0 // pred_check_branch
    %13 = sbr.rel (0) target = $region9
  $region8: #{net_forward.4} parent=0 // pred_region
    _
  $region9: #{net_forward.4} parent=0 // pred_fallthru
    _
  // Predicated region
  $region10: #{net_forward.4} parent=0 // pred_check
    _
  $region11: #{net_forward.4} parent=0 // pred_check_branch
    %15 = sbr.rel (0) target = $region13
  $region12: #{net_forward.4} parent=0 // pred_region
    _
  $region13: #{net_forward.4} parent=0 // pred_fallthru
    _
  // Predicated region
  $region14: #{net_forward.4} parent=0 // pred_check
    _
  $region15: #{net_forward.4} parent=0 // pred_check_branch
    %17 = sbr.rel (0) target = $region17
  $region16: #{net_forward.4} parent=0 // pred_region
    _
  $region17: #{net_forward.4} parent=0 // pred_fallthru
    _
  // Predicated region
  $region18: #{net_forward.4} parent=0 // pred_check
    _
  $region19: #{net_forward.4} parent=0 // pred_check_branch
    %19 = sbr.rel (0) target = $region21
  $region20: #{net_forward.4} parent=0 // pred_region
    _
  $region21: #{net_forward.4} parent=0 // pred_fallthru
    _
  %v21 = vld [vmem:[%s1] sm:$0xf]
  %v22 = vld [vmem:[%s1 + $0x4] sm:$0xf]
  %v23 = vld [vmem:[%s1 + $0x8] sm:$0xf]
  %v24 = vld [vmem:[%s1 + $0xc] sm:$0xf]
  %v25 = vld [vmem:[%s1 + $0x10] sm:$0xf]
  %v26 = vld [vmem:[%s1 + $0x14] sm:$0xf]
  %v27 = vld [vmem:[%s1 + $0x18] sm:$0xf]
  %v28 = vld [vmem:[%s1 + $0x1c] sm:$0xf]
  %v29 = vld [vmem:[%s1 + $0x20] sm:$0xf]
  %v30 = vld [vmem:[%s1 + $0x24] sm:$0xf]
  %v31 = vld [vmem:[%s1 + $0x28] sm:$0xf]
  %v32 = vld [vmem:[%s1 + $0x2c] sm:$0xf]
  %v33 = vld [vmem:[%s1 + $0x30] sm:$0xf]
  %v34 = vld [vmem:[%s1 + $0x34] sm:$0xf]
  %v35 = vld [vmem:[%s1 + $0x38] sm:$0xf]
  %v36 = vld [vmem:[%s1 + $0x3c] sm:$0xf]
  %v37 = vld [vmem:[%s1 + $0x40] sm:$0xf]
  %v38 = vld [vmem:[%s1 + $0x44] sm:$0xf]
  %v39 = vld [vmem:[%s1 + $0x48] sm:$0xf]
  %v40 = vld [vmem:[%s1 + $0x4c] sm:$0xf]
  %v41 = vld [vmem:[%s1 + $0x50] sm:$0xf]
  %v42 = vld [vmem:[%s1 + $0x54] sm:$0xf]
  %v43 = vld [vmem:[%s1 + $0x58] sm:$0xf]
  %v44 = vld [vmem:[%s1 + $0x5c] sm:$0xf]
  %v45 = vld [vmem:[%s1 + $0x60] sm:$0xf]
  %v46 = vld [vmem:[%s1 + $0x64] sm:$0xf]
  %v47 = vld [vmem:[%s1 + $0x68] sm:$0xf]
  %v48 = vld [vmem:[%s1 + $0x6c] sm:$0xf]
  %v49 = vld [vmem:[%s1 + $0x70] sm:$0xf]
  %v50 = vld [vmem:[%s1 + $0x74] sm:$0xf]
  %v51 = vld [vmem:[%s1 + $0x78] sm:$0xf]
  %v52 = vld [vmem:[%s1 + $0x7c] sm:$0xf]
  %v53 = vld [vmem:[%s1 + $0x80] sm:$0xf]
  %v54 = vld [vmem:[%s1 + $0x84] sm:$0xf]
  %v55 = vld [vmem:[%s1 + $0x88] sm:$0xf]
  %v56 = vld [vmem:[%s1 + $0x8c] sm:$0xf]
  %v57 = vld [vmem:[%s1 + $0x90] sm:$0xf]
  %v58 = vld [vmem:[%s1 + $0x94] sm:$0xf]
  %v59 = vld [vmem:[%s1 + $0x98] sm:$0xf]
  %v60 = vld [vmem:[%s1 + $0x9c] sm:$0xf]
  %v61 = vld [vmem:[%s1 + $0xa0] sm:$0xf]
  %v62 = vld [vmem:[%s1 + $0xa4] sm:$0xf]
  %v63 = vld [vmem:[%s1 + $0xa8] sm:$0xf]
  %v64 = vld [vmem:[%s1 + $0xac] sm:$0xf]
  %v65 = vld [vmem:[%s1 + $0xb0] sm:$0xf]
  %v66 = vld [vmem:[%s1 + $0xb4] sm:$0xf]
  %v67 = vld [vmem:[%s1 + $0xb8] sm:$0xf]
  %v68 = vld [vmem:[%s1 + $0xbc] sm:$0xf]
  %v69 = vld [vmem:[%s1 + $0xc0] sm:$0xf]
  %v70 = vld [vmem:[%s1 + $0xc4] sm:$0xf]
  %v71 = vld [vmem:[%s2] sm:$0x1]
  %v72 = vld [vmem:[%s0] sm:$0xff]
  %v73 = vld [vmem:[%s0 + $0x8] sm:$0xff]
  %v74 = vld [vmem:[%s0 + $0x10] sm:$0xff]
  %v75 = vld [vmem:[%s0 + $0x18] sm:$0xff]
  %v76 = vld [vmem:[%s0 + $0x20] sm:$0xff]
  %v77 = vld [vmem:[%s0 + $0x28] sm:$0xff]
  %v78 = vld [vmem:[%s0 + $0x30] sm:$0xff]
  %v79 = vld [vmem:[%s0 + $0x38] sm:$0xff]
  %v80 = vld [vmem:[%s0 + $0x40] sm:$0xff]
  %v81 = vld [vmem:[%s0 + $0x48] sm:$0xff]
  %v82 = vld [vmem:[%s0 + $0x50] sm:$0xff]
  %v83 = vld [vmem:[%s0 + $0x58] sm:$0xff]
  %v84 = vld [vmem:[%s0 + $0x60] sm:$0xff]
  %v85 = vld [vmem:[%s0 + $0x68] sm:$0xff]
  %v86 = vld [vmem:[%s0 + $0x70] sm:$0xff]
  %v87 = vld [vmem:[%s0 + $0x78] sm:$0xff]
  %v88 = vld [vmem:[%s0 + $0x80] sm:$0xff]
  %v89 = vld [vmem:[%s0 + $0x88] sm:$0xff]
  %v90 = vld [vmem:[%s0 + $0x90] sm:$0xff]
  %v91 = vld [vmem:[%s0 + $0x98] sm:$0xff]
  %v92 = vld [vmem:[%s0 + $0xa0] sm:$0xff]
  %v93 = vld [vmem:[%s0 + $0xa8] sm:$0xff]
  %v94 = vld [vmem:[%s0 + $0xb0] sm:$0xff]
  %v95 = vld [vmem:[%s0 + $0xb8] sm:$0xff]
  %v96 = vld [vmem:[%s0 + $0xc0] sm:$0x11]
  %v97 = vld [vmem:[%s0 + $0xc8] sm:$0x11]
  %v99 = vlaneseq
  %v100 = vshrl.u32 %v99, 7
  %v101 = vsub.s32 0, %v100
  %v102 = vrot.slane %v71, %v101
  %v130 = vunpack.c.l.b16 %v72
  %v131 = vunpack.c.h.b16 %v72
  %v132 = vunpack.c.l.b16 %v73
  %v133 = vunpack.c.h.b16 %v73
  %v134 = vunpack.c.l.b16 %v74
  %v135 = vunpack.c.h.b16 %v74
  %v136 = vunpack.c.l.b16 %v75
  %v137 = vunpack.c.h.b16 %v75
  %v138 = vunpack.c.l.b16 %v76
  %v139 = vunpack.c.h.b16 %v76
  %v140 = vunpack.c.l.b16 %v77
  %v141 = vunpack.c.h.b16 %v77
  %v142 = vunpack.c.l.b16 %v78
  %v143 = vunpack.c.h.b16 %v78
  %v144 = vunpack.c.l.b16 %v79
  %v145 = vunpack.c.h.b16 %v79
  %v146 = vunpack.c.l.b16 %v80
  %v147 = vunpack.c.h.b16 %v80
  %v148 = vunpack.c.l.b16 %v81
  %v149 = vunpack.c.h.b16 %v81
  %v150 = vunpack.c.l.b16 %v82
  %v151 = vunpack.c.h.b16 %v82
  %v152 = vunpack.c.l.b16 %v83
  %v153 = vunpack.c.h.b16 %v83
  %v154 = vunpack.c.l.b16 %v84
  %v155 = vunpack.c.h.b16 %v84
  %v156 = vunpack.c.l.b16 %v85
  %v157 = vunpack.c.h.b16 %v85
  %v158 = vunpack.c.l.b16 %v86
  %v159 = vunpack.c.h.b16 %v86
  %v160 = vunpack.c.l.b16 %v87
  %v161 = vunpack.c.h.b16 %v87
  %v162 = vunpack.c.l.b16 %v88
  %v163 = vunpack.c.h.b16 %v88
  %v164 = vunpack.c.l.b16 %v89
  %v165 = vunpack.c.h.b16 %v89
  %v166 = vunpack.c.l.b16 %v90
  %v167 = vunpack.c.h.b16 %v90
  %v168 = vunpack.c.l.b16 %v91
  %v169 = vunpack.c.h.b16 %v91
  %v170 = vunpack.c.l.b16 %v92
  %v171 = vunpack.c.h.b16 %v92
  %v172 = vunpack.c.l.b16 %v93
  %v173 = vunpack.c.h.b16 %v93
  %v174 = vunpack.c.l.b16 %v94
  %v175 = vunpack.c.h.b16 %v94
  %v176 = vunpack.c.l.b16 %v95
  %v177 = vunpack.c.h.b16 %v95
  %v178 = vunpack.c.l.b16 %v96
  %v179 = vunpack.c.h.b16 %v96
  %v180 = vunpack.c.l.b16 %v97
  %v181 = vunpack.c.h.b16 %v97
  %v182 = vpack.c.b16 %v134, %v130
  %v183 = vpack.c.b16 %v135, %v131
  %v184 = vpack.c.b16 %v136, %v132
  %v185 = vpack.c.b16 %v137, %v133
  %v186 = vpack.c.b16 %v142, %v138
  %v187 = vpack.c.b16 %v143, %v139
  %v188 = vpack.c.b16 %v144, %v140
  %v189 = vpack.c.b16 %v145, %v141
  %v190 = vpack.c.b16 %v150, %v146
  %v191 = vpack.c.b16 %v151, %v147
  %v192 = vpack.c.b16 %v152, %v148
  %v193 = vpack.c.b16 %v153, %v149
  %v194 = vpack.c.b16 %v158, %v154
  %v195 = vpack.c.b16 %v159, %v155
  %v196 = vpack.c.b16 %v160, %v156
  %v197 = vpack.c.b16 %v161, %v157
  %v198 = vpack.c.b16 %v166, %v162
  %v199 = vpack.c.b16 %v167, %v163
  %v200 = vpack.c.b16 %v168, %v164
  %v201 = vpack.c.b16 %v169, %v165
  %v202 = vpack.c.b16 %v174, %v170
  %v203 = vpack.c.b16 %v175, %v171
  %v204 = vpack.c.b16 %v176, %v172
  %v205 = vpack.c.b16 %v177, %v173
  %v206 = vpack.c.b16 %v178, %v178
  %v207 = vpack.c.b16 %v179, %v179
  %v208 = vpack.c.b16 %v180, %v180
  %v209 = vpack.c.b16 %v181, %v181
  %v281 = vunpack.c.l.b16 %v21
  %v282 = vunpack.c.l.b16 %v22
  %v283 = vunpack.c.l.b16 %v23
  %v284 = vunpack.c.l.b16 %v24
  %v285 = vunpack.c.l.b16 %v25
  %v286 = vunpack.c.l.b16 %v26
  %v287 = vunpack.c.l.b16 %v27
  %v288 = vunpack.c.l.b16 %v28
  %v289 = vunpack.c.l.b16 %v29
  %v290 = vunpack.c.l.b16 %v30
  %v291 = vunpack.c.l.b16 %v31
  %v292 = vunpack.c.l.b16 %v32
  %v293 = vunpack.c.l.b16 %v33
  %v294 = vunpack.c.l.b16 %v34
  %v295 = vunpack.c.l.b16 %v35
  %v296 = vunpack.c.l.b16 %v36
  %v297 = vunpack.c.l.b16 %v37
  %v298 = vunpack.c.l.b16 %v38
  %v299 = vunpack.c.l.b16 %v39
  %v300 = vunpack.c.l.b16 %v40
  %v301 = vunpack.c.l.b16 %v41
  %v302 = vunpack.c.l.b16 %v42
  %v303 = vunpack.c.l.b16 %v43
  %v304 = vunpack.c.l.b16 %v44
  %v305 = vunpack.c.l.b16 %v45
  %v306 = vunpack.c.l.b16 %v46
  %v307 = vunpack.c.l.b16 %v47
  %v308 = vunpack.c.l.b16 %v48
  %v309 = vunpack.c.l.b16 %v49
  %v310 = vunpack.c.l.b16 %v50
  %v311 = vunpack.c.l.b16 %v51
  %v312 = vunpack.c.l.b16 %v52
  %v313 = vunpack.c.l.b16 %v53
  %v314 = vunpack.c.l.b16 %v54
  %v315 = vunpack.c.l.b16 %v55
  %v316 = vunpack.c.l.b16 %v56
  %v317 = vunpack.c.l.b16 %v57
  %v318 = vunpack.c.l.b16 %v58
  %v319 = vunpack.c.l.b16 %v59
  %v320 = vunpack.c.l.b16 %v60
  %v321 = vunpack.c.l.b16 %v61
  %v322 = vunpack.c.l.b16 %v62
  %v323 = vunpack.c.l.b16 %v63
  %v324 = vunpack.c.l.b16 %v64
  %v325 = vunpack.c.l.b16 %v65
  %v326 = vunpack.c.l.b16 %v66
  %v327 = vunpack.c.l.b16 %v67
  %v328 = vunpack.c.l.b16 %v68
  %v329 = vunpack.c.l.b16 %v69
  %v330 = vunpack.c.l.b16 %v70
  %v331 = vpack.c.b16 %v282, %v281
  %v332 = vpack.c.b16 %v284, %v283
  %v333 = vpack.c.b16 %v286, %v285
  %v334 = vpack.c.b16 %v288, %v287
  %v335 = vpack.c.b16 %v290, %v289
  %v336 = vpack.c.b16 %v292, %v291
  %v337 = vpack.c.b16 %v294, %v293
  %v338 = vpack.c.b16 %v296, %v295
  %v339 = vpack.c.b16 %v298, %v297
  %v340 = vpack.c.b16 %v300, %v299
  %v341 = vpack.c.b16 %v302, %v301
  %v342 = vpack.c.b16 %v304, %v303
  %v343 = vpack.c.b16 %v306, %v305
  %v344 = vpack.c.b16 %v308, %v307
  %v345 = vpack.c.b16 %v310, %v309
  %v346 = vpack.c.b16 %v312, %v311
  %v347 = vpack.c.b16 %v314, %v313
  %v348 = vpack.c.b16 %v316, %v315
  %v349 = vpack.c.b16 %v318, %v317
  %v350 = vpack.c.b16 %v320, %v319
  %v351 = vpack.c.b16 %v322, %v321
  %v352 = vpack.c.b16 %v324, %v323
  %v353 = vpack.c.b16 %v326, %v325
  %v354 = vpack.c.b16 %v328, %v327
  %v355 = vpack.c.b16 %v330, %v329
  %vm381 = vcmask 130048
  %v383 = vsel %vm381, %v185, 0
  %v386 = vsel %vm381, %v189, 0
  %v389 = vsel %vm381, %v193, 0
  %v392 = vsel %vm381, %v197, 0
  %v395 = vsel %vm381, %v201, 0
  %v398 = vsel %vm381, %v205, 0
  %v401 = vsel %vm381, %v209, 0
  %403 = vmatprep.subr.bf16.mxu0 0
  %404 = vmatpush1.bf16.msra.mxu0 %v338
  %405 = vmatprep.subr.bf16.mxu0 0
  %406 = vmatpush1.bf16.msra.mxu0 %v337
  %407 = vmatprep.subr.bf16.mxu0 0
  %408 = vmatpush1.bf16.msra.mxu0 %v336
  %409 = vmatprep.subr.bf16.mxu0 0
  %410 = vmatpush1.bf16.msra.mxu0 %v335
  %411 = vmatprep.subr.bf16.mxu0 0
  %412 = vmatpush1.bf16.msra.mxu0 %v334
  %413 = vmatprep.subr.bf16.mxu0 0
  %414 = vmatpush1.bf16.msra.mxu0 %v333
  %415 = vmatprep.subr.bf16.mxu0 0
  %416 = vmatpush1.bf16.msra.mxu0 %v332
  %417 = vmatprep.subr.bf16.mxu0 0
  %418 = vmatpush1.bf16.msra.mxu0 %v331
  %419 = vmatprep.subr.bf16.mxu0 0
  %420 = vmatpush2.bf16.msra.mxu0 %v346
  %421 = vmatprep.subr.bf16.mxu0 0
  %422 = vmatpush2.bf16.msra.mxu0 %v345
  %423 = vmatprep.subr.bf16.mxu0 0
  %424 = vmatpush2.bf16.msra.mxu0 %v344
  %425 = vmatprep.subr.bf16.mxu0 0
  %426 = vmatpush2.bf16.msra.mxu0 %v343
  %427 = vmatprep.subr.bf16.mxu0 0
  %428 = vmatpush2.bf16.msra.mxu0 %v342
  %429 = vmatprep.subr.bf16.mxu0 0
  %430 = vmatpush2.bf16.msra.mxu0 %v341
  %431 = vmatprep.subr.bf16.mxu0 0
  %432 = vmatpush2.bf16.msra.mxu0 %v340
  %433 = vmatprep.subr.bf16.mxu0 0
  %434 = vmatpush2.bf16.msra.mxu0 %v339
  %435 = vmatprep.mubr.bf16.mxu0 %v183
  %436 = vmatmul.mubr.bf16.gmra.mxu0 %v182
  %v437 = vpop.f32.mrf.mxu0
  %v438 = vadd.f32 %v102, %v437
  %v439 = vpop.f32.mrf.mxu0
  %v440 = vpop.f32.mrf.mxu0
  %v441 = vadd.f32 %v102, %v440
  %v442 = vpop.f32.mrf.mxu0
  %443 = vmatprep.mubr.bf16.mxu0 %v187
  %444 = vmatmul.mubr.bf16.gmra.mxu0 %v186
  %v445 = vpop.f32.mrf.mxu0
  %v446 = vadd.f32 %v102, %v445
  %v447 = vpop.f32.mrf.mxu0
  %v448 = vpop.f32.mrf.mxu0
  %v449 = vadd.f32 %v102, %v448
  %v450 = vpop.f32.mrf.mxu0
  %451 = vmatprep.mubr.bf16.mxu0 %v191
  %452 = vmatmul.mubr.bf16.gmra.mxu0 %v190
  %v453 = vpop.f32.mrf.mxu0
  %v454 = vadd.f32 %v102, %v453
  %v455 = vpop.f32.mrf.mxu0
  %v456 = vpop.f32.mrf.mxu0
  %v457 = vadd.f32 %v102, %v456
  %v458 = vpop.f32.mrf.mxu0
  %459 = vmatprep.mubr.bf16.mxu0 %v195
  %460 = vmatmul.mubr.bf16.gmra.mxu0 %v194
  %v461 = vpop.f32.mrf.mxu0
  %v462 = vadd.f32 %v102, %v461
  %v463 = vpop.f32.mrf.mxu0
  %v464 = vpop.f32.mrf.mxu0
  %v465 = vadd.f32 %v102, %v464
  %v466 = vpop.f32.mrf.mxu0
  %467 = vmatprep.mubr.bf16.mxu0 %v199
  %468 = vmatmul.mubr.bf16.gmra.mxu0 %v198
  %v469 = vpop.f32.mrf.mxu0
  %v470 = vadd.f32 %v102, %v469
  %v471 = vpop.f32.mrf.mxu0
  %v472 = vpop.f32.mrf.mxu0
  %v473 = vadd.f32 %v102, %v472
  %v474 = vpop.f32.mrf.mxu0
  %475 = vmatprep.mubr.bf16.mxu0 %v203
  %476 = vmatmul.mubr.bf16.gmra.mxu0 %v202
  %v477 = vpop.f32.mrf.mxu0
  %v478 = vadd.f32 %v102, %v477
  %v479 = vpop.f32.mrf.mxu0
  %v480 = vpop.f32.mrf.mxu0
  %v481 = vadd.f32 %v102, %v480
  %v482 = vpop.f32.mrf.mxu0
  %483 = vmatprep.mubr.bf16.mxu0 %v207
  %484 = vmatmul.mubr.bf16.gmra.mxu0 %v206
  %v485 = vpop.f32.mrf.mxu0
  %v486 = vadd.f32 %v102, %v485
  %v487 = vpop.f32.mrf.mxu0
  %v488 = vpop.f32.mrf.mxu0
  %v489 = vpop.f32.mrf.mxu0
  %490 = vdwg.mxu0
  %491 = vmatprep.subr.bf16.mxu0 0
  %492 = vmatpush1.bf16.msra.mxu0 %v354
  %493 = vmatprep.subr.bf16.mxu0 0
  %494 = vmatpush1.bf16.msra.mxu0 %v353
  %495 = vmatprep.subr.bf16.mxu0 0
  %496 = vmatpush1.bf16.msra.mxu0 %v352
  %497 = vmatprep.subr.bf16.mxu0 0
  %498 = vmatpush1.bf16.msra.mxu0 %v351
  %499 = vmatprep.subr.bf16.mxu0 0
  %500 = vmatpush1.bf16.msra.mxu0 %v350
  %501 = vmatprep.subr.bf16.mxu0 0
  %502 = vmatpush1.bf16.msra.mxu0 %v349
  %503 = vmatprep.subr.bf16.mxu0 0
  %504 = vmatpush1.bf16.msra.mxu0 %v348
  %505 = vmatprep.subr.bf16.mxu0 0
  %506 = vmatpush1.bf16.msra.mxu0 %v347
  %507 = vmatprep.subr.bf16.mxu0 0
  %508 = vmatpush2.bf16.msra.mxu0 0
  %509 = vmatprep.subr.bf16.mxu0 0
  %510 = vmatpush2.bf16.msra.mxu0 0
  %511 = vmatprep.subr.bf16.mxu0 0
  %512 = vmatpush2.bf16.msra.mxu0 0
  %513 = vmatprep.subr.bf16.mxu0 0
  %514 = vmatpush2.bf16.msra.mxu0 0
  %515 = vmatprep.subr.bf16.mxu0 0
  %516 = vmatpush2.bf16.msra.mxu0 0
  %517 = vmatprep.subr.bf16.mxu0 0
  %518 = vmatpush2.bf16.msra.mxu0 0
  %519 = vmatprep.subr.bf16.mxu0 0
  %520 = vmatpush2.bf16.msra.mxu0 0
  %521 = vmatprep.subr.bf16.mxu0 0
  %522 = vmatpush2.bf16.msra.mxu0 %v355
  %523 = vmatprep.mubr.bf16.mxu0 %v383
  %524 = vmatmul.mubr.bf16.gmra.mxu0 %v184
  %v525 = vpop.f32.mrf.mxu0
  %v526 = vadd.f32 %v438, %v525
  %v527 = vpop.f32.mrf.mxu0
  %v528 = vpop.f32.mrf.mxu0
  %v529 = vadd.f32 %v441, %v528
  %v530 = vpop.f32.mrf.mxu0
  %531 = vmatprep.mubr.bf16.mxu0 %v386
  %532 = vmatmul.mubr.bf16.gmra.mxu0 %v188
  %v533 = vpop.f32.mrf.mxu0
  %v534 = vadd.f32 %v446, %v533
  %v535 = vpop.f32.mrf.mxu0
  %v536 = vpop.f32.mrf.mxu0
  %v537 = vadd.f32 %v449, %v536
  %v538 = vpop.f32.mrf.mxu0
  %539 = vmatprep.mubr.bf16.mxu0 %v389
  %540 = vmatmul.mubr.bf16.gmra.mxu0 %v192
  %v541 = vpop.f32.mrf.mxu0
  %v542 = vadd.f32 %v454, %v541
  %v543 = vpop.f32.mrf.mxu0
  %v544 = vpop.f32.mrf.mxu0
  %v545 = vadd.f32 %v457, %v544
  %v546 = vpop.f32.mrf.mxu0
  %547 = vmatprep.mubr.bf16.mxu0 %v392
  %548 = vmatmul.mubr.bf16.gmra.mxu0 %v196
  %v549 = vpop.f32.mrf.mxu0
  %v550 = vadd.f32 %v462, %v549
  %v551 = vpop.f32.mrf.mxu0
  %v552 = vpop.f32.mrf.mxu0
  %v553 = vadd.f32 %v465, %v552
  %v554 = vpop.f32.mrf.mxu0
  %555 = vmatprep.mubr.bf16.mxu0 %v395
  %556 = vmatmul.mubr.bf16.gmra.mxu0 %v200
  %v557 = vpop.f32.mrf.mxu0
  %v558 = vadd.f32 %v470, %v557
  %v559 = vpop.f32.mrf.mxu0
  %v560 = vpop.f32.mrf.mxu0
  %v561 = vadd.f32 %v473, %v560
  %v562 = vpop.f32.mrf.mxu0
  %563 = vmatprep.mubr.bf16.mxu0 %v398
  %564 = vmatmul.mubr.bf16.gmra.mxu0 %v204
  %v565 = vpop.f32.mrf.mxu0
  %v566 = vadd.f32 %v478, %v565
  %v567 = vpop.f32.mrf.mxu0
  %v568 = vpop.f32.mrf.mxu0
  %v569 = vadd.f32 %v481, %v568
  %v570 = vpop.f32.mrf.mxu0
  %571 = vmatprep.mubr.bf16.mxu0 %v401
  %572 = vmatmul.mubr.bf16.gmra.mxu0 %v208
  %v573 = vpop.f32.mrf.mxu0
  %v574 = vadd.f32 %v486, %v573
  %v575 = vpop.f32.mrf.mxu0
  %v576 = vpop.f32.mrf.mxu0
  %v577 = vpop.f32.mrf.mxu0
  %578 = vdwg.mxu0
  %s579 = scalar_lea.vmem %s0, 208
  %v580 = vld [vmem:[%s579] sm:$0xff]
  %v581 = vld [vmem:[%s579 + $0x8] sm:$0xff]
  %v582 = vld [vmem:[%s579 + $0x10] sm:$0xff]
  %v583 = vld [vmem:[%s579 + $0x18] sm:$0xff]
  %v584 = vld [vmem:[%s579 + $0x20] sm:$0xff]
  %v585 = vld [vmem:[%s579 + $0x28] sm:$0xff]
  %v586 = vld [vmem:[%s579 + $0x30] sm:$0xff]
  %v587 = vld [vmem:[%s579 + $0x38] sm:$0xff]
  %v588 = vld [vmem:[%s579 + $0x40] sm:$0xff]
  %v589 = vld [vmem:[%s579 + $0x48] sm:$0xff]
  %v590 = vld [vmem:[%s579 + $0x50] sm:$0xff]
  %v591 = vld [vmem:[%s579 + $0x58] sm:$0xff]
  %v592 = vld [vmem:[%s579 + $0x60] sm:$0xff]
  %v593 = vld [vmem:[%s579 + $0x68] sm:$0xff]
  %v594 = vld [vmem:[%s579 + $0x70] sm:$0xff]
  %v595 = vld [vmem:[%s579 + $0x78] sm:$0xff]
  %v596 = vld [vmem:[%s579 + $0x80] sm:$0xff]
  %v597 = vld [vmem:[%s579 + $0x88] sm:$0xff]
  %v598 = vld [vmem:[%s579 + $0x90] sm:$0xff]
  %v599 = vld [vmem:[%s579 + $0x98] sm:$0xff]
  %v600 = vld [vmem:[%s579 + $0xa0] sm:$0xff]
  %v601 = vld [vmem:[%s579 + $0xa8] sm:$0xff]
  %v602 = vld [vmem:[%s579 + $0xb0] sm:$0xff]
  %v603 = vld [vmem:[%s579 + $0xb8] sm:$0xff]
  %v604 = vld [vmem:[%s579 + $0xc0] sm:$0x11]
  %v605 = vld [vmem:[%s579 + $0xc8] sm:$0x11]
  %v632 = vunpack.c.l.b16 %v580
  %v633 = vunpack.c.h.b16 %v580
  %v634 = vunpack.c.l.b16 %v581
  %v635 = vunpack.c.h.b16 %v581
  %v636 = vunpack.c.l.b16 %v582
  %v637 = vunpack.c.h.b16 %v582
  %v638 = vunpack.c.l.b16 %v583
  %v639 = vunpack.c.h.b16 %v583
  %v640 = vunpack.c.l.b16 %v584
  %v641 = vunpack.c.h.b16 %v584
  %v642 = vunpack.c.l.b16 %v585
  %v643 = vunpack.c.h.b16 %v585
  %v644 = vunpack.c.l.b16 %v586
  %v645 = vunpack.c.h.b16 %v586
  %v646 = vunpack.c.l.b16 %v587
  %v647 = vunpack.c.h.b16 %v587
  %v648 = vunpack.c.l.b16 %v588
  %v649 = vunpack.c.h.b16 %v588
  %v650 = vunpack.c.l.b16 %v589
  %v651 = vunpack.c.h.b16 %v589
  %v652 = vunpack.c.l.b16 %v590
  %v653 = vunpack.c.h.b16 %v590
  %v654 = vunpack.c.l.b16 %v591
  %v655 = vunpack.c.h.b16 %v591
  %v656 = vunpack.c.l.b16 %v592
  %v657 = vunpack.c.h.b16 %v592
  %v658 = vunpack.c.l.b16 %v593
  %v659 = vunpack.c.h.b16 %v593
  %v660 = vunpack.c.l.b16 %v594
  %v661 = vunpack.c.h.b16 %v594
  %v662 = vunpack.c.l.b16 %v595
  %v663 = vunpack.c.h.b16 %v595
  %v664 = vunpack.c.l.b16 %v596
  %v665 = vunpack.c.h.b16 %v596
  %v666 = vunpack.c.l.b16 %v597
  %v667 = vunpack.c.h.b16 %v597
  %v668 = vunpack.c.l.b16 %v598
  %v669 = vunpack.c.h.b16 %v598
  %v670 = vunpack.c.l.b16 %v599
  %v671 = vunpack.c.h.b16 %v599
  %v672 = vunpack.c.l.b16 %v600
  %v673 = vunpack.c.h.b16 %v600
  %v674 = vunpack.c.l.b16 %v601
  %v675 = vunpack.c.h.b16 %v601
  %v676 = vunpack.c.l.b16 %v602
  %v677 = vunpack.c.h.b16 %v602
  %v678 = vunpack.c.l.b16 %v603
  %v679 = vunpack.c.h.b16 %v603
  %v680 = vunpack.c.l.b16 %v604
  %v681 = vunpack.c.h.b16 %v604
  %v682 = vunpack.c.l.b16 %v605
  %v683 = vunpack.c.h.b16 %v605
  %v684 = vpack.c.b16 %v636, %v632
  %v685 = vpack.c.b16 %v637, %v633
  %v686 = vpack.c.b16 %v638, %v634
  %v687 = vpack.c.b16 %v639, %v635
  %v688 = vpack.c.b16 %v644, %v640
  %v689 = vpack.c.b16 %v645, %v641
  %v690 = vpack.c.b16 %v646, %v642
  %v691 = vpack.c.b16 %v647, %v643
  %v692 = vpack.c.b16 %v652, %v648
  %v693 = vpack.c.b16 %v653, %v649
  %v694 = vpack.c.b16 %v654, %v650
  %v695 = vpack.c.b16 %v655, %v651
  %v696 = vpack.c.b16 %v660, %v656
  %v697 = vpack.c.b16 %v661, %v657
  %v698 = vpack.c.b16 %v662, %v658
  %v699 = vpack.c.b16 %v663, %v659
  %v700 = vpack.c.b16 %v668, %v664
  %v701 = vpack.c.b16 %v669, %v665
  %v702 = vpack.c.b16 %v670, %v666
  %v703 = vpack.c.b16 %v671, %v667
  %v704 = vpack.c.b16 %v676, %v672
  %v705 = vpack.c.b16 %v677, %v673
  %v706 = vpack.c.b16 %v678, %v674
  %v707 = vpack.c.b16 %v679, %v675
  %v708 = vpack.c.b16 %v680, %v680
  %v709 = vpack.c.b16 %v681, %v681
  %v710 = vpack.c.b16 %v682, %v682
  %v711 = vpack.c.b16 %v683, %v683
  %v734 = vsel %vm381, %v687, 0
  %v737 = vsel %vm381, %v691, 0
  %v740 = vsel %vm381, %v695, 0
  %v743 = vsel %vm381, %v699, 0
  %v746 = vsel %vm381, %v703, 0
  %v749 = vsel %vm381, %v707, 0
  %v752 = vsel %vm381, %v711, 0
  %754 = vmatprep.subr.bf16.mxu0 0
  %755 = vmatpush1.bf16.msra.mxu0 %v338
  %756 = vmatprep.subr.bf16.mxu0 0
  %757 = vmatpush1.bf16.msra.mxu0 %v337
  %758 = vmatprep.subr.bf16.mxu0 0
  %759 = vmatpush1.bf16.msra.mxu0 %v336
  %760 = vmatprep.subr.bf16.mxu0 0
  %761 = vmatpush1.bf16.msra.mxu0 %v335
  %762 = vmatprep.subr.bf16.mxu0 0
  %763 = vmatpush1.bf16.msra.mxu0 %v334
  %764 = vmatprep.subr.bf16.mxu0 0
  %765 = vmatpush1.bf16.msra.mxu0 %v333
  %766 = vmatprep.subr.bf16.mxu0 0
  %767 = vmatpush1.bf16.msra.mxu0 %v332
  %768 = vmatprep.subr.bf16.mxu0 0
  %769 = vmatpush1.bf16.msra.mxu0 %v331
  %770 = vmatprep.subr.bf16.mxu0 0
  %771 = vmatpush2.bf16.msra.mxu0 %v346
  %772 = vmatprep.subr.bf16.mxu0 0
  %773 = vmatpush2.bf16.msra.mxu0 %v345
  %774 = vmatprep.subr.bf16.mxu0 0
  %775 = vmatpush2.bf16.msra.mxu0 %v344
  %776 = vmatprep.subr.bf16.mxu0 0
  %777 = vmatpush2.bf16.msra.mxu0 %v343
  %778 = vmatprep.subr.bf16.mxu0 0
  %779 = vmatpush2.bf16.msra.mxu0 %v342
  %780 = vmatprep.subr.bf16.mxu0 0
  %781 = vmatpush2.bf16.msra.mxu0 %v341
  %782 = vmatprep.subr.bf16.mxu0 0
  %783 = vmatpush2.bf16.msra.mxu0 %v340
  %784 = vmatprep.subr.bf16.mxu0 0
  %785 = vmatpush2.bf16.msra.mxu0 %v339
  %786 = vmatprep.mubr.bf16.mxu0 %v685
  %787 = vmatmul.mubr.bf16.gmra.mxu0 %v684
  %v788 = vpop.f32.mrf.mxu0
  %v789 = vadd.f32 %v102, %v788
  %v790 = vpop.f32.mrf.mxu0
  %v791 = vpop.f32.mrf.mxu0
  %v792 = vadd.f32 %v102, %v791
  %v793 = vpop.f32.mrf.mxu0
  %794 = vmatprep.mubr.bf16.mxu0 %v689
  %795 = vmatmul.mubr.bf16.gmra.mxu0 %v688
  %v796 = vpop.f32.mrf.mxu0
  %v797 = vadd.f32 %v102, %v796
  %v798 = vpop.f32.mrf.mxu0
  %v799 = vpop.f32.mrf.mxu0
  %v800 = vadd.f32 %v102, %v799
  %v801 = vpop.f32.mrf.mxu0
  %802 = vmatprep.mubr.bf16.mxu0 %v693
  %803 = vmatmul.mubr.bf16.gmra.mxu0 %v692
  %v804 = vpop.f32.mrf.mxu0
  %v805 = vadd.f32 %v102, %v804
  %v806 = vpop.f32.mrf.mxu0
  %v807 = vpop.f32.mrf.mxu0
  %v808 = vadd.f32 %v102, %v807
  %v809 = vpop.f32.mrf.mxu0
  %810 = vmatprep.mubr.bf16.mxu0 %v697
  %811 = vmatmul.mubr.bf16.gmra.mxu0 %v696
  %v812 = vpop.f32.mrf.mxu0
  %v813 = vadd.f32 %v102, %v812
  %v814 = vpop.f32.mrf.mxu0
  %v815 = vpop.f32.mrf.mxu0
  %v816 = vadd.f32 %v102, %v815
  %v817 = vpop.f32.mrf.mxu0
  %818 = vmatprep.mubr.bf16.mxu0 %v701
  %819 = vmatmul.mubr.bf16.gmra.mxu0 %v700
  %v820 = vpop.f32.mrf.mxu0
  %v821 = vadd.f32 %v102, %v820
  %v822 = vpop.f32.mrf.mxu0
  %v823 = vpop.f32.mrf.mxu0
  %v824 = vadd.f32 %v102, %v823
  %v825 = vpop.f32.mrf.mxu0
  %826 = vmatprep.mubr.bf16.mxu0 %v705
  %827 = vmatmul.mubr.bf16.gmra.mxu0 %v704
  %v828 = vpop.f32.mrf.mxu0
  %v829 = vadd.f32 %v102, %v828
  %v830 = vpop.f32.mrf.mxu0
  %v831 = vpop.f32.mrf.mxu0
  %v832 = vadd.f32 %v102, %v831
  %v833 = vpop.f32.mrf.mxu0
  %834 = vmatprep.mubr.bf16.mxu0 %v709
  %835 = vmatmul.mubr.bf16.gmra.mxu0 %v708
  %v836 = vpop.f32.mrf.mxu0
  %v837 = vadd.f32 %v102, %v836
  %v838 = vpop.f32.mrf.mxu0
  %v839 = vpop.f32.mrf.mxu0
  %v840 = vpop.f32.mrf.mxu0
  %841 = vdwg.mxu0
  %842 = vmatprep.subr.bf16.mxu0 0
  %843 = vmatpush1.bf16.msra.mxu0 %v354
  %844 = vmatprep.subr.bf16.mxu0 0
  %845 = vmatpush1.bf16.msra.mxu0 %v353
  %846 = vmatprep.subr.bf16.mxu0 0
  %847 = vmatpush1.bf16.msra.mxu0 %v352
  %848 = vmatprep.subr.bf16.mxu0 0
  %849 = vmatpush1.bf16.msra.mxu0 %v351
  %850 = vmatprep.subr.bf16.mxu0 0
  %851 = vmatpush1.bf16.msra.mxu0 %v350
  %852 = vmatprep.subr.bf16.mxu0 0
  %853 = vmatpush1.bf16.msra.mxu0 %v349
  %854 = vmatprep.subr.bf16.mxu0 0
  %855 = vmatpush1.bf16.msra.mxu0 %v348
  %856 = vmatprep.subr.bf16.mxu0 0
  %857 = vmatpush1.bf16.msra.mxu0 %v347
  %858 = vmatprep.subr.bf16.mxu0 0
  %859 = vmatpush2.bf16.msra.mxu0 0
  %860 = vmatprep.subr.bf16.mxu0 0
  %861 = vmatpush2.bf16.msra.mxu0 0
  %862 = vmatprep.subr.bf16.mxu0 0
  %863 = vmatpush2.bf16.msra.mxu0 0
  %864 = vmatprep.subr.bf16.mxu0 0
  %865 = vmatpush2.bf16.msra.mxu0 0
  %866 = vmatprep.subr.bf16.mxu0 0
  %867 = vmatpush2.bf16.msra.mxu0 0
  %868 = vmatprep.subr.bf16.mxu0 0
  %869 = vmatpush2.bf16.msra.mxu0 0
  %870 = vmatprep.subr.bf16.mxu0 0
  %871 = vmatpush2.bf16.msra.mxu0 0
  %872 = vmatprep.subr.bf16.mxu0 0
  %873 = vmatpush2.bf16.msra.mxu0 %v355
  %874 = vmatprep.mubr.bf16.mxu0 %v734
  %875 = vmatmul.mubr.bf16.gmra.mxu0 %v686
  %v876 = vpop.f32.mrf.mxu0
  %v877 = vadd.f32 %v789, %v876
  %v878 = vpop.f32.mrf.mxu0
  %v879 = vpop.f32.mrf.mxu0
  %v880 = vadd.f32 %v792, %v879
  %v881 = vpop.f32.mrf.mxu0
  %882 = vmatprep.mubr.bf16.mxu0 %v737
  %883 = vmatmul.mubr.bf16.gmra.mxu0 %v690
  %v884 = vpop.f32.mrf.mxu0
  %v885 = vadd.f32 %v797, %v884
  %v886 = vpop.f32.mrf.mxu0
  %v887 = vpop.f32.mrf.mxu0
  %v888 = vadd.f32 %v800, %v887
  %v889 = vpop.f32.mrf.mxu0
  %890 = vmatprep.mubr.bf16.mxu0 %v740
  %891 = vmatmul.mubr.bf16.gmra.mxu0 %v694
  %v892 = vpop.f32.mrf.mxu0
  %v893 = vadd.f32 %v805, %v892
  %v894 = vpop.f32.mrf.mxu0
  %v895 = vpop.f32.mrf.mxu0
  %v896 = vadd.f32 %v808, %v895
  %v897 = vpop.f32.mrf.mxu0
  %898 = vmatprep.mubr.bf16.mxu0 %v743
  %899 = vmatmul.mubr.bf16.gmra.mxu0 %v698
  %v900 = vpop.f32.mrf.mxu0
  %v901 = vadd.f32 %v813, %v900
  %v902 = vpop.f32.mrf.mxu0
  %v903 = vpop.f32.mrf.mxu0
  %v904 = vadd.f32 %v816, %v903
  %v905 = vpop.f32.mrf.mxu0
  %906 = vmatprep.mubr.bf16.mxu0 %v746
  %907 = vmatmul.mubr.bf16.gmra.mxu0 %v702
  %v908 = vpop.f32.mrf.mxu0
  %v909 = vadd.f32 %v821, %v908
  %v910 = vpop.f32.mrf.mxu0
  %v911 = vpop.f32.mrf.mxu0
  %v912 = vadd.f32 %v824, %v911
  %v913 = vpop.f32.mrf.mxu0
  %914 = vmatprep.mubr.bf16.mxu0 %v749
  %915 = vmatmul.mubr.bf16.gmra.mxu0 %v706
  %v916 = vpop.f32.mrf.mxu0
  %v917 = vadd.f32 %v829, %v916
  %v918 = vpop.f32.mrf.mxu0
  %v919 = vpop.f32.mrf.mxu0
  %v920 = vadd.f32 %v832, %v919
  %v921 = vpop.f32.mrf.mxu0
  %922 = vmatprep.mubr.bf16.mxu0 %v752
  %923 = vmatmul.mubr.bf16.gmra.mxu0 %v710
  %v924 = vpop.f32.mrf.mxu0
  %v925 = vadd.f32 %v837, %v924
  %v926 = vpop.f32.mrf.mxu0
  %v927 = vpop.f32.mrf.mxu0
  %v928 = vpop.f32.mrf.mxu0
  %929 = vdwg.mxu0
  %s930 = scalar_lea.vmem %s0, 416
  %v931 = vld [vmem:[%s930] sm:$0xff]
  %v932 = vld [vmem:[%s930 + $0x8] sm:$0xff]
  %v933 = vld [vmem:[%s930 + $0x10] sm:$0xff]
  %v934 = vld [vmem:[%s930 + $0x18] sm:$0xff]
  %v935 = vld [vmem:[%s930 + $0x20] sm:$0xff]
  %v936 = vld [vmem:[%s930 + $0x28] sm:$0xff]
  %v937 = vld [vmem:[%s930 + $0x30] sm:$0xff]
  %v938 = vld [vmem:[%s930 + $0x38] sm:$0xff]
  %v939 = vld [vmem:[%s930 + $0x40] sm:$0xff]
  %v940 = vld [vmem:[%s930 + $0x48] sm:$0xff]
  %v941 = vld [vmem:[%s930 + $0x50] sm:$0xff]
  %v942 = vld [vmem:[%s930 + $0x58] sm:$0xff]
  %v943 = vld [vmem:[%s930 + $0x60] sm:$0xff]
  %v944 = vld [vmem:[%s930 + $0x68] sm:$0xff]
  %v945 = vld [vmem:[%s930 + $0x70] sm:$0xff]
  %v946 = vld [vmem:[%s930 + $0x78] sm:$0xff]
  %v947 = vld [vmem:[%s930 + $0x80] sm:$0xff]
  %v948 = vld [vmem:[%s930 + $0x88] sm:$0xff]
  %v949 = vld [vmem:[%s930 + $0x90] sm:$0xff]
  %v950 = vld [vmem:[%s930 + $0x98] sm:$0xff]
  %v951 = vld [vmem:[%s930 + $0xa0] sm:$0xff]
  %v952 = vld [vmem:[%s930 + $0xa8] sm:$0xff]
  %v953 = vld [vmem:[%s930 + $0xb0] sm:$0xff]
  %v954 = vld [vmem:[%s930 + $0xb8] sm:$0xff]
  %v955 = vld [vmem:[%s930 + $0xc0] sm:$0x11]
  %v956 = vld [vmem:[%s930 + $0xc8] sm:$0x11]
  %v983 = vunpack.c.l.b16 %v931
  %v984 = vunpack.c.h.b16 %v931
  %v985 = vunpack.c.l.b16 %v932
  %v986 = vunpack.c.h.b16 %v932
  %v987 = vunpack.c.l.b16 %v933
  %v988 = vunpack.c.h.b16 %v933
  %v989 = vunpack.c.l.b16 %v934
  %v990 = vunpack.c.h.b16 %v934
  %v991 = vunpack.c.l.b16 %v935
  %v992 = vunpack.c.h.b16 %v935
  %v993 = vunpack.c.l.b16 %v936
  %v994 = vunpack.c.h.b16 %v936
  %v995 = vunpack.c.l.b16 %v937
  %v996 = vunpack.c.h.b16 %v937
  %v997 = vunpack.c.l.b16 %v938
  %v998 = vunpack.c.h.b16 %v938
  %v999 = vunpack.c.l.b16 %v939
  %v1000 = vunpack.c.h.b16 %v939
  %v1001 = vunpack.c.l.b16 %v940
  %v1002 = vunpack.c.h.b16 %v940
  %v1003 = vunpack.c.l.b16 %v941
  %v1004 = vunpack.c.h.b16 %v941
  %v1005 = vunpack.c.l.b16 %v942
  %v1006 = vunpack.c.h.b16 %v942
  %v1007 = vunpack.c.l.b16 %v943
  %v1008 = vunpack.c.h.b16 %v943
  %v1009 = vunpack.c.l.b16 %v944
  %v1010 = vunpack.c.h.b16 %v944
  %v1011 = vunpack.c.l.b16 %v945
  %v1012 = vunpack.c.h.b16 %v945
  %v1013 = vunpack.c.l.b16 %v946
  %v1014 = vunpack.c.h.b16 %v946
  %v1015 = vunpack.c.l.b16 %v947
  %v1016 = vunpack.c.h.b16 %v947
  %v1017 = vunpack.c.l.b16 %v948
  %v1018 = vunpack.c.h.b16 %v948
  %v1019 = vunpack.c.l.b16 %v949
  %v1020 = vunpack.c.h.b16 %v949
  %v1021 = vunpack.c.l.b16 %v950
  %v1022 = vunpack.c.h.b16 %v950
  %v1023 = vunpack.c.l.b16 %v951
  %v1024 = vunpack.c.h.b16 %v951
  %v1025 = vunpack.c.l.b16 %v952
  %v1026 = vunpack.c.h.b16 %v952
  %v1027 = vunpack.c.l.b16 %v953
  %v1028 = vunpack.c.h.b16 %v953
  %v1029 = vunpack.c.l.b16 %v954
  %v1030 = vunpack.c.h.b16 %v954
  %v1031 = vunpack.c.l.b16 %v955
  %v1032 = vunpack.c.h.b16 %v955
  %v1033 = vunpack.c.l.b16 %v956
  %v1034 = vunpack.c.h.b16 %v956
  %v1035 = vpack.c.b16 %v987, %v983
  %v1036 = vpack.c.b16 %v988, %v984
  %v1037 = vpack.c.b16 %v989, %v985
  %v1038 = vpack.c.b16 %v990, %v986
  %v1039 = vpack.c.b16 %v995, %v991
  %v1040 = vpack.c.b16 %v996, %v992
  %v1041 = vpack.c.b16 %v997, %v993
  %v1042 = vpack.c.b16 %v998, %v994
  %v1043 = vpack.c.b16 %v1003, %v999
  %v1044 = vpack.c.b16 %v1004, %v1000
  %v1045 = vpack.c.b16 %v1005, %v1001
  %v1046 = vpack.c.b16 %v1006, %v1002
  %v1047 = vpack.c.b16 %v1011, %v1007
  %v1048 = vpack.c.b16 %v1012, %v1008
  %v1049 = vpack.c.b16 %v1013, %v1009
  %v1050 = vpack.c.b16 %v1014, %v1010
  %v1051 = vpack.c.b16 %v1019, %v1015
  %v1052 = vpack.c.b16 %v1020, %v1016
  %v1053 = vpack.c.b16 %v1021, %v1017
  %v1054 = vpack.c.b16 %v1022, %v1018
  %v1055 = vpack.c.b16 %v1027, %v1023
  %v1056 = vpack.c.b16 %v1028, %v1024
  %v1057 = vpack.c.b16 %v1029, %v1025
  %v1058 = vpack.c.b16 %v1030, %v1026
  %v1059 = vpack.c.b16 %v1031, %v1031
  %v1060 = vpack.c.b16 %v1032, %v1032
  %v1061 = vpack.c.b16 %v1033, %v1033
  %v1062 = vpack.c.b16 %v1034, %v1034
  %v1085 = vsel %vm381, %v1038, 0
  %v1088 = vsel %vm381, %v1042, 0
  %v1091 = vsel %vm381, %v1046, 0
  %v1094 = vsel %vm381, %v1050, 0
  %v1097 = vsel %vm381, %v1054, 0
  %v1100 = vsel %vm381, %v1058, 0
  %v1103 = vsel %vm381, %v1062, 0
  %1105 = vmatprep.subr.bf16.mxu0 0
  %1106 = vmatpush1.bf16.msra.mxu0 %v338
  %1107 = vmatprep.subr.bf16.mxu0 0
  %1108 = vmatpush1.bf16.msra.mxu0 %v337
  %1109 = vmatprep.subr.bf16.mxu0 0
  %1110 = vmatpush1.bf16.msra.mxu0 %v336
  %1111 = vmatprep.subr.bf16.mxu0 0
  %1112 = vmatpush1.bf16.msra.mxu0 %v335
  %1113 = vmatprep.subr.bf16.mxu0 0
  %1114 = vmatpush1.bf16.msra.mxu0 %v334
  %1115 = vmatprep.subr.bf16.mxu0 0
  %1116 = vmatpush1.bf16.msra.mxu0 %v333
  %1117 = vmatprep.subr.bf16.mxu0 0
  %1118 = vmatpush1.bf16.msra.mxu0 %v332
  %1119 = vmatprep.subr.bf16.mxu0 0
  %1120 = vmatpush1.bf16.msra.mxu0 %v331
  %1121 = vmatprep.subr.bf16.mxu0 0
  %1122 = vmatpush2.bf16.msra.mxu0 %v346
  %1123 = vmatprep.subr.bf16.mxu0 0
  %1124 = vmatpush2.bf16.msra.mxu0 %v345
  %1125 = vmatprep.subr.bf16.mxu0 0
  %1126 = vmatpush2.bf16.msra.mxu0 %v344
  %1127 = vmatprep.subr.bf16.mxu0 0
  %1128 = vmatpush2.bf16.msra.mxu0 %v343
  %1129 = vmatprep.subr.bf16.mxu0 0
  %1130 = vmatpush2.bf16.msra.mxu0 %v342
  %1131 = vmatprep.subr.bf16.mxu0 0
  %1132 = vmatpush2.bf16.msra.mxu0 %v341
  %1133 = vmatprep.subr.bf16.mxu0 0
  %1134 = vmatpush2.bf16.msra.mxu0 %v340
  %1135 = vmatprep.subr.bf16.mxu0 0
  %1136 = vmatpush2.bf16.msra.mxu0 %v339
  %1137 = vmatprep.mubr.bf16.mxu0 %v1036
  %1138 = vmatmul.mubr.bf16.gmra.mxu0 %v1035
  %v1139 = vpop.f32.mrf.mxu0
  %v1140 = vadd.f32 %v102, %v1139
  %v1141 = vpop.f32.mrf.mxu0
  %v1142 = vpop.f32.mrf.mxu0
  %v1143 = vadd.f32 %v102, %v1142
  %v1144 = vpop.f32.mrf.mxu0
  %1145 = vmatprep.mubr.bf16.mxu0 %v1040
  %1146 = vmatmul.mubr.bf16.gmra.mxu0 %v1039
  %v1147 = vpop.f32.mrf.mxu0
  %v1148 = vadd.f32 %v102, %v1147
  %v1149 = vpop.f32.mrf.mxu0
  %v1150 = vpop.f32.mrf.mxu0
  %v1151 = vadd.f32 %v102, %v1150
  %v1152 = vpop.f32.mrf.mxu0
  %1153 = vmatprep.mubr.bf16.mxu0 %v1044
  %1154 = vmatmul.mubr.bf16.gmra.mxu0 %v1043
  %v1155 = vpop.f32.mrf.mxu0
  %v1156 = vadd.f32 %v102, %v1155
  %v1157 = vpop.f32.mrf.mxu0
  %v1158 = vpop.f32.mrf.mxu0
  %v1159 = vadd.f32 %v102, %v1158
  %v1160 = vpop.f32.mrf.mxu0
  %1161 = vmatprep.mubr.bf16.mxu0 %v1048
  %1162 = vmatmul.mubr.bf16.gmra.mxu0 %v1047
  %v1163 = vpop.f32.mrf.mxu0
  %v1164 = vadd.f32 %v102, %v1163
  %v1165 = vpop.f32.mrf.mxu0
  %v1166 = vpop.f32.mrf.mxu0
  %v1167 = vadd.f32 %v102, %v1166
  %v1168 = vpop.f32.mrf.mxu0
  %1169 = vmatprep.mubr.bf16.mxu0 %v1052
  %1170 = vmatmul.mubr.bf16.gmra.mxu0 %v1051
  %v1171 = vpop.f32.mrf.mxu0
  %v1172 = vadd.f32 %v102, %v1171
  %v1173 = vpop.f32.mrf.mxu0
  %v1174 = vpop.f32.mrf.mxu0
  %v1175 = vadd.f32 %v102, %v1174
  %v1176 = vpop.f32.mrf.mxu0
  %1177 = vmatprep.mubr.bf16.mxu0 %v1056
  %1178 = vmatmul.mubr.bf16.gmra.mxu0 %v1055
  %v1179 = vpop.f32.mrf.mxu0
  %v1180 = vadd.f32 %v102, %v1179
  %v1181 = vpop.f32.mrf.mxu0
  %v1182 = vpop.f32.mrf.mxu0
  %v1183 = vadd.f32 %v102, %v1182
  %v1184 = vpop.f32.mrf.mxu0
  %1185 = vmatprep.mubr.bf16.mxu0 %v1060
  %1186 = vmatmul.mubr.bf16.gmra.mxu0 %v1059
  %v1187 = vpop.f32.mrf.mxu0
  %v1188 = vadd.f32 %v102, %v1187
  %v1189 = vpop.f32.mrf.mxu0
  %v1190 = vpop.f32.mrf.mxu0
  %v1191 = vpop.f32.mrf.mxu0
  %1192 = vdwg.mxu0
  %1193 = vmatprep.subr.bf16.mxu0 0
  %1194 = vmatpush1.bf16.msra.mxu0 %v354
  %1195 = vmatprep.subr.bf16.mxu0 0
  %1196 = vmatpush1.bf16.msra.mxu0 %v353
  %1197 = vmatprep.subr.bf16.mxu0 0
  %1198 = vmatpush1.bf16.msra.mxu0 %v352
  %1199 = vmatprep.subr.bf16.mxu0 0
  %1200 = vmatpush1.bf16.msra.mxu0 %v351
  %1201 = vmatprep.subr.bf16.mxu0 0
  %1202 = vmatpush1.bf16.msra.mxu0 %v350
  %1203 = vmatprep.subr.bf16.mxu0 0
  %1204 = vmatpush1.bf16.msra.mxu0 %v349
  %1205 = vmatprep.subr.bf16.mxu0 0
  %1206 = vmatpush1.bf16.msra.mxu0 %v348
  %1207 = vmatprep.subr.bf16.mxu0 0
  %1208 = vmatpush1.bf16.msra.mxu0 %v347
  %1209 = vmatprep.subr.bf16.mxu0 0
  %1210 = vmatpush2.bf16.msra.mxu0 0
  %1211 = vmatprep.subr.bf16.mxu0 0
  %1212 = vmatpush2.bf16.msra.mxu0 0
  %1213 = vmatprep.subr.bf16.mxu0 0
  %1214 = vmatpush2.bf16.msra.mxu0 0
  %1215 = vmatprep.subr.bf16.mxu0 0
  %1216 = vmatpush2.bf16.msra.mxu0 0
  %1217 = vmatprep.subr.bf16.mxu0 0
  %1218 = vmatpush2.bf16.msra.mxu0 0
  %1219 = vmatprep.subr.bf16.mxu0 0
  %1220 = vmatpush2.bf16.msra.mxu0 0
  %1221 = vmatprep.subr.bf16.mxu0 0
  %1222 = vmatpush2.bf16.msra.mxu0 0
  %1223 = vmatprep.subr.bf16.mxu0 0
  %1224 = vmatpush2.bf16.msra.mxu0 %v355
  %1225 = vmatprep.mubr.bf16.mxu0 %v1085
  %1226 = vmatmul.mubr.bf16.gmra.mxu0 %v1037
  %v1227 = vpop.f32.mrf.mxu0
  %v1228 = vadd.f32 %v1140, %v1227
  %v1229 = vpop.f32.mrf.mxu0
  %v1230 = vpop.f32.mrf.mxu0
  %v1231 = vadd.f32 %v1143, %v1230
  %v1232 = vpop.f32.mrf.mxu0
  %1233 = vmatprep.mubr.bf16.mxu0 %v1088
  %1234 = vmatmul.mubr.bf16.gmra.mxu0 %v1041
  %v1235 = vpop.f32.mrf.mxu0
  %v1236 = vadd.f32 %v1148, %v1235
  %v1237 = vpop.f32.mrf.mxu0
  %v1238 = vpop.f32.mrf.mxu0
  %v1239 = vadd.f32 %v1151, %v1238
  %v1240 = vpop.f32.mrf.mxu0
  %1241 = vmatprep.mubr.bf16.mxu0 %v1091
  %1242 = vmatmul.mubr.bf16.gmra.mxu0 %v1045
  %v1243 = vpop.f32.mrf.mxu0
  %v1244 = vadd.f32 %v1156, %v1243
  %v1245 = vpop.f32.mrf.mxu0
  %v1246 = vpop.f32.mrf.mxu0
  %v1247 = vadd.f32 %v1159, %v1246
  %v1248 = vpop.f32.mrf.mxu0
  %1249 = vmatprep.mubr.bf16.mxu0 %v1094
  %1250 = vmatmul.mubr.bf16.gmra.mxu0 %v1049
  %v1251 = vpop.f32.mrf.mxu0
  %v1252 = vadd.f32 %v1164, %v1251
  %v1253 = vpop.f32.mrf.mxu0
  %v1254 = vpop.f32.mrf.mxu0
  %v1255 = vadd.f32 %v1167, %v1254
  %v1256 = vpop.f32.mrf.mxu0
  %1257 = vmatprep.mubr.bf16.mxu0 %v1097
  %1258 = vmatmul.mubr.bf16.gmra.mxu0 %v1053
  %v1259 = vpop.f32.mrf.mxu0
  %v1260 = vadd.f32 %v1172, %v1259
  %v1261 = vpop.f32.mrf.mxu0
  %v1262 = vpop.f32.mrf.mxu0
  %v1263 = vadd.f32 %v1175, %v1262
  %v1264 = vpop.f32.mrf.mxu0
  %1265 = vmatprep.mubr.bf16.mxu0 %v1100
  %1266 = vmatmul.mubr.bf16.gmra.mxu0 %v1057
  %v1267 = vpop.f32.mrf.mxu0
  %v1268 = vadd.f32 %v1180, %v1267
  %v1269 = vpop.f32.mrf.mxu0
  %v1270 = vpop.f32.mrf.mxu0
  %v1271 = vadd.f32 %v1183, %v1270
  %v1272 = vpop.f32.mrf.mxu0
  %1273 = vmatprep.mubr.bf16.mxu0 %v1103
  %1274 = vmatmul.mubr.bf16.gmra.mxu0 %v1061
  %v1275 = vpop.f32.mrf.mxu0
  %v1276 = vadd.f32 %v1188, %v1275
  %v1277 = vpop.f32.mrf.mxu0
  %v1278 = vpop.f32.mrf.mxu0
  %v1279 = vpop.f32.mrf.mxu0
  %1280 = vdwg.mxu0
  %s1281 = scalar_lea.vmem %s0, 624
  %v1282 = vld [vmem:[%s1281] sm:$0xff]
  %v1283 = vld [vmem:[%s1281 + $0x8] sm:$0xff]
  %v1284 = vld [vmem:[%s1281 + $0x10] sm:$0xff]
  %v1285 = vld [vmem:[%s1281 + $0x18] sm:$0xff]
  %v1286 = vld [vmem:[%s1281 + $0x20] sm:$0xff]
  %v1287 = vld [vmem:[%s1281 + $0x28] sm:$0xff]
  %v1288 = vld [vmem:[%s1281 + $0x30] sm:$0xff]
  %v1289 = vld [vmem:[%s1281 + $0x38] sm:$0xff]
  %v1290 = vld [vmem:[%s1281 + $0x40] sm:$0xff]
  %v1291 = vld [vmem:[%s1281 + $0x48] sm:$0xff]
  %v1292 = vld [vmem:[%s1281 + $0x50] sm:$0xff]
  %v1293 = vld [vmem:[%s1281 + $0x58] sm:$0xff]
  %v1294 = vld [vmem:[%s1281 + $0x60] sm:$0xff]
  %v1295 = vld [vmem:[%s1281 + $0x68] sm:$0xff]
  %v1296 = vld [vmem:[%s1281 + $0x70] sm:$0xff]
  %v1297 = vld [vmem:[%s1281 + $0x78] sm:$0xff]
  %v1298 = vld [vmem:[%s1281 + $0x80] sm:$0xff]
  %v1299 = vld [vmem:[%s1281 + $0x88] sm:$0xff]
  %v1300 = vld [vmem:[%s1281 + $0x90] sm:$0xff]
  %v1301 = vld [vmem:[%s1281 + $0x98] sm:$0xff]
  %v1302 = vld [vmem:[%s1281 + $0xa0] sm:$0xff]
  %v1303 = vld [vmem:[%s1281 + $0xa8] sm:$0xff]
  %v1304 = vld [vmem:[%s1281 + $0xb0] sm:$0xff]
  %v1305 = vld [vmem:[%s1281 + $0xb8] sm:$0xff]
  %v1306 = vld [vmem:[%s1281 + $0xc0] sm:$0x11]
  %v1307 = vld [vmem:[%s1281 + $0xc8] sm:$0x11]
  %v1334 = vunpack.c.l.b16 %v1282
  %v1335 = vunpack.c.h.b16 %v1282
  %v1336 = vunpack.c.l.b16 %v1283
  %v1337 = vunpack.c.h.b16 %v1283
  %v1338 = vunpack.c.l.b16 %v1284
  %v1339 = vunpack.c.h.b16 %v1284
  %v1340 = vunpack.c.l.b16 %v1285
  %v1341 = vunpack.c.h.b16 %v1285
  %v1342 = vunpack.c.l.b16 %v1286
  %v1343 = vunpack.c.h.b16 %v1286
  %v1344 = vunpack.c.l.b16 %v1287
  %v1345 = vunpack.c.h.b16 %v1287
  %v1346 = vunpack.c.l.b16 %v1288
  %v1347 = vunpack.c.h.b16 %v1288
  %v1348 = vunpack.c.l.b16 %v1289
  %v1349 = vunpack.c.h.b16 %v1289
  %v1350 = vunpack.c.l.b16 %v1290
  %v1351 = vunpack.c.h.b16 %v1290
  %v1352 = vunpack.c.l.b16 %v1291
  %v1353 = vunpack.c.h.b16 %v1291
  %v1354 = vunpack.c.l.b16 %v1292
  %v1355 = vunpack.c.h.b16 %v1292
  %v1356 = vunpack.c.l.b16 %v1293
  %v1357 = vunpack.c.h.b16 %v1293
  %v1358 = vunpack.c.l.b16 %v1294
  %v1359 = vunpack.c.h.b16 %v1294
  %v1360 = vunpack.c.l.b16 %v1295
  %v1361 = vunpack.c.h.b16 %v1295
  %v1362 = vunpack.c.l.b16 %v1296
  %v1363 = vunpack.c.h.b16 %v1296
  %v1364 = vunpack.c.l.b16 %v1297
  %v1365 = vunpack.c.h.b16 %v1297
  %v1366 = vunpack.c.l.b16 %v1298
  %v1367 = vunpack.c.h.b16 %v1298
  %v1368 = vunpack.c.l.b16 %v1299
  %v1369 = vunpack.c.h.b16 %v1299
  %v1370 = vunpack.c.l.b16 %v1300
  %v1371 = vunpack.c.h.b16 %v1300
  %v1372 = vunpack.c.l.b16 %v1301
  %v1373 = vunpack.c.h.b16 %v1301
  %v1374 = vunpack.c.l.b16 %v1302
  %v1375 = vunpack.c.h.b16 %v1302
  %v1376 = vunpack.c.l.b16 %v1303
  %v1377 = vunpack.c.h.b16 %v1303
  %v1378 = vunpack.c.l.b16 %v1304
  %v1379 = vunpack.c.h.b16 %v1304
  %v1380 = vunpack.c.l.b16 %v1305
  %v1381 = vunpack.c.h.b16 %v1305
  %v1382 = vunpack.c.l.b16 %v1306
  %v1383 = vunpack.c.h.b16 %v1306
  %v1384 = vunpack.c.l.b16 %v1307
  %v1385 = vunpack.c.h.b16 %v1307
  %v1386 = vpack.c.b16 %v1338, %v1334
  %v1387 = vpack.c.b16 %v1339, %v1335
  %v1388 = vpack.c.b16 %v1340, %v1336
  %v1389 = vpack.c.b16 %v1341, %v1337
  %v1390 = vpack.c.b16 %v1346, %v1342
  %v1391 = vpack.c.b16 %v1347, %v1343
  %v1392 = vpack.c.b16 %v1348, %v1344
  %v1393 = vpack.c.b16 %v1349, %v1345
  %v1394 = vpack.c.b16 %v1354, %v1350
  %v1395 = vpack.c.b16 %v1355, %v1351
  %v1396 = vpack.c.b16 %v1356, %v1352
  %v1397 = vpack.c.b16 %v1357, %v1353
  %v1398 = vpack.c.b16 %v1362, %v1358
  %v1399 = vpack.c.b16 %v1363, %v1359
  %v1400 = vpack.c.b16 %v1364, %v1360
  %v1401 = vpack.c.b16 %v1365, %v1361
  %v1402 = vpack.c.b16 %v1370, %v1366
  %v1403 = vpack.c.b16 %v1371, %v1367
  %v1404 = vpack.c.b16 %v1372, %v1368
  %v1405 = vpack.c.b16 %v1373, %v1369
  %v1406 = vpack.c.b16 %v1378, %v1374
  %v1407 = vpack.c.b16 %v1379, %v1375
  %v1408 = vpack.c.b16 %v1380, %v1376
  %v1409 = vpack.c.b16 %v1381, %v1377
  %v1410 = vpack.c.b16 %v1382, %v1382
  %v1411 = vpack.c.b16 %v1383, %v1383
  %v1412 = vpack.c.b16 %v1384, %v1384
  %v1413 = vpack.c.b16 %v1385, %v1385
  %v1436 = vsel %vm381, %v1389, 0
  %v1439 = vsel %vm381, %v1393, 0
  %v1442 = vsel %vm381, %v1397, 0
  %v1445 = vsel %vm381, %v1401, 0
  %v1448 = vsel %vm381, %v1405, 0
  %v1451 = vsel %vm381, %v1409, 0
  %v1454 = vsel %vm381, %v1413, 0
  %1456 = vmatprep.subr.bf16.mxu0 0
  %1457 = vmatpush1.bf16.msra.mxu0 %v338
  %1458 = vmatprep.subr.bf16.mxu0 0
  %1459 = vmatpush1.bf16.msra.mxu0 %v337
  %1460 = vmatprep.subr.bf16.mxu0 0
  %1461 = vmatpush1.bf16.msra.mxu0 %v336
  %1462 = vmatprep.subr.bf16.mxu0 0
  %1463 = vmatpush1.bf16.msra.mxu0 %v335
  %1464 = vmatprep.subr.bf16.mxu0 0
  %1465 = vmatpush1.bf16.msra.mxu0 %v334
  %1466 = vmatprep.subr.bf16.mxu0 0
  %1467 = vmatpush1.bf16.msra.mxu0 %v333
  %1468 = vmatprep.subr.bf16.mxu0 0
  %1469 = vmatpush1.bf16.msra.mxu0 %v332
  %1470 = vmatprep.subr.bf16.mxu0 0
  %1471 = vmatpush1.bf16.msra.mxu0 %v331
  %1472 = vmatprep.subr.bf16.mxu0 0
  %1473 = vmatpush2.bf16.msra.mxu0 %v346
  %1474 = vmatprep.subr.bf16.mxu0 0
  %1475 = vmatpush2.bf16.msra.mxu0 %v345
  %1476 = vmatprep.subr.bf16.mxu0 0
  %1477 = vmatpush2.bf16.msra.mxu0 %v344
  %1478 = vmatprep.subr.bf16.mxu0 0
  %1479 = vmatpush2.bf16.msra.mxu0 %v343
  %1480 = vmatprep.subr.bf16.mxu0 0
  %1481 = vmatpush2.bf16.msra.mxu0 %v342
  %1482 = vmatprep.subr.bf16.mxu0 0
  %1483 = vmatpush2.bf16.msra.mxu0 %v341
  %1484 = vmatprep.subr.bf16.mxu0 0
  %1485 = vmatpush2.bf16.msra.mxu0 %v340
  %1486 = vmatprep.subr.bf16.mxu0 0
  %1487 = vmatpush2.bf16.msra.mxu0 %v339
  %1488 = vmatprep.mubr.bf16.mxu0 %v1387
  %1489 = vmatmul.mubr.bf16.gmra.mxu0 %v1386
  %v1490 = vpop.f32.mrf.mxu0
  %v1491 = vadd.f32 %v102, %v1490
  %v1492 = vpop.f32.mrf.mxu0
  %v1493 = vpop.f32.mrf.mxu0
  %v1494 = vadd.f32 %v102, %v1493
  %v1495 = vpop.f32.mrf.mxu0
  %1496 = vmatprep.mubr.bf16.mxu0 %v1391
  %1497 = vmatmul.mubr.bf16.gmra.mxu0 %v1390
  %v1498 = vpop.f32.mrf.mxu0
  %v1499 = vadd.f32 %v102, %v1498
  %v1500 = vpop.f32.mrf.mxu0
  %v1501 = vpop.f32.mrf.mxu0
  %v1502 = vadd.f32 %v102, %v1501
  %v1503 = vpop.f32.mrf.mxu0
  %1504 = vmatprep.mubr.bf16.mxu0 %v1395
  %1505 = vmatmul.mubr.bf16.gmra.mxu0 %v1394
  %v1506 = vpop.f32.mrf.mxu0
  %v1507 = vadd.f32 %v102, %v1506
  %v1508 = vpop.f32.mrf.mxu0
  %v1509 = vpop.f32.mrf.mxu0
  %v1510 = vadd.f32 %v102, %v1509
  %v1511 = vpop.f32.mrf.mxu0
  %1512 = vmatprep.mubr.bf16.mxu0 %v1399
  %1513 = vmatmul.mubr.bf16.gmra.mxu0 %v1398
  %v1514 = vpop.f32.mrf.mxu0
  %v1515 = vadd.f32 %v102, %v1514
  %v1516 = vpop.f32.mrf.mxu0
  %v1517 = vpop.f32.mrf.mxu0
  %v1518 = vadd.f32 %v102, %v1517
  %v1519 = vpop.f32.mrf.mxu0
  %1520 = vmatprep.mubr.bf16.mxu0 %v1403
  %1521 = vmatmul.mubr.bf16.gmra.mxu0 %v1402
  %v1522 = vpop.f32.mrf.mxu0
  %v1523 = vadd.f32 %v102, %v1522
  %v1524 = vpop.f32.mrf.mxu0
  %v1525 = vpop.f32.mrf.mxu0
  %v1526 = vadd.f32 %v102, %v1525
  %v1527 = vpop.f32.mrf.mxu0
  %1528 = vmatprep.mubr.bf16.mxu0 %v1407
  %1529 = vmatmul.mubr.bf16.gmra.mxu0 %v1406
  %v1530 = vpop.f32.mrf.mxu0
  %v1531 = vadd.f32 %v102, %v1530
  %v1532 = vpop.f32.mrf.mxu0
  %v1533 = vpop.f32.mrf.mxu0
  %v1534 = vadd.f32 %v102, %v1533
  %v1535 = vpop.f32.mrf.mxu0
  %1536 = vmatprep.mubr.bf16.mxu0 %v1411
  %1537 = vmatmul.mubr.bf16.gmra.mxu0 %v1410
  %v1538 = vpop.f32.mrf.mxu0
  %v1539 = vadd.f32 %v102, %v1538
  %v1540 = vpop.f32.mrf.mxu0
  %v1541 = vpop.f32.mrf.mxu0
  %v1542 = vpop.f32.mrf.mxu0
  %1543 = vdwg.mxu0
  %1544 = vmatprep.subr.bf16.mxu0 0
  %1545 = vmatpush1.bf16.msra.mxu0 %v354
  %1546 = vmatprep.subr.bf16.mxu0 0
  %1547 = vmatpush1.bf16.msra.mxu0 %v353
  %1548 = vmatprep.subr.bf16.mxu0 0
  %1549 = vmatpush1.bf16.msra.mxu0 %v352
  %1550 = vmatprep.subr.bf16.mxu0 0
  %1551 = vmatpush1.bf16.msra.mxu0 %v351
  %1552 = vmatprep.subr.bf16.mxu0 0
  %1553 = vmatpush1.bf16.msra.mxu0 %v350
  %1554 = vmatprep.subr.bf16.mxu0 0
  %1555 = vmatpush1.bf16.msra.mxu0 %v349
  %1556 = vmatprep.subr.bf16.mxu0 0
  %1557 = vmatpush1.bf16.msra.mxu0 %v348
  %1558 = vmatprep.subr.bf16.mxu0 0
  %1559 = vmatpush1.bf16.msra.mxu0 %v347
  %1560 = vmatprep.subr.bf16.mxu0 0
  %1561 = vmatpush2.bf16.msra.mxu0 0
  %1562 = vmatprep.subr.bf16.mxu0 0
  %1563 = vmatpush2.bf16.msra.mxu0 0
  %1564 = vmatprep.subr.bf16.mxu0 0
  %1565 = vmatpush2.bf16.msra.mxu0 0
  %1566 = vmatprep.subr.bf16.mxu0 0
  %1567 = vmatpush2.bf16.msra.mxu0 0
  %1568 = vmatprep.subr.bf16.mxu0 0
  %1569 = vmatpush2.bf16.msra.mxu0 0
  %1570 = vmatprep.subr.bf16.mxu0 0
  %1571 = vmatpush2.bf16.msra.mxu0 0
  %1572 = vmatprep.subr.bf16.mxu0 0
  %1573 = vmatpush2.bf16.msra.mxu0 0
  %1574 = vmatprep.subr.bf16.mxu0 0
  %1575 = vmatpush2.bf16.msra.mxu0 %v355
  %1576 = vmatprep.mubr.bf16.mxu0 %v1436
  %1577 = vmatmul.mubr.bf16.gmra.mxu0 %v1388
  %v1578 = vpop.f32.mrf.mxu0
  %v1579 = vadd.f32 %v1491, %v1578
  %v1580 = vpop.f32.mrf.mxu0
  %v1581 = vpop.f32.mrf.mxu0
  %v1582 = vadd.f32 %v1494, %v1581
  %v1583 = vpop.f32.mrf.mxu0
  %1584 = vmatprep.mubr.bf16.mxu0 %v1439
  %1585 = vmatmul.mubr.bf16.gmra.mxu0 %v1392
  %v1586 = vpop.f32.mrf.mxu0
  %v1587 = vadd.f32 %v1499, %v1586
  %v1588 = vpop.f32.mrf.mxu0
  %v1589 = vpop.f32.mrf.mxu0
  %v1590 = vadd.f32 %v1502, %v1589
  %v1591 = vpop.f32.mrf.mxu0
  %1592 = vmatprep.mubr.bf16.mxu0 %v1442
  %1593 = vmatmul.mubr.bf16.gmra.mxu0 %v1396
  %v1594 = vpop.f32.mrf.mxu0
  %v1595 = vadd.f32 %v1507, %v1594
  %v1596 = vpop.f32.mrf.mxu0
  %v1597 = vpop.f32.mrf.mxu0
  %v1598 = vadd.f32 %v1510, %v1597
  %v1599 = vpop.f32.mrf.mxu0
  %1600 = vmatprep.mubr.bf16.mxu0 %v1445
  %1601 = vmatmul.mubr.bf16.gmra.mxu0 %v1400
  %v1602 = vpop.f32.mrf.mxu0
  %v1603 = vadd.f32 %v1515, %v1602
  %v1604 = vpop.f32.mrf.mxu0
  %v1605 = vpop.f32.mrf.mxu0
  %v1606 = vadd.f32 %v1518, %v1605
  %v1607 = vpop.f32.mrf.mxu0
  %1608 = vmatprep.mubr.bf16.mxu0 %v1448
  %1609 = vmatmul.mubr.bf16.gmra.mxu0 %v1404
  %v1610 = vpop.f32.mrf.mxu0
  %v1611 = vadd.f32 %v1523, %v1610
  %v1612 = vpop.f32.mrf.mxu0
  %v1613 = vpop.f32.mrf.mxu0
  %v1614 = vadd.f32 %v1526, %v1613
  %v1615 = vpop.f32.mrf.mxu0
  %1616 = vmatprep.mubr.bf16.mxu0 %v1451
  %1617 = vmatmul.mubr.bf16.gmra.mxu0 %v1408
  %v1618 = vpop.f32.mrf.mxu0
  %v1619 = vadd.f32 %v1531, %v1618
  %v1620 = vpop.f32.mrf.mxu0
  %v1621 = vpop.f32.mrf.mxu0
  %v1622 = vadd.f32 %v1534, %v1621
  %v1623 = vpop.f32.mrf.mxu0
  %1624 = vmatprep.mubr.bf16.mxu0 %v1454
  %1625 = vmatmul.mubr.bf16.gmra.mxu0 %v1412
  %v1626 = vpop.f32.mrf.mxu0
  %v1627 = vadd.f32 %v1539, %v1626
  %v1628 = vpop.f32.mrf.mxu0
  %v1629 = vpop.f32.mrf.mxu0
  %v1630 = vpop.f32.mrf.mxu0
  %1631 = vdwg.mxu0
  %vm1632 = vcmask 261120
  %v1633 = vsel %vm1632, %v526, 0.0
  %v1634 = vsel %vm1632, %v529, 0.0
  %v1635 = vadd.f32 %v1633, %v1634
  %v1636 = vsel %vm1632, %v534, 0.0
  %v1637 = vadd.f32 %v1635, %v1636
  %v1638 = vsel %vm1632, %v537, 0.0
  %v1639 = vadd.f32 %v1637, %v1638
  %v1640 = vsel %vm1632, %v542, 0.0
  %v1641 = vadd.f32 %v1639, %v1640
  %v1642 = vsel %vm1632, %v545, 0.0
  %v1643 = vadd.f32 %v1641, %v1642
  %v1644 = vsel %vm1632, %v550, 0.0
  %v1645 = vadd.f32 %v1643, %v1644
  %v1646 = vsel %vm1632, %v553, 0.0
  %v1647 = vadd.f32 %v1645, %v1646
  %v1648 = vsel %vm1632, %v558, 0.0
  %v1649 = vadd.f32 %v1647, %v1648
  %v1650 = vsel %vm1632, %v561, 0.0
  %v1651 = vadd.f32 %v1649, %v1650
  %v1652 = vsel %vm1632, %v566, 0.0
  %v1653 = vadd.f32 %v1651, %v1652
  %v1654 = vsel %vm1632, %v569, 0.0
  %v1655 = vadd.f32 %v1653, %v1654
  %vm1656 = vcmask 254976
  %v1657 = vsel %vm1656, %v574, 0.0
  %v1658 = vadd.f32 %v1655, %v1657
  %v1659 = vrot.slane %v1658, 4
  %v1660 = vadd.f32 %v1658, %v1659
  %v1661 = vrot.slane %v1660, 2
  %v1662 = vadd.f32 %v1660, %v1661
  %v1663 = vrot.slane %v1662, 1
  %v1664 = vadd.f32 %v1662, %v1663
  %v1665 = vsel %vm1632, %v877, 0.0
  %v1666 = vsel %vm1632, %v880, 0.0
  %v1667 = vadd.f32 %v1665, %v1666
  %v1668 = vsel %vm1632, %v885, 0.0
  %v1669 = vadd.f32 %v1667, %v1668
  %v1670 = vsel %vm1632, %v888, 0.0
  %v1671 = vadd.f32 %v1669, %v1670
  %v1672 = vsel %vm1632, %v893, 0.0
  %v1673 = vadd.f32 %v1671, %v1672
  %v1674 = vsel %vm1632, %v896, 0.0
  %v1675 = vadd.f32 %v1673, %v1674
  %v1676 = vsel %vm1632, %v901, 0.0
  %v1677 = vadd.f32 %v1675, %v1676
  %v1678 = vsel %vm1632, %v904, 0.0
  %v1679 = vadd.f32 %v1677, %v1678
  %v1680 = vsel %vm1632, %v909, 0.0
  %v1681 = vadd.f32 %v1679, %v1680
  %v1682 = vsel %vm1632, %v912, 0.0
  %v1683 = vadd.f32 %v1681, %v1682
  %v1684 = vsel %vm1632, %v917, 0.0
  %v1685 = vadd.f32 %v1683, %v1684
  %v1686 = vsel %vm1632, %v920, 0.0
  %v1687 = vadd.f32 %v1685, %v1686
  %v1688 = vsel %vm1656, %v925, 0.0
  %v1689 = vadd.f32 %v1687, %v1688
  %v1690 = vrot.slane %v1689, 4
  %v1691 = vadd.f32 %v1689, %v1690
  %v1692 = vrot.slane %v1691, 2
  %v1693 = vadd.f32 %v1691, %v1692
  %v1694 = vrot.slane %v1693, 1
  %v1695 = vadd.f32 %v1693, %v1694
  %v1696 = vadd.f32 %v1664, %v1695
  %v1697 = vsel %vm1632, %v1228, 0.0
  %v1698 = vsel %vm1632, %v1231, 0.0
  %v1699 = vadd.f32 %v1697, %v1698
  %v1700 = vsel %vm1632, %v1236, 0.0
  %v1701 = vadd.f32 %v1699, %v1700
  %v1702 = vsel %vm1632, %v1239, 0.0
  %v1703 = vadd.f32 %v1701, %v1702
  %v1704 = vsel %vm1632, %v1244, 0.0
  %v1705 = vadd.f32 %v1703, %v1704
  %v1706 = vsel %vm1632, %v1247, 0.0
  %v1707 = vadd.f32 %v1705, %v1706
  %v1708 = vsel %vm1632, %v1252, 0.0
  %v1709 = vadd.f32 %v1707, %v1708
  %v1710 = vsel %vm1632, %v1255, 0.0
  %v1711 = vadd.f32 %v1709, %v1710
  %v1712 = vsel %vm1632, %v1260, 0.0
  %v1713 = vadd.f32 %v1711, %v1712
  %v1714 = vsel %vm1632, %v1263, 0.0
  %v1715 = vadd.f32 %v1713, %v1714
  %v1716 = vsel %vm1632, %v1268, 0.0
  %v1717 = vadd.f32 %v1715, %v1716
  %v1718 = vsel %vm1632, %v1271, 0.0
  %v1719 = vadd.f32 %v1717, %v1718
  %v1720 = vsel %vm1656, %v1276, 0.0
  %v1721 = vadd.f32 %v1719, %v1720
  %v1722 = vrot.slane %v1721, 4
  %v1723 = vadd.f32 %v1721, %v1722
  %v1724 = vrot.slane %v1723, 2
  %v1725 = vadd.f32 %v1723, %v1724
  %v1726 = vrot.slane %v1725, 1
  %v1727 = vadd.f32 %v1725, %v1726
  %v1728 = vadd.f32 %v1696, %v1727
  %v1729 = vsel %vm1632, %v1579, 0.0
  %v1730 = vsel %vm1632, %v1582, 0.0
  %v1731 = vadd.f32 %v1729, %v1730
  %v1732 = vsel %vm1632, %v1587, 0.0
  %v1733 = vadd.f32 %v1731, %v1732
  %v1734 = vsel %vm1632, %v1590, 0.0
  %v1735 = vadd.f32 %v1733, %v1734
  %v1736 = vsel %vm1632, %v1595, 0.0
  %v1737 = vadd.f32 %v1735, %v1736
  %v1738 = vsel %vm1632, %v1598, 0.0
  %v1739 = vadd.f32 %v1737, %v1738
  %v1740 = vsel %vm1632, %v1603, 0.0
  %v1741 = vadd.f32 %v1739, %v1740
  %v1742 = vsel %vm1632, %v1606, 0.0
  %v1743 = vadd.f32 %v1741, %v1742
  %v1744 = vsel %vm1632, %v1611, 0.0
  %v1745 = vadd.f32 %v1743, %v1744
  %v1746 = vsel %vm1632, %v1614, 0.0
  %v1747 = vadd.f32 %v1745, %v1746
  %v1748 = vsel %vm1632, %v1619, 0.0
  %v1749 = vadd.f32 %v1747, %v1748
  %v1750 = vsel %vm1632, %v1622, 0.0
  %v1751 = vadd.f32 %v1749, %v1750
  %v1752 = vsel %vm1656, %v1627, 0.0
  %v1753 = vadd.f32 %v1751, %v1752
  %v1754 = vrot.slane %v1753, 4
  %v1755 = vadd.f32 %v1753, %v1754
  %v1756 = vrot.slane %v1755, 2
  %v1757 = vadd.f32 %v1755, %v1756
  %v1758 = vrot.slane %v1757, 1
  %v1759 = vadd.f32 %v1757, %v1758
  %v1760 = vadd.f32 %v1728, %v1759
  %v1761 = vmul.f32 %v1760, 0.0025510204
  %v1762 = vsub.f32 %v526, %v1761
  %v1763 = vsub.f32 %v529, %v1761
  %v1764 = vsub.f32 %v534, %v1761
  %v1765 = vsub.f32 %v537, %v1761
  %v1766 = vsub.f32 %v542, %v1761
  %v1767 = vsub.f32 %v545, %v1761
  %v1768 = vsub.f32 %v550, %v1761
  %v1769 = vsub.f32 %v553, %v1761
  %v1770 = vsub.f32 %v558, %v1761
  %v1771 = vsub.f32 %v561, %v1761
  %v1772 = vsub.f32 %v566, %v1761
  %v1773 = vsub.f32 %v569, %v1761
  %v1774 = vsub.f32 %v574, %v1761
  %v1775 = vsub.f32 %v877, %v1761
  %v1776 = vsub.f32 %v880, %v1761
  %v1777 = vsub.f32 %v885, %v1761
  %v1778 = vsub.f32 %v888, %v1761
  %v1779 = vsub.f32 %v893, %v1761
  %v1780 = vsub.f32 %v896, %v1761
  %v1781 = vsub.f32 %v901, %v1761
  %v1782 = vsub.f32 %v904, %v1761
  %v1783 = vsub.f32 %v909, %v1761
  %v1784 = vsub.f32 %v912, %v1761
  %v1785 = vsub.f32 %v917, %v1761
  %v1786 = vsub.f32 %v920, %v1761
  %v1787 = vsub.f32 %v925, %v1761
  %v1788 = vsub.f32 %v1228, %v1761
  %v1789 = vsub.f32 %v1231, %v1761
  %v1790 = vsub.f32 %v1236, %v1761
  %v1791 = vsub.f32 %v1239, %v1761
  %v1792 = vsub.f32 %v1244, %v1761
  %v1793 = vsub.f32 %v1247, %v1761
  %v1794 = vsub.f32 %v1252, %v1761
  %v1795 = vsub.f32 %v1255, %v1761
  %v1796 = vsub.f32 %v1260, %v1761
  %v1797 = vsub.f32 %v1263, %v1761
  %v1798 = vsub.f32 %v1268, %v1761
  %v1799 = vsub.f32 %v1271, %v1761
  %v1800 = vsub.f32 %v1276, %v1761
  %v1801 = vsub.f32 %v1579, %v1761
  %v1802 = vsub.f32 %v1582, %v1761
  %v1803 = vsub.f32 %v1587, %v1761
  %v1804 = vsub.f32 %v1590, %v1761
  %v1805 = vsub.f32 %v1595, %v1761
  %v1806 = vsub.f32 %v1598, %v1761
  %v1807 = vsub.f32 %v1603, %v1761
  %v1808 = vsub.f32 %v1606, %v1761
  %v1809 = vsub.f32 %v1611, %v1761
  %v1810 = vsub.f32 %v1614, %v1761
  %v1811 = vsub.f32 %v1619, %v1761
  %v1812 = vsub.f32 %v1622, %v1761
  %v1813 = vsub.f32 %v1627, %v1761
  %v1814 = vmul.f32 %v1762, %v1762
  %v1815 = vmul.f32 %v1763, %v1763
  %v1816 = vmul.f32 %v1764, %v1764
  %v1817 = vmul.f32 %v1765, %v1765
  %v1818 = vmul.f32 %v1766, %v1766
  %v1819 = vmul.f32 %v1767, %v1767
  %v1820 = vmul.f32 %v1768, %v1768
  %v1821 = vmul.f32 %v1769, %v1769
  %v1822 = vmul.f32 %v1770, %v1770
  %v1823 = vmul.f32 %v1771, %v1771
  %v1824 = vmul.f32 %v1772, %v1772
  %v1825 = vmul.f32 %v1773, %v1773
  %v1826 = vmul.f32 %v1774, %v1774
  %v1827 = vsel %vm1632, %v1814, 0.0
  %v1828 = vsel %vm1632, %v1815, 0.0
  %v1829 = vadd.f32 %v1827, %v1828
  %v1830 = vsel %vm1632, %v1816, 0.0
  %v1831 = vadd.f32 %v1829, %v1830
  %v1832 = vsel %vm1632, %v1817, 0.0
  %v1833 = vadd.f32 %v1831, %v1832
  %v1834 = vsel %vm1632, %v1818, 0.0
  %v1835 = vadd.f32 %v1833, %v1834
  %v1836 = vsel %vm1632, %v1819, 0.0
  %v1837 = vadd.f32 %v1835, %v1836
  %v1838 = vsel %vm1632, %v1820, 0.0
  %v1839 = vadd.f32 %v1837, %v1838
  %v1840 = vsel %vm1632, %v1821, 0.0
  %v1841 = vadd.f32 %v1839, %v1840
  %v1842 = vsel %vm1632, %v1822, 0.0
  %v1843 = vadd.f32 %v1841, %v1842
  %v1844 = vsel %vm1632, %v1823, 0.0
  %v1845 = vadd.f32 %v1843, %v1844
  %v1846 = vsel %vm1632, %v1824, 0.0
  %v1847 = vadd.f32 %v1845, %v1846
  %v1848 = vsel %vm1632, %v1825, 0.0
  %v1849 = vadd.f32 %v1847, %v1848
  %v1850 = vsel %vm1656, %v1826, 0.0
  %v1851 = vadd.f32 %v1849, %v1850
  %v1852 = vrot.slane %v1851, 4
  %v1853 = vadd.f32 %v1851, %v1852
  %v1854 = vrot.slane %v1853, 2
  %v1855 = vadd.f32 %v1853, %v1854
  %v1856 = vrot.slane %v1855, 1
  %v1857 = vadd.f32 %v1855, %v1856
  %v1858 = vmul.f32 %v1775, %v1775
  %v1859 = vmul.f32 %v1776, %v1776
  %v1860 = vmul.f32 %v1777, %v1777
  %v1861 = vmul.f32 %v1778, %v1778
  %v1862 = vmul.f32 %v1779, %v1779
  %v1863 = vmul.f32 %v1780, %v1780
  %v1864 = vmul.f32 %v1781, %v1781
  %v1865 = vmul.f32 %v1782, %v1782
  %v1866 = vmul.f32 %v1783, %v1783
  %v1867 = vmul.f32 %v1784, %v1784
  %v1868 = vmul.f32 %v1785, %v1785
  %v1869 = vmul.f32 %v1786, %v1786
  %v1870 = vmul.f32 %v1787, %v1787
  %v1871 = vsel %vm1632, %v1858, 0.0
  %v1872 = vsel %vm1632, %v1859, 0.0
  %v1873 = vadd.f32 %v1871, %v1872
  %v1874 = vsel %vm1632, %v1860, 0.0
  %v1875 = vadd.f32 %v1873, %v1874
  %v1876 = vsel %vm1632, %v1861, 0.0
  %v1877 = vadd.f32 %v1875, %v1876
  %v1878 = vsel %vm1632, %v1862, 0.0
  %v1879 = vadd.f32 %v1877, %v1878
  %v1880 = vsel %vm1632, %v1863, 0.0
  %v1881 = vadd.f32 %v1879, %v1880
  %v1882 = vsel %vm1632, %v1864, 0.0
  %v1883 = vadd.f32 %v1881, %v1882
  %v1884 = vsel %vm1632, %v1865, 0.0
  %v1885 = vadd.f32 %v1883, %v1884
  %v1886 = vsel %vm1632, %v1866, 0.0
  %v1887 = vadd.f32 %v1885, %v1886
  %v1888 = vsel %vm1632, %v1867, 0.0
  %v1889 = vadd.f32 %v1887, %v1888
  %v1890 = vsel %vm1632, %v1868, 0.0
  %v1891 = vadd.f32 %v1889, %v1890
  %v1892 = vsel %vm1632, %v1869, 0.0
  %v1893 = vadd.f32 %v1891, %v1892
  %v1894 = vsel %vm1656, %v1870, 0.0
  %v1895 = vadd.f32 %v1893, %v1894
  %v1896 = vrot.slane %v1895, 4
  %v1897 = vadd.f32 %v1895, %v1896
  %v1898 = vrot.slane %v1897, 2
  %v1899 = vadd.f32 %v1897, %v1898
  %v1900 = vrot.slane %v1899, 1
  %v1901 = vadd.f32 %v1899, %v1900
  %v1902 = vadd.f32 %v1857, %v1901
  %v1903 = vmul.f32 %v1788, %v1788
  %v1904 = vmul.f32 %v1789, %v1789
  %v1905 = vmul.f32 %v1790, %v1790
  %v1906 = vmul.f32 %v1791, %v1791
  %v1907 = vmul.f32 %v1792, %v1792
  %v1908 = vmul.f32 %v1793, %v1793
  %v1909 = vmul.f32 %v1794, %v1794
  %v1910 = vmul.f32 %v1795, %v1795
  %v1911 = vmul.f32 %v1796, %v1796
  %v1912 = vmul.f32 %v1797, %v1797
  %v1913 = vmul.f32 %v1798, %v1798
  %v1914 = vmul.f32 %v1799, %v1799
  %v1915 = vmul.f32 %v1800, %v1800
  %v1916 = vsel %vm1632, %v1903, 0.0
  %v1917 = vsel %vm1632, %v1904, 0.0
  %v1918 = vadd.f32 %v1916, %v1917
  %v1919 = vsel %vm1632, %v1905, 0.0
  %v1920 = vadd.f32 %v1918, %v1919
  %v1921 = vsel %vm1632, %v1906, 0.0
  %v1922 = vadd.f32 %v1920, %v1921
  %v1923 = vsel %vm1632, %v1907, 0.0
  %v1924 = vadd.f32 %v1922, %v1923
  %v1925 = vsel %vm1632, %v1908, 0.0
  %v1926 = vadd.f32 %v1924, %v1925
  %v1927 = vsel %vm1632, %v1909, 0.0
  %v1928 = vadd.f32 %v1926, %v1927
  %v1929 = vsel %vm1632, %v1910, 0.0
  %v1930 = vadd.f32 %v1928, %v1929
  %v1931 = vsel %vm1632, %v1911, 0.0
  %v1932 = vadd.f32 %v1930, %v1931
  %v1933 = vsel %vm1632, %v1912, 0.0
  %v1934 = vadd.f32 %v1932, %v1933
  %v1935 = vsel %vm1632, %v1913, 0.0
  %v1936 = vadd.f32 %v1934, %v1935
  %v1937 = vsel %vm1632, %v1914, 0.0
  %v1938 = vadd.f32 %v1936, %v1937
  %v1939 = vsel %vm1656, %v1915, 0.0
  %v1940 = vadd.f32 %v1938, %v1939
  %v1941 = vrot.slane %v1940, 4
  %v1942 = vadd.f32 %v1940, %v1941
  %v1943 = vrot.slane %v1942, 2
  %v1944 = vadd.f32 %v1942, %v1943
  %v1945 = vrot.slane %v1944, 1
  %v1946 = vadd.f32 %v1944, %v1945
  %v1947 = vadd.f32 %v1902, %v1946
  %v1948 = vmul.f32 %v1801, %v1801
  %v1949 = vmul.f32 %v1802, %v1802
  %v1950 = vmul.f32 %v1803, %v1803
  %v1951 = vmul.f32 %v1804, %v1804
  %v1952 = vmul.f32 %v1805, %v1805
  %v1953 = vmul.f32 %v1806, %v1806
  %v1954 = vmul.f32 %v1807, %v1807
  %v1955 = vmul.f32 %v1808, %v1808
  %v1956 = vmul.f32 %v1809, %v1809
  %v1957 = vmul.f32 %v1810, %v1810
  %v1958 = vmul.f32 %v1811, %v1811
  %v1959 = vmul.f32 %v1812, %v1812
  %v1960 = vmul.f32 %v1813, %v1813
  %v1961 = vsel %vm1632, %v1948, 0.0
  %v1962 = vsel %vm1632, %v1949, 0.0
  %v1963 = vadd.f32 %v1961, %v1962
  %v1964 = vsel %vm1632, %v1950, 0.0
  %v1965 = vadd.f32 %v1963, %v1964
  %v1966 = vsel %vm1632, %v1951, 0.0
  %v1967 = vadd.f32 %v1965, %v1966
  %v1968 = vsel %vm1632, %v1952, 0.0
  %v1969 = vadd.f32 %v1967, %v1968
  %v1970 = vsel %vm1632, %v1953, 0.0
  %v1971 = vadd.f32 %v1969, %v1970
  %v1972 = vsel %vm1632, %v1954, 0.0
  %v1973 = vadd.f32 %v1971, %v1972
  %v1974 = vsel %vm1632, %v1955, 0.0
  %v1975 = vadd.f32 %v1973, %v1974
  %v1976 = vsel %vm1632, %v1956, 0.0
  %v1977 = vadd.f32 %v1975, %v1976
  %v1978 = vsel %vm1632, %v1957, 0.0
  %v1979 = vadd.f32 %v1977, %v1978
  %v1980 = vsel %vm1632, %v1958, 0.0
  %v1981 = vadd.f32 %v1979, %v1980
  %v1982 = vsel %vm1632, %v1959, 0.0
  %v1983 = vadd.f32 %v1981, %v1982
  %v1984 = vsel %vm1656, %v1960, 0.0
  %v1985 = vadd.f32 %v1983, %v1984
  %v1986 = vrot.slane %v1985, 4
  %v1987 = vadd.f32 %v1985, %v1986
  %v1988 = vrot.slane %v1987, 2
  %v1989 = vadd.f32 %v1987, %v1988
  %v1990 = vrot.slane %v1989, 1
  %v1991 = vadd.f32 %v1989, %v1990
  %v1992 = vadd.f32 %v1947, %v1991
  %v1993 = vmul.f32 %v1992, 0.0025510204
  %v1994 = vld [vmem:[%s3] sm:$0x1]
  %v1995 = vadd.f32 %v1993, 1e-05
  %v1996 = vrsqrt.pop %v1995
  %v1997 = vmul.f32 %v1994, %v1996
  %v1998 = vld [vmem:[%s4] sm:$0x1]
  %v1999 = vmul.f32 %v1761, %v1997
  %v2000 = vsub.f32 %v1998, %v1999
  %v2002 = vlaneseq
  %v2003 = vshrl.u32 %v2002, 7
  %v2004 = vsub.s32 0, %v2003
  %v2005 = vrot.slane %v1997, %v2004
  %v2007 = vmul.f32 %v526, %v2005
  %v2008 = vmul.f32 %v529, %v2005
  %v2009 = vmul.f32 %v534, %v2005
  %v2010 = vmul.f32 %v537, %v2005
  %v2011 = vmul.f32 %v542, %v2005
  %v2012 = vmul.f32 %v545, %v2005
  %v2013 = vmul.f32 %v550, %v2005
  %v2014 = vmul.f32 %v553, %v2005
  %v2015 = vmul.f32 %v558, %v2005
  %v2016 = vmul.f32 %v561, %v2005
  %v2017 = vmul.f32 %v566, %v2005
  %v2018 = vmul.f32 %v569, %v2005
  %v2019 = vmul.f32 %v574, %v2005
  %v2021 = vlaneseq
  %v2022 = vshrl.u32 %v2021, 7
  %v2023 = vsub.s32 0, %v2022
  %v2024 = vrot.slane %v2000, %v2023
  %v2026 = vadd.f32 %v2007, %v2024
  %v2027 = vadd.f32 %v2008, %v2024
  %v2028 = vadd.f32 %v2009, %v2024
  %v2029 = vadd.f32 %v2010, %v2024
  %v2030 = vadd.f32 %v2011, %v2024
  %v2031 = vadd.f32 %v2012, %v2024
  %v2032 = vadd.f32 %v2013, %v2024
  %v2033 = vadd.f32 %v2014, %v2024
  %v2034 = vadd.f32 %v2015, %v2024
  %v2035 = vadd.f32 %v2016, %v2024
  %v2036 = vadd.f32 %v2017, %v2024
  %v2037 = vadd.f32 %v2018, %v2024
  %v2038 = vadd.f32 %v2019, %v2024
  %v2039 = vmax.f32 %v2026, 0.0
  %v2040 = vmax.f32 %v2027, 0.0
  %v2041 = vmax.f32 %v2028, 0.0
  %v2042 = vmax.f32 %v2029, 0.0
  %v2043 = vmax.f32 %v2030, 0.0
  %v2044 = vmax.f32 %v2031, 0.0
  %v2045 = vmax.f32 %v2032, 0.0
  %v2046 = vmax.f32 %v2033, 0.0
  %v2047 = vmax.f32 %v2034, 0.0
  %v2048 = vmax.f32 %v2035, 0.0
  %v2049 = vmax.f32 %v2036, 0.0
  %v2050 = vmax.f32 %v2037, 0.0
  %v2051 = vmax.f32 %v2038, 0.0
  %v2052 = vmul.f32 %v877, %v2005
  %v2053 = vmul.f32 %v880, %v2005
  %v2054 = vmul.f32 %v885, %v2005
  %v2055 = vmul.f32 %v888, %v2005
  %v2056 = vmul.f32 %v893, %v2005
  %v2057 = vmul.f32 %v896, %v2005
  %v2058 = vmul.f32 %v901, %v2005
  %v2059 = vmul.f32 %v904, %v2005
  %v2060 = vmul.f32 %v909, %v2005
  %v2061 = vmul.f32 %v912, %v2005
  %v2062 = vmul.f32 %v917, %v2005
  %v2063 = vmul.f32 %v920, %v2005
  %v2064 = vmul.f32 %v925, %v2005
  %v2065 = vadd.f32 %v2052, %v2024
  %v2066 = vadd.f32 %v2053, %v2024
  %v2067 = vadd.f32 %v2054, %v2024
  %v2068 = vadd.f32 %v2055, %v2024
  %v2069 = vadd.f32 %v2056, %v2024
  %v2070 = vadd.f32 %v2057, %v2024
  %v2071 = vadd.f32 %v2058, %v2024
  %v2072 = vadd.f32 %v2059, %v2024
  %v2073 = vadd.f32 %v2060, %v2024
  %v2074 = vadd.f32 %v2061, %v2024
  %v2075 = vadd.f32 %v2062, %v2024
  %v2076 = vadd.f32 %v2063, %v2024
  %v2077 = vadd.f32 %v2064, %v2024
  %v2078 = vmax.f32 %v2065, 0.0
  %v2079 = vmax.f32 %v2066, 0.0
  %v2080 = vmax.f32 %v2067, 0.0
  %v2081 = vmax.f32 %v2068, 0.0
  %v2082 = vmax.f32 %v2069, 0.0
  %v2083 = vmax.f32 %v2070, 0.0
  %v2084 = vmax.f32 %v2071, 0.0
  %v2085 = vmax.f32 %v2072, 0.0
  %v2086 = vmax.f32 %v2073, 0.0
  %v2087 = vmax.f32 %v2074, 0.0
  %v2088 = vmax.f32 %v2075, 0.0
  %v2089 = vmax.f32 %v2076, 0.0
  %v2090 = vmax.f32 %v2077, 0.0
  %v2091 = vmul.f32 %v1228, %v2005
  %v2092 = vmul.f32 %v1231, %v2005
  %v2093 = vmul.f32 %v1236, %v2005
  %v2094 = vmul.f32 %v1239, %v2005
  %v2095 = vmul.f32 %v1244, %v2005
  %v2096 = vmul.f32 %v1247, %v2005
  %v2097 = vmul.f32 %v1252, %v2005
  %v2098 = vmul.f32 %v1255, %v2005
  %v2099 = vmul.f32 %v1260, %v2005
  %v2100 = vmul.f32 %v1263, %v2005
  %v2101 = vmul.f32 %v1268, %v2005
  %v2102 = vmul.f32 %v1271, %v2005
  %v2103 = vmul.f32 %v1276, %v2005
  %v2104 = vadd.f32 %v2091, %v2024
  %v2105 = vadd.f32 %v2092, %v2024
  %v2106 = vadd.f32 %v2093, %v2024
  %v2107 = vadd.f32 %v2094, %v2024
  %v2108 = vadd.f32 %v2095, %v2024
  %v2109 = vadd.f32 %v2096, %v2024
  %v2110 = vadd.f32 %v2097, %v2024
  %v2111 = vadd.f32 %v2098, %v2024
  %v2112 = vadd.f32 %v2099, %v2024
  %v2113 = vadd.f32 %v2100, %v2024
  %v2114 = vadd.f32 %v2101, %v2024
  %v2115 = vadd.f32 %v2102, %v2024
  %v2116 = vadd.f32 %v2103, %v2024
  %v2117 = vmax.f32 %v2104, 0.0
  %v2118 = vmax.f32 %v2105, 0.0
  %v2119 = vmax.f32 %v2106, 0.0
  %v2120 = vmax.f32 %v2107, 0.0
  %v2121 = vmax.f32 %v2108, 0.0
  %v2122 = vmax.f32 %v2109, 0.0
  %v2123 = vmax.f32 %v2110, 0.0
  %v2124 = vmax.f32 %v2111, 0.0
  %v2125 = vmax.f32 %v2112, 0.0
  %v2126 = vmax.f32 %v2113, 0.0
  %v2127 = vmax.f32 %v2114, 0.0
  %v2128 = vmax.f32 %v2115, 0.0
  %v2129 = vmax.f32 %v2116, 0.0
  %v2130 = vmul.f32 %v1579, %v2005
  %v2131 = vmul.f32 %v1582, %v2005
  %v2132 = vmul.f32 %v1587, %v2005
  %v2133 = vmul.f32 %v1590, %v2005
  %v2134 = vmul.f32 %v1595, %v2005
  %v2135 = vmul.f32 %v1598, %v2005
  %v2136 = vmul.f32 %v1603, %v2005
  %v2137 = vmul.f32 %v1606, %v2005
  %v2138 = vmul.f32 %v1611, %v2005
  %v2139 = vmul.f32 %v1614, %v2005
  %v2140 = vmul.f32 %v1619, %v2005
  %v2141 = vmul.f32 %v1622, %v2005
  %v2142 = vmul.f32 %v1627, %v2005
  %v2143 = vadd.f32 %v2130, %v2024
  %v2144 = vadd.f32 %v2131, %v2024
  %v2145 = vadd.f32 %v2132, %v2024
  %v2146 = vadd.f32 %v2133, %v2024
  %v2147 = vadd.f32 %v2134, %v2024
  %v2148 = vadd.f32 %v2135, %v2024
  %v2149 = vadd.f32 %v2136, %v2024
  %v2150 = vadd.f32 %v2137, %v2024
  %v2151 = vadd.f32 %v2138, %v2024
  %v2152 = vadd.f32 %v2139, %v2024
  %v2153 = vadd.f32 %v2140, %v2024
  %v2154 = vadd.f32 %v2141, %v2024
  %v2155 = vadd.f32 %v2142, %v2024
  %v2156 = vmax.f32 %v2143, 0.0
  %v2157 = vmax.f32 %v2144, 0.0
  %v2158 = vmax.f32 %v2145, 0.0
  %v2159 = vmax.f32 %v2146, 0.0
  %v2160 = vmax.f32 %v2147, 0.0
  %v2161 = vmax.f32 %v2148, 0.0
  %v2162 = vmax.f32 %v2149, 0.0
  %v2163 = vmax.f32 %v2150, 0.0
  %v2164 = vmax.f32 %v2151, 0.0
  %v2165 = vmax.f32 %v2152, 0.0
  %v2166 = vmax.f32 %v2153, 0.0
  %v2167 = vmax.f32 %v2154, 0.0
  %v2168 = vmax.f32 %v2155, 0.0
  %v2169 = vmax.f32 %v2039, %v2078
  %v2170 = vmax.f32 %v2040, %v2079
  %v2171 = vmax.f32 %v2041, %v2080
  %v2172 = vmax.f32 %v2042, %v2081
  %v2173 = vmax.f32 %v2043, %v2082
  %v2174 = vmax.f32 %v2044, %v2083
  %v2175 = vmax.f32 %v2045, %v2084
  %v2176 = vmax.f32 %v2046, %v2085
  %v2177 = vmax.f32 %v2047, %v2086
  %v2178 = vmax.f32 %v2048, %v2087
  %v2179 = vmax.f32 %v2049, %v2088
  %v2180 = vmax.f32 %v2050, %v2089
  %v2181 = vmax.f32 %v2051, %v2090
  %v2182 = vmax.f32 %v2117, %v2156
  %v2183 = vmax.f32 %v2118, %v2157
  %v2184 = vmax.f32 %v2119, %v2158
  %v2185 = vmax.f32 %v2120, %v2159
  %v2186 = vmax.f32 %v2121, %v2160
  %v2187 = vmax.f32 %v2122, %v2161
  %v2188 = vmax.f32 %v2123, %v2162
  %v2189 = vmax.f32 %v2124, %v2163
  %v2190 = vmax.f32 %v2125, %v2164
  %v2191 = vmax.f32 %v2126, %v2165
  %v2192 = vmax.f32 %v2127, %v2166
  %v2193 = vmax.f32 %v2128, %v2167
  %v2194 = vmax.f32 %v2129, %v2168
  %v2195 = vmax.f32 %v2169, %v2182
  %v2196 = vmax.f32 %v2170, %v2183
  %v2197 = vmax.f32 %v2171, %v2184
  %v2198 = vmax.f32 %v2172, %v2185
  %v2199 = vmax.f32 %v2173, %v2186
  %v2200 = vmax.f32 %v2174, %v2187
  %v2201 = vmax.f32 %v2175, %v2188
  %v2202 = vmax.f32 %v2176, %v2189
  %v2203 = vmax.f32 %v2177, %v2190
  %v2204 = vmax.f32 %v2178, %v2191
  %v2205 = vmax.f32 %v2179, %v2192
  %v2206 = vmax.f32 %v2180, %v2193
  %v2207 = vmax.f32 %v2181, %v2194
  %2208 = vst.msk [vmem:[%s5] sm:$0xff] %vm1632, %v2195
  %2209 = vst.msk [vmem:[%s5 + $0x8] sm:$0xff] %vm1632, %v2196
  %2210 = vst.msk [vmem:[%s5 + $0x10] sm:$0xff] %vm1632, %v2197
  %2211 = vst.msk [vmem:[%s5 + $0x18] sm:$0xff] %vm1632, %v2198
  %2212 = vst.msk [vmem:[%s5 + $0x20] sm:$0xff] %vm1632, %v2199
  %2213 = vst.msk [vmem:[%s5 + $0x28] sm:$0xff] %vm1632, %v2200
  %2214 = vst.msk [vmem:[%s5 + $0x30] sm:$0xff] %vm1632, %v2201
  %2215 = vst.msk [vmem:[%s5 + $0x38] sm:$0xff] %vm1632, %v2202
  %2216 = vst.msk [vmem:[%s5 + $0x40] sm:$0xff] %vm1632, %v2203
  %2217 = vst.msk [vmem:[%s5 + $0x48] sm:$0xff] %vm1632, %v2204
  %2218 = vst.msk [vmem:[%s5 + $0x50] sm:$0xff] %vm1632, %v2205
  %2219 = vst.msk [vmem:[%s5 + $0x58] sm:$0xff] %vm1632, %v2206
  %2220 = vst.msk [vmem:[%s5 + $0x60] sm:$0x3] %vm1656, %v2207
  // Predicated region
  $region22: #{net_forward.4} parent=0 // pred_check
    _
  $region23: #{net_forward.4} parent=0 // pred_check_branch
    %2222 = sbr.rel (0) target = $region25
  $region24: #{net_forward.4} parent=0 // pred_region
    _
  $region25: #{net_forward.4} parent=0 // pred_fallthru
    _
  // Predicated region
  $region26: #{net_forward.4} parent=0 // pred_check
    _
  $region27: #{net_forward.4} parent=0 // pred_check_branch
    %2224 = sbr.rel (0) target = $region29
  $region28: #{net_forward.4} parent=0 // pred_region
    _
  $region29: #{net_forward.4} parent=0 // pred_fallthru
    _

// kernel: net_forward.5
$region0: #{net_forward.5}
  #allocation0 [shape = 'u32[]', space=smem, size = 0x4, offset = 0x4, fixed_abs, tag = 'smem constant byte address 0x4 - core index']
  #allocation1 [shape = 'u32[144,128]{1,0:T(1,128)}', space=vmem, size = 0x12000, scoped, tag = 'internal scratch']
  %s0 = inlined_call_operand.vmem [shape: bf16[2,1568], index: 0, kind: input, shape index: {}]
  %s1 = inlined_call_operand.vmem [shape: bf16[1568,10], index: 1, kind: input, shape index: {}]
  %s2 = inlined_call_operand.vmem [shape: f32[1,10], index: 2, kind: input, shape index: {}]
  %s3 = inlined_call_operand.hbm [shape: f32[2,10], index: 3, kind: output, shape index: {}]
  %s4 = sld [smem:[#allocation0]]
  $region22: #{net_forward.5} parent=0
    _
  %s6 = ssub.s32 1, %s4
  %s7 = scalar_select 0, %s6, %s4
  $region1: #{net_forward.5} parent=0
    #allocation2 [shape = 'u8[1024]{0}', space=vmem, size = 0x400, scoped, tag = 'output window, operand 0, single buffered']
    #allocation3 [shape = 's32[1]{0}', space=sflag, size = 0x4, scoped, tag = 'scoped memory for net_forward.5']
    %8 = vsyncpa [#allocation3], 0
    // Predicated region
    $region2: #{net_forward.5} parent=1 // pred_check
      _
    $region3: #{net_forward.5} parent=1 // pred_check_branch
      %10 = sbr.rel (0) target = $region5
    $region4: #{net_forward.5} parent=1 // pred_region
      _
    $region5: #{net_forward.5} parent=1 // pred_fallthru
      _
    // Predicated region
    $region6: #{net_forward.5} parent=1 // pred_check
      _
    $region7: #{net_forward.5} parent=1 // pred_check_branch
      %12 = sbr.rel (0) target = $region9
    $region8: #{net_forward.5} parent=1 // pred_region
      _
    $region9: #{net_forward.5} parent=1 // pred_fallthru
      _
    // Predicated region
    $region10: #{net_forward.5} parent=1 // pred_check
      _
    $region11: #{net_forward.5} parent=1 // pred_check_branch
      %14 = sbr.rel (0) target = $region13
    $region12: #{net_forward.5} parent=1 // pred_region
      _
    $region13: #{net_forward.5} parent=1 // pred_fallthru
      _
    %v16 = vld [vmem:[%s0] sm:$0xff]
    %v17 = vld [vmem:[%s0 + $0x8] sm:$0x1f]
    %v18 = vld [vmem:[%s1] sm:$0xf]
    %v19 = vld [vmem:[%s1 + $0x4] sm:$0xf]
    %v20 = vld [vmem:[%s1 + $0x8] sm:$0xf]
    %v21 = vld [vmem:[%s1 + $0xc] sm:$0xf]
    %v22 = vld [vmem:[%s1 + $0x10] sm:$0xf]
    %v23 = vld [vmem:[%s1 + $0x14] sm:$0xf]
    %v24 = vld [vmem:[%s1 + $0x18] sm:$0xf]
    %v25 = vld [vmem:[%s1 + $0x1c] sm:$0xf]
    %v26 = vld [vmem:[%s1 + $0x20] sm:$0xf]
    %v27 = vld [vmem:[%s1 + $0x24] sm:$0xf]
    %v28 = vld [vmem:[%s1 + $0x28] sm:$0xf]
    %v29 = vld [vmem:[%s1 + $0x2c] sm:$0xf]
    %v30 = vld [vmem:[%s1 + $0x30] sm:$0xf]
    %v31 = vld [vmem:[%s1 + $0x34] sm:$0xf]
    %v32 = vld [vmem:[%s1 + $0x38] sm:$0xf]
    %v33 = vld [vmem:[%s1 + $0x3c] sm:$0xf]
    %v34 = vld [vmem:[%s1 + $0x40] sm:$0xf]
    %v35 = vld [vmem:[%s1 + $0x44] sm:$0xf]
    %v36 = vld [vmem:[%s1 + $0x48] sm:$0xf]
    %v37 = vld [vmem:[%s1 + $0x4c] sm:$0xf]
    %v38 = vld [vmem:[%s1 + $0x50] sm:$0xf]
    %v39 = vld [vmem:[%s1 + $0x54] sm:$0xf]
    %v40 = vld [vmem:[%s1 + $0x58] sm:$0xf]
    %v41 = vld [vmem:[%s1 + $0x5c] sm:$0xf]
    %v42 = vld [vmem:[%s1 + $0x60] sm:$0xf]
    %v43 = vld [vmem:[%s1 + $0x64] sm:$0xf]
    %v44 = vld [vmem:[%s1 + $0x68] sm:$0xf]
    %v45 = vld [vmem:[%s1 + $0x6c] sm:$0xf]
    %v46 = vld [vmem:[%s1 + $0x70] sm:$0xf]
    %v47 = vld [vmem:[%s1 + $0x74] sm:$0xf]
    %v48 = vld [vmem:[%s1 + $0x78] sm:$0xf]
    %v49 = vld [vmem:[%s1 + $0x7c] sm:$0xf]
    %v50 = vld [vmem:[%s1 + $0x80] sm:$0xf]
    %v51 = vld [vmem:[%s1 + $0x84] sm:$0xf]
    %v52 = vld [vmem:[%s1 + $0x88] sm:$0xf]
    %v53 = vld [vmem:[%s1 + $0x8c] sm:$0xf]
    %v54 = vld [vmem:[%s1 + $0x90] sm:$0xf]
    %v55 = vld [vmem:[%s1 + $0x94] sm:$0xf]
    %v56 = vld [vmem:[%s1 + $0x98] sm:$0xf]
    %v57 = vld [vmem:[%s1 + $0x9c] sm:$0xf]
    %v58 = vld [vmem:[%s1 + $0xa0] sm:$0xf]
    %v59 = vld [vmem:[%s1 + $0xa4] sm:$0xf]
    %v60 = vld [vmem:[%s1 + $0xa8] sm:$0xf]
    %v61 = vld [vmem:[%s1 + $0xac] sm:$0xf]
    %v62 = vld [vmem:[%s1 + $0xb0] sm:$0xf]
    %v63 = vld [vmem:[%s1 + $0xb4] sm:$0xf]
    %v64 = vld [vmem:[%s1 + $0xb8] sm:$0xf]
    %v65 = vld [vmem:[%s1 + $0xbc] sm:$0xf]
    %v66 = vld [vmem:[%s1 + $0xc0] sm:$0xf]
    %v67 = vld [vmem:[%s1 + $0xc4] sm:$0xf]
    %v68 = vld [vmem:[%s1 + $0xc8] sm:$0xf]
    %v69 = vld [vmem:[%s1 + $0xcc] sm:$0xf]
    %v70 = vld [vmem:[%s1 + $0xd0] sm:$0xf]
    %v71 = vld [vmem:[%s1 + $0xd4] sm:$0xf]
    %v72 = vld [vmem:[%s1 + $0xd8] sm:$0xf]
    %v73 = vld [vmem:[%s1 + $0xdc] sm:$0xf]
    %v74 = vld [vmem:[%s1 + $0xe0] sm:$0xf]
    %v75 = vld [vmem:[%s1 + $0xe4] sm:$0xf]
    %v76 = vld [vmem:[%s1 + $0xe8] sm:$0xf]
    %v77 = vld [vmem:[%s1 + $0xec] sm:$0xf]
    %v78 = vld [vmem:[%s1 + $0xf0] sm:$0xf]
    %v79 = vld [vmem:[%s1 + $0xf4] sm:$0xf]
    %v80 = vld [vmem:[%s1 + $0xf8] sm:$0xf]
    %v81 = vld [vmem:[%s1 + $0xfc] sm:$0xf]
    %v82 = vld [vmem:[%s1 + $0x100] sm:$0xf]
    %v83 = vld [vmem:[%s1 + $0x104] sm:$0xf]
    %v84 = vld [vmem:[%s1 + $0x108] sm:$0xf]
    %v85 = vld [vmem:[%s1 + $0x10c] sm:$0xf]
    %v86 = vld [vmem:[%s1 + $0x110] sm:$0xf]
    %v87 = vld [vmem:[%s1 + $0x114] sm:$0xf]
    %v88 = vld [vmem:[%s1 + $0x118] sm:$0xf]
    %v89 = vld [vmem:[%s1 + $0x11c] sm:$0xf]
    %v90 = vld [vmem:[%s1 + $0x120] sm:$0xf]
    %v91 = vld [vmem:[%s1 + $0x124] sm:$0xf]
    %v92 = vld [vmem:[%s1 + $0x128] sm:$0xf]
    %v93 = vld [vmem:[%s1 + $0x12c] sm:$0xf]
    %v94 = vld [vmem:[%s1 + $0x130] sm:$0xf]
    %v95 = vld [vmem:[%s1 + $0x134] sm:$0xf]
    %v96 = vld [vmem:[%s1 + $0x138] sm:$0xf]
    %v97 = vld [vmem:[%s1 + $0x13c] sm:$0xf]
    %v98 = vld [vmem:[%s1 + $0x140] sm:$0xf]
    %v99 = vld [vmem:[%s1 + $0x144] sm:$0xf]
    %v100 = vld [vmem:[%s1 + $0x148] sm:$0xf]
    %v101 = vld [vmem:[%s1 + $0x14c] sm:$0xf]
    %v102 = vld [vmem:[%s1 + $0x150] sm:$0xf]
    %v103 = vld [vmem:[%s1 + $0x154] sm:$0xf]
    %v104 = vld [vmem:[%s1 + $0x158] sm:$0xf]
    %v105 = vld [vmem:[%s1 + $0x15c] sm:$0xf]
    %v106 = vld [vmem:[%s1 + $0x160] sm:$0xf]
    %v107 = vld [vmem:[%s1 + $0x164] sm:$0xf]
    %v108 = vld [vmem:[%s1 + $0x168] sm:$0xf]
    %v109 = vld [vmem:[%s1 + $0x16c] sm:$0xf]
    %v110 = vld [vmem:[%s1 + $0x170] sm:$0xf]
    %v111 = vld [vmem:[%s1 + $0x174] sm:$0xf]
    %v112 = vld [vmem:[%s1 + $0x178] sm:$0xf]
    %v113 = vld [vmem:[%s1 + $0x17c] sm:$0xf]
    %v114 = vld [vmem:[%s1 + $0x180] sm:$0xf]
    %v115 = vld [vmem:[%s1 + $0x184] sm:$0xf]
    %v116 = vld [vmem:[%s1 + $0x188] sm:$0xf]
    %v117 = vld [vmem:[%s1 + $0x18c] sm:$0xf]
    %v118 = vld [vmem:[%s1 + $0x190] sm:$0xf]
    %v119 = vld [vmem:[%s1 + $0x194] sm:$0xf]
    %v120 = vld [vmem:[%s1 + $0x198] sm:$0xf]
    %v121 = vld [vmem:[%s1 + $0x19c] sm:$0xf]
    %v122 = vld [vmem:[%s1 + $0x1a0] sm:$0xf]
    %v123 = vld [vmem:[%s1 + $0x1a4] sm:$0xf]
    %v124 = vld [vmem:[%s1 + $0x1a8] sm:$0xf]
    %v125 = vld [vmem:[%s1 + $0x1ac] sm:$0xf]
    %v126 = vld [vmem:[%s1 + $0x1b0] sm:$0xf]
    %v127 = vld [vmem:[%s1 + $0x1b4] sm:$0xf]
    %v128 = vld [vmem:[%s1 + $0x1b8] sm:$0xf]
    %v129 = vld [vmem:[%s1 + $0x1bc] sm:$0xf]
    %v130 = vld [vmem:[%s1 + $0x1c0] sm:$0xf]
    %v131 = vld [vmem:[%s1 + $0x1c4] sm:$0xf]
    %v132 = vld [vmem:[%s1 + $0x1c8] sm:$0xf]
    %v133 = vld [vmem:[%s1 + $0x1cc] sm:$0xf]
    %v134 = vld [vmem:[%s1 + $0x1d0] sm:$0xf]
    %v135 = vld [vmem:[%s1 + $0x1d4] sm:$0xf]
    %v136 = vld [vmem:[%s1 + $0x1d8] sm:$0xf]
    %v137 = vld [vmem:[%s1 + $0x1dc] sm:$0xf]
    %v138 = vld [vmem:[%s1 + $0x1e0] sm:$0xf]
    %v139 = vld [vmem:[%s1 + $0x1e4] sm:$0xf]
    %v140 = vld [vmem:[%s1 + $0x1e8] sm:$0xf]
    %v141 = vld [vmem:[%s1 + $0x1ec] sm:$0xf]
    %v142 = vld [vmem:[%s1 + $0x1f0] sm:$0xf]
    %v143 = vld [vmem:[%s1 + $0x1f4] sm:$0xf]
    %v144 = vld [vmem:[%s1 + $0x1f8] sm:$0xf]
    %v145 = vld [vmem:[%s1 + $0x1fc] sm:$0xf]
    %v146 = vld [vmem:[%s1 + $0x200] sm:$0xf]
    %v147 = vld [vmem:[%s1 + $0x204] sm:$0xf]
    %v148 = vld [vmem:[%s1 + $0x208] sm:$0xf]
    %v149 = vld [vmem:[%s1 + $0x20c] sm:$0xf]
    %v150 = vld [vmem:[%s1 + $0x210] sm:$0xf]
    %v151 = vld [vmem:[%s1 + $0x214] sm:$0xf]
    %v152 = vld [vmem:[%s1 + $0x218] sm:$0xf]
    %v153 = vld [vmem:[%s1 + $0x21c] sm:$0xf]
    %v154 = vld [vmem:[%s1 + $0x220] sm:$0xf]
    %v155 = vld [vmem:[%s1 + $0x224] sm:$0xf]
    %v156 = vld [vmem:[%s1 + $0x228] sm:$0xf]
    %v157 = vld [vmem:[%s1 + $0x22c] sm:$0xf]
    %v158 = vld [vmem:[%s1 + $0x230] sm:$0xf]
    %v159 = vld [vmem:[%s1 + $0x234] sm:$0xf]
    %v160 = vld [vmem:[%s1 + $0x238] sm:$0xf]
    %v161 = vld [vmem:[%s1 + $0x23c] sm:$0xf]
    %v162 = vld [vmem:[%s1 + $0x240] sm:$0xf]
    %v163 = vld [vmem:[%s1 + $0x244] sm:$0xf]
    %v164 = vld [vmem:[%s1 + $0x248] sm:$0xf]
    %v165 = vld [vmem:[%s1 + $0x24c] sm:$0xf]
    %v166 = vld [vmem:[%s1 + $0x250] sm:$0xf]
    %v167 = vld [vmem:[%s1 + $0x254] sm:$0xf]
    %v168 = vld [vmem:[%s1 + $0x258] sm:$0xf]
    %v169 = vld [vmem:[%s1 + $0x25c] sm:$0xf]
    %v170 = vld [vmem:[%s1 + $0x260] sm:$0xf]
    %v171 = vld [vmem:[%s1 + $0x264] sm:$0xf]
    %v172 = vld [vmem:[%s1 + $0x268] sm:$0xf]
    %v173 = vld [vmem:[%s1 + $0x26c] sm:$0xf]
    %v174 = vld [vmem:[%s1 + $0x270] sm:$0xf]
    %v175 = vld [vmem:[%s1 + $0x274] sm:$0xf]
    %v176 = vld [vmem:[%s1 + $0x278] sm:$0xf]
    %v177 = vld [vmem:[%s1 + $0x27c] sm:$0xf]
    %v178 = vld [vmem:[%s1 + $0x280] sm:$0xf]
    %v179 = vld [vmem:[%s1 + $0x284] sm:$0xf]
    %v180 = vld [vmem:[%s1 + $0x288] sm:$0xf]
    %v181 = vld [vmem:[%s1 + $0x28c] sm:$0xf]
    %v182 = vld [vmem:[%s1 + $0x290] sm:$0xf]
    %v183 = vld [vmem:[%s1 + $0x294] sm:$0xf]
    %v184 = vld [vmem:[%s1 + $0x298] sm:$0xf]
    %v185 = vld [vmem:[%s1 + $0x29c] sm:$0xf]
    %v186 = vld [vmem:[%s1 + $0x2a0] sm:$0xf]
    %v187 = vld [vmem:[%s1 + $0x2a4] sm:$0xf]
    %v188 = vld [vmem:[%s1 + $0x2a8] sm:$0xf]
    %v189 = vld [vmem:[%s1 + $0x2ac] sm:$0xf]
    %v190 = vld [vmem:[%s1 + $0x2b0] sm:$0xf]
    %v191 = vld [vmem:[%s1 + $0x2b4] sm:$0xf]
    %v192 = vld [vmem:[%s1 + $0x2b8] sm:$0xf]
    %v193 = vld [vmem:[%s1 + $0x2bc] sm:$0xf]
    %v194 = vld [vmem:[%s1 + $0x2c0] sm:$0xf]
    %v195 = vld [vmem:[%s1 + $0x2c4] sm:$0xf]
    %v196 = vld [vmem:[%s1 + $0x2c8] sm:$0xf]
    %v197 = vld [vmem:[%s1 + $0x2cc] sm:$0xf]
    %v198 = vld [vmem:[%s1 + $0x2d0] sm:$0xf]
    %v199 = vld [vmem:[%s1 + $0x2d4] sm:$0xf]
    %v200 = vld [vmem:[%s1 + $0x2d8] sm:$0xf]
    %v201 = vld [vmem:[%s1 + $0x2dc] sm:$0xf]
    %v202 = vld [vmem:[%s1 + $0x2e0] sm:$0xf]
    %v203 = vld [vmem:[%s1 + $0x2e4] sm:$0xf]
    %v204 = vld [vmem:[%s1 + $0x2e8] sm:$0xf]
    %v205 = vld [vmem:[%s1 + $0x2ec] sm:$0xf]
    %v206 = vld [vmem:[%s1 + $0x2f0] sm:$0xf]
    %v207 = vld [vmem:[%s1 + $0x2f4] sm:$0xf]
    %v208 = vld [vmem:[%s1 + $0x2f8] sm:$0xf]
    %v209 = vld [vmem:[%s1 + $0x2fc] sm:$0xf]
    %v210 = vld [vmem:[%s1 + $0x300] sm:$0xf]
    %v211 = vld [vmem:[%s1 + $0x304] sm:$0xf]
    %v212 = vld [vmem:[%s1 + $0x308] sm:$0xf]
    %v213 = vld [vmem:[%s1 + $0x30c] sm:$0xf]
    %v214 = vld [vmem:[%s2] sm:$0x1]
    %v216 = vlaneseq
    %v217 = vshrl.u32 %v216, 7
    %v218 = vsub.s32 0, %v217
    %v219 = vrot.slane %v214, %v218
    %v223 = vcombine.high %v16, %v16
    %v225 = vunpack.c.l.s4 1966171168
    %v226 = vunpack.c.0.s8 %v225
    %v227 = vlaneseq
    %v228 = vshrl.u32 %v227, 7
    %v229 = vsub.s32 %v226, %v228
    %v230 = vrot.slane %v16, %v229
    %v232 = vunpack.c.l.s4 1966171168
    %v233 = vunpack.c.0.s8 %v232
    %v234 = vlaneseq
    %v235 = vshrl.u32 %v234, 7
    %v236 = vsub.s32 %v233, %v235
    %v237 = vrot.slane %v223, %v236
    %v238 = vcombine.high %v230, %v230
    %v239 = vcombine.high %v237, %v237
    %v241 = vunpack.c.l.s4 1966171168
    %v242 = vunpack.c.0.s8 %v241
    %v243 = vlaneseq
    %v244 = vshrl.u32 %v243, 7
    %v245 = vsub.s32 %v242, %v244
    %v246 = vrot.slane %v230, %v245
    %v248 = vunpack.c.l.s4 1966171168
    %v249 = vunpack.c.0.s8 %v248
    %v250 = vlaneseq
    %v251 = vshrl.u32 %v250, 7
    %v252 = vsub.s32 %v249, %v251
    %v253 = vrot.slane %v237, %v252
    %v255 = vunpack.c.l.s4 1966171168
    %v256 = vunpack.c.0.s8 %v255
    %v257 = vlaneseq
    %v258 = vshrl.u32 %v257, 7
    %v259 = vsub.s32 %v256, %v258
    %v260 = vrot.slane %v238, %v259
    %v262 = vunpack.c.l.s4 1966171168
    %v263 = vunpack.c.0.s8 %v262
    %v264 = vlaneseq
    %v265 = vshrl.u32 %v264, 7
    %v266 = vsub.s32 %v263, %v265
    %v267 = vrot.slane %v239, %v266
    %v268 = vcombine.high %v246, %v246
    %v269 = vcombine.high %v253, %v253
    %v270 = vcombine.high %v260, %v260
    %v271 = vcombine.high %v267, %v267
    %v272 = vcombine.high %v17, %v17
    %v274 = vunpack.c.l.s4 1966171168
    %v275 = vunpack.c.0.s8 %v274
    %v276 = vlaneseq
    %v277 = vshrl.u32 %v276, 7
    %v278 = vsub.s32 %v275, %v277
    %v279 = vrot.slane %v17, %v278
    %v281 = vunpack.c.l.s4 1966171168
    %v282 = vunpack.c.0.s8 %v281
    %v283 = vlaneseq
    %v284 = vshrl.u32 %v283, 7
    %v285 = vsub.s32 %v282, %v284
    %v286 = vrot.slane %v272, %v285
    %v287 = vcombine.high %v279, %v279
    %v289 = vunpack.c.l.s4 1966171168
    %v290 = vunpack.c.0.s8 %v289
    %v291 = vlaneseq
    %v292 = vshrl.u32 %v291, 7
    %v293 = vsub.s32 %v290, %v292
    %v294 = vrot.slane %v279, %v293
    %v296 = vunpack.c.l.s4 1966171168
    %v297 = vunpack.c.0.s8 %v296
    %v298 = vlaneseq
    %v299 = vshrl.u32 %v298, 7
    %v300 = vsub.s32 %v297, %v299
    %v301 = vrot.slane %v286, %v300
    %v303 = vunpack.c.l.s4 1966171168
    %v304 = vunpack.c.0.s8 %v303
    %v305 = vlaneseq
    %v306 = vshrl.u32 %v305, 7
    %v307 = vsub.s32 %v304, %v306
    %v308 = vrot.slane %v287, %v307
    %v309 = vcombine.high %v294, %v294
    %v310 = vcombine.high %v308, %v308
    %v519 = vunpack.c.l.b16 %v18
    %v520 = vunpack.c.l.b16 %v19
    %v521 = vunpack.c.l.b16 %v20
    %v522 = vunpack.c.l.b16 %v21
    %v523 = vunpack.c.l.b16 %v22
    %v524 = vunpack.c.l.b16 %v23
    %v525 = vunpack.c.l.b16 %v24
    %v526 = vunpack.c.l.b16 %v25
    %v527 = vunpack.c.l.b16 %v26
    %v528 = vunpack.c.l.b16 %v27
    %v529 = vunpack.c.l.b16 %v28
    %v530 = vunpack.c.l.b16 %v29
    %v531 = vunpack.c.l.b16 %v30
    %v532 = vunpack.c.l.b16 %v31
    %v533 = vunpack.c.l.b16 %v32
    %v534 = vunpack.c.l.b16 %v33
    %v535 = vunpack.c.l.b16 %v34
    %v536 = vunpack.c.l.b16 %v35
    %v537 = vunpack.c.l.b16 %v36
    %v538 = vunpack.c.l.b16 %v37
    %v539 = vunpack.c.l.b16 %v38
    %v540 = vunpack.c.l.b16 %v39
    %v541 = vunpack.c.l.b16 %v40
    %v542 = vunpack.c.l.b16 %v41
    %v543 = vunpack.c.l.b16 %v42
    %v544 = vunpack.c.l.b16 %v43
    %v545 = vunpack.c.l.b16 %v44
    %v546 = vunpack.c.l.b16 %v45
    %v547 = vunpack.c.l.b16 %v46
    %v548 = vunpack.c.l.b16 %v47
    %v549 = vunpack.c.l.b16 %v48
    %v550 = vunpack.c.l.b16 %v49
    %v551 = vunpack.c.l.b16 %v50
    %v552 = vunpack.c.l.b16 %v51
    %v553 = vunpack.c.l.b16 %v52
    %v554 = vunpack.c.l.b16 %v53
    %v555 = vunpack.c.l.b16 %v54
    %v556 = vunpack.c.l.b16 %v55
    %v557 = vunpack.c.l.b16 %v56
    %v558 = vunpack.c.l.b16 %v57
    %v559 = vunpack.c.l.b16 %v58
    %v560 = vunpack.c.l.b16 %v59
    %v561 = vunpack.c.l.b16 %v60
    %v562 = vunpack.c.l.b16 %v61
    %v563 = vunpack.c.l.b16 %v62
    %v564 = vunpack.c.l.b16 %v63
    %v565 = vunpack.c.l.b16 %v64
    %v566 = vunpack.c.l.b16 %v65
    %v567 = vunpack.c.l.b16 %v66
    %v568 = vunpack.c.l.b16 %v67
    %v569 = vunpack.c.l.b16 %v68
    %v570 = vunpack.c.l.b16 %v69
    %v571 = vunpack.c.l.b16 %v70
    %v572 = vunpack.c.l.b16 %v71
    %v573 = vunpack.c.l.b16 %v72
    %v574 = vunpack.c.l.b16 %v73
    %v575 = vunpack.c.l.b16 %v74
    %v576 = vunpack.c.l.b16 %v75
    %v577 = vunpack.c.l.b16 %v76
    %v578 = vunpack.c.l.b16 %v77
    %v579 = vunpack.c.l.b16 %v78
    %v580 = vunpack.c.l.b16 %v79
    %v581 = vunpack.c.l.b16 %v80
    %v582 = vunpack.c.l.b16 %v81
    %v583 = vunpack.c.l.b16 %v82
    %v584 = vunpack.c.l.b16 %v83
    %v585 = vunpack.c.l.b16 %v84
    %v586 = vunpack.c.l.b16 %v85
    %v587 = vunpack.c.l.b16 %v86
    %v588 = vunpack.c.l.b16 %v87
    %v589 = vunpack.c.l.b16 %v88
    %v590 = vunpack.c.l.b16 %v89
    %v591 = vunpack.c.l.b16 %v90
    %v592 = vunpack.c.l.b16 %v91
    %v593 = vunpack.c.l.b16 %v92
    %v594 = vunpack.c.l.b16 %v93
    %v595 = vunpack.c.l.b16 %v94
    %v596 = vunpack.c.l.b16 %v95
    %v597 = vunpack.c.l.b16 %v96
    %v598 = vunpack.c.l.b16 %v97
    %v599 = vunpack.c.l.b16 %v98
    %v600 = vunpack.c.l.b16 %v99
    %v601 = vunpack.c.l.b16 %v100
    %v602 = vunpack.c.l.b16 %v101
    %v603 = vunpack.c.l.b16 %v102
    %v604 = vunpack.c.l.b16 %v103
    %v605 = vunpack.c.l.b16 %v104
    %v606 = vunpack.c.l.b16 %v105
    %v607 = vunpack.c.l.b16 %v106
    %v608 = vunpack.c.l.b16 %v107
    %v609 = vunpack.c.l.b16 %v108
    %v610 = vunpack.c.l.b16 %v109
    %v611 = vunpack.c.l.b16 %v110
    %v612 = vunpack.c.l.b16 %v111
    %v613 = vunpack.c.l.b16 %v112
    %v614 = vunpack.c.l.b16 %v113
    %v615 = vunpack.c.l.b16 %v114
    %v616 = vunpack.c.l.b16 %v115
    %v617 = vunpack.c.l.b16 %v116
    %v618 = vunpack.c.l.b16 %v117
    %v619 = vunpack.c.l.b16 %v118
    %v620 = vunpack.c.l.b16 %v119
    %v621 = vunpack.c.l.b16 %v120
    %v622 = vunpack.c.l.b16 %v121
    %v623 = vunpack.c.l.b16 %v122
    %v624 = vunpack.c.l.b16 %v123
    %v625 = vunpack.c.l.b16 %v124
    %v626 = vunpack.c.l.b16 %v125
    %v627 = vunpack.c.l.b16 %v126
    %v628 = vunpack.c.l.b16 %v127
    %v629 = vunpack.c.l.b16 %v128
    %v630 = vunpack.c.l.b16 %v129
    %v631 = vunpack.c.l.b16 %v130
    %v632 = vunpack.c.l.b16 %v131
    %v633 = vunpack.c.l.b16 %v132
    %v634 = vunpack.c.l.b16 %v133
    %v635 = vunpack.c.l.b16 %v134
    %v636 = vunpack.c.l.b16 %v135
    %v637 = vunpack.c.l.b16 %v136
    %v638 = vunpack.c.l.b16 %v137
    %v639 = vunpack.c.l.b16 %v138
    %v640 = vunpack.c.l.b16 %v139
    %v641 = vunpack.c.l.b16 %v140
    %v642 = vunpack.c.l.b16 %v141
    %v643 = vunpack.c.l.b16 %v142
    %v644 = vunpack.c.l.b16 %v143
    %v645 = vunpack.c.l.b16 %v144
    %v646 = vunpack.c.l.b16 %v145
    %v647 = vunpack.c.l.b16 %v146
    %v648 = vunpack.c.l.b16 %v147
    %v649 = vunpack.c.l.b16 %v148
    %v650 = vunpack.c.l.b16 %v149
    %v651 = vunpack.c.l.b16 %v150
    %v652 = vunpack.c.l.b16 %v151
    %v653 = vunpack.c.l.b16 %v152
    %v654 = vunpack.c.l.b16 %v153
    %v655 = vunpack.c.l.b16 %v154
    %v656 = vunpack.c.l.b16 %v155
    %v657 = vunpack.c.l.b16 %v156
    %v658 = vunpack.c.l.b16 %v157
    %v659 = vunpack.c.l.b16 %v158
    %v660 = vunpack.c.l.b16 %v159
    %v661 = vunpack.c.l.b16 %v160
    %v662 = vunpack.c.l.b16 %v161
    %v663 = vunpack.c.l.b16 %v162
    %v664 = vunpack.c.l.b16 %v163
    %v665 = vunpack.c.l.b16 %v164
    %v666 = vunpack.c.l.b16 %v165
    %v667 = vunpack.c.l.b16 %v166
    %v668 = vunpack.c.l.b16 %v167
    %v669 = vunpack.c.l.b16 %v168
    %v670 = vunpack.c.l.b16 %v169
    %v671 = vunpack.c.l.b16 %v170
    %v672 = vunpack.c.l.b16 %v171
    %v673 = vunpack.c.l.b16 %v172
    %v674 = vunpack.c.l.b16 %v173
    %v675 = vunpack.c.l.b16 %v174
    %v676 = vunpack.c.l.b16 %v175
    %v677 = vunpack.c.l.b16 %v176
    %v678 = vunpack.c.l.b16 %v177
    %v679 = vunpack.c.l.b16 %v178
    %v680 = vunpack.c.l.b16 %v179
    %v681 = vunpack.c.l.b16 %v180
    %v682 = vunpack.c.l.b16 %v181
    %v683 = vunpack.c.l.b16 %v182
    %v684 = vunpack.c.l.b16 %v183
    %v685 = vunpack.c.l.b16 %v184
    %v686 = vunpack.c.l.b16 %v185
    %v687 = vunpack.c.l.b16 %v186
    %v688 = vunpack.c.l.b16 %v187
    %v689 = vunpack.c.l.b16 %v188
    %v690 = vunpack.c.l.b16 %v189
    %v691 = vunpack.c.l.b16 %v190
    %v692 = vunpack.c.l.b16 %v191
    %v693 = vunpack.c.l.b16 %v192
    %v694 = vunpack.c.l.b16 %v193
    %v695 = vunpack.c.l.b16 %v194
    %v696 = vunpack.c.l.b16 %v195
    %v697 = vunpack.c.l.b16 %v196
    %v698 = vunpack.c.l.b16 %v197
    %v699 = vunpack.c.l.b16 %v198
    %v700 = vunpack.c.l.b16 %v199
    %v701 = vunpack.c.l.b16 %v200
    %v702 = vunpack.c.l.b16 %v201
    %v703 = vunpack.c.l.b16 %v202
    %v704 = vunpack.c.l.b16 %v203
    %v705 = vunpack.c.l.b16 %v204
    %v706 = vunpack.c.l.b16 %v205
    %v707 = vunpack.c.l.b16 %v206
    %v708 = vunpack.c.l.b16 %v207
    %v709 = vunpack.c.l.b16 %v208
    %v710 = vunpack.c.l.b16 %v209
    %v711 = vunpack.c.l.b16 %v210
    %v712 = vunpack.c.l.b16 %v211
    %v713 = vunpack.c.l.b16 %v212
    %v714 = vunpack.c.l.b16 %v213
    %v715 = vpack.c.b16 %v520, %v519
    %v716 = vpack.c.b16 %v522, %v521
    %v717 = vpack.c.b16 %v524, %v523
    %v718 = vpack.c.b16 %v526, %v525
    %v719 = vpack.c.b16 %v528, %v527
    %v720 = vpack.c.b16 %v530, %v529
    %v721 = vpack.c.b16 %v532, %v531
    %v722 = vpack.c.b16 %v534, %v533
    %v723 = vpack.c.b16 %v536, %v535
    %v724 = vpack.c.b16 %v538, %v537
    %v725 = vpack.c.b16 %v540, %v539
    %v726 = vpack.c.b16 %v542, %v541
    %v727 = vpack.c.b16 %v544, %v543
    %v728 = vpack.c.b16 %v546, %v545
    %v729 = vpack.c.b16 %v548, %v547
    %v730 = vpack.c.b16 %v550, %v549
    %v731 = vpack.c.b16 %v552, %v551
    %v732 = vpack.c.b16 %v554, %v553
    %v733 = vpack.c.b16 %v556, %v555
    %v734 = vpack.c.b16 %v558, %v557
    %v735 = vpack.c.b16 %v560, %v559
    %v736 = vpack.c.b16 %v562, %v561
    %v737 = vpack.c.b16 %v564, %v563
    %v738 = vpack.c.b16 %v566, %v565
    %v739 = vpack.c.b16 %v568, %v567
    %v740 = vpack.c.b16 %v570, %v569
    %v741 = vpack.c.b16 %v572, %v571
    %v742 = vpack.c.b16 %v574, %v573
    %v743 = vpack.c.b16 %v576, %v575
    %v744 = vpack.c.b16 %v578, %v577
    %v745 = vpack.c.b16 %v580, %v579
    %v746 = vpack.c.b16 %v582, %v581
    %v747 = vpack.c.b16 %v584, %v583
    %v748 = vpack.c.b16 %v586, %v585
    %v749 = vpack.c.b16 %v588, %v587
    %v750 = vpack.c.b16 %v590, %v589
    %v751 = vpack.c.b16 %v592, %v591
    %v752 = vpack.c.b16 %v594, %v593
    %v753 = vpack.c.b16 %v596, %v595
    %v754 = vpack.c.b16 %v598, %v597
    %v755 = vpack.c.b16 %v600, %v599
    %v756 = vpack.c.b16 %v602, %v601
    %v757 = vpack.c.b16 %v604, %v603
    %v758 = vpack.c.b16 %v606, %v605
    %v759 = vpack.c.b16 %v608, %v607
    %v760 = vpack.c.b16 %v610, %v609
    %v761 = vpack.c.b16 %v612, %v611
    %v762 = vpack.c.b16 %v614, %v613
    %v763 = vpack.c.b16 %v616, %v615
    %v764 = vpack.c.b16 %v618, %v617
    %v765 = vpack.c.b16 %v620, %v619
    %v766 = vpack.c.b16 %v622, %v621
    %v767 = vpack.c.b16 %v624, %v623
    %v768 = vpack.c.b16 %v626, %v625
    %v769 = vpack.c.b16 %v628, %v627
    %v770 = vpack.c.b16 %v630, %v629
    %v771 = vpack.c.b16 %v632, %v631
    %v772 = vpack.c.b16 %v634, %v633
    %v773 = vpack.c.b16 %v636, %v635
    %v774 = vpack.c.b16 %v638, %v637
    %v775 = vpack.c.b16 %v640, %v639
    %v776 = vpack.c.b16 %v642, %v641
    %v777 = vpack.c.b16 %v644, %v643
    %v778 = vpack.c.b16 %v646, %v645
    %v779 = vpack.c.b16 %v648, %v647
    %v780 = vpack.c.b16 %v650, %v649
    %v781 = vpack.c.b16 %v652, %v651
    %v782 = vpack.c.b16 %v654, %v653
    %v783 = vpack.c.b16 %v656, %v655
    %v784 = vpack.c.b16 %v658, %v657
    %v785 = vpack.c.b16 %v660, %v659
    %v786 = vpack.c.b16 %v662, %v661
    %v787 = vpack.c.b16 %v664, %v663
    %v788 = vpack.c.b16 %v666, %v665
    %v789 = vpack.c.b16 %v668, %v667
    %v790 = vpack.c.b16 %v670, %v669
    %v791 = vpack.c.b16 %v672, %v671
    %v792 = vpack.c.b16 %v674, %v673
    %v793 = vpack.c.b16 %v676, %v675
    %v794 = vpack.c.b16 %v678, %v677
    %v795 = vpack.c.b16 %v680, %v679
    %v796 = vpack.c.b16 %v682, %v681
    %v797 = vpack.c.b16 %v684, %v683
    %v798 = vpack.c.b16 %v686, %v685
    %v799 = vpack.c.b16 %v688, %v687
    %v800 = vpack.c.b16 %v690, %v689
    %v801 = vpack.c.b16 %v692, %v691
    %v802 = vpack.c.b16 %v694, %v693
    %v803 = vpack.c.b16 %v696, %v695
    %v804 = vpack.c.b16 %v698, %v697
    %v805 = vpack.c.b16 %v700, %v699
    %v806 = vpack.c.b16 %v702, %v701
    %v807 = vpack.c.b16 %v704, %v703
    %v808 = vpack.c.b16 %v706, %v705
    %v809 = vpack.c.b16 %v708, %v707
    %v810 = vpack.c.b16 %v710, %v709
    %v811 = vpack.c.b16 %v712, %v711
    %v812 = vpack.c.b16 %v714, %v713
    %vm911 = vcmask 261120
    %v913 = vsel %vm911, %v301, 0
    %915 = vmatprep.subr.bf16.mxu0 0
    %916 = vmatpush1.bf16.msra.mxu0 %v722
    %917 = vmatprep.subr.bf16.mxu0 0
    %918 = vmatpush1.bf16.msra.mxu0 %v721
    %919 = vmatprep.subr.bf16.mxu0 0
    %920 = vmatpush1.bf16.msra.mxu0 %v720
    %921 = vmatprep.subr.bf16.mxu0 0
    %922 = vmatpush1.bf16.msra.mxu0 %v719
    %923 = vmatprep.subr.bf16.mxu0 0
    %924 = vmatpush1.bf16.msra.mxu0 %v718
    %925 = vmatprep.subr.bf16.mxu0 0
    %926 = vmatpush1.bf16.msra.mxu0 %v717
    %927 = vmatprep.subr.bf16.mxu0 0
    %928 = vmatpush1.bf16.msra.mxu0 %v716
    %929 = vmatprep.subr.bf16.mxu0 0
    %930 = vmatpush1.bf16.msra.mxu0 %v715
    %931 = vmatprep.subr.bf16.mxu0 0
    %932 = vmatpush2.bf16.msra.mxu0 %v730
    %933 = vmatprep.subr.bf16.mxu0 0
    %934 = vmatpush2.bf16.msra.mxu0 %v729
    %935 = vmatprep.subr.bf16.mxu0 0
    %936 = vmatpush2.bf16.msra.mxu0 %v728
    %937 = vmatprep.subr.bf16.mxu0 0
    %938 = vmatpush2.bf16.msra.mxu0 %v727
    %939 = vmatprep.subr.bf16.mxu0 0
    %940 = vmatpush2.bf16.msra.mxu0 %v726
    %941 = vmatprep.subr.bf16.mxu0 0
    %942 = vmatpush2.bf16.msra.mxu0 %v725
    %943 = vmatprep.subr.bf16.mxu0 0
    %944 = vmatpush2.bf16.msra.mxu0 %v724
    %945 = vmatprep.subr.bf16.mxu0 0
    %946 = vmatpush2.bf16.msra.mxu0 %v723
    %947 = vmatprep.mubr.bf16.mxu0 %v260
    %948 = vmatmul.mubr.bf16.gmra.mxu0 %v246
    %v949 = vpop.f32.mrf.mxu0
    %v950 = vadd.f32 %v219, %v949
    %v951 = vpop.f32.mrf.mxu0
    %v952 = vpop.f32.mrf.mxu0
    %v953 = vpop.f32.mrf.mxu0
    %954 = vdwg.mxu0
    %955 = vmatprep.subr.bf16.mxu0 0
    %956 = vmatpush1.bf16.msra.mxu0 %v738
    %957 = vmatprep.subr.bf16.mxu0 0
    %958 = vmatpush1.bf16.msra.mxu0 %v737
    %959 = vmatprep.subr.bf16.mxu0 0
    %960 = vmatpush1.bf16.msra.mxu0 %v736
    %961 = vmatprep.subr.bf16.mxu0 0
    %962 = vmatpush1.bf16.msra.mxu0 %v735
    %963 = vmatprep.subr.bf16.mxu0 0
    %964 = vmatpush1.bf16.msra.mxu0 %v734
    %965 = vmatprep.subr.bf16.mxu0 0
    %966 = vmatpush1.bf16.msra.mxu0 %v733
    %967 = vmatprep.subr.bf16.mxu0 0
    %968 = vmatpush1.bf16.msra.mxu0 %v732
    %969 = vmatprep.subr.bf16.mxu0 0
    %970 = vmatpush1.bf16.msra.mxu0 %v731
    %971 = vmatprep.subr.bf16.mxu0 0
    %972 = vmatpush2.bf16.msra.mxu0 %v746
    %973 = vmatprep.subr.bf16.mxu0 0
    %974 = vmatpush2.bf16.msra.mxu0 %v745
    %975 = vmatprep.subr.bf16.mxu0 0
    %976 = vmatpush2.bf16.msra.mxu0 %v744
    %977 = vmatprep.subr.bf16.mxu0 0
    %978 = vmatpush2.bf16.msra.mxu0 %v743
    %979 = vmatprep.subr.bf16.mxu0 0
    %980 = vmatpush2.bf16.msra.mxu0 %v742
    %981 = vmatprep.subr.bf16.mxu0 0
    %982 = vmatpush2.bf16.msra.mxu0 %v741
    %983 = vmatprep.subr.bf16.mxu0 0
    %984 = vmatpush2.bf16.msra.mxu0 %v740
    %985 = vmatprep.subr.bf16.mxu0 0
    %986 = vmatpush2.bf16.msra.mxu0 %v739
    %987 = vmatprep.mubr.bf16.mxu0 %v270
    %988 = vmatmul.mubr.bf16.gmra.mxu0 %v268
    %v989 = vpop.f32.mrf.mxu0
    %v990 = vadd.f32 %v950, %v989
    %v991 = vpop.f32.mrf.mxu0
    %v992 = vpop.f32.mrf.mxu0
    %v993 = vpop.f32.mrf.mxu0
    %994 = vdwg.mxu0
    %995 = vmatprep.subr.bf16.mxu0 0
    %996 = vmatpush1.bf16.msra.mxu0 %v754
    %997 = vmatprep.subr.bf16.mxu0 0
    %998 = vmatpush1.bf16.msra.mxu0 %v753
    %999 = vmatprep.subr.bf16.mxu0 0
    %1000 = vmatpush1.bf16.msra.mxu0 %v752
    %1001 = vmatprep.subr.bf16.mxu0 0
    %1002 = vmatpush1.bf16.msra.mxu0 %v751
    %1003 = vmatprep.subr.bf16.mxu0 0
    %1004 = vmatpush1.bf16.msra.mxu0 %v750
    %1005 = vmatprep.subr.bf16.mxu0 0
    %1006 = vmatpush1.bf16.msra.mxu0 %v749
    %1007 = vmatprep.subr.bf16.mxu0 0
    %1008 = vmatpush1.bf16.msra.mxu0 %v748
    %1009 = vmatprep.subr.bf16.mxu0 0
    %1010 = vmatpush1.bf16.msra.mxu0 %v747
    %1011 = vmatprep.subr.bf16.mxu0 0
    %1012 = vmatpush2.bf16.msra.mxu0 %v762
    %1013 = vmatprep.subr.bf16.mxu0 0
    %1014 = vmatpush2.bf16.msra.mxu0 %v761
    %1015 = vmatprep.subr.bf16.mxu0 0
    %1016 = vmatpush2.bf16.msra.mxu0 %v760
    %1017 = vmatprep.subr.bf16.mxu0 0
    %1018 = vmatpush2.bf16.msra.mxu0 %v759
    %1019 = vmatprep.subr.bf16.mxu0 0
    %1020 = vmatpush2.bf16.msra.mxu0 %v758
    %1021 = vmatprep.subr.bf16.mxu0 0
    %1022 = vmatpush2.bf16.msra.mxu0 %v757
    %1023 = vmatprep.subr.bf16.mxu0 0
    %1024 = vmatpush2.bf16.msra.mxu0 %v756
    %1025 = vmatprep.subr.bf16.mxu0 0
    %1026 = vmatpush2.bf16.msra.mxu0 %v755
    %1027 = vmatprep.mubr.bf16.mxu0 %v267
    %1028 = vmatmul.mubr.bf16.gmra.mxu0 %v253
    %v1029 = vpop.f32.mrf.mxu0
    %v1030 = vadd.f32 %v990, %v1029
    %v1031 = vpop.f32.mrf.mxu0
    %v1032 = vpop.f32.mrf.mxu0
    %v1033 = vpop.f32.mrf.mxu0
    %1034 = vdwg.mxu0
    %1035 = vmatprep.subr.bf16.mxu0 0
    %1036 = vmatpush1.bf16.msra.mxu0 %v770
    %1037 = vmatprep.subr.bf16.mxu0 0
    %1038 = vmatpush1.bf16.msra.mxu0 %v769
    %1039 = vmatprep.subr.bf16.mxu0 0
    %1040 = vmatpush1.bf16.msra.mxu0 %v768
    %1041 = vmatprep.subr.bf16.mxu0 0
    %1042 = vmatpush1.bf16.msra.mxu0 %v767
    %1043 = vmatprep.subr.bf16.mxu0 0
    %1044 = vmatpush1.bf16.msra.mxu0 %v766
    %1045 = vmatprep.subr.bf16.mxu0 0
    %1046 = vmatpush1.bf16.msra.mxu0 %v765
    %1047 = vmatprep.subr.bf16.mxu0 0
    %1048 = vmatpush1.bf16.msra.mxu0 %v764
    %1049 = vmatprep.subr.bf16.mxu0 0
    %1050 = vmatpush1.bf16.msra.mxu0 %v763
    %1051 = vmatprep.subr.bf16.mxu0 0
    %1052 = vmatpush2.bf16.msra.mxu0 %v778
    %1053 = vmatprep.subr.bf16.mxu0 0
    %1054 = vmatpush2.bf16.msra.mxu0 %v777
    %1055 = vmatprep.subr.bf16.mxu0 0
    %1056 = vmatpush2.bf16.msra.mxu0 %v776
    %1057 = vmatprep.subr.bf16.mxu0 0
    %1058 = vmatpush2.bf16.msra.mxu0 %v775
    %1059 = vmatprep.subr.bf16.mxu0 0
    %1060 = vmatpush2.bf16.msra.mxu0 %v774
    %1061 = vmatprep.subr.bf16.mxu0 0
    %1062 = vmatpush2.bf16.msra.mxu0 %v773
    %1063 = vmatprep.subr.bf16.mxu0 0
    %1064 = vmatpush2.bf16.msra.mxu0 %v772
    %1065 = vmatprep.subr.bf16.mxu0 0
    %1066 = vmatpush2.bf16.msra.mxu0 %v771
    %1067 = vmatprep.mubr.bf16.mxu0 %v271
    %1068 = vmatmul.mubr.bf16.gmra.mxu0 %v269
    %v1069 = vpop.f32.mrf.mxu0
    %v1070 = vadd.f32 %v1030, %v1069
    %v1071 = vpop.f32.mrf.mxu0
    %v1072 = vpop.f32.mrf.mxu0
    %v1073 = vpop.f32.mrf.mxu0
    %1074 = vdwg.mxu0
    %1075 = vmatprep.subr.bf16.mxu0 0
    %1076 = vmatpush1.bf16.msra.mxu0 %v786
    %1077 = vmatprep.subr.bf16.mxu0 0
    %1078 = vmatpush1.bf16.msra.mxu0 %v785
    %1079 = vmatprep.subr.bf16.mxu0 0
    %1080 = vmatpush1.bf16.msra.mxu0 %v784
    %1081 = vmatprep.subr.bf16.mxu0 0
    %1082 = vmatpush1.bf16.msra.mxu0 %v783
    %1083 = vmatprep.subr.bf16.mxu0 0
    %1084 = vmatpush1.bf16.msra.mxu0 %v782
    %1085 = vmatprep.subr.bf16.mxu0 0
    %1086 = vmatpush1.bf16.msra.mxu0 %v781
    %1087 = vmatprep.subr.bf16.mxu0 0
    %1088 = vmatpush1.bf16.msra.mxu0 %v780
    %1089 = vmatprep.subr.bf16.mxu0 0
    %1090 = vmatpush1.bf16.msra.mxu0 %v779
    %1091 = vmatprep.subr.bf16.mxu0 0
    %1092 = vmatpush2.bf16.msra.mxu0 %v794
    %1093 = vmatprep.subr.bf16.mxu0 0
    %1094 = vmatpush2.bf16.msra.mxu0 %v793
    %1095 = vmatprep.subr.bf16.mxu0 0
    %1096 = vmatpush2.bf16.msra.mxu0 %v792
    %1097 = vmatprep.subr.bf16.mxu0 0
    %1098 = vmatpush2.bf16.msra.mxu0 %v791
    %1099 = vmatprep.subr.bf16.mxu0 0
    %1100 = vmatpush2.bf16.msra.mxu0 %v790
    %1101 = vmatprep.subr.bf16.mxu0 0
    %1102 = vmatpush2.bf16.msra.mxu0 %v789
    %1103 = vmatprep.subr.bf16.mxu0 0
    %1104 = vmatpush2.bf16.msra.mxu0 %v788
    %1105 = vmatprep.subr.bf16.mxu0 0
    %1106 = vmatpush2.bf16.msra.mxu0 %v787
    %1107 = vmatprep.mubr.bf16.mxu0 %v308
    %1108 = vmatmul.mubr.bf16.gmra.mxu0 %v294
    %v1109 = vpop.f32.mrf.mxu0
    %v1110 = vadd.f32 %v1070, %v1109
    %v1111 = vpop.f32.mrf.mxu0
    %v1112 = vpop.f32.mrf.mxu0
    %v1113 = vpop.f32.mrf.mxu0
    %1114 = vdwg.mxu0
    %1115 = vmatprep.subr.bf16.mxu0 0
    %1116 = vmatpush1.bf16.msra.mxu0 %v802
    %1117 = vmatprep.subr.bf16.mxu0 0
    %1118 = vmatpush1.bf16.msra.mxu0 %v801
    %1119 = vmatprep.subr.bf16.mxu0 0
    %1120 = vmatpush1.bf16.msra.mxu0 %v800
    %1121 = vmatprep.subr.bf16.mxu0 0
    %1122 = vmatpush1.bf16.msra.mxu0 %v799
    %1123 = vmatprep.subr.bf16.mxu0 0
    %1124 = vmatpush1.bf16.msra.mxu0 %v798
    %1125 = vmatprep.subr.bf16.mxu0 0
    %1126 = vmatpush1.bf16.msra.mxu0 %v797
    %1127 = vmatprep.subr.bf16.mxu0 0
    %1128 = vmatpush1.bf16.msra.mxu0 %v796
    %1129 = vmatprep.subr.bf16.mxu0 0
    %1130 = vmatpush1.bf16.msra.mxu0 %v795
    %1131 = vmatprep.subr.bf16.mxu0 0
    %1132 = vmatpush2.bf16.msra.mxu0 %v810
    %1133 = vmatprep.subr.bf16.mxu0 0
    %1134 = vmatpush2.bf16.msra.mxu0 %v809
    %1135 = vmatprep.subr.bf16.mxu0 0
    %1136 = vmatpush2.bf16.msra.mxu0 %v808
    %1137 = vmatprep.subr.bf16.mxu0 0
    %1138 = vmatpush2.bf16.msra.mxu0 %v807
    %1139 = vmatprep.subr.bf16.mxu0 0
    %1140 = vmatpush2.bf16.msra.mxu0 %v806
    %1141 = vmatprep.subr.bf16.mxu0 0
    %1142 = vmatpush2.bf16.msra.mxu0 %v805
    %1143 = vmatprep.subr.bf16.mxu0 0
    %1144 = vmatpush2.bf16.msra.mxu0 %v804
    %1145 = vmatprep.subr.bf16.mxu0 0
    %1146 = vmatpush2.bf16.msra.mxu0 %v803
    %1147 = vmatprep.mubr.bf16.mxu0 %v310
    %1148 = vmatmul.mubr.bf16.gmra.mxu0 %v309
    %v1149 = vpop.f32.mrf.mxu0
    %v1150 = vadd.f32 %v1110, %v1149
    %v1151 = vpop.f32.mrf.mxu0
    %v1152 = vpop.f32.mrf.mxu0
    %v1153 = vpop.f32.mrf.mxu0
    %1154 = vdwg.mxu0
    %1155 = vmatprep.subr.bf16.mxu0 0
    %1156 = vmatpush1.bf16.msra.mxu0 0
    %1157 = vmatprep.subr.bf16.mxu0 0
    %1158 = vmatpush1.bf16.msra.mxu0 0
    %1159 = vmatprep.subr.bf16.mxu0 0
    %1160 = vmatpush1.bf16.msra.mxu0 0
    %1161 = vmatprep.subr.bf16.mxu0 0
    %1162 = vmatpush1.bf16.msra.mxu0 0
    %1163 = vmatprep.subr.bf16.mxu0 0
    %1164 = vmatpush1.bf16.msra.mxu0 0
    %1165 = vmatprep.subr.bf16.mxu0 0
    %1166 = vmatpush1.bf16.msra.mxu0 0
    %1167 = vmatprep.subr.bf16.mxu0 0
    %1168 = vmatpush1.bf16.msra.mxu0 %v812
    %1169 = vmatprep.subr.bf16.mxu0 0
    %1170 = vmatpush1.bf16.msra.mxu0 %v811
    %1171 = vmatprep.subr.bf16.mxu0 0
    %1172 = vmatpush2.bf16.msra.mxu0 0
    %1173 = vmatprep.subr.bf16.mxu0 0
    %1174 = vmatpush2.bf16.msra.mxu0 0
    %1175 = vmatprep.subr.bf16.mxu0 0
    %1176 = vmatpush2.bf16.msra.mxu0 0
    %1177 = vmatprep.subr.bf16.mxu0 0
    %1178 = vmatpush2.bf16.msra.mxu0 0
    %1179 = vmatprep.subr.bf16.mxu0 0
    %1180 = vmatpush2.bf16.msra.mxu0 0
    %1181 = vmatprep.subr.bf16.mxu0 0
    %1182 = vmatpush2.bf16.msra.mxu0 0
    %1183 = vmatprep.subr.bf16.mxu0 0
    %1184 = vmatpush2.bf16.msra.mxu0 0
    %1185 = vmatprep.subr.bf16.mxu0 0
    %1186 = vmatpush2.bf16.msra.mxu0 0
    %1187 = vmatprep.mubr.bf16.mxu0 0
    %1188 = vmatmul.mubr.bf16.gmra.mxu0 %v913
    %v1189 = vpop.f32.mrf.mxu0
    %v1190 = vadd.f32 %v1150, %v1189
    %v1191 = vpop.f32.mrf.mxu0
    %v1192 = vpop.f32.mrf.mxu0
    %v1193 = vpop.f32.mrf.mxu0
    %1194 = vdwg.mxu0
    %vm1195 = vcmask 74752
    %1196 = vst.msk [vmem:[#allocation2] sm:$0x3] %vm1195, %v1190
    // Predicated region
    $region14: #{net_forward.5} parent=1 // pred_check
      _
    $region15: #{net_forward.5} parent=1 // pred_check_branch
      %1198 = sbr.rel (0) target = $region17
    $region16: #{net_forward.5} parent=1 // pred_region
      %s1200 = ssub.s32 32, 32
      %1201 = vsyncadd [#allocation3], %s1200
      %s1203 = sshll.u32 [#allocation2], 4
      %s1204 = int_to_ptr.vmem [resolvable:$true] %s1203
      %1206 = dma.vmem_to_hbm [thread:$0]  %s1204, 32, %s3, [#allocation3]
    $region17: #{net_forward.5} parent=1 // pred_fallthru
      _
    // Predicated region
    $region18: #{net_forward.5} parent=1 // pred_check
      _
    $region19: #{net_forward.5} parent=1 // pred_check_branch
      %1208 = sbr.rel (0) target = $region21
    $region20: #{net_forward.5} parent=1 // pred_region
      %1209 = dma.done [#allocation3], 32
    $region21: #{net_forward.5} parent=1 // pred_fallthru
      _
    %1210 = vsyncpa [#allocation3], 1

</llo_original>
